<compile_context>
chip_gen: v7x
topology: tpu7x:2x2x1
jax: 0.10.0
libtpu: 0.0.40
codegen_flags: <defaults>
</compile_context>

<pallas_src>
import functools

import jax
import jax.numpy as jnp
import numpy as np
from jax.experimental import pallas as pl
from jax.experimental.pallas import tpu as pltpu


# ---------------------------------------------------------------------------
# In-kernel helper: 3x3 VALID conv (no bias) + folded BN + ReLU, flattened rows.
#   in_ref : (rows_padded, cin)  f32, rows = h*width + w (row-major flatten)
#   w_ref  : (kh*kw, cin, cout)  bf16
#   returns (m_rows, cout) f32; row h*width+w is the true conv output when
#   w < width-kw+1, finite garbage otherwise.
# ---------------------------------------------------------------------------
def _conv_bn_relu_flat(in_ref, w_ref, scale_ref, bias_ref, m_rows, width, kh, kw):
    cout = w_ref.shape[-1]
    acc = jnp.zeros((m_rows, cout), jnp.float32)
    for ky in range(kh):
        for kx in range(kw):
            off = ky * width + kx
            patch = in_ref[off:off + m_rows, :].astype(jnp.bfloat16)   # (m_rows, cin)
            acc = acc + jnp.dot(patch, w_ref[ky * kw + kx],            # MXU
                                preferred_element_type=jnp.float32)
    y = acc * scale_ref[...] + bias_ref[...]
    return jnp.maximum(y, 0.0)


# ---------------------------------------------------------------------------
# Fused kernel: conv_kernel, conv_search, xcorr_depthwise, head  (one batch item).
# ---------------------------------------------------------------------------
def _dwxcorr_fused_kernel(z_ref, x_ref,
                          wk_ref, kscale_ref, kbias_ref,
                          ws_ref, sscale_ref, sbias_ref,
                          w1_ref, s1_ref, b1_ref,
                          w2_ref, b2_ref,
                          o_ref,
                          kf_scr, sf_scr,
                          *, kh, kw, wz, wx, hok, wok):
    mo = o_ref.shape[0]          # ho_xcorr * wx   (valid cols: w < wo_xcorr)
    hidden = kf_scr.shape[1]

    # --- template / search 3x3 conv + BN + ReLU (9 MXU taps each) ----------
    kf_scr[...] = _conv_bn_relu_flat(z_ref, wk_ref, kscale_ref, kbias_ref,
                                     kf_scr.shape[0], wz, kh, kw)
    sf_scr[...] = _conv_bn_relu_flat(x_ref, ws_ref, sscale_ref, sbias_ref,
                                     sf_scr.shape[0], wx, kh, kw)

    # --- depthwise cross-correlation: hok*wok full-lane-width VPU MACs -----
    acc = jnp.zeros((mo, hidden), jnp.float32)
    for p in range(hok):
        for q in range(wok):
            s_off = p * wx + q
            k_off = p * wz + q
            acc = acc + (sf_scr[s_off:s_off + mo, :]
                         * kf_scr[k_off:k_off + 1, :])

    # --- head: 1x1 conv + BN + ReLU + 1x1 conv (+bias), two MXU matmuls ----
    h = jnp.dot(acc.astype(jnp.bfloat16), w1_ref[...],
                preferred_element_type=jnp.float32)
    h = jnp.maximum(h * s1_ref[...] + b1_ref[...], 0.0)
    out = jnp.dot(h.astype(jnp.bfloat16), w2_ref[...],
                  preferred_element_type=jnp.float32) + b2_ref[...]
    o_ref[...] = out.astype(o_ref.dtype)          # lane-dense (128-col) store


# ---------------------------------------------------------------------------
# Wrapper: NCHW in / NCHW out, matching the PyTorch module.
# ---------------------------------------------------------------------------
def depthwise_xcorr_forward(params, kernel_nchw, search_nchw, kernel_size=3):
    kh = kw = kernel_size
    B, cin, Hz, Wz = kernel_nchw.shape
    _, _, Hx, Wx = search_nchw.shape
    hidden = params["scale_k"].shape[0]
    out_ch = params["b2"].shape[0]

    hok, wok = Hz - kh + 1, Wz - kw + 1          # template feature spatial
    hos, wos = Hx - kh + 1, Wx - kw + 1          # search feature spatial
    ho, wo = hos - hok + 1, wos - wok + 1        # xcorr / head output spatial

    # flattened-spatial row counts
    mk = hok * Wz                 # template conv rows computed (covers all kf taps)
    ms = (hos + 1) * Wx           # search conv rows computed (+slack for xcorr taps)
    mo = ho * Wx                  # xcorr/head rows computed (valid cols w < wo)

    rnd8 = lambda n: ((n + 7) // 8) * 8
    rz_rows = rnd8(mk + (kh - 1) * Wz + (kw - 1))   # padded flat input rows (template)
    rx_rows = rnd8(ms + (kh - 1) * Wx + (kw - 1))   # padded flat input rows (search)

    # --- wrapper-side layout plumbing (plain JAX, tiny tensors) -------------
    def flatten_rows(inp_nchw, rows):
        x = jnp.transpose(inp_nchw, (0, 2, 3, 1))            # NCHW -> NHWC
        b, h, w, c = x.shape
        x = x.reshape(b, h * w, c)
        return jnp.pad(x, ((0, 0), (0, rows - h * w), (0, 0)))

    z_flat = flatten_rows(kernel_nchw, rz_rows)               # (B, rz_rows, cin)
    x_flat = flatten_rows(search_nchw, rx_rows)               # (B, rx_rows, cin)

    def conv_taps(w_oihw):   # (cout, cin, kh, kw) -> (kh*kw, cin, cout) bf16
        return (jnp.transpose(w_oihw, (2, 3, 1, 0))
                .reshape(kh * kw, cin, -1).astype(jnp.bfloat16))

    wk_tap = conv_taps(params["wk_oihw"])
    ws_tap = conv_taps(params["ws_oihw"])
    w1_io = jnp.transpose(params["w1_oihw"][:, :, 0, 0], (1, 0)).astype(jnp.bfloat16)

    out_pad = ((out_ch + 127) // 128) * 128                   # lane-dense output width
    w2_io = jnp.transpose(params["w2_oihw"][:, :, 0, 0], (1, 0))
    w2_p = (jnp.zeros((hidden, out_pad), jnp.float32)
            .at[:, :out_ch].set(w2_io).astype(jnp.bfloat16))
    b2_p = jnp.zeros((1, out_pad), jnp.float32).at[:, :out_ch].set(params["b2"][None, :])

    row2 = lambda v: v.reshape(1, -1).astype(jnp.float32)

    kernel = functools.partial(_dwxcorr_fused_kernel,
                               kh=kh, kw=kw, wz=Wz, wx=Wx, hok=hok, wok=wok)

    out_full = pl.pallas_call(
        kernel,
        out_shape=jax.ShapeDtypeStruct((B, mo, out_pad), jnp.float32),
        grid=(B,),
        in_specs=[
            pl.BlockSpec((None, rz_rows, cin), lambda b: (b, 0, 0)),
            pl.BlockSpec((None, rx_rows, cin), lambda b: (b, 0, 0)),
            pl.BlockSpec((kh * kw, cin, hidden), lambda b: (0, 0, 0)),
            pl.BlockSpec((1, hidden), lambda b: (0, 0)),
            pl.BlockSpec((1, hidden), lambda b: (0, 0)),
            pl.BlockSpec((kh * kw, cin, hidden), lambda b: (0, 0, 0)),
            pl.BlockSpec((1, hidden), lambda b: (0, 0)),
            pl.BlockSpec((1, hidden), lambda b: (0, 0)),
            pl.BlockSpec((hidden, hidden), lambda b: (0, 0)),
            pl.BlockSpec((1, hidden), lambda b: (0, 0)),
            pl.BlockSpec((1, hidden), lambda b: (0, 0)),
            pl.BlockSpec((hidden, out_pad), lambda b: (0, 0)),
            pl.BlockSpec((1, out_pad), lambda b: (0, 0)),
        ],
        out_specs=pl.BlockSpec((None, mo, out_pad), lambda b: (b, 0, 0)),
        scratch_shapes=[
            pltpu.VMEM((mk, hidden), jnp.float32),   # template feature (kf)
            pltpu.VMEM((ms, hidden), jnp.float32),   # search feature (sf)
        ],
        compiler_params=pltpu.CompilerParams(dimension_semantics=("parallel",)),
    )(z_flat, x_flat,
      wk_tap, row2(params["scale_k"]), row2(params["bias_k"]),
      ws_tap, row2(params["scale_s"]), row2(params["bias_s"]),
      w1_io, row2(params["scale_1"]), row2(params["bias_1"]),
      w2_p, b2_p)

    # (B, ho*Wx, out_pad) -> (B, ho, Wx, out_pad) -> crop valid cols/channels -> NCHW
    out = out_full.reshape(B, ho, Wx, out_pad)[:, :, :wo, :out_ch]
    return jnp.transpose(out, (0, 3, 1, 2))


# ---------------------------------------------------------------------------
# Deterministic synthetic parameters (folded eval-mode BatchNorm).
# ---------------------------------------------------------------------------
def _fold_bn(gamma, beta, mean, var, eps=1e-5):
    scale = gamma / jnp.sqrt(var + eps)
    return scale, beta - mean * scale


def init_params(key, in_channels, hidden, out_channels, kernel_size=3):
    ks = jax.random.split(key, 9)

    def bn(k, n):
        k1, k2, k3, k4 = jax.random.split(k, 4)
        gamma = 1.0 + 0.1 * jax.random.normal(k1, (n,), jnp.float32)
        beta = 0.1 * jax.random.normal(k2, (n,), jnp.float32)
        mean = 0.1 * jax.random.normal(k3, (n,), jnp.float32)
        var = 0.5 + jnp.abs(jax.random.normal(k4, (n,), jnp.float32))
        return _fold_bn(gamma, beta, mean, var)

    wk = 0.1 * jax.random.normal(ks[0], (hidden, in_channels, kernel_size, kernel_size), jnp.float32)
    ws = 0.1 * jax.random.normal(ks[1], (hidden, in_channels, kernel_size, kernel_size), jnp.float32)
    w1 = 0.1 * jax.random.normal(ks[2], (hidden, hidden, 1, 1), jnp.float32)
    w2 = 0.1 * jax.random.normal(ks[3], (out_channels, hidden, 1, 1), jnp.float32)
    b2 = 0.1 * jax.random.normal(ks[4], (out_channels,), jnp.float32)
    scale_k, bias_k = bn(ks[5], hidden)
    scale_s, bias_s = bn(ks[6], hidden)
    scale_1, bias_1 = bn(ks[7], hidden)

    return dict(
        wk_oihw=wk, ws_oihw=ws, w1_oihw=w1, w2_oihw=w2, b2=b2,
        scale_k=scale_k, bias_k=bias_k,
        scale_s=scale_s, bias_s=bias_s,
        scale_1=scale_1, bias_1=bias_1,
    )


# ---------------------------------------------------------------------------
# Pure-JAX reference (NCHW, mirrors the PyTorch module with eval-mode BN).
# ---------------------------------------------------------------------------
def reference_forward(params, kernel_nchw, search_nchw):
    prec = jax.lax.Precision.HIGHEST

    def conv_bn_relu(inp, w, scale, bias):
        y = jax.lax.conv_general_dilated(
            inp, w, (1, 1), "VALID",
            dimension_numbers=("NCHW", "OIHW", "NCHW"), precision=prec)
        y = y * scale[None, :, None, None] + bias[None, :, None, None]
        return jnp.maximum(y, 0.0)

    kf = conv_bn_relu(kernel_nchw, params["wk_oihw"], params["scale_k"], params["bias_k"])
    sf = conv_bn_relu(search_nchw, params["ws_oihw"], params["scale_s"], params["bias_s"])

    B, C, Hs, Ws = sf.shape
    xr = sf.reshape(1, B * C, Hs, Ws)
    kr = kf.reshape(B * C, 1, kf.shape[2], kf.shape[3])
    feat = jax.lax.conv_general_dilated(
        xr, kr, (1, 1), "VALID",
        dimension_numbers=("NCHW", "OIHW", "NCHW"),
        feature_group_count=B * C, precision=prec)
    feat = feat.reshape(B, C, feat.shape[2], feat.shape[3])

    w1 = params["w1_oihw"][:, :, 0, 0]
    w2 = params["w2_oihw"][:, :, 0, 0]
    h = jnp.einsum("oc,bchw->bohw", w1, feat, precision=prec)
    h = jnp.maximum(h * params["scale_1"][None, :, None, None]
                    + params["bias_1"][None, :, None, None], 0.0)
    o = jnp.einsum("oc,bchw->bohw", w2, h, precision=prec)
    return o + params["b2"][None, :, None, None]


if __name__ == "__main__":
    key = jax.random.PRNGKey(0)
    k_z, k_x, k_p = jax.random.split(key, 3)

    B, in_channels, hidden, out_channels = 2, 4, 32, 8
    # "kernel" = template branch input, "search" = search branch input (NCHW)
    z = jax.random.normal(k_z, (B, in_channels, 8, 8), jnp.float32)
    x = jax.random.normal(k_x, (B, in_channels, 16, 16), jnp.float32)

    params = init_params(k_p, in_channels, hidden, out_channels, kernel_size=3)

    fwd = jax.jit(depthwise_xcorr_forward)
    out = jax.block_until_ready(fwd(params, z, x))

    # template feat 6x6, search feat 14x14 -> xcorr 9x9 -> head output 9x9
    assert out.shape == (B, out_channels, 9, 9), out.shape

    ref = reference_forward(params, z, x)
    # bf16 MXU operands (f32 accumulation) vs an f32 HIGHEST-precision reference:
    # use a correspondingly looser tolerance (typical error ~2e-3).
    np.testing.assert_allclose(np.asarray(out), np.asarray(ref),
                               rtol=3e-2, atol=3e-2)
    print("KERNEL_OK")
</pallas_src>

<mosaic_0001>
module attributes {stable_mosaic.version = 11 : i64} {
  func.func @_dwxcorr_fused_kernel(%arg0: i32, %arg1: memref<1x72x4xf32, #tpu.memory_space<vmem>>, %arg2: memref<1x280x4xf32, #tpu.memory_space<vmem>>, %arg3: memref<9x4x32xbf16, #tpu.memory_space<vmem>>, %arg4: memref<1x32xf32, #tpu.memory_space<vmem>>, %arg5: memref<1x32xf32, #tpu.memory_space<vmem>>, %arg6: memref<9x4x32xbf16, #tpu.memory_space<vmem>>, %arg7: memref<1x32xf32, #tpu.memory_space<vmem>>, %arg8: memref<1x32xf32, #tpu.memory_space<vmem>>, %arg9: memref<32x32xbf16, #tpu.memory_space<vmem>>, %arg10: memref<1x32xf32, #tpu.memory_space<vmem>>, %arg11: memref<1x32xf32, #tpu.memory_space<vmem>>, %arg12: memref<32x128xbf16, #tpu.memory_space<vmem>>, %arg13: memref<1x128xf32, #tpu.memory_space<vmem>>, %arg14: memref<1x144x128xf32, #tpu.memory_space<vmem>>, %arg15: memref<48x32xf32, #tpu.memory_space<vmem>>, %arg16: memref<240x32xf32, #tpu.memory_space<vmem>>) attributes {dimension_semantics = [#tpu.dimension_semantics<parallel>], iteration_bounds = array<i64: 2>, scalar_prefetch = 0 : i64, scratch_operands = 2 : i64, tpu.core_type = #tpu.core_type<tc>, window_params = [{transform_indices = @transform_0, window_bounds = array<i64: 1, 72, 4>}, {transform_indices = @transform_1, window_bounds = array<i64: 1, 280, 4>}, {pipeline_mode = #tpu.pipeline_mode<synchronous>, transform_indices = @transform_2, window_bounds = array<i64: 9, 4, 32>}, {pipeline_mode = #tpu.pipeline_mode<synchronous>, transform_indices = @transform_3, window_bounds = array<i64: 1, 32>}, {pipeline_mode = #tpu.pipeline_mode<synchronous>, transform_indices = @transform_4, window_bounds = array<i64: 1, 32>}, {pipeline_mode = #tpu.pipeline_mode<synchronous>, transform_indices = @transform_5, window_bounds = array<i64: 9, 4, 32>}, {pipeline_mode = #tpu.pipeline_mode<synchronous>, transform_indices = @transform_6, window_bounds = array<i64: 1, 32>}, {pipeline_mode = #tpu.pipeline_mode<synchronous>, transform_indices = @transform_7, window_bounds = array<i64: 1, 32>}, {pipeline_mode = #tpu.pipeline_mode<synchronous>, transform_indices = @transform_8, window_bounds = array<i64: 32, 32>}, {pipeline_mode = #tpu.pipeline_mode<synchronous>, transform_indices = @transform_9, window_bounds = array<i64: 1, 32>}, {pipeline_mode = #tpu.pipeline_mode<synchronous>, transform_indices = @transform_10, window_bounds = array<i64: 1, 32>}, {pipeline_mode = #tpu.pipeline_mode<synchronous>, transform_indices = @transform_11, window_bounds = array<i64: 32, 128>}, {pipeline_mode = #tpu.pipeline_mode<synchronous>, transform_indices = @transform_12, window_bounds = array<i64: 1, 128>}, {transform_indices = @transform_13, window_bounds = array<i64: 1, 144, 128>}]} {
    %cst = arith.constant 0.000000e+00 : f32
    %0 = vector.broadcast %cst : f32 to vector<48x32xf32>
    %c0 = arith.constant 0 : index
    %c0_0 = arith.constant 0 : index
    %c0_1 = arith.constant 0 : index
    %1 = vector.load %arg1[%c0, %c0_0, %c0_1] : memref<1x72x4xf32, #tpu.memory_space<vmem>>, vector<1x48x4xf32>
    %2 = vector.shape_cast %1 : vector<1x48x4xf32> to vector<48x4xf32>
    %3 = arith.truncf %2 : vector<48x4xf32> to vector<48x4xbf16>
    %c0_2 = arith.constant 0 : index
    %c0_3 = arith.constant 0 : index
    %c0_4 = arith.constant 0 : index
    %4 = vector.load %arg3[%c0_2, %c0_3, %c0_4] : memref<9x4x32xbf16, #tpu.memory_space<vmem>>, vector<1x4x32xbf16>
    %5 = vector.shape_cast %4 : vector<1x4x32xbf16> to vector<4x32xbf16>
    %cst_5 = arith.constant dense<0.000000e+00> : vector<48x32xf32>
    %6 = tpu.matmul %3, %5, %cst_5 {dimension_numbers = #tpu.dot_dimension_numbers<[1], [0], [0], [1], [0, 0, 1, 1], [], []>} : vector<48x4xbf16>, vector<4x32xbf16>, vector<48x32xf32> -> vector<48x32xf32>
    %7 = arith.addf %0, %6 : vector<48x32xf32>
    %c0_6 = arith.constant 0 : index
    %c1 = arith.constant 1 : index
    %c0_7 = arith.constant 0 : index
    %8 = vector.load %arg1[%c0_6, %c1, %c0_7] : memref<1x72x4xf32, #tpu.memory_space<vmem>>, vector<1x48x4xf32>
    %9 = vector.shape_cast %8 : vector<1x48x4xf32> to vector<48x4xf32>
    %10 = arith.truncf %9 : vector<48x4xf32> to vector<48x4xbf16>
    %c1_8 = arith.constant 1 : index
    %c0_9 = arith.constant 0 : index
    %c0_10 = arith.constant 0 : index
    %11 = vector.load %arg3[%c1_8, %c0_9, %c0_10] : memref<9x4x32xbf16, #tpu.memory_space<vmem>>, vector<1x4x32xbf16>
    %12 = vector.shape_cast %11 : vector<1x4x32xbf16> to vector<4x32xbf16>
    %cst_11 = arith.constant dense<0.000000e+00> : vector<48x32xf32>
    %13 = tpu.matmul %10, %12, %cst_11 {dimension_numbers = #tpu.dot_dimension_numbers<[1], [0], [0], [1], [0, 0, 1, 1], [], []>} : vector<48x4xbf16>, vector<4x32xbf16>, vector<48x32xf32> -> vector<48x32xf32>
    %14 = arith.addf %7, %13 : vector<48x32xf32>
    %c0_12 = arith.constant 0 : index
    %c2 = arith.constant 2 : index
    %c0_13 = arith.constant 0 : index
    %15 = vector.load %arg1[%c0_12, %c2, %c0_13] : memref<1x72x4xf32, #tpu.memory_space<vmem>>, vector<1x48x4xf32>
    %16 = vector.shape_cast %15 : vector<1x48x4xf32> to vector<48x4xf32>
    %17 = arith.truncf %16 : vector<48x4xf32> to vector<48x4xbf16>
    %c2_14 = arith.constant 2 : index
    %c0_15 = arith.constant 0 : index
    %c0_16 = arith.constant 0 : index
    %18 = vector.load %arg3[%c2_14, %c0_15, %c0_16] : memref<9x4x32xbf16, #tpu.memory_space<vmem>>, vector<1x4x32xbf16>
    %19 = vector.shape_cast %18 : vector<1x4x32xbf16> to vector<4x32xbf16>
    %cst_17 = arith.constant dense<0.000000e+00> : vector<48x32xf32>
    %20 = tpu.matmul %17, %19, %cst_17 {dimension_numbers = #tpu.dot_dimension_numbers<[1], [0], [0], [1], [0, 0, 1, 1], [], []>} : vector<48x4xbf16>, vector<4x32xbf16>, vector<48x32xf32> -> vector<48x32xf32>
    %21 = arith.addf %14, %20 : vector<48x32xf32>
    %c0_18 = arith.constant 0 : index
    %c8 = arith.constant 8 : index
    %c0_19 = arith.constant 0 : index
    %22 = vector.load %arg1[%c0_18, %c8, %c0_19] : memref<1x72x4xf32, #tpu.memory_space<vmem>>, vector<1x48x4xf32>
    %23 = vector.shape_cast %22 : vector<1x48x4xf32> to vector<48x4xf32>
    %24 = arith.truncf %23 : vector<48x4xf32> to vector<48x4xbf16>
    %c3 = arith.constant 3 : index
    %c0_20 = arith.constant 0 : index
    %c0_21 = arith.constant 0 : index
    %25 = vector.load %arg3[%c3, %c0_20, %c0_21] : memref<9x4x32xbf16, #tpu.memory_space<vmem>>, vector<1x4x32xbf16>
    %26 = vector.shape_cast %25 : vector<1x4x32xbf16> to vector<4x32xbf16>
    %cst_22 = arith.constant dense<0.000000e+00> : vector<48x32xf32>
    %27 = tpu.matmul %24, %26, %cst_22 {dimension_numbers = #tpu.dot_dimension_numbers<[1], [0], [0], [1], [0, 0, 1, 1], [], []>} : vector<48x4xbf16>, vector<4x32xbf16>, vector<48x32xf32> -> vector<48x32xf32>
    %28 = arith.addf %21, %27 : vector<48x32xf32>
    %c0_23 = arith.constant 0 : index
    %c9 = arith.constant 9 : index
    %c0_24 = arith.constant 0 : index
    %29 = vector.load %arg1[%c0_23, %c9, %c0_24] : memref<1x72x4xf32, #tpu.memory_space<vmem>>, vector<1x48x4xf32>
    %30 = vector.shape_cast %29 : vector<1x48x4xf32> to vector<48x4xf32>
    %31 = arith.truncf %30 : vector<48x4xf32> to vector<48x4xbf16>
    %c4 = arith.constant 4 : index
    %c0_25 = arith.constant 0 : index
    %c0_26 = arith.constant 0 : index
    %32 = vector.load %arg3[%c4, %c0_25, %c0_26] : memref<9x4x32xbf16, #tpu.memory_space<vmem>>, vector<1x4x32xbf16>
    %33 = vector.shape_cast %32 : vector<1x4x32xbf16> to vector<4x32xbf16>
    %cst_27 = arith.constant dense<0.000000e+00> : vector<48x32xf32>
    %34 = tpu.matmul %31, %33, %cst_27 {dimension_numbers = #tpu.dot_dimension_numbers<[1], [0], [0], [1], [0, 0, 1, 1], [], []>} : vector<48x4xbf16>, vector<4x32xbf16>, vector<48x32xf32> -> vector<48x32xf32>
    %35 = arith.addf %28, %34 : vector<48x32xf32>
    %c0_28 = arith.constant 0 : index
    %c10 = arith.constant 10 : index
    %c0_29 = arith.constant 0 : index
    %36 = vector.load %arg1[%c0_28, %c10, %c0_29] : memref<1x72x4xf32, #tpu.memory_space<vmem>>, vector<1x48x4xf32>
    %37 = vector.shape_cast %36 : vector<1x48x4xf32> to vector<48x4xf32>
    %38 = arith.truncf %37 : vector<48x4xf32> to vector<48x4xbf16>
    %c5 = arith.constant 5 : index
    %c0_30 = arith.constant 0 : index
    %c0_31 = arith.constant 0 : index
    %39 = vector.load %arg3[%c5, %c0_30, %c0_31] : memref<9x4x32xbf16, #tpu.memory_space<vmem>>, vector<1x4x32xbf16>
    %40 = vector.shape_cast %39 : vector<1x4x32xbf16> to vector<4x32xbf16>
    %cst_32 = arith.constant dense<0.000000e+00> : vector<48x32xf32>
    %41 = tpu.matmul %38, %40, %cst_32 {dimension_numbers = #tpu.dot_dimension_numbers<[1], [0], [0], [1], [0, 0, 1, 1], [], []>} : vector<48x4xbf16>, vector<4x32xbf16>, vector<48x32xf32> -> vector<48x32xf32>
    %42 = arith.addf %35, %41 : vector<48x32xf32>
    %c0_33 = arith.constant 0 : index
    %c16 = arith.constant 16 : index
    %c0_34 = arith.constant 0 : index
    %43 = vector.load %arg1[%c0_33, %c16, %c0_34] : memref<1x72x4xf32, #tpu.memory_space<vmem>>, vector<1x48x4xf32>
    %44 = vector.shape_cast %43 : vector<1x48x4xf32> to vector<48x4xf32>
    %45 = arith.truncf %44 : vector<48x4xf32> to vector<48x4xbf16>
    %c6 = arith.constant 6 : index
    %c0_35 = arith.constant 0 : index
    %c0_36 = arith.constant 0 : index
    %46 = vector.load %arg3[%c6, %c0_35, %c0_36] : memref<9x4x32xbf16, #tpu.memory_space<vmem>>, vector<1x4x32xbf16>
    %47 = vector.shape_cast %46 : vector<1x4x32xbf16> to vector<4x32xbf16>
    %cst_37 = arith.constant dense<0.000000e+00> : vector<48x32xf32>
    %48 = tpu.matmul %45, %47, %cst_37 {dimension_numbers = #tpu.dot_dimension_numbers<[1], [0], [0], [1], [0, 0, 1, 1], [], []>} : vector<48x4xbf16>, vector<4x32xbf16>, vector<48x32xf32> -> vector<48x32xf32>
    %49 = arith.addf %42, %48 : vector<48x32xf32>
    %c0_38 = arith.constant 0 : index
    %c17 = arith.constant 17 : index
    %c0_39 = arith.constant 0 : index
    %50 = vector.load %arg1[%c0_38, %c17, %c0_39] : memref<1x72x4xf32, #tpu.memory_space<vmem>>, vector<1x48x4xf32>
    %51 = vector.shape_cast %50 : vector<1x48x4xf32> to vector<48x4xf32>
    %52 = arith.truncf %51 : vector<48x4xf32> to vector<48x4xbf16>
    %c7 = arith.constant 7 : index
    %c0_40 = arith.constant 0 : index
    %c0_41 = arith.constant 0 : index
    %53 = vector.load %arg3[%c7, %c0_40, %c0_41] : memref<9x4x32xbf16, #tpu.memory_space<vmem>>, vector<1x4x32xbf16>
    %54 = vector.shape_cast %53 : vector<1x4x32xbf16> to vector<4x32xbf16>
    %cst_42 = arith.constant dense<0.000000e+00> : vector<48x32xf32>
    %55 = tpu.matmul %52, %54, %cst_42 {dimension_numbers = #tpu.dot_dimension_numbers<[1], [0], [0], [1], [0, 0, 1, 1], [], []>} : vector<48x4xbf16>, vector<4x32xbf16>, vector<48x32xf32> -> vector<48x32xf32>
    %56 = arith.addf %49, %55 : vector<48x32xf32>
    %c0_43 = arith.constant 0 : index
    %c18 = arith.constant 18 : index
    %c0_44 = arith.constant 0 : index
    %57 = vector.load %arg1[%c0_43, %c18, %c0_44] : memref<1x72x4xf32, #tpu.memory_space<vmem>>, vector<1x48x4xf32>
    %58 = vector.shape_cast %57 : vector<1x48x4xf32> to vector<48x4xf32>
    %59 = arith.truncf %58 : vector<48x4xf32> to vector<48x4xbf16>
    %c8_45 = arith.constant 8 : index
    %c0_46 = arith.constant 0 : index
    %c0_47 = arith.constant 0 : index
    %60 = vector.load %arg3[%c8_45, %c0_46, %c0_47] : memref<9x4x32xbf16, #tpu.memory_space<vmem>>, vector<1x4x32xbf16>
    %61 = vector.shape_cast %60 : vector<1x4x32xbf16> to vector<4x32xbf16>
    %cst_48 = arith.constant dense<0.000000e+00> : vector<48x32xf32>
    %62 = tpu.matmul %59, %61, %cst_48 {dimension_numbers = #tpu.dot_dimension_numbers<[1], [0], [0], [1], [0, 0, 1, 1], [], []>} : vector<48x4xbf16>, vector<4x32xbf16>, vector<48x32xf32> -> vector<48x32xf32>
    %63 = arith.addf %56, %62 : vector<48x32xf32>
    %c0_49 = arith.constant 0 : index
    %c0_50 = arith.constant 0 : index
    %64 = vector.load %arg4[%c0_49, %c0_50] : memref<1x32xf32, #tpu.memory_space<vmem>>, vector<1x32xf32>
    %65 = vector.broadcast %64 : vector<1x32xf32> to vector<48x32xf32>
    %66 = arith.mulf %63, %65 : vector<48x32xf32>
    %c0_51 = arith.constant 0 : index
    %c0_52 = arith.constant 0 : index
    %67 = vector.load %arg5[%c0_51, %c0_52] : memref<1x32xf32, #tpu.memory_space<vmem>>, vector<1x32xf32>
    %68 = vector.broadcast %67 : vector<1x32xf32> to vector<48x32xf32>
    %69 = arith.addf %66, %68 : vector<48x32xf32>
    %cst_53 = arith.constant 0.000000e+00 : f32
    %70 = vector.broadcast %cst_53 : f32 to vector<48x32xf32>
    %71 = arith.maximumf %69, %70 : vector<48x32xf32>
    %c0_54 = arith.constant 0 : index
    %c0_55 = arith.constant 0 : index
    %72 = vector.load %arg15[%c0_54, %c0_55] : memref<48x32xf32, #tpu.memory_space<vmem>>, vector<48x32xf32>
    tpu.vector_store %arg15[%c0_54, %c0_55], %71 {strides = array<i32>} : memref<48x32xf32, #tpu.memory_space<vmem>>, vector<48x32xf32>,
    %cst_56 = arith.constant 0.000000e+00 : f32
    %73 = vector.broadcast %cst_56 : f32 to vector<240x32xf32>
    %c0_57 = arith.constant 0 : index
    %c0_58 = arith.constant 0 : index
    %c0_59 = arith.constant 0 : index
    %74 = vector.load %arg2[%c0_57, %c0_58, %c0_59] : memref<1x280x4xf32, #tpu.memory_space<vmem>>, vector<1x240x4xf32>
    %75 = vector.shape_cast %74 : vector<1x240x4xf32> to vector<240x4xf32>
    %76 = arith.truncf %75 : vector<240x4xf32> to vector<240x4xbf16>
    %c0_60 = arith.constant 0 : index
    %c0_61 = arith.constant 0 : index
    %c0_62 = arith.constant 0 : index
    %77 = vector.load %arg6[%c0_60, %c0_61, %c0_62] : memref<9x4x32xbf16, #tpu.memory_space<vmem>>, vector<1x4x32xbf16>
    %78 = vector.shape_cast %77 : vector<1x4x32xbf16> to vector<4x32xbf16>
    %cst_63 = arith.constant dense<0.000000e+00> : vector<240x32xf32>
    %79 = tpu.matmul %76, %78, %cst_63 {dimension_numbers = #tpu.dot_dimension_numbers<[1], [0], [0], [1], [0, 0, 1, 1], [], []>} : vector<240x4xbf16>, vector<4x32xbf16>, vector<240x32xf32> -> vector<240x32xf32>
    %80 = arith.addf %73, %79 : vector<240x32xf32>
    %c0_64 = arith.constant 0 : index
    %c1_65 = arith.constant 1 : index
    %c0_66 = arith.constant 0 : index
    %81 = vector.load %arg2[%c0_64, %c1_65, %c0_66] : memref<1x280x4xf32, #tpu.memory_space<vmem>>, vector<1x240x4xf32>
    %82 = vector.shape_cast %81 : vector<1x240x4xf32> to vector<240x4xf32>
    %83 = arith.truncf %82 : vector<240x4xf32> to vector<240x4xbf16>
    %c1_67 = arith.constant 1 : index
    %c0_68 = arith.constant 0 : index
    %c0_69 = arith.constant 0 : index
    %84 = vector.load %arg6[%c1_67, %c0_68, %c0_69] : memref<9x4x32xbf16, #tpu.memory_space<vmem>>, vector<1x4x32xbf16>
    %85 = vector.shape_cast %84 : vector<1x4x32xbf16> to vector<4x32xbf16>
    %cst_70 = arith.constant dense<0.000000e+00> : vector<240x32xf32>
    %86 = tpu.matmul %83, %85, %cst_70 {dimension_numbers = #tpu.dot_dimension_numbers<[1], [0], [0], [1], [0, 0, 1, 1], [], []>} : vector<240x4xbf16>, vector<4x32xbf16>, vector<240x32xf32> -> vector<240x32xf32>
    %87 = arith.addf %80, %86 : vector<240x32xf32>
    %c0_71 = arith.constant 0 : index
    %c2_72 = arith.constant 2 : index
    %c0_73 = arith.constant 0 : index
    %88 = vector.load %arg2[%c0_71, %c2_72, %c0_73] : memref<1x280x4xf32, #tpu.memory_space<vmem>>, vector<1x240x4xf32>
    %89 = vector.shape_cast %88 : vector<1x240x4xf32> to vector<240x4xf32>
    %90 = arith.truncf %89 : vector<240x4xf32> to vector<240x4xbf16>
    %c2_74 = arith.constant 2 : index
    %c0_75 = arith.constant 0 : index
    %c0_76 = arith.constant 0 : index
    %91 = vector.load %arg6[%c2_74, %c0_75, %c0_76] : memref<9x4x32xbf16, #tpu.memory_space<vmem>>, vector<1x4x32xbf16>
    %92 = vector.shape_cast %91 : vector<1x4x32xbf16> to vector<4x32xbf16>
    %cst_77 = arith.constant dense<0.000000e+00> : vector<240x32xf32>
    %93 = tpu.matmul %90, %92, %cst_77 {dimension_numbers = #tpu.dot_dimension_numbers<[1], [0], [0], [1], [0, 0, 1, 1], [], []>} : vector<240x4xbf16>, vector<4x32xbf16>, vector<240x32xf32> -> vector<240x32xf32>
    %94 = arith.addf %87, %93 : vector<240x32xf32>
    %c0_78 = arith.constant 0 : index
    %c16_79 = arith.constant 16 : index
    %c0_80 = arith.constant 0 : index
    %95 = vector.load %arg2[%c0_78, %c16_79, %c0_80] : memref<1x280x4xf32, #tpu.memory_space<vmem>>, vector<1x240x4xf32>
    %96 = vector.shape_cast %95 : vector<1x240x4xf32> to vector<240x4xf32>
    %97 = arith.truncf %96 : vector<240x4xf32> to vector<240x4xbf16>
    %c3_81 = arith.constant 3 : index
    %c0_82 = arith.constant 0 : index
    %c0_83 = arith.constant 0 : index
    %98 = vector.load %arg6[%c3_81, %c0_82, %c0_83] : memref<9x4x32xbf16, #tpu.memory_space<vmem>>, vector<1x4x32xbf16>
    %99 = vector.shape_cast %98 : vector<1x4x32xbf16> to vector<4x32xbf16>
    %cst_84 = arith.constant dense<0.000000e+00> : vector<240x32xf32>
    %100 = tpu.matmul %97, %99, %cst_84 {dimension_numbers = #tpu.dot_dimension_numbers<[1], [0], [0], [1], [0, 0, 1, 1], [], []>} : vector<240x4xbf16>, vector<4x32xbf16>, vector<240x32xf32> -> vector<240x32xf32>
    %101 = arith.addf %94, %100 : vector<240x32xf32>
    %c0_85 = arith.constant 0 : index
    %c17_86 = arith.constant 17 : index
    %c0_87 = arith.constant 0 : index
    %102 = vector.load %arg2[%c0_85, %c17_86, %c0_87] : memref<1x280x4xf32, #tpu.memory_space<vmem>>, vector<1x240x4xf32>
    %103 = vector.shape_cast %102 : vector<1x240x4xf32> to vector<240x4xf32>
    %104 = arith.truncf %103 : vector<240x4xf32> to vector<240x4xbf16>
    %c4_88 = arith.constant 4 : index
    %c0_89 = arith.constant 0 : index
    %c0_90 = arith.constant 0 : index
    %105 = vector.load %arg6[%c4_88, %c0_89, %c0_90] : memref<9x4x32xbf16, #tpu.memory_space<vmem>>, vector<1x4x32xbf16>
    %106 = vector.shape_cast %105 : vector<1x4x32xbf16> to vector<4x32xbf16>
    %cst_91 = arith.constant dense<0.000000e+00> : vector<240x32xf32>
    %107 = tpu.matmul %104, %106, %cst_91 {dimension_numbers = #tpu.dot_dimension_numbers<[1], [0], [0], [1], [0, 0, 1, 1], [], []>} : vector<240x4xbf16>, vector<4x32xbf16>, vector<240x32xf32> -> vector<240x32xf32>
    %108 = arith.addf %101, %107 : vector<240x32xf32>
    %c0_92 = arith.constant 0 : index
    %c18_93 = arith.constant 18 : index
    %c0_94 = arith.constant 0 : index
    %109 = vector.load %arg2[%c0_92, %c18_93, %c0_94] : memref<1x280x4xf32, #tpu.memory_space<vmem>>, vector<1x240x4xf32>
    %110 = vector.shape_cast %109 : vector<1x240x4xf32> to vector<240x4xf32>
    %111 = arith.truncf %110 : vector<240x4xf32> to vector<240x4xbf16>
    %c5_95 = arith.constant 5 : index
    %c0_96 = arith.constant 0 : index
    %c0_97 = arith.constant 0 : index
    %112 = vector.load %arg6[%c5_95, %c0_96, %c0_97] : memref<9x4x32xbf16, #tpu.memory_space<vmem>>, vector<1x4x32xbf16>
    %113 = vector.shape_cast %112 : vector<1x4x32xbf16> to vector<4x32xbf16>
    %cst_98 = arith.constant dense<0.000000e+00> : vector<240x32xf32>
    %114 = tpu.matmul %111, %113, %cst_98 {dimension_numbers = #tpu.dot_dimension_numbers<[1], [0], [0], [1], [0, 0, 1, 1], [], []>} : vector<240x4xbf16>, vector<4x32xbf16>, vector<240x32xf32> -> vector<240x32xf32>
    %115 = arith.addf %108, %114 : vector<240x32xf32>
    %c0_99 = arith.constant 0 : index
    %c32 = arith.constant 32 : index
    %c0_100 = arith.constant 0 : index
    %116 = vector.load %arg2[%c0_99, %c32, %c0_100] : memref<1x280x4xf32, #tpu.memory_space<vmem>>, vector<1x240x4xf32>
    %117 = vector.shape_cast %116 : vector<1x240x4xf32> to vector<240x4xf32>
    %118 = arith.truncf %117 : vector<240x4xf32> to vector<240x4xbf16>
    %c6_101 = arith.constant 6 : index
    %c0_102 = arith.constant 0 : index
    %c0_103 = arith.constant 0 : index
    %119 = vector.load %arg6[%c6_101, %c0_102, %c0_103] : memref<9x4x32xbf16, #tpu.memory_space<vmem>>, vector<1x4x32xbf16>
    %120 = vector.shape_cast %119 : vector<1x4x32xbf16> to vector<4x32xbf16>
    %cst_104 = arith.constant dense<0.000000e+00> : vector<240x32xf32>
    %121 = tpu.matmul %118, %120, %cst_104 {dimension_numbers = #tpu.dot_dimension_numbers<[1], [0], [0], [1], [0, 0, 1, 1], [], []>} : vector<240x4xbf16>, vector<4x32xbf16>, vector<240x32xf32> -> vector<240x32xf32>
    %122 = arith.addf %115, %121 : vector<240x32xf32>
    %c0_105 = arith.constant 0 : index
    %c33 = arith.constant 33 : index
    %c0_106 = arith.constant 0 : index
    %123 = vector.load %arg2[%c0_105, %c33, %c0_106] : memref<1x280x4xf32, #tpu.memory_space<vmem>>, vector<1x240x4xf32>
    %124 = vector.shape_cast %123 : vector<1x240x4xf32> to vector<240x4xf32>
    %125 = arith.truncf %124 : vector<240x4xf32> to vector<240x4xbf16>
    %c7_107 = arith.constant 7 : index
    %c0_108 = arith.constant 0 : index
    %c0_109 = arith.constant 0 : index
    %126 = vector.load %arg6[%c7_107, %c0_108, %c0_109] : memref<9x4x32xbf16, #tpu.memory_space<vmem>>, vector<1x4x32xbf16>
    %127 = vector.shape_cast %126 : vector<1x4x32xbf16> to vector<4x32xbf16>
    %cst_110 = arith.constant dense<0.000000e+00> : vector<240x32xf32>
    %128 = tpu.matmul %125, %127, %cst_110 {dimension_numbers = #tpu.dot_dimension_numbers<[1], [0], [0], [1], [0, 0, 1, 1], [], []>} : vector<240x4xbf16>, vector<4x32xbf16>, vector<240x32xf32> -> vector<240x32xf32>
    %129 = arith.addf %122, %128 : vector<240x32xf32>
    %c0_111 = arith.constant 0 : index
    %c34 = arith.constant 34 : index
    %c0_112 = arith.constant 0 : index
    %130 = vector.load %arg2[%c0_111, %c34, %c0_112] : memref<1x280x4xf32, #tpu.memory_space<vmem>>, vector<1x240x4xf32>
    %131 = vector.shape_cast %130 : vector<1x240x4xf32> to vector<240x4xf32>
    %132 = arith.truncf %131 : vector<240x4xf32> to vector<240x4xbf16>
    %c8_113 = arith.constant 8 : index
    %c0_114 = arith.constant 0 : index
    %c0_115 = arith.constant 0 : index
    %133 = vector.load %arg6[%c8_113, %c0_114, %c0_115] : memref<9x4x32xbf16, #tpu.memory_space<vmem>>, vector<1x4x32xbf16>
    %134 = vector.shape_cast %133 : vector<1x4x32xbf16> to vector<4x32xbf16>
    %cst_116 = arith.constant dense<0.000000e+00> : vector<240x32xf32>
    %135 = tpu.matmul %132, %134, %cst_116 {dimension_numbers = #tpu.dot_dimension_numbers<[1], [0], [0], [1], [0, 0, 1, 1], [], []>} : vector<240x4xbf16>, vector<4x32xbf16>, vector<240x32xf32> -> vector<240x32xf32>
    %136 = arith.addf %129, %135 : vector<240x32xf32>
    %c0_117 = arith.constant 0 : index
    %c0_118 = arith.constant 0 : index
    %137 = vector.load %arg7[%c0_117, %c0_118] : memref<1x32xf32, #tpu.memory_space<vmem>>, vector<1x32xf32>
    %138 = vector.broadcast %137 : vector<1x32xf32> to vector<240x32xf32>
    %139 = arith.mulf %136, %138 : vector<240x32xf32>
    %c0_119 = arith.constant 0 : index
    %c0_120 = arith.constant 0 : index
    %140 = vector.load %arg8[%c0_119, %c0_120] : memref<1x32xf32, #tpu.memory_space<vmem>>, vector<1x32xf32>
    %141 = vector.broadcast %140 : vector<1x32xf32> to vector<240x32xf32>
    %142 = arith.addf %139, %141 : vector<240x32xf32>
    %cst_121 = arith.constant 0.000000e+00 : f32
    %143 = vector.broadcast %cst_121 : f32 to vector<240x32xf32>
    %144 = arith.maximumf %142, %143 : vector<240x32xf32>
    %c0_122 = arith.constant 0 : index
    %c0_123 = arith.constant 0 : index
    %145 = vector.load %arg16[%c0_122, %c0_123] : memref<240x32xf32, #tpu.memory_space<vmem>>, vector<240x32xf32>
    tpu.vector_store %arg16[%c0_122, %c0_123], %144 {strides = array<i32>} : memref<240x32xf32, #tpu.memory_space<vmem>>, vector<240x32xf32>,
    %cst_124 = arith.constant 0.000000e+00 : f32
    %146 = vector.broadcast %cst_124 : f32 to vector<144x32xf32>
    %c0_125 = arith.constant 0 : index
    %c0_126 = arith.constant 0 : index
    %147 = vector.load %arg16[%c0_125, %c0_126] : memref<240x32xf32, #tpu.memory_space<vmem>>, vector<144x32xf32>
    %c0_127 = arith.constant 0 : index
    %c0_128 = arith.constant 0 : index
    %148 = vector.load %arg15[%c0_127, %c0_128] : memref<48x32xf32, #tpu.memory_space<vmem>>, vector<1x32xf32>
    %149 = vector.broadcast %148 : vector<1x32xf32> to vector<144x32xf32>
    %150 = arith.mulf %147, %149 : vector<144x32xf32>
    %151 = arith.addf %146, %150 : vector<144x32xf32>
    %c1_129 = arith.constant 1 : index
    %c0_130 = arith.constant 0 : index
    %152 = vector.load %arg16[%c1_129, %c0_130] : memref<240x32xf32, #tpu.memory_space<vmem>>, vector<144x32xf32>
    %c1_131 = arith.constant 1 : index
    %c0_132 = arith.constant 0 : index
    %153 = vector.load %arg15[%c1_131, %c0_132] : memref<48x32xf32, #tpu.memory_space<vmem>>, vector<1x32xf32>
    %154 = vector.broadcast %153 : vector<1x32xf32> to vector<144x32xf32>
    %155 = arith.mulf %152, %154 : vector<144x32xf32>
    %156 = arith.addf %151, %155 : vector<144x32xf32>
    %c2_133 = arith.constant 2 : index
    %c0_134 = arith.constant 0 : index
    %157 = vector.load %arg16[%c2_133, %c0_134] : memref<240x32xf32, #tpu.memory_space<vmem>>, vector<144x32xf32>
    %c2_135 = arith.constant 2 : index
    %c0_136 = arith.constant 0 : index
    %158 = vector.load %arg15[%c2_135, %c0_136] : memref<48x32xf32, #tpu.memory_space<vmem>>, vector<1x32xf32>
    %159 = vector.broadcast %158 : vector<1x32xf32> to vector<144x32xf32>
    %160 = arith.mulf %157, %159 : vector<144x32xf32>
    %161 = arith.addf %156, %160 : vector<144x32xf32>
    %c3_137 = arith.constant 3 : index
    %c0_138 = arith.constant 0 : index
    %162 = vector.load %arg16[%c3_137, %c0_138] : memref<240x32xf32, #tpu.memory_space<vmem>>, vector<144x32xf32>
    %c3_139 = arith.constant 3 : index
    %c0_140 = arith.constant 0 : index
    %163 = vector.load %arg15[%c3_139, %c0_140] : memref<48x32xf32, #tpu.memory_space<vmem>>, vector<1x32xf32>
    %164 = vector.broadcast %163 : vector<1x32xf32> to vector<144x32xf32>
    %165 = arith.mulf %162, %164 : vector<144x32xf32>
    %166 = arith.addf %161, %165 : vector<144x32xf32>
    %c4_141 = arith.constant 4 : index
    %c0_142 = arith.constant 0 : index
    %167 = vector.load %arg16[%c4_141, %c0_142] : memref<240x32xf32, #tpu.memory_space<vmem>>, vector<144x32xf32>
    %c4_143 = arith.constant 4 : index
    %c0_144 = arith.constant 0 : index
    %168 = vector.load %arg15[%c4_143, %c0_144] : memref<48x32xf32, #tpu.memory_space<vmem>>, vector<1x32xf32>
    %169 = vector.broadcast %168 : vector<1x32xf32> to vector<144x32xf32>
    %170 = arith.mulf %167, %169 : vector<144x32xf32>
    %171 = arith.addf %166, %170 : vector<144x32xf32>
    %c5_145 = arith.constant 5 : index
    %c0_146 = arith.constant 0 : index
    %172 = vector.load %arg16[%c5_145, %c0_146] : memref<240x32xf32, #tpu.memory_space<vmem>>, vector<144x32xf32>
    %c5_147 = arith.constant 5 : index
    %c0_148 = arith.constant 0 : index
    %173 = vector.load %arg15[%c5_147, %c0_148] : memref<48x32xf32, #tpu.memory_space<vmem>>, vector<1x32xf32>
    %174 = vector.broadcast %173 : vector<1x32xf32> to vector<144x32xf32>
    %175 = arith.mulf %172, %174 : vector<144x32xf32>
    %176 = arith.addf %171, %175 : vector<144x32xf32>
    %c16_149 = arith.constant 16 : index
    %c0_150 = arith.constant 0 : index
    %177 = vector.load %arg16[%c16_149, %c0_150] : memref<240x32xf32, #tpu.memory_space<vmem>>, vector<144x32xf32>
    %c8_151 = arith.constant 8 : index
    %c0_152 = arith.constant 0 : index
    %178 = vector.load %arg15[%c8_151, %c0_152] : memref<48x32xf32, #tpu.memory_space<vmem>>, vector<1x32xf32>
    %179 = vector.broadcast %178 : vector<1x32xf32> to vector<144x32xf32>
    %180 = arith.mulf %177, %179 : vector<144x32xf32>
    %181 = arith.addf %176, %180 : vector<144x32xf32>
    %c17_153 = arith.constant 17 : index
    %c0_154 = arith.constant 0 : index
    %182 = vector.load %arg16[%c17_153, %c0_154] : memref<240x32xf32, #tpu.memory_space<vmem>>, vector<144x32xf32>
    %c9_155 = arith.constant 9 : index
    %c0_156 = arith.constant 0 : index
    %183 = vector.load %arg15[%c9_155, %c0_156] : memref<48x32xf32, #tpu.memory_space<vmem>>, vector<1x32xf32>
    %184 = vector.broadcast %183 : vector<1x32xf32> to vector<144x32xf32>
    %185 = arith.mulf %182, %184 : vector<144x32xf32>
    %186 = arith.addf %181, %185 : vector<144x32xf32>
    %c18_157 = arith.constant 18 : index
    %c0_158 = arith.constant 0 : index
    %187 = vector.load %arg16[%c18_157, %c0_158] : memref<240x32xf32, #tpu.memory_space<vmem>>, vector<144x32xf32>
    %c10_159 = arith.constant 10 : index
    %c0_160 = arith.constant 0 : index
    %188 = vector.load %arg15[%c10_159, %c0_160] : memref<48x32xf32, #tpu.memory_space<vmem>>, vector<1x32xf32>
    %189 = vector.broadcast %188 : vector<1x32xf32> to vector<144x32xf32>
    %190 = arith.mulf %187, %189 : vector<144x32xf32>
    %191 = arith.addf %186, %190 : vector<144x32xf32>
    %c19 = arith.constant 19 : index
    %c0_161 = arith.constant 0 : index
    %192 = vector.load %arg16[%c19, %c0_161] : memref<240x32xf32, #tpu.memory_space<vmem>>, vector<144x32xf32>
    %c11 = arith.constant 11 : index
    %c0_162 = arith.constant 0 : index
    %193 = vector.load %arg15[%c11, %c0_162] : memref<48x32xf32, #tpu.memory_space<vmem>>, vector<1x32xf32>
    %194 = vector.broadcast %193 : vector<1x32xf32> to vector<144x32xf32>
    %195 = arith.mulf %192, %194 : vector<144x32xf32>
    %196 = arith.addf %191, %195 : vector<144x32xf32>
    %c20 = arith.constant 20 : index
    %c0_163 = arith.constant 0 : index
    %197 = vector.load %arg16[%c20, %c0_163] : memref<240x32xf32, #tpu.memory_space<vmem>>, vector<144x32xf32>
    %c12 = arith.constant 12 : index
    %c0_164 = arith.constant 0 : index
    %198 = vector.load %arg15[%c12, %c0_164] : memref<48x32xf32, #tpu.memory_space<vmem>>, vector<1x32xf32>
    %199 = vector.broadcast %198 : vector<1x32xf32> to vector<144x32xf32>
    %200 = arith.mulf %197, %199 : vector<144x32xf32>
    %201 = arith.addf %196, %200 : vector<144x32xf32>
    %c21 = arith.constant 21 : index
    %c0_165 = arith.constant 0 : index
    %202 = vector.load %arg16[%c21, %c0_165] : memref<240x32xf32, #tpu.memory_space<vmem>>, vector<144x32xf32>
    %c13 = arith.constant 13 : index
    %c0_166 = arith.constant 0 : index
    %203 = vector.load %arg15[%c13, %c0_166] : memref<48x32xf32, #tpu.memory_space<vmem>>, vector<1x32xf32>
    %204 = vector.broadcast %203 : vector<1x32xf32> to vector<144x32xf32>
    %205 = arith.mulf %202, %204 : vector<144x32xf32>
    %206 = arith.addf %201, %205 : vector<144x32xf32>
    %c32_167 = arith.constant 32 : index
    %c0_168 = arith.constant 0 : index
    %207 = vector.load %arg16[%c32_167, %c0_168] : memref<240x32xf32, #tpu.memory_space<vmem>>, vector<144x32xf32>
    %c16_169 = arith.constant 16 : index
    %c0_170 = arith.constant 0 : index
    %208 = vector.load %arg15[%c16_169, %c0_170] : memref<48x32xf32, #tpu.memory_space<vmem>>, vector<1x32xf32>
    %209 = vector.broadcast %208 : vector<1x32xf32> to vector<144x32xf32>
    %210 = arith.mulf %207, %209 : vector<144x32xf32>
    %211 = arith.addf %206, %210 : vector<144x32xf32>
    %c33_171 = arith.constant 33 : index
    %c0_172 = arith.constant 0 : index
    %212 = vector.load %arg16[%c33_171, %c0_172] : memref<240x32xf32, #tpu.memory_space<vmem>>, vector<144x32xf32>
    %c17_173 = arith.constant 17 : index
    %c0_174 = arith.constant 0 : index
    %213 = vector.load %arg15[%c17_173, %c0_174] : memref<48x32xf32, #tpu.memory_space<vmem>>, vector<1x32xf32>
    %214 = vector.broadcast %213 : vector<1x32xf32> to vector<144x32xf32>
    %215 = arith.mulf %212, %214 : vector<144x32xf32>
    %216 = arith.addf %211, %215 : vector<144x32xf32>
    %c34_175 = arith.constant 34 : index
    %c0_176 = arith.constant 0 : index
    %217 = vector.load %arg16[%c34_175, %c0_176] : memref<240x32xf32, #tpu.memory_space<vmem>>, vector<144x32xf32>
    %c18_177 = arith.constant 18 : index
    %c0_178 = arith.constant 0 : index
    %218 = vector.load %arg15[%c18_177, %c0_178] : memref<48x32xf32, #tpu.memory_space<vmem>>, vector<1x32xf32>
    %219 = vector.broadcast %218 : vector<1x32xf32> to vector<144x32xf32>
    %220 = arith.mulf %217, %219 : vector<144x32xf32>
    %221 = arith.addf %216, %220 : vector<144x32xf32>
    %c35 = arith.constant 35 : index
    %c0_179 = arith.constant 0 : index
    %222 = vector.load %arg16[%c35, %c0_179] : memref<240x32xf32, #tpu.memory_space<vmem>>, vector<144x32xf32>
    %c19_180 = arith.constant 19 : index
    %c0_181 = arith.constant 0 : index
    %223 = vector.load %arg15[%c19_180, %c0_181] : memref<48x32xf32, #tpu.memory_space<vmem>>, vector<1x32xf32>
    %224 = vector.broadcast %223 : vector<1x32xf32> to vector<144x32xf32>
    %225 = arith.mulf %222, %224 : vector<144x32xf32>
    %226 = arith.addf %221, %225 : vector<144x32xf32>
    %c36 = arith.constant 36 : index
    %c0_182 = arith.constant 0 : index
    %227 = vector.load %arg16[%c36, %c0_182] : memref<240x32xf32, #tpu.memory_space<vmem>>, vector<144x32xf32>
    %c20_183 = arith.constant 20 : index
    %c0_184 = arith.constant 0 : index
    %228 = vector.load %arg15[%c20_183, %c0_184] : memref<48x32xf32, #tpu.memory_space<vmem>>, vector<1x32xf32>
    %229 = vector.broadcast %228 : vector<1x32xf32> to vector<144x32xf32>
    %230 = arith.mulf %227, %229 : vector<144x32xf32>
    %231 = arith.addf %226, %230 : vector<144x32xf32>
    %c37 = arith.constant 37 : index
    %c0_185 = arith.constant 0 : index
    %232 = vector.load %arg16[%c37, %c0_185] : memref<240x32xf32, #tpu.memory_space<vmem>>, vector<144x32xf32>
    %c21_186 = arith.constant 21 : index
    %c0_187 = arith.constant 0 : index
    %233 = vector.load %arg15[%c21_186, %c0_187] : memref<48x32xf32, #tpu.memory_space<vmem>>, vector<1x32xf32>
    %234 = vector.broadcast %233 : vector<1x32xf32> to vector<144x32xf32>
    %235 = arith.mulf %232, %234 : vector<144x32xf32>
    %236 = arith.addf %231, %235 : vector<144x32xf32>
    %c48 = arith.constant 48 : index
    %c0_188 = arith.constant 0 : index
    %237 = vector.load %arg16[%c48, %c0_188] : memref<240x32xf32, #tpu.memory_space<vmem>>, vector<144x32xf32>
    %c24 = arith.constant 24 : index
    %c0_189 = arith.constant 0 : index
    %238 = vector.load %arg15[%c24, %c0_189] : memref<48x32xf32, #tpu.memory_space<vmem>>, vector<1x32xf32>
    %239 = vector.broadcast %238 : vector<1x32xf32> to vector<144x32xf32>
    %240 = arith.mulf %237, %239 : vector<144x32xf32>
    %241 = arith.addf %236, %240 : vector<144x32xf32>
    %c49 = arith.constant 49 : index
    %c0_190 = arith.constant 0 : index
    %242 = vector.load %arg16[%c49, %c0_190] : memref<240x32xf32, #tpu.memory_space<vmem>>, vector<144x32xf32>
    %c25 = arith.constant 25 : index
    %c0_191 = arith.constant 0 : index
    %243 = vector.load %arg15[%c25, %c0_191] : memref<48x32xf32, #tpu.memory_space<vmem>>, vector<1x32xf32>
    %244 = vector.broadcast %243 : vector<1x32xf32> to vector<144x32xf32>
    %245 = arith.mulf %242, %244 : vector<144x32xf32>
    %246 = arith.addf %241, %245 : vector<144x32xf32>
    %c50 = arith.constant 50 : index
    %c0_192 = arith.constant 0 : index
    %247 = vector.load %arg16[%c50, %c0_192] : memref<240x32xf32, #tpu.memory_space<vmem>>, vector<144x32xf32>
    %c26 = arith.constant 26 : index
    %c0_193 = arith.constant 0 : index
    %248 = vector.load %arg15[%c26, %c0_193] : memref<48x32xf32, #tpu.memory_space<vmem>>, vector<1x32xf32>
    %249 = vector.broadcast %248 : vector<1x32xf32> to vector<144x32xf32>
    %250 = arith.mulf %247, %249 : vector<144x32xf32>
    %251 = arith.addf %246, %250 : vector<144x32xf32>
    %c51 = arith.constant 51 : index
    %c0_194 = arith.constant 0 : index
    %252 = vector.load %arg16[%c51, %c0_194] : memref<240x32xf32, #tpu.memory_space<vmem>>, vector<144x32xf32>
    %c27 = arith.constant 27 : index
    %c0_195 = arith.constant 0 : index
    %253 = vector.load %arg15[%c27, %c0_195] : memref<48x32xf32, #tpu.memory_space<vmem>>, vector<1x32xf32>
    %254 = vector.broadcast %253 : vector<1x32xf32> to vector<144x32xf32>
    %255 = arith.mulf %252, %254 : vector<144x32xf32>
    %256 = arith.addf %251, %255 : vector<144x32xf32>
    %c52 = arith.constant 52 : index
    %c0_196 = arith.constant 0 : index
    %257 = vector.load %arg16[%c52, %c0_196] : memref<240x32xf32, #tpu.memory_space<vmem>>, vector<144x32xf32>
    %c28 = arith.constant 28 : index
    %c0_197 = arith.constant 0 : index
    %258 = vector.load %arg15[%c28, %c0_197] : memref<48x32xf32, #tpu.memory_space<vmem>>, vector<1x32xf32>
    %259 = vector.broadcast %258 : vector<1x32xf32> to vector<144x32xf32>
    %260 = arith.mulf %257, %259 : vector<144x32xf32>
    %261 = arith.addf %256, %260 : vector<144x32xf32>
    %c53 = arith.constant 53 : index
    %c0_198 = arith.constant 0 : index
    %262 = vector.load %arg16[%c53, %c0_198] : memref<240x32xf32, #tpu.memory_space<vmem>>, vector<144x32xf32>
    %c29 = arith.constant 29 : index
    %c0_199 = arith.constant 0 : index
    %263 = vector.load %arg15[%c29, %c0_199] : memref<48x32xf32, #tpu.memory_space<vmem>>, vector<1x32xf32>
    %264 = vector.broadcast %263 : vector<1x32xf32> to vector<144x32xf32>
    %265 = arith.mulf %262, %264 : vector<144x32xf32>
    %266 = arith.addf %261, %265 : vector<144x32xf32>
    %c64 = arith.constant 64 : index
    %c0_200 = arith.constant 0 : index
    %267 = vector.load %arg16[%c64, %c0_200] : memref<240x32xf32, #tpu.memory_space<vmem>>, vector<144x32xf32>
    %c32_201 = arith.constant 32 : index
    %c0_202 = arith.constant 0 : index
    %268 = vector.load %arg15[%c32_201, %c0_202] : memref<48x32xf32, #tpu.memory_space<vmem>>, vector<1x32xf32>
    %269 = vector.broadcast %268 : vector<1x32xf32> to vector<144x32xf32>
    %270 = arith.mulf %267, %269 : vector<144x32xf32>
    %271 = arith.addf %266, %270 : vector<144x32xf32>
    %c65 = arith.constant 65 : index
    %c0_203 = arith.constant 0 : index
    %272 = vector.load %arg16[%c65, %c0_203] : memref<240x32xf32, #tpu.memory_space<vmem>>, vector<144x32xf32>
    %c33_204 = arith.constant 33 : index
    %c0_205 = arith.constant 0 : index
    %273 = vector.load %arg15[%c33_204, %c0_205] : memref<48x32xf32, #tpu.memory_space<vmem>>, vector<1x32xf32>
    %274 = vector.broadcast %273 : vector<1x32xf32> to vector<144x32xf32>
    %275 = arith.mulf %272, %274 : vector<144x32xf32>
    %276 = arith.addf %271, %275 : vector<144x32xf32>
    %c66 = arith.constant 66 : index
    %c0_206 = arith.constant 0 : index
    %277 = vector.load %arg16[%c66, %c0_206] : memref<240x32xf32, #tpu.memory_space<vmem>>, vector<144x32xf32>
    %c34_207 = arith.constant 34 : index
    %c0_208 = arith.constant 0 : index
    %278 = vector.load %arg15[%c34_207, %c0_208] : memref<48x32xf32, #tpu.memory_space<vmem>>, vector<1x32xf32>
    %279 = vector.broadcast %278 : vector<1x32xf32> to vector<144x32xf32>
    %280 = arith.mulf %277, %279 : vector<144x32xf32>
    %281 = arith.addf %276, %280 : vector<144x32xf32>
    %c67 = arith.constant 67 : index
    %c0_209 = arith.constant 0 : index
    %282 = vector.load %arg16[%c67, %c0_209] : memref<240x32xf32, #tpu.memory_space<vmem>>, vector<144x32xf32>
    %c35_210 = arith.constant 35 : index
    %c0_211 = arith.constant 0 : index
    %283 = vector.load %arg15[%c35_210, %c0_211] : memref<48x32xf32, #tpu.memory_space<vmem>>, vector<1x32xf32>
    %284 = vector.broadcast %283 : vector<1x32xf32> to vector<144x32xf32>
    %285 = arith.mulf %282, %284 : vector<144x32xf32>
    %286 = arith.addf %281, %285 : vector<144x32xf32>
    %c68 = arith.constant 68 : index
    %c0_212 = arith.constant 0 : index
    %287 = vector.load %arg16[%c68, %c0_212] : memref<240x32xf32, #tpu.memory_space<vmem>>, vector<144x32xf32>
    %c36_213 = arith.constant 36 : index
    %c0_214 = arith.constant 0 : index
    %288 = vector.load %arg15[%c36_213, %c0_214] : memref<48x32xf32, #tpu.memory_space<vmem>>, vector<1x32xf32>
    %289 = vector.broadcast %288 : vector<1x32xf32> to vector<144x32xf32>
    %290 = arith.mulf %287, %289 : vector<144x32xf32>
    %291 = arith.addf %286, %290 : vector<144x32xf32>
    %c69 = arith.constant 69 : index
    %c0_215 = arith.constant 0 : index
    %292 = vector.load %arg16[%c69, %c0_215] : memref<240x32xf32, #tpu.memory_space<vmem>>, vector<144x32xf32>
    %c37_216 = arith.constant 37 : index
    %c0_217 = arith.constant 0 : index
    %293 = vector.load %arg15[%c37_216, %c0_217] : memref<48x32xf32, #tpu.memory_space<vmem>>, vector<1x32xf32>
    %294 = vector.broadcast %293 : vector<1x32xf32> to vector<144x32xf32>
    %295 = arith.mulf %292, %294 : vector<144x32xf32>
    %296 = arith.addf %291, %295 : vector<144x32xf32>
    %c80 = arith.constant 80 : index
    %c0_218 = arith.constant 0 : index
    %297 = vector.load %arg16[%c80, %c0_218] : memref<240x32xf32, #tpu.memory_space<vmem>>, vector<144x32xf32>
    %c40 = arith.constant 40 : index
    %c0_219 = arith.constant 0 : index
    %298 = vector.load %arg15[%c40, %c0_219] : memref<48x32xf32, #tpu.memory_space<vmem>>, vector<1x32xf32>
    %299 = vector.broadcast %298 : vector<1x32xf32> to vector<144x32xf32>
    %300 = arith.mulf %297, %299 : vector<144x32xf32>
    %301 = arith.addf %296, %300 : vector<144x32xf32>
    %c81 = arith.constant 81 : index
    %c0_220 = arith.constant 0 : index
    %302 = vector.load %arg16[%c81, %c0_220] : memref<240x32xf32, #tpu.memory_space<vmem>>, vector<144x32xf32>
    %c41 = arith.constant 41 : index
    %c0_221 = arith.constant 0 : index
    %303 = vector.load %arg15[%c41, %c0_221] : memref<48x32xf32, #tpu.memory_space<vmem>>, vector<1x32xf32>
    %304 = vector.broadcast %303 : vector<1x32xf32> to vector<144x32xf32>
    %305 = arith.mulf %302, %304 : vector<144x32xf32>
    %306 = arith.addf %301, %305 : vector<144x32xf32>
    %c82 = arith.constant 82 : index
    %c0_222 = arith.constant 0 : index
    %307 = vector.load %arg16[%c82, %c0_222] : memref<240x32xf32, #tpu.memory_space<vmem>>, vector<144x32xf32>
    %c42 = arith.constant 42 : index
    %c0_223 = arith.constant 0 : index
    %308 = vector.load %arg15[%c42, %c0_223] : memref<48x32xf32, #tpu.memory_space<vmem>>, vector<1x32xf32>
    %309 = vector.broadcast %308 : vector<1x32xf32> to vector<144x32xf32>
    %310 = arith.mulf %307, %309 : vector<144x32xf32>
    %311 = arith.addf %306, %310 : vector<144x32xf32>
    %c83 = arith.constant 83 : index
    %c0_224 = arith.constant 0 : index
    %312 = vector.load %arg16[%c83, %c0_224] : memref<240x32xf32, #tpu.memory_space<vmem>>, vector<144x32xf32>
    %c43 = arith.constant 43 : index
    %c0_225 = arith.constant 0 : index
    %313 = vector.load %arg15[%c43, %c0_225] : memref<48x32xf32, #tpu.memory_space<vmem>>, vector<1x32xf32>
    %314 = vector.broadcast %313 : vector<1x32xf32> to vector<144x32xf32>
    %315 = arith.mulf %312, %314 : vector<144x32xf32>
    %316 = arith.addf %311, %315 : vector<144x32xf32>
    %c84 = arith.constant 84 : index
    %c0_226 = arith.constant 0 : index
    %317 = vector.load %arg16[%c84, %c0_226] : memref<240x32xf32, #tpu.memory_space<vmem>>, vector<144x32xf32>
    %c44 = arith.constant 44 : index
    %c0_227 = arith.constant 0 : index
    %318 = vector.load %arg15[%c44, %c0_227] : memref<48x32xf32, #tpu.memory_space<vmem>>, vector<1x32xf32>
    %319 = vector.broadcast %318 : vector<1x32xf32> to vector<144x32xf32>
    %320 = arith.mulf %317, %319 : vector<144x32xf32>
    %321 = arith.addf %316, %320 : vector<144x32xf32>
    %c85 = arith.constant 85 : index
    %c0_228 = arith.constant 0 : index
    %322 = vector.load %arg16[%c85, %c0_228] : memref<240x32xf32, #tpu.memory_space<vmem>>, vector<144x32xf32>
    %c45 = arith.constant 45 : index
    %c0_229 = arith.constant 0 : index
    %323 = vector.load %arg15[%c45, %c0_229] : memref<48x32xf32, #tpu.memory_space<vmem>>, vector<1x32xf32>
    %324 = vector.broadcast %323 : vector<1x32xf32> to vector<144x32xf32>
    %325 = arith.mulf %322, %324 : vector<144x32xf32>
    %326 = arith.addf %321, %325 : vector<144x32xf32>
    %327 = arith.truncf %326 : vector<144x32xf32> to vector<144x32xbf16>
    %c0_230 = arith.constant 0 : index
    %c0_231 = arith.constant 0 : index
    %328 = vector.load %arg9[%c0_230, %c0_231] : memref<32x32xbf16, #tpu.memory_space<vmem>>, vector<32x32xbf16>
    %cst_232 = arith.constant dense<0.000000e+00> : vector<144x32xf32>
    %329 = tpu.matmul %327, %328, %cst_232 {dimension_numbers = #tpu.dot_dimension_numbers<[1], [0], [0], [1], [0, 0, 1, 1], [], []>} : vector<144x32xbf16>, vector<32x32xbf16>, vector<144x32xf32> -> vector<144x32xf32>
    %c0_233 = arith.constant 0 : index
    %c0_234 = arith.constant 0 : index
    %330 = vector.load %arg10[%c0_233, %c0_234] : memref<1x32xf32, #tpu.memory_space<vmem>>, vector<1x32xf32>
    %331 = vector.broadcast %330 : vector<1x32xf32> to vector<144x32xf32>
    %332 = arith.mulf %329, %331 : vector<144x32xf32>
    %c0_235 = arith.constant 0 : index
    %c0_236 = arith.constant 0 : index
    %333 = vector.load %arg11[%c0_235, %c0_236] : memref<1x32xf32, #tpu.memory_space<vmem>>, vector<1x32xf32>
    %334 = vector.broadcast %333 : vector<1x32xf32> to vector<144x32xf32>
    %335 = arith.addf %332, %334 : vector<144x32xf32>
    %cst_237 = arith.constant 0.000000e+00 : f32
    %336 = vector.broadcast %cst_237 : f32 to vector<144x32xf32>
    %337 = arith.maximumf %335, %336 : vector<144x32xf32>
    %338 = arith.truncf %337 : vector<144x32xf32> to vector<144x32xbf16>
    %c0_238 = arith.constant 0 : index
    %c0_239 = arith.constant 0 : index
    %339 = vector.load %arg12[%c0_238, %c0_239] : memref<32x128xbf16, #tpu.memory_space<vmem>>, vector<32x128xbf16>
    %cst_240 = arith.constant dense<0.000000e+00> : vector<144x128xf32>
    %340 = tpu.matmul %338, %339, %cst_240 {dimension_numbers = #tpu.dot_dimension_numbers<[1], [0], [0], [1], [0, 0, 1, 1], [], []>} : vector<144x32xbf16>, vector<32x128xbf16>, vector<144x128xf32> -> vector<144x128xf32>
    %c0_241 = arith.constant 0 : index
    %c0_242 = arith.constant 0 : index
    %341 = vector.load %arg13[%c0_241, %c0_242] : memref<1x128xf32, #tpu.memory_space<vmem>>, vector<1x128xf32>
    %342 = vector.broadcast %341 : vector<1x128xf32> to vector<144x128xf32>
    %343 = arith.addf %340, %342 : vector<144x128xf32>
    %c0_243 = arith.constant 0 : index
    %c0_244 = arith.constant 0 : index
    %c0_245 = arith.constant 0 : index
    %344 = vector.load %arg14[%c0_243, %c0_244, %c0_245] : memref<1x144x128xf32, #tpu.memory_space<vmem>>, vector<1x144x128xf32>
    %345 = vector.shape_cast %344 : vector<1x144x128xf32> to vector<144x128xf32>
    %346 = vector.shape_cast %343 : vector<144x128xf32> to vector<1x144x128xf32>
    tpu.vector_store %arg14[%c0_243, %c0_244, %c0_245], %346 {strides = array<i32>} : memref<1x144x128xf32, #tpu.memory_space<vmem>>, vector<1x144x128xf32>,
    return
  }
  func.func @transform_0(%arg0: i32) -> (i32, i32, i32) {
    %c0_i32 = arith.constant 0 : i32
    %c0_i32_0 = arith.constant 0 : i32
    %c0_i32_1 = arith.constant 0 : i32
    return %arg0, %c0_i32, %c0_i32_0 : i32, i32, i32
  }
  func.func @transform_1(%arg0: i32) -> (i32, i32, i32) {
    %c0_i32 = arith.constant 0 : i32
    %c0_i32_0 = arith.constant 0 : i32
    %c0_i32_1 = arith.constant 0 : i32
    return %arg0, %c0_i32, %c0_i32_0 : i32, i32, i32
  }
  func.func @transform_2(%arg0: i32) -> (i32, i32, i32) {
    %c0_i32 = arith.constant 0 : i32
    %c0_i32_0 = arith.constant 0 : i32
    %c0_i32_1 = arith.constant 0 : i32
    %c0_i32_2 = arith.constant 0 : i32
    return %c0_i32, %c0_i32_0, %c0_i32_1 : i32, i32, i32
  }
  func.func @transform_3(%arg0: i32) -> (i32, i32) {
    %c0_i32 = arith.constant 0 : i32
    %c0_i32_0 = arith.constant 0 : i32
    %c0_i32_1 = arith.constant 0 : i32
    return %c0_i32, %c0_i32_0 : i32, i32
  }
  func.func @transform_4(%arg0: i32) -> (i32, i32) {
    %c0_i32 = arith.constant 0 : i32
    %c0_i32_0 = arith.constant 0 : i32
    %c0_i32_1 = arith.constant 0 : i32
    return %c0_i32, %c0_i32_0 : i32, i32
  }
  func.func @transform_5(%arg0: i32) -> (i32, i32, i32) {
    %c0_i32 = arith.constant 0 : i32
    %c0_i32_0 = arith.constant 0 : i32
    %c0_i32_1 = arith.constant 0 : i32
    %c0_i32_2 = arith.constant 0 : i32
    return %c0_i32, %c0_i32_0, %c0_i32_1 : i32, i32, i32
  }
  func.func @transform_6(%arg0: i32) -> (i32, i32) {
    %c0_i32 = arith.constant 0 : i32
    %c0_i32_0 = arith.constant 0 : i32
    %c0_i32_1 = arith.constant 0 : i32
    return %c0_i32, %c0_i32_0 : i32, i32
  }
  func.func @transform_7(%arg0: i32) -> (i32, i32) {
    %c0_i32 = arith.constant 0 : i32
    %c0_i32_0 = arith.constant 0 : i32
    %c0_i32_1 = arith.constant 0 : i32
    return %c0_i32, %c0_i32_0 : i32, i32
  }
  func.func @transform_8(%arg0: i32) -> (i32, i32) {
    %c0_i32 = arith.constant 0 : i32
    %c0_i32_0 = arith.constant 0 : i32
    %c0_i32_1 = arith.constant 0 : i32
    return %c0_i32, %c0_i32_0 : i32, i32
  }
  func.func @transform_9(%arg0: i32) -> (i32, i32) {
    %c0_i32 = arith.constant 0 : i32
    %c0_i32_0 = arith.constant 0 : i32
    %c0_i32_1 = arith.constant 0 : i32
    return %c0_i32, %c0_i32_0 : i32, i32
  }
  func.func @transform_10(%arg0: i32) -> (i32, i32) {
    %c0_i32 = arith.constant 0 : i32
    %c0_i32_0 = arith.constant 0 : i32
    %c0_i32_1 = arith.constant 0 : i32
    return %c0_i32, %c0_i32_0 : i32, i32
  }
  func.func @transform_11(%arg0: i32) -> (i32, i32) {
    %c0_i32 = arith.constant 0 : i32
    %c0_i32_0 = arith.constant 0 : i32
    %c0_i32_1 = arith.constant 0 : i32
    return %c0_i32, %c0_i32_0 : i32, i32
  }
  func.func @transform_12(%arg0: i32) -> (i32, i32) {
    %c0_i32 = arith.constant 0 : i32
    %c0_i32_0 = arith.constant 0 : i32
    %c0_i32_1 = arith.constant 0 : i32
    return %c0_i32, %c0_i32_0 : i32, i32
  }
  func.func @transform_13(%arg0: i32) -> (i32, i32, i32) {
    %c0_i32 = arith.constant 0 : i32
    %c0_i32_0 = arith.constant 0 : i32
    %c0_i32_1 = arith.constant 0 : i32
    return %arg0, %c0_i32, %c0_i32_0 : i32, i32, i32
  }
}

</mosaic_0001>

<llo_original>
// kernel: depthwise_xcorr_forward.1
$region0: #{depthwise_xcorr_forward.1}
  #allocation0 [shape = 'u32[]', space=smem, size = 0x4, offset = 0x4, fixed_abs, tag = 'smem constant byte address 0x4 - core index']
  #allocation1 [shape = 'u32[144,128]{1,0:T(1,128)}', space=vmem, size = 0x12000, scoped, tag = 'internal scratch']
  #allocation2 [shape = 'f32[48,32]{1,0:T(8,128)}', space=vmem, size = 0x6000, scoped, tag = 'scratch operand']
  #allocation3 [shape = 'f32[240,32]{1,0:T(8,128)}', space=vmem, size = 0x1e000, scoped, tag = 'scratch operand']
  %s0 = inlined_call_operand.vmem [shape: f32[2,72,4], index: 0, kind: input, shape index: {}]
  %s1 = inlined_call_operand.vmem [shape: f32[2,280,4], index: 1, kind: input, shape index: {}]
  %s2 = inlined_call_operand.vmem [shape: bf16[9,4,32], index: 2, kind: input, shape index: {}]
  %s3 = inlined_call_operand.vmem [shape: f32[1,32], index: 3, kind: input, shape index: {}]
  %s4 = inlined_call_operand.vmem [shape: f32[1,32], index: 4, kind: input, shape index: {}]
  %s5 = inlined_call_operand.vmem [shape: bf16[9,4,32], index: 5, kind: input, shape index: {}]
  %s6 = inlined_call_operand.vmem [shape: f32[1,32], index: 6, kind: input, shape index: {}]
  %s7 = inlined_call_operand.vmem [shape: f32[1,32], index: 7, kind: input, shape index: {}]
  %s8 = inlined_call_operand.vmem [shape: bf16[32,32], index: 8, kind: input, shape index: {}]
  %s9 = inlined_call_operand.vmem [shape: f32[1,32], index: 9, kind: input, shape index: {}]
  %s10 = inlined_call_operand.vmem [shape: f32[1,32], index: 10, kind: input, shape index: {}]
  %s11 = inlined_call_operand.vmem [shape: bf16[32,128], index: 11, kind: input, shape index: {}]
  %s12 = inlined_call_operand.vmem [shape: f32[1,128], index: 12, kind: input, shape index: {}]
  %s13 = inlined_call_operand.vmem [shape: f32[2,144,128], index: 13, kind: output, shape index: {}]
  %s14 = sld [smem:[#allocation0]]
  $region85: #{depthwise_xcorr_forward.1} parent=0
    _
  %s16 = ssub.s32 1, %s14
  %s17 = scalar_select 0, %s16, %s14
  loop: start=0, step=1, limit=4
  $region2: #{depthwise_xcorr_forward.1} parent=0 // loop_pre_header
    _
  $region3: #{depthwise_xcorr_forward.1} parent=0 // loop_header
    %s19 = sphi 0, %s23
    %p20 = scmp.ge.s32.totalorder %s19, 4
    %s29 = sphi 0, %s31
    %s32 = sphi 0, %s29
    %s33 = sphi 0, %s32
    %s49 = sphi 0, %s33
    %s55 = sphi 0, %s57
    %s58 = sphi 0, %s55
    %s59 = sphi 0, %s58
    %s75 = sphi 0, %s59
    %s79 = sphi 0, %s79
    %s81 = sphi 0, %s79
    %s82 = sphi 0, %s81
    %s96 = sphi 0, %s82
    %s100 = sphi 0, %s100
    %s102 = sphi 0, %s100
    %s103 = sphi 0, %s102
    %s117 = sphi 0, %s103
    %s121 = sphi 0, %s121
    %s123 = sphi 0, %s121
    %s124 = sphi 0, %s123
    %s138 = sphi 0, %s124
    %s142 = sphi 0, %s142
    %s144 = sphi 0, %s142
    %s145 = sphi 0, %s144
    %s159 = sphi 0, %s145
    %s163 = sphi 0, %s163
    %s165 = sphi 0, %s163
    %s166 = sphi 0, %s165
    %s180 = sphi 0, %s166
    %s184 = sphi 0, %s184
    %s186 = sphi 0, %s184
    %s187 = sphi 0, %s186
    %s201 = sphi 0, %s187
    %s205 = sphi 0, %s205
    %s207 = sphi 0, %s205
    %s208 = sphi 0, %s207
    %s222 = sphi 0, %s208
    %s226 = sphi 0, %s226
    %s228 = sphi 0, %s226
    %s229 = sphi 0, %s228
    %s243 = sphi 0, %s229
    %s247 = sphi 0, %s247
    %s249 = sphi 0, %s247
    %s250 = sphi 0, %s249
    %s264 = sphi 0, %s250
    %s268 = sphi 0, %s268
    %s270 = sphi 0, %s268
    %s271 = sphi 0, %s270
    %s285 = sphi 0, %s271
    %s289 = sphi 0, %s289
    %s291 = sphi 0, %s289
    %s292 = sphi 0, %s291
    %s306 = sphi 0, %s292
    %s312 = sphi 0, %s314
    %s315 = sphi 0, %s312
    %s316 = sphi 0, %s315
    %s332 = sphi 0, %s316
  $region4: #{depthwise_xcorr_forward.1} parent=0 // loop_header_branch
    %22 = sbr.rel (%p20) target = $region8
  $region5: #{depthwise_xcorr_forward.1} parent=0 // loop_body
    %s24 = ssub.s32 %s19, 1
    %s25 = ssub.s32 %s19, 2
    %s26 = sadd.s32 %s19, 1
    %s27 = ssub.s32 %s19, %s26
    %p28 = scmp.eq.s32.totalorder %s27, 0
    %s30 = sadd.s32 %s29, 1
    %s31 = scalar_select %p28, %s29, %s30
    %p34 = pneg %p28
    %p35 = scmp.eq.s32.totalorder %s19, 1
    %p36 = por %p34, %p35
    %p37 = scmp.ne.s32.totalorder %s29, %s32
    %p38 = scmp.eq.s32.totalorder %s19, 0
    %p39 = por %p37, %p38
    %p40 = scmp.ne.s32.totalorder %s29, %s32
    %p41 = scmp.eq.s32.totalorder %s24, 1
    %p42 = por %p40, %p41
    %p43 = scmp.ne.s32.totalorder %s32, %s33
    %p44 = scmp.eq.s32.totalorder %s24, 0
    %p45 = por %p43, %p44
    %p46 = scmp.ne.s32.totalorder %s32, %s33
    %p47 = scmp.eq.s32.totalorder %s25, 1
    %p48 = por %p46, %p47
    %p50 = scmp.ne.s32.totalorder %s33, %s49
    %p51 = scmp.eq.s32.totalorder %s25, 0
    %p52 = por %p50, %p51
    %s53 = ssub.s32 %s19, %s26
    %p54 = scmp.eq.s32.totalorder %s53, 0
    %s56 = sadd.s32 %s55, 1
    %s57 = scalar_select %p54, %s55, %s56
    %p60 = pneg %p54
    %p61 = scmp.eq.s32.totalorder %s19, 1
    %p62 = por %p60, %p61
    %p63 = scmp.ne.s32.totalorder %s55, %s58
    %p64 = scmp.eq.s32.totalorder %s19, 0
    %p65 = por %p63, %p64
    %p66 = scmp.ne.s32.totalorder %s55, %s58
    %p67 = scmp.eq.s32.totalorder %s24, 1
    %p68 = por %p66, %p67
    %p69 = scmp.ne.s32.totalorder %s58, %s59
    %p70 = scmp.eq.s32.totalorder %s24, 0
    %p71 = por %p69, %p70
    %p72 = scmp.ne.s32.totalorder %s58, %s59
    %p73 = scmp.eq.s32.totalorder %s25, 1
    %p74 = por %p72, %p73
    %p76 = scmp.ne.s32.totalorder %s59, %s75
    %p77 = scmp.eq.s32.totalorder %s25, 0
    %p78 = por %p76, %p77
    %s80 = sadd.s32 %s79, 1
    %p83 = scmp.eq.s32.totalorder %s19, 1
    %p84 = scmp.ne.s32.totalorder %s79, %s81
    %p85 = scmp.eq.s32.totalorder %s19, 0
    %p86 = por %p84, %p85
    %p87 = scmp.ne.s32.totalorder %s79, %s81
    %p88 = scmp.eq.s32.totalorder %s24, 1
    %p89 = por %p87, %p88
    %p90 = scmp.ne.s32.totalorder %s81, %s82
    %p91 = scmp.eq.s32.totalorder %s24, 0
    %p92 = por %p90, %p91
    %p93 = scmp.ne.s32.totalorder %s81, %s82
    %p94 = scmp.eq.s32.totalorder %s25, 1
    %p95 = por %p93, %p94
    %p97 = scmp.ne.s32.totalorder %s82, %s96
    %p98 = scmp.eq.s32.totalorder %s25, 0
    %p99 = por %p97, %p98
    %s101 = sadd.s32 %s100, 1
    %p104 = scmp.eq.s32.totalorder %s19, 1
    %p105 = scmp.ne.s32.totalorder %s100, %s102
    %p106 = scmp.eq.s32.totalorder %s19, 0
    %p107 = por %p105, %p106
    %p108 = scmp.ne.s32.totalorder %s100, %s102
    %p109 = scmp.eq.s32.totalorder %s24, 1
    %p110 = por %p108, %p109
    %p111 = scmp.ne.s32.totalorder %s102, %s103
    %p112 = scmp.eq.s32.totalorder %s24, 0
    %p113 = por %p111, %p112
    %p114 = scmp.ne.s32.totalorder %s102, %s103
    %p115 = scmp.eq.s32.totalorder %s25, 1
    %p116 = por %p114, %p115
    %p118 = scmp.ne.s32.totalorder %s103, %s117
    %p119 = scmp.eq.s32.totalorder %s25, 0
    %p120 = por %p118, %p119
    %s122 = sadd.s32 %s121, 1
    %p125 = scmp.eq.s32.totalorder %s19, 1
    %p126 = scmp.ne.s32.totalorder %s121, %s123
    %p127 = scmp.eq.s32.totalorder %s19, 0
    %p128 = por %p126, %p127
    %p129 = scmp.ne.s32.totalorder %s121, %s123
    %p130 = scmp.eq.s32.totalorder %s24, 1
    %p131 = por %p129, %p130
    %p132 = scmp.ne.s32.totalorder %s123, %s124
    %p133 = scmp.eq.s32.totalorder %s24, 0
    %p134 = por %p132, %p133
    %p135 = scmp.ne.s32.totalorder %s123, %s124
    %p136 = scmp.eq.s32.totalorder %s25, 1
    %p137 = por %p135, %p136
    %p139 = scmp.ne.s32.totalorder %s124, %s138
    %p140 = scmp.eq.s32.totalorder %s25, 0
    %p141 = por %p139, %p140
    %s143 = sadd.s32 %s142, 1
    %p146 = scmp.eq.s32.totalorder %s19, 1
    %p147 = scmp.ne.s32.totalorder %s142, %s144
    %p148 = scmp.eq.s32.totalorder %s19, 0
    %p149 = por %p147, %p148
    %p150 = scmp.ne.s32.totalorder %s142, %s144
    %p151 = scmp.eq.s32.totalorder %s24, 1
    %p152 = por %p150, %p151
    %p153 = scmp.ne.s32.totalorder %s144, %s145
    %p154 = scmp.eq.s32.totalorder %s24, 0
    %p155 = por %p153, %p154
    %p156 = scmp.ne.s32.totalorder %s144, %s145
    %p157 = scmp.eq.s32.totalorder %s25, 1
    %p158 = por %p156, %p157
    %p160 = scmp.ne.s32.totalorder %s145, %s159
    %p161 = scmp.eq.s32.totalorder %s25, 0
    %p162 = por %p160, %p161
    %s164 = sadd.s32 %s163, 1
    %p167 = scmp.eq.s32.totalorder %s19, 1
    %p168 = scmp.ne.s32.totalorder %s163, %s165
    %p169 = scmp.eq.s32.totalorder %s19, 0
    %p170 = por %p168, %p169
    %p171 = scmp.ne.s32.totalorder %s163, %s165
    %p172 = scmp.eq.s32.totalorder %s24, 1
    %p173 = por %p171, %p172
    %p174 = scmp.ne.s32.totalorder %s165, %s166
    %p175 = scmp.eq.s32.totalorder %s24, 0
    %p176 = por %p174, %p175
    %p177 = scmp.ne.s32.totalorder %s165, %s166
    %p178 = scmp.eq.s32.totalorder %s25, 1
    %p179 = por %p177, %p178
    %p181 = scmp.ne.s32.totalorder %s166, %s180
    %p182 = scmp.eq.s32.totalorder %s25, 0
    %p183 = por %p181, %p182
    %s185 = sadd.s32 %s184, 1
    %p188 = scmp.eq.s32.totalorder %s19, 1
    %p189 = scmp.ne.s32.totalorder %s184, %s186
    %p190 = scmp.eq.s32.totalorder %s19, 0
    %p191 = por %p189, %p190
    %p192 = scmp.ne.s32.totalorder %s184, %s186
    %p193 = scmp.eq.s32.totalorder %s24, 1
    %p194 = por %p192, %p193
    %p195 = scmp.ne.s32.totalorder %s186, %s187
    %p196 = scmp.eq.s32.totalorder %s24, 0
    %p197 = por %p195, %p196
    %p198 = scmp.ne.s32.totalorder %s186, %s187
    %p199 = scmp.eq.s32.totalorder %s25, 1
    %p200 = por %p198, %p199
    %p202 = scmp.ne.s32.totalorder %s187, %s201
    %p203 = scmp.eq.s32.totalorder %s25, 0
    %p204 = por %p202, %p203
    %s206 = sadd.s32 %s205, 1
    %p209 = scmp.eq.s32.totalorder %s19, 1
    %p210 = scmp.ne.s32.totalorder %s205, %s207
    %p211 = scmp.eq.s32.totalorder %s19, 0
    %p212 = por %p210, %p211
    %p213 = scmp.ne.s32.totalorder %s205, %s207
    %p214 = scmp.eq.s32.totalorder %s24, 1
    %p215 = por %p213, %p214
    %p216 = scmp.ne.s32.totalorder %s207, %s208
    %p217 = scmp.eq.s32.totalorder %s24, 0
    %p218 = por %p216, %p217
    %p219 = scmp.ne.s32.totalorder %s207, %s208
    %p220 = scmp.eq.s32.totalorder %s25, 1
    %p221 = por %p219, %p220
    %p223 = scmp.ne.s32.totalorder %s208, %s222
    %p224 = scmp.eq.s32.totalorder %s25, 0
    %p225 = por %p223, %p224
    %s227 = sadd.s32 %s226, 1
    %p230 = scmp.eq.s32.totalorder %s19, 1
    %p231 = scmp.ne.s32.totalorder %s226, %s228
    %p232 = scmp.eq.s32.totalorder %s19, 0
    %p233 = por %p231, %p232
    %p234 = scmp.ne.s32.totalorder %s226, %s228
    %p235 = scmp.eq.s32.totalorder %s24, 1
    %p236 = por %p234, %p235
    %p237 = scmp.ne.s32.totalorder %s228, %s229
    %p238 = scmp.eq.s32.totalorder %s24, 0
    %p239 = por %p237, %p238
    %p240 = scmp.ne.s32.totalorder %s228, %s229
    %p241 = scmp.eq.s32.totalorder %s25, 1
    %p242 = por %p240, %p241
    %p244 = scmp.ne.s32.totalorder %s229, %s243
    %p245 = scmp.eq.s32.totalorder %s25, 0
    %p246 = por %p244, %p245
    %s248 = sadd.s32 %s247, 1
    %p251 = scmp.eq.s32.totalorder %s19, 1
    %p252 = scmp.ne.s32.totalorder %s247, %s249
    %p253 = scmp.eq.s32.totalorder %s19, 0
    %p254 = por %p252, %p253
    %p255 = scmp.ne.s32.totalorder %s247, %s249
    %p256 = scmp.eq.s32.totalorder %s24, 1
    %p257 = por %p255, %p256
    %p258 = scmp.ne.s32.totalorder %s249, %s250
    %p259 = scmp.eq.s32.totalorder %s24, 0
    %p260 = por %p258, %p259
    %p261 = scmp.ne.s32.totalorder %s249, %s250
    %p262 = scmp.eq.s32.totalorder %s25, 1
    %p263 = por %p261, %p262
    %p265 = scmp.ne.s32.totalorder %s250, %s264
    %p266 = scmp.eq.s32.totalorder %s25, 0
    %p267 = por %p265, %p266
    %s269 = sadd.s32 %s268, 1
    %p272 = scmp.eq.s32.totalorder %s19, 1
    %p273 = scmp.ne.s32.totalorder %s268, %s270
    %p274 = scmp.eq.s32.totalorder %s19, 0
    %p275 = por %p273, %p274
    %p276 = scmp.ne.s32.totalorder %s268, %s270
    %p277 = scmp.eq.s32.totalorder %s24, 1
    %p278 = por %p276, %p277
    %p279 = scmp.ne.s32.totalorder %s270, %s271
    %p280 = scmp.eq.s32.totalorder %s24, 0
    %p281 = por %p279, %p280
    %p282 = scmp.ne.s32.totalorder %s270, %s271
    %p283 = scmp.eq.s32.totalorder %s25, 1
    %p284 = por %p282, %p283
    %p286 = scmp.ne.s32.totalorder %s271, %s285
    %p287 = scmp.eq.s32.totalorder %s25, 0
    %p288 = por %p286, %p287
    %s290 = sadd.s32 %s289, 1
    %p293 = scmp.eq.s32.totalorder %s19, 1
    %p294 = scmp.ne.s32.totalorder %s289, %s291
    %p295 = scmp.eq.s32.totalorder %s19, 0
    %p296 = por %p294, %p295
    %p297 = scmp.ne.s32.totalorder %s289, %s291
    %p298 = scmp.eq.s32.totalorder %s24, 1
    %p299 = por %p297, %p298
    %p300 = scmp.ne.s32.totalorder %s291, %s292
    %p301 = scmp.eq.s32.totalorder %s24, 0
    %p302 = por %p300, %p301
    %p303 = scmp.ne.s32.totalorder %s291, %s292
    %p304 = scmp.eq.s32.totalorder %s25, 1
    %p305 = por %p303, %p304
    %p307 = scmp.ne.s32.totalorder %s292, %s306
    %p308 = scmp.eq.s32.totalorder %s25, 0
    %p309 = por %p307, %p308
    %s310 = ssub.s32 %s19, %s26
    %p311 = scmp.eq.s32.totalorder %s310, 0
    %s313 = sadd.s32 %s312, 1
    %s314 = scalar_select %p311, %s312, %s313
    %p317 = pneg %p311
    %p318 = scmp.eq.s32.totalorder %s19, 1
    %p319 = por %p317, %p318
    %p320 = scmp.ne.s32.totalorder %s312, %s315
    %p321 = scmp.eq.s32.totalorder %s19, 0
    %p322 = por %p320, %p321
    %p323 = scmp.ne.s32.totalorder %s312, %s315
    %p324 = scmp.eq.s32.totalorder %s24, 1
    %p325 = por %p323, %p324
    %p326 = scmp.ne.s32.totalorder %s315, %s316
    %p327 = scmp.eq.s32.totalorder %s24, 0
    %p328 = por %p326, %p327
    %p329 = scmp.ne.s32.totalorder %s315, %s316
    %p330 = scmp.eq.s32.totalorder %s25, 1
    %p331 = por %p329, %p330
    %p333 = scmp.ne.s32.totalorder %s316, %s332
    %p334 = scmp.eq.s32.totalorder %s25, 0
    %p335 = por %p333, %p334
    %p336 = scmp.le.s32.totalorder 1, %s19
    %p337 = scmp.lt.s32.totalorder %s19, 3
    %p338 = pnand %p336, %p337
    %p339 = pneg %p338
    // Predicated region
    $region9: #{depthwise_xcorr_forward.1} parent=5 // pred_check
      _
    $region10: #{depthwise_xcorr_forward.1} parent=5 // pred_check_branch
      %341 = sbr.rel (%p338) target = $region12
    $region11: #{depthwise_xcorr_forward.1} parent=5 // pred_region
      %s342 = ssub.s32 %s19, 1
      // Predicated region
      $region13: #{depthwise_xcorr_forward.1} parent=11 // pred_check
        %p343 = pneg %p92
      $region14: #{depthwise_xcorr_forward.1} parent=11 // pred_check_branch
        %345 = sbr.rel (%p343) target = $region16
      $region15: #{depthwise_xcorr_forward.1} parent=11 // pred_region
        _
      $region16: #{depthwise_xcorr_forward.1} parent=11 // pred_fallthru
        _
      // Predicated region
      $region17: #{depthwise_xcorr_forward.1} parent=11 // pred_check
        %p346 = pneg %p113
      $region18: #{depthwise_xcorr_forward.1} parent=11 // pred_check_branch
        %348 = sbr.rel (%p346) target = $region20
      $region19: #{depthwise_xcorr_forward.1} parent=11 // pred_region
        _
      $region20: #{depthwise_xcorr_forward.1} parent=11 // pred_fallthru
        _
      // Predicated region
      $region21: #{depthwise_xcorr_forward.1} parent=11 // pred_check
        %p349 = pneg %p134
      $region22: #{depthwise_xcorr_forward.1} parent=11 // pred_check_branch
        %351 = sbr.rel (%p349) target = $region24
      $region23: #{depthwise_xcorr_forward.1} parent=11 // pred_region
        _
      $region24: #{depthwise_xcorr_forward.1} parent=11 // pred_fallthru
        _
      // Predicated region
      $region25: #{depthwise_xcorr_forward.1} parent=11 // pred_check
        %p352 = pneg %p155
      $region26: #{depthwise_xcorr_forward.1} parent=11 // pred_check_branch
        %354 = sbr.rel (%p352) target = $region28
      $region27: #{depthwise_xcorr_forward.1} parent=11 // pred_region
        _
      $region28: #{depthwise_xcorr_forward.1} parent=11 // pred_fallthru
        _
      // Predicated region
      $region29: #{depthwise_xcorr_forward.1} parent=11 // pred_check
        %p355 = pneg %p176
      $region30: #{depthwise_xcorr_forward.1} parent=11 // pred_check_branch
        %357 = sbr.rel (%p355) target = $region32
      $region31: #{depthwise_xcorr_forward.1} parent=11 // pred_region
        _
      $region32: #{depthwise_xcorr_forward.1} parent=11 // pred_fallthru
        _
      // Predicated region
      $region33: #{depthwise_xcorr_forward.1} parent=11 // pred_check
        %p358 = pneg %p197
      $region34: #{depthwise_xcorr_forward.1} parent=11 // pred_check_branch
        %360 = sbr.rel (%p358) target = $region36
      $region35: #{depthwise_xcorr_forward.1} parent=11 // pred_region
        _
      $region36: #{depthwise_xcorr_forward.1} parent=11 // pred_fallthru
        _
      // Predicated region
      $region37: #{depthwise_xcorr_forward.1} parent=11 // pred_check
        %p361 = pneg %p218
      $region38: #{depthwise_xcorr_forward.1} parent=11 // pred_check_branch
        %363 = sbr.rel (%p361) target = $region40
      $region39: #{depthwise_xcorr_forward.1} parent=11 // pred_region
        _
      $region40: #{depthwise_xcorr_forward.1} parent=11 // pred_fallthru
        _
      // Predicated region
      $region41: #{depthwise_xcorr_forward.1} parent=11 // pred_check
        %p364 = pneg %p239
      $region42: #{depthwise_xcorr_forward.1} parent=11 // pred_check_branch
        %366 = sbr.rel (%p364) target = $region44
      $region43: #{depthwise_xcorr_forward.1} parent=11 // pred_region
        _
      $region44: #{depthwise_xcorr_forward.1} parent=11 // pred_fallthru
        _
      // Predicated region
      $region45: #{depthwise_xcorr_forward.1} parent=11 // pred_check
        %p367 = pneg %p260
      $region46: #{depthwise_xcorr_forward.1} parent=11 // pred_check_branch
        %369 = sbr.rel (%p367) target = $region48
      $region47: #{depthwise_xcorr_forward.1} parent=11 // pred_region
        _
      $region48: #{depthwise_xcorr_forward.1} parent=11 // pred_fallthru
        _
      // Predicated region
      $region49: #{depthwise_xcorr_forward.1} parent=11 // pred_check
        %p370 = pneg %p281
      $region50: #{depthwise_xcorr_forward.1} parent=11 // pred_check_branch
        %372 = sbr.rel (%p370) target = $region52
      $region51: #{depthwise_xcorr_forward.1} parent=11 // pred_region
        _
      $region52: #{depthwise_xcorr_forward.1} parent=11 // pred_fallthru
        _
      // Predicated region
      $region53: #{depthwise_xcorr_forward.1} parent=11 // pred_check
        %p373 = pneg %p302
      $region54: #{depthwise_xcorr_forward.1} parent=11 // pred_check_branch
        %375 = sbr.rel (%p373) target = $region56
      $region55: #{depthwise_xcorr_forward.1} parent=11 // pred_region
        _
      $region56: #{depthwise_xcorr_forward.1} parent=11 // pred_fallthru
        _
    $region12: #{depthwise_xcorr_forward.1} parent=5 // pred_fallthru
      _
    %p376 = scmp.lt.s32.totalorder %s19, 2
    // Predicated region
    $region57: #{depthwise_xcorr_forward.1} parent=5 // pred_check
      %p377 = pneg %p376
    $region58: #{depthwise_xcorr_forward.1} parent=5 // pred_check_branch
      %379 = sbr.rel (%p377) target = $region60
    $region59: #{depthwise_xcorr_forward.1} parent=5 // pred_region
      // Predicated region
      $region61: #{depthwise_xcorr_forward.1} parent=59 // pred_check
        %p380 = pneg %p39
      $region62: #{depthwise_xcorr_forward.1} parent=59 // pred_check_branch
        %382 = sbr.rel (%p380) target = $region64
      $region63: #{depthwise_xcorr_forward.1} parent=59 // pred_region
        %p383 = scmp.lt.s32.totalorder %s19, 1
        %s384 = scalar_select %p383, %s19, 1
        %s385 = smul.addr %s384, 9
        %s386 = smul.addr %s385, 8
        %s387 = scalar_lea.vmem %s0, %s386
      $region64: #{depthwise_xcorr_forward.1} parent=59 // pred_fallthru
        _
      // Predicated region
      $region65: #{depthwise_xcorr_forward.1} parent=59 // pred_check
        %p388 = pneg %p65
      $region66: #{depthwise_xcorr_forward.1} parent=59 // pred_check_branch
        %390 = sbr.rel (%p388) target = $region68
      $region67: #{depthwise_xcorr_forward.1} parent=59 // pred_region
        %p391 = scmp.lt.s32.totalorder %s19, 1
        %s392 = scalar_select %p391, %s19, 1
        %s393 = smul.addr %s392, 35
        %s394 = smul.addr %s393, 8
        %s395 = scalar_lea.vmem %s1, %s394
      $region68: #{depthwise_xcorr_forward.1} parent=59 // pred_fallthru
        _
    $region60: #{depthwise_xcorr_forward.1} parent=5 // pred_fallthru
      _
    %p396 = scmp.le.s32.totalorder 1, %s19
    %p397 = scmp.lt.s32.totalorder %s19, 3
    %p398 = pnand %p396, %p397
    %p399 = pneg %p398
    // Predicated region
    $region69: #{depthwise_xcorr_forward.1} parent=5 // pred_check
      _
    $region70: #{depthwise_xcorr_forward.1} parent=5 // pred_check_branch
      %401 = sbr.rel (%p398) target = $region72
    $region71: #{depthwise_xcorr_forward.1} parent=5 // pred_region
      %s402 = ssub.s32 %s19, 1
      %p403 = scmp.lt.s32.totalorder %s24, 1
      %s404 = scalar_select %p403, %s24, 1
      %s405 = smul.addr %s404, 9
      %s406 = smul.addr %s405, 8
      %s407 = scalar_lea.vmem %s0, %s406
      %p408 = pneg %p45
      %p409 = pneg %p42
      %p410 = scmp.lt.s32.totalorder %s24, 1
      %s411 = scalar_select %p410, %s24, 1
      %s412 = smul.addr %s411, 35
      %s413 = smul.addr %s412, 8
      %s414 = scalar_lea.vmem %s1, %s413
      %p415 = pneg %p71
      %p416 = pneg %p68
      %p417 = pneg %p92
      %p418 = pneg %p89
      %p419 = pneg %p113
      %p420 = pneg %p110
      %p421 = pneg %p134
      %p422 = pneg %p131
      %p423 = pneg %p155
      %p424 = pneg %p152
      %p425 = pneg %p176
      %p426 = pneg %p173
      %p427 = pneg %p197
      %p428 = pneg %p194
      %p429 = pneg %p218
      %p430 = pneg %p215
      %p431 = pneg %p239
      %p432 = pneg %p236
      %p433 = pneg %p260
      %p434 = pneg %p257
      %p435 = pneg %p281
      %p436 = pneg %p278
      %p437 = pneg %p302
      %p438 = pneg %p299
      %p439 = pneg %p328
      %p440 = pneg %p325
      %p441 = scmp.lt.s32.totalorder %s24, 1
      %s442 = scalar_select %p441, %s24, 1
      %s443 = smul.addr %s442, 18
      %s444 = smul.addr %s443, 8
      %s445 = scalar_lea.vmem %s13, %s444
      %p446 = scmp.lt.s32.totalorder %s24, 1
      %s447 = scalar_select %p446, %s24, 1
      %s448 = smul.addr %s447, 9
      %s449 = smul.addr %s448, 8
      %s450 = scalar_lea.vmem %s0, %s449
      %p451 = scmp.lt.s32.totalorder %s24, 1
      %s452 = scalar_select %p451, %s24, 1
      %s453 = smul.addr %s452, 35
      %s454 = smul.addr %s453, 8
      %s455 = scalar_lea.vmem %s1, %s454
      %p456 = scmp.lt.s32.totalorder %s24, 1
      %s457 = scalar_select %p456, %s24, 1
      %s458 = smul.addr %s457, 18
      %s459 = smul.addr %s458, 8
      %s460 = scalar_lea.vmem %s13, %s459
      %v462 = vld [vmem:[%s450] sm:$0xff]
      %v463 = vld [vmem:[%s450 + $0x8] sm:$0xff]
      %v464 = vld [vmem:[%s450 + $0x10] sm:$0xff]
      %v465 = vld [vmem:[%s450 + $0x18] sm:$0xff]
      %v466 = vld [vmem:[%s450 + $0x20] sm:$0xff]
      %v467 = vld [vmem:[%s450 + $0x28] sm:$0xff]
      %v468 = vpack.c.bf16 %v463, %v462
      %v469 = vpack.c.bf16 %v465, %v464
      %v470 = vpack.c.bf16 %v467, %v466
      %v471 = vld [vmem:[%s2] sm:$0x3]
      %v472 = vld [vmem:[%s450 + $0x1] sm:$0xff]
      %v473 = vld [vmem:[%s450 + $0x9] sm:$0xff]
      %v474 = vld [vmem:[%s450 + $0x11] sm:$0xff]
      %v475 = vld [vmem:[%s450 + $0x19] sm:$0xff]
      %v476 = vld [vmem:[%s450 + $0x21] sm:$0xff]
      %v477 = vld [vmem:[%s450 + $0x29] sm:$0xff]
      %v478 = vpack.c.bf16 %v473, %v472
      %v479 = vpack.c.bf16 %v475, %v474
      %v480 = vpack.c.bf16 %v477, %v476
      %s481 = scalar_lea.vmem %s2, 2
      %v482 = vld [vmem:[%s481] sm:$0x3]
      %vm483 = vcmask 31744
      %v485 = vsel %vm483, %v478, 0
      %v488 = vsel %vm483, %v479, 0
      %v491 = vsel %vm483, %v480, 0
      %vm493 = vcmask 1041408
      %v495 = vsel %vm493, %v482, 0
      %497 = vmatprep.subr.bf16.mxu0 0
      %498 = vmatpush1.bf16.msra.mxu0 %v495
      %499 = vmatprep.subr.bf16.mxu0 0
      %500 = vmatpush1.bf16.msra.mxu0 0
      %501 = vmatprep.subr.bf16.mxu0 0
      %502 = vmatpush1.bf16.msra.mxu0 0
      %503 = vmatprep.subr.bf16.mxu0 0
      %504 = vmatpush1.bf16.msra.mxu0 0
      %505 = vmatprep.subr.bf16.mxu0 0
      %506 = vmatpush1.bf16.msra.mxu0 0
      %507 = vmatprep.subr.bf16.mxu0 0
      %508 = vmatpush1.bf16.msra.mxu0 0
      %509 = vmatprep.subr.bf16.mxu0 0
      %510 = vmatpush1.bf16.msra.mxu0 0
      %511 = vmatprep.subr.bf16.mxu0 0
      %512 = vmatpush1.bf16.msra.mxu0 0
      %513 = vmatprep.subr.bf16.mxu0 0
      %514 = vmatpush1.bf16.msra.mxu0 0
      %515 = vmatprep.subr.bf16.mxu0 0
      %516 = vmatpush1.bf16.msra.mxu0 0
      %517 = vmatprep.subr.bf16.mxu0 0
      %518 = vmatpush1.bf16.msra.mxu0 0
      %519 = vmatprep.subr.bf16.mxu0 0
      %520 = vmatpush1.bf16.msra.mxu0 0
      %521 = vmatprep.subr.bf16.mxu0 0
      %522 = vmatpush1.bf16.msra.mxu0 0
      %523 = vmatprep.subr.bf16.mxu0 0
      %524 = vmatpush1.bf16.msra.mxu0 0
      %525 = vmatprep.subr.bf16.mxu0 0
      %526 = vmatpush1.bf16.msra.mxu0 0
      %527 = vmatprep.subr.bf16.mxu0 0
      %528 = vmatpush1.bf16.msra.mxu0 0
      %529 = vmatprep.mubr.bf16.mxu0 0
      %530 = vmatmul.mubr.bf16.gmra.mrb[0].mxu0 %v485
      %v531 = vpop.f32.mrb[0].mxu0
      %v532 = vadd.f32 0.0, %v531
      %v533 = vpop.f32.mrb[0].mxu0
      %v534 = vpop.f32.mrb[0].mxu0
      %v535 = vadd.f32 0.0, %v534
      %v536 = vpop.f32.mrb[0].mxu0
      %537 = vmatprep.mubr.bf16.mxu0 0
      %538 = vmatmul.mubr.bf16.gmra.mrb[0].mxu0 %v488
      %v539 = vpop.f32.mrb[0].mxu0
      %v540 = vadd.f32 0.0, %v539
      %v541 = vpop.f32.mrb[0].mxu0
      %v542 = vpop.f32.mrb[0].mxu0
      %v543 = vadd.f32 0.0, %v542
      %v544 = vpop.f32.mrb[0].mxu0
      %545 = vmatprep.mubr.bf16.mxu0 0
      %546 = vmatmul.mubr.bf16.gmra.mrb[0].mxu0 %v491
      %v547 = vpop.f32.mrb[0].mxu0
      %v548 = vadd.f32 0.0, %v547
      %v549 = vpop.f32.mrb[0].mxu0
      %v550 = vpop.f32.mrb[0].mxu0
      %v551 = vadd.f32 0.0, %v550
      %v552 = vpop.f32.mrb[0].mxu0
      %553 = vdwg.mxu0
      %v555 = vsel %vm483, %v468, 0
      %v558 = vsel %vm483, %v469, 0
      %v561 = vsel %vm483, %v470, 0
      %v564 = vsel %vm493, %v471, 0
      %566 = vmatprep.subr.bf16.mxu0 0
      %567 = vmatpush1.bf16.msra.mxu0 %v564
      %568 = vmatprep.subr.bf16.mxu0 0
      %569 = vmatpush1.bf16.msra.mxu0 0
      %570 = vmatprep.subr.bf16.mxu0 0
      %571 = vmatpush1.bf16.msra.mxu0 0
      %572 = vmatprep.subr.bf16.mxu0 0
      %573 = vmatpush1.bf16.msra.mxu0 0
      %574 = vmatprep.subr.bf16.mxu0 0
      %575 = vmatpush1.bf16.msra.mxu0 0
      %576 = vmatprep.subr.bf16.mxu0 0
      %577 = vmatpush1.bf16.msra.mxu0 0
      %578 = vmatprep.subr.bf16.mxu0 0
      %579 = vmatpush1.bf16.msra.mxu0 0
      %580 = vmatprep.subr.bf16.mxu0 0
      %581 = vmatpush1.bf16.msra.mxu0 0
      %582 = vmatprep.subr.bf16.mxu0 0
      %583 = vmatpush1.bf16.msra.mxu0 0
      %584 = vmatprep.subr.bf16.mxu0 0
      %585 = vmatpush1.bf16.msra.mxu0 0
      %586 = vmatprep.subr.bf16.mxu0 0
      %587 = vmatpush1.bf16.msra.mxu0 0
      %588 = vmatprep.subr.bf16.mxu0 0
      %589 = vmatpush1.bf16.msra.mxu0 0
      %590 = vmatprep.subr.bf16.mxu0 0
      %591 = vmatpush1.bf16.msra.mxu0 0
      %592 = vmatprep.subr.bf16.mxu0 0
      %593 = vmatpush1.bf16.msra.mxu0 0
      %594 = vmatprep.subr.bf16.mxu0 0
      %595 = vmatpush1.bf16.msra.mxu0 0
      %596 = vmatprep.subr.bf16.mxu0 0
      %597 = vmatpush1.bf16.msra.mxu0 0
      %598 = vmatprep.mubr.bf16.mxu0 0
      %599 = vmatmul.mubr.bf16.gmra.mrb[0].mxu0 %v555
      %v600 = vpop.f32.mrb[0].mxu0
      %v601 = vadd.f32 %v532, %v600
      %v602 = vpop.f32.mrb[0].mxu0
      %v603 = vpop.f32.mrb[0].mxu0
      %v604 = vadd.f32 %v535, %v603
      %v605 = vpop.f32.mrb[0].mxu0
      %606 = vmatprep.mubr.bf16.mxu0 0
      %607 = vmatmul.mubr.bf16.gmra.mrb[0].mxu0 %v558
      %v608 = vpop.f32.mrb[0].mxu0
      %v609 = vadd.f32 %v540, %v608
      %v610 = vpop.f32.mrb[0].mxu0
      %v611 = vpop.f32.mrb[0].mxu0
      %v612 = vadd.f32 %v543, %v611
      %v613 = vpop.f32.mrb[0].mxu0
      %614 = vmatprep.mubr.bf16.mxu0 0
      %615 = vmatmul.mubr.bf16.gmra.mrb[0].mxu0 %v561
      %v616 = vpop.f32.mrb[0].mxu0
      %v617 = vadd.f32 %v548, %v616
      %v618 = vpop.f32.mrb[0].mxu0
      %v619 = vpop.f32.mrb[0].mxu0
      %v620 = vadd.f32 %v551, %v619
      %v621 = vpop.f32.mrb[0].mxu0
      %622 = vdwg.mxu0
      %v623 = vld [vmem:[%s450 + $0x2] sm:$0xff]
      %v624 = vld [vmem:[%s450 + $0xa] sm:$0xff]
      %v625 = vld [vmem:[%s450 + $0x12] sm:$0xff]
      %v626 = vld [vmem:[%s450 + $0x1a] sm:$0xff]
      %v627 = vld [vmem:[%s450 + $0x22] sm:$0xff]
      %v628 = vld [vmem:[%s450 + $0x2a] sm:$0xff]
      %v629 = vpack.c.bf16 %v624, %v623
      %v630 = vpack.c.bf16 %v626, %v625
      %v631 = vpack.c.bf16 %v628, %v627
      %s632 = scalar_lea.vmem %s2, 4
      %v633 = vld [vmem:[%s632] sm:$0x3]
      %v635 = vsel %vm483, %v629, 0
      %v638 = vsel %vm483, %v630, 0
      %v641 = vsel %vm483, %v631, 0
      %v644 = vsel %vm493, %v633, 0
      %646 = vmatprep.subr.bf16.mxu0 0
      %647 = vmatpush1.bf16.msra.mxu0 %v644
      %648 = vmatprep.subr.bf16.mxu0 0
      %649 = vmatpush1.bf16.msra.mxu0 0
      %650 = vmatprep.subr.bf16.mxu0 0
      %651 = vmatpush1.bf16.msra.mxu0 0
      %652 = vmatprep.subr.bf16.mxu0 0
      %653 = vmatpush1.bf16.msra.mxu0 0
      %654 = vmatprep.subr.bf16.mxu0 0
      %655 = vmatpush1.bf16.msra.mxu0 0
      %656 = vmatprep.subr.bf16.mxu0 0
      %657 = vmatpush1.bf16.msra.mxu0 0
      %658 = vmatprep.subr.bf16.mxu0 0
      %659 = vmatpush1.bf16.msra.mxu0 0
      %660 = vmatprep.subr.bf16.mxu0 0
      %661 = vmatpush1.bf16.msra.mxu0 0
      %662 = vmatprep.subr.bf16.mxu0 0
      %663 = vmatpush1.bf16.msra.mxu0 0
      %664 = vmatprep.subr.bf16.mxu0 0
      %665 = vmatpush1.bf16.msra.mxu0 0
      %666 = vmatprep.subr.bf16.mxu0 0
      %667 = vmatpush1.bf16.msra.mxu0 0
      %668 = vmatprep.subr.bf16.mxu0 0
      %669 = vmatpush1.bf16.msra.mxu0 0
      %670 = vmatprep.subr.bf16.mxu0 0
      %671 = vmatpush1.bf16.msra.mxu0 0
      %672 = vmatprep.subr.bf16.mxu0 0
      %673 = vmatpush1.bf16.msra.mxu0 0
      %674 = vmatprep.subr.bf16.mxu0 0
      %675 = vmatpush1.bf16.msra.mxu0 0
      %676 = vmatprep.subr.bf16.mxu0 0
      %677 = vmatpush1.bf16.msra.mxu0 0
      %678 = vmatprep.mubr.bf16.mxu0 0
      %679 = vmatmul.mubr.bf16.gmra.mrb[0].mxu0 %v635
      %v680 = vpop.f32.mrb[0].mxu0
      %v681 = vadd.f32 0.0, %v680
      %v682 = vpop.f32.mrb[0].mxu0
      %v683 = vpop.f32.mrb[0].mxu0
      %v684 = vadd.f32 0.0, %v683
      %v685 = vpop.f32.mrb[0].mxu0
      %686 = vmatprep.mubr.bf16.mxu0 0
      %687 = vmatmul.mubr.bf16.gmra.mrb[0].mxu0 %v638
      %v688 = vpop.f32.mrb[0].mxu0
      %v689 = vadd.f32 0.0, %v688
      %v690 = vpop.f32.mrb[0].mxu0
      %v691 = vpop.f32.mrb[0].mxu0
      %v692 = vadd.f32 0.0, %v691
      %v693 = vpop.f32.mrb[0].mxu0
      %694 = vmatprep.mubr.bf16.mxu0 0
      %695 = vmatmul.mubr.bf16.gmra.mrb[0].mxu0 %v641
      %v696 = vpop.f32.mrb[0].mxu0
      %v697 = vadd.f32 0.0, %v696
      %v698 = vpop.f32.mrb[0].mxu0
      %v699 = vpop.f32.mrb[0].mxu0
      %v700 = vadd.f32 0.0, %v699
      %v701 = vpop.f32.mrb[0].mxu0
      %702 = vdwg.mxu0
      %v703 = vadd.f32 %v601, %v681
      %v704 = vadd.f32 %v604, %v684
      %v705 = vadd.f32 %v609, %v689
      %v706 = vadd.f32 %v612, %v692
      %v707 = vadd.f32 %v617, %v697
      %v708 = vadd.f32 %v620, %v700
      %v709 = vld [vmem:[%s450 + $0x8] sm:$0xff]
      %v710 = vld [vmem:[%s450 + $0x10] sm:$0xff]
      %v711 = vld [vmem:[%s450 + $0x18] sm:$0xff]
      %v712 = vld [vmem:[%s450 + $0x20] sm:$0xff]
      %v713 = vld [vmem:[%s450 + $0x28] sm:$0xff]
      %v714 = vld [vmem:[%s450 + $0x30] sm:$0xff]
      %v715 = vpack.c.bf16 %v710, %v709
      %v716 = vpack.c.bf16 %v712, %v711
      %v717 = vpack.c.bf16 %v714, %v713
      %s718 = scalar_lea.vmem %s2, 6
      %v719 = vld [vmem:[%s718] sm:$0x3]
      %v721 = vsel %vm483, %v715, 0
      %v724 = vsel %vm483, %v716, 0
      %v727 = vsel %vm483, %v717, 0
      %v730 = vsel %vm493, %v719, 0
      %732 = vmatprep.subr.bf16.mxu0 0
      %733 = vmatpush1.bf16.msra.mxu0 %v730
      %734 = vmatprep.subr.bf16.mxu0 0
      %735 = vmatpush1.bf16.msra.mxu0 0
      %736 = vmatprep.subr.bf16.mxu0 0
      %737 = vmatpush1.bf16.msra.mxu0 0
      %738 = vmatprep.subr.bf16.mxu0 0
      %739 = vmatpush1.bf16.msra.mxu0 0
      %740 = vmatprep.subr.bf16.mxu0 0
      %741 = vmatpush1.bf16.msra.mxu0 0
      %742 = vmatprep.subr.bf16.mxu0 0
      %743 = vmatpush1.bf16.msra.mxu0 0
      %744 = vmatprep.subr.bf16.mxu0 0
      %745 = vmatpush1.bf16.msra.mxu0 0
      %746 = vmatprep.subr.bf16.mxu0 0
      %747 = vmatpush1.bf16.msra.mxu0 0
      %748 = vmatprep.subr.bf16.mxu0 0
      %749 = vmatpush1.bf16.msra.mxu0 0
      %750 = vmatprep.subr.bf16.mxu0 0
      %751 = vmatpush1.bf16.msra.mxu0 0
      %752 = vmatprep.subr.bf16.mxu0 0
      %753 = vmatpush1.bf16.msra.mxu0 0
      %754 = vmatprep.subr.bf16.mxu0 0
      %755 = vmatpush1.bf16.msra.mxu0 0
      %756 = vmatprep.subr.bf16.mxu0 0
      %757 = vmatpush1.bf16.msra.mxu0 0
      %758 = vmatprep.subr.bf16.mxu0 0
      %759 = vmatpush1.bf16.msra.mxu0 0
      %760 = vmatprep.subr.bf16.mxu0 0
      %761 = vmatpush1.bf16.msra.mxu0 0
      %762 = vmatprep.subr.bf16.mxu0 0
      %763 = vmatpush1.bf16.msra.mxu0 0
      %764 = vmatprep.mubr.bf16.mxu0 0
      %765 = vmatmul.mubr.bf16.gmra.mrb[0].mxu0 %v721
      %v766 = vpop.f32.mrb[0].mxu0
      %v767 = vadd.f32 0.0, %v766
      %v768 = vpop.f32.mrb[0].mxu0
      %v769 = vpop.f32.mrb[0].mxu0
      %v770 = vadd.f32 0.0, %v769
      %v771 = vpop.f32.mrb[0].mxu0
      %772 = vmatprep.mubr.bf16.mxu0 0
      %773 = vmatmul.mubr.bf16.gmra.mrb[0].mxu0 %v724
      %v774 = vpop.f32.mrb[0].mxu0
      %v775 = vadd.f32 0.0, %v774
      %v776 = vpop.f32.mrb[0].mxu0
      %v777 = vpop.f32.mrb[0].mxu0
      %v778 = vadd.f32 0.0, %v777
      %v779 = vpop.f32.mrb[0].mxu0
      %780 = vmatprep.mubr.bf16.mxu0 0
      %781 = vmatmul.mubr.bf16.gmra.mrb[0].mxu0 %v727
      %v782 = vpop.f32.mrb[0].mxu0
      %v783 = vadd.f32 0.0, %v782
      %v784 = vpop.f32.mrb[0].mxu0
      %v785 = vpop.f32.mrb[0].mxu0
      %v786 = vadd.f32 0.0, %v785
      %v787 = vpop.f32.mrb[0].mxu0
      %788 = vdwg.mxu0
      %v789 = vadd.f32 %v703, %v767
      %v790 = vadd.f32 %v704, %v770
      %v791 = vadd.f32 %v705, %v775
      %v792 = vadd.f32 %v706, %v778
      %v793 = vadd.f32 %v707, %v783
      %v794 = vadd.f32 %v708, %v786
      %v795 = vld [vmem:[%s450 + $0x9] sm:$0xff]
      %v796 = vld [vmem:[%s450 + $0x11] sm:$0xff]
      %v797 = vld [vmem:[%s450 + $0x19] sm:$0xff]
      %v798 = vld [vmem:[%s450 + $0x21] sm:$0xff]
      %v799 = vld [vmem:[%s450 + $0x29] sm:$0xff]
      %v800 = vld [vmem:[%s450 + $0x31] sm:$0xff]
      %v801 = vpack.c.bf16 %v796, %v795
      %v802 = vpack.c.bf16 %v798, %v797
      %v803 = vpack.c.bf16 %v800, %v799
      %s804 = scalar_lea.vmem %s2, 8
      %v805 = vld [vmem:[%s804] sm:$0x3]
      %v807 = vsel %vm483, %v801, 0
      %v810 = vsel %vm483, %v802, 0
      %v813 = vsel %vm483, %v803, 0
      %v816 = vsel %vm493, %v805, 0
      %818 = vmatprep.subr.bf16.mxu0 0
      %819 = vmatpush1.bf16.msra.mxu0 %v816
      %820 = vmatprep.subr.bf16.mxu0 0
      %821 = vmatpush1.bf16.msra.mxu0 0
      %822 = vmatprep.subr.bf16.mxu0 0
      %823 = vmatpush1.bf16.msra.mxu0 0
      %824 = vmatprep.subr.bf16.mxu0 0
      %825 = vmatpush1.bf16.msra.mxu0 0
      %826 = vmatprep.subr.bf16.mxu0 0
      %827 = vmatpush1.bf16.msra.mxu0 0
      %828 = vmatprep.subr.bf16.mxu0 0
      %829 = vmatpush1.bf16.msra.mxu0 0
      %830 = vmatprep.subr.bf16.mxu0 0
      %831 = vmatpush1.bf16.msra.mxu0 0
      %832 = vmatprep.subr.bf16.mxu0 0
      %833 = vmatpush1.bf16.msra.mxu0 0
      %834 = vmatprep.subr.bf16.mxu0 0
      %835 = vmatpush1.bf16.msra.mxu0 0
      %836 = vmatprep.subr.bf16.mxu0 0
      %837 = vmatpush1.bf16.msra.mxu0 0
      %838 = vmatprep.subr.bf16.mxu0 0
      %839 = vmatpush1.bf16.msra.mxu0 0
      %840 = vmatprep.subr.bf16.mxu0 0
      %841 = vmatpush1.bf16.msra.mxu0 0
      %842 = vmatprep.subr.bf16.mxu0 0
      %843 = vmatpush1.bf16.msra.mxu0 0
      %844 = vmatprep.subr.bf16.mxu0 0
      %845 = vmatpush1.bf16.msra.mxu0 0
      %846 = vmatprep.subr.bf16.mxu0 0
      %847 = vmatpush1.bf16.msra.mxu0 0
      %848 = vmatprep.subr.bf16.mxu0 0
      %849 = vmatpush1.bf16.msra.mxu0 0
      %850 = vmatprep.mubr.bf16.mxu0 0
      %851 = vmatmul.mubr.bf16.gmra.mrb[0].mxu0 %v807
      %v852 = vpop.f32.mrb[0].mxu0
      %v853 = vadd.f32 0.0, %v852
      %v854 = vpop.f32.mrb[0].mxu0
      %v855 = vpop.f32.mrb[0].mxu0
      %v856 = vadd.f32 0.0, %v855
      %v857 = vpop.f32.mrb[0].mxu0
      %858 = vmatprep.mubr.bf16.mxu0 0
      %859 = vmatmul.mubr.bf16.gmra.mrb[0].mxu0 %v810
      %v860 = vpop.f32.mrb[0].mxu0
      %v861 = vadd.f32 0.0, %v860
      %v862 = vpop.f32.mrb[0].mxu0
      %v863 = vpop.f32.mrb[0].mxu0
      %v864 = vadd.f32 0.0, %v863
      %v865 = vpop.f32.mrb[0].mxu0
      %866 = vmatprep.mubr.bf16.mxu0 0
      %867 = vmatmul.mubr.bf16.gmra.mrb[0].mxu0 %v813
      %v868 = vpop.f32.mrb[0].mxu0
      %v869 = vadd.f32 0.0, %v868
      %v870 = vpop.f32.mrb[0].mxu0
      %v871 = vpop.f32.mrb[0].mxu0
      %v872 = vadd.f32 0.0, %v871
      %v873 = vpop.f32.mrb[0].mxu0
      %874 = vdwg.mxu0
      %v875 = vadd.f32 %v789, %v853
      %v876 = vadd.f32 %v790, %v856
      %v877 = vadd.f32 %v791, %v861
      %v878 = vadd.f32 %v792, %v864
      %v879 = vadd.f32 %v793, %v869
      %v880 = vadd.f32 %v794, %v872
      %v881 = vld [vmem:[%s450 + $0xa] sm:$0xff]
      %v882 = vld [vmem:[%s450 + $0x12] sm:$0xff]
      %v883 = vld [vmem:[%s450 + $0x1a] sm:$0xff]
      %v884 = vld [vmem:[%s450 + $0x22] sm:$0xff]
      %v885 = vld [vmem:[%s450 + $0x2a] sm:$0xff]
      %v886 = vld [vmem:[%s450 + $0x32] sm:$0xff]
      %v887 = vpack.c.bf16 %v882, %v881
      %v888 = vpack.c.bf16 %v884, %v883
      %v889 = vpack.c.bf16 %v886, %v885
      %s890 = scalar_lea.vmem %s2, 10
      %v891 = vld [vmem:[%s890] sm:$0x3]
      %v893 = vsel %vm483, %v887, 0
      %v896 = vsel %vm483, %v888, 0
      %v899 = vsel %vm483, %v889, 0
      %v902 = vsel %vm493, %v891, 0
      %904 = vmatprep.subr.bf16.mxu0 0
      %905 = vmatpush1.bf16.msra.mxu0 %v902
      %906 = vmatprep.subr.bf16.mxu0 0
      %907 = vmatpush1.bf16.msra.mxu0 0
      %908 = vmatprep.subr.bf16.mxu0 0
      %909 = vmatpush1.bf16.msra.mxu0 0
      %910 = vmatprep.subr.bf16.mxu0 0
      %911 = vmatpush1.bf16.msra.mxu0 0
      %912 = vmatprep.subr.bf16.mxu0 0
      %913 = vmatpush1.bf16.msra.mxu0 0
      %914 = vmatprep.subr.bf16.mxu0 0
      %915 = vmatpush1.bf16.msra.mxu0 0
      %916 = vmatprep.subr.bf16.mxu0 0
      %917 = vmatpush1.bf16.msra.mxu0 0
      %918 = vmatprep.subr.bf16.mxu0 0
      %919 = vmatpush1.bf16.msra.mxu0 0
      %920 = vmatprep.subr.bf16.mxu0 0
      %921 = vmatpush1.bf16.msra.mxu0 0
      %922 = vmatprep.subr.bf16.mxu0 0
      %923 = vmatpush1.bf16.msra.mxu0 0
      %924 = vmatprep.subr.bf16.mxu0 0
      %925 = vmatpush1.bf16.msra.mxu0 0
      %926 = vmatprep.subr.bf16.mxu0 0
      %927 = vmatpush1.bf16.msra.mxu0 0
      %928 = vmatprep.subr.bf16.mxu0 0
      %929 = vmatpush1.bf16.msra.mxu0 0
      %930 = vmatprep.subr.bf16.mxu0 0
      %931 = vmatpush1.bf16.msra.mxu0 0
      %932 = vmatprep.subr.bf16.mxu0 0
      %933 = vmatpush1.bf16.msra.mxu0 0
      %934 = vmatprep.subr.bf16.mxu0 0
      %935 = vmatpush1.bf16.msra.mxu0 0
      %936 = vmatprep.mubr.bf16.mxu0 0
      %937 = vmatmul.mubr.bf16.gmra.mrb[0].mxu0 %v893
      %v938 = vpop.f32.mrb[0].mxu0
      %v939 = vadd.f32 0.0, %v938
      %v940 = vpop.f32.mrb[0].mxu0
      %v941 = vpop.f32.mrb[0].mxu0
      %v942 = vadd.f32 0.0, %v941
      %v943 = vpop.f32.mrb[0].mxu0
      %944 = vmatprep.mubr.bf16.mxu0 0
      %945 = vmatmul.mubr.bf16.gmra.mrb[0].mxu0 %v896
      %v946 = vpop.f32.mrb[0].mxu0
      %v947 = vadd.f32 0.0, %v946
      %v948 = vpop.f32.mrb[0].mxu0
      %v949 = vpop.f32.mrb[0].mxu0
      %v950 = vadd.f32 0.0, %v949
      %v951 = vpop.f32.mrb[0].mxu0
      %952 = vmatprep.mubr.bf16.mxu0 0
      %953 = vmatmul.mubr.bf16.gmra.mrb[0].mxu0 %v899
      %v954 = vpop.f32.mrb[0].mxu0
      %v955 = vadd.f32 0.0, %v954
      %v956 = vpop.f32.mrb[0].mxu0
      %v957 = vpop.f32.mrb[0].mxu0
      %v958 = vadd.f32 0.0, %v957
      %v959 = vpop.f32.mrb[0].mxu0
      %960 = vdwg.mxu0
      %v961 = vadd.f32 %v875, %v939
      %v962 = vadd.f32 %v876, %v942
      %v963 = vadd.f32 %v877, %v947
      %v964 = vadd.f32 %v878, %v950
      %v965 = vadd.f32 %v879, %v955
      %v966 = vadd.f32 %v880, %v958
      %v967 = vld [vmem:[%s450 + $0x10] sm:$0xff]
      %v968 = vld [vmem:[%s450 + $0x18] sm:$0xff]
      %v969 = vld [vmem:[%s450 + $0x20] sm:$0xff]
      %v970 = vld [vmem:[%s450 + $0x28] sm:$0xff]
      %v971 = vld [vmem:[%s450 + $0x30] sm:$0xff]
      %v972 = vld [vmem:[%s450 + $0x38] sm:$0xff]
      %v973 = vpack.c.bf16 %v968, %v967
      %v974 = vpack.c.bf16 %v970, %v969
      %v975 = vpack.c.bf16 %v972, %v971
      %s976 = scalar_lea.vmem %s2, 12
      %v977 = vld [vmem:[%s976] sm:$0x3]
      %v979 = vsel %vm483, %v973, 0
      %v982 = vsel %vm483, %v974, 0
      %v985 = vsel %vm483, %v975, 0
      %v988 = vsel %vm493, %v977, 0
      %990 = vmatprep.subr.bf16.mxu0 0
      %991 = vmatpush1.bf16.msra.mxu0 %v988
      %992 = vmatprep.subr.bf16.mxu0 0
      %993 = vmatpush1.bf16.msra.mxu0 0
      %994 = vmatprep.subr.bf16.mxu0 0
      %995 = vmatpush1.bf16.msra.mxu0 0
      %996 = vmatprep.subr.bf16.mxu0 0
      %997 = vmatpush1.bf16.msra.mxu0 0
      %998 = vmatprep.subr.bf16.mxu0 0
      %999 = vmatpush1.bf16.msra.mxu0 0
      %1000 = vmatprep.subr.bf16.mxu0 0
      %1001 = vmatpush1.bf16.msra.mxu0 0
      %1002 = vmatprep.subr.bf16.mxu0 0
      %1003 = vmatpush1.bf16.msra.mxu0 0
      %1004 = vmatprep.subr.bf16.mxu0 0
      %1005 = vmatpush1.bf16.msra.mxu0 0
      %1006 = vmatprep.subr.bf16.mxu0 0
      %1007 = vmatpush1.bf16.msra.mxu0 0
      %1008 = vmatprep.subr.bf16.mxu0 0
      %1009 = vmatpush1.bf16.msra.mxu0 0
      %1010 = vmatprep.subr.bf16.mxu0 0
      %1011 = vmatpush1.bf16.msra.mxu0 0
      %1012 = vmatprep.subr.bf16.mxu0 0
      %1013 = vmatpush1.bf16.msra.mxu0 0
      %1014 = vmatprep.subr.bf16.mxu0 0
      %1015 = vmatpush1.bf16.msra.mxu0 0
      %1016 = vmatprep.subr.bf16.mxu0 0
      %1017 = vmatpush1.bf16.msra.mxu0 0
      %1018 = vmatprep.subr.bf16.mxu0 0
      %1019 = vmatpush1.bf16.msra.mxu0 0
      %1020 = vmatprep.subr.bf16.mxu0 0
      %1021 = vmatpush1.bf16.msra.mxu0 0
      %1022 = vmatprep.mubr.bf16.mxu0 0
      %1023 = vmatmul.mubr.bf16.gmra.mrb[0].mxu0 %v979
      %v1024 = vpop.f32.mrb[0].mxu0
      %v1025 = vadd.f32 0.0, %v1024
      %v1026 = vpop.f32.mrb[0].mxu0
      %v1027 = vpop.f32.mrb[0].mxu0
      %v1028 = vadd.f32 0.0, %v1027
      %v1029 = vpop.f32.mrb[0].mxu0
      %1030 = vmatprep.mubr.bf16.mxu0 0
      %1031 = vmatmul.mubr.bf16.gmra.mrb[0].mxu0 %v982
      %v1032 = vpop.f32.mrb[0].mxu0
      %v1033 = vadd.f32 0.0, %v1032
      %v1034 = vpop.f32.mrb[0].mxu0
      %v1035 = vpop.f32.mrb[0].mxu0
      %v1036 = vadd.f32 0.0, %v1035
      %v1037 = vpop.f32.mrb[0].mxu0
      %1038 = vmatprep.mubr.bf16.mxu0 0
      %1039 = vmatmul.mubr.bf16.gmra.mrb[0].mxu0 %v985
      %v1040 = vpop.f32.mrb[0].mxu0
      %v1041 = vadd.f32 0.0, %v1040
      %v1042 = vpop.f32.mrb[0].mxu0
      %v1043 = vpop.f32.mrb[0].mxu0
      %v1044 = vadd.f32 0.0, %v1043
      %v1045 = vpop.f32.mrb[0].mxu0
      %1046 = vdwg.mxu0
      %v1047 = vadd.f32 %v961, %v1025
      %v1048 = vadd.f32 %v962, %v1028
      %v1049 = vadd.f32 %v963, %v1033
      %v1050 = vadd.f32 %v964, %v1036
      %v1051 = vadd.f32 %v965, %v1041
      %v1052 = vadd.f32 %v966, %v1044
      %v1053 = vld [vmem:[%s450 + $0x11] sm:$0xff]
      %v1054 = vld [vmem:[%s450 + $0x19] sm:$0xff]
      %v1055 = vld [vmem:[%s450 + $0x21] sm:$0xff]
      %v1056 = vld [vmem:[%s450 + $0x29] sm:$0xff]
      %v1057 = vld [vmem:[%s450 + $0x31] sm:$0xff]
      %v1058 = vld [vmem:[%s450 + $0x39] sm:$0xff]
      %v1059 = vpack.c.bf16 %v1054, %v1053
      %v1060 = vpack.c.bf16 %v1056, %v1055
      %v1061 = vpack.c.bf16 %v1058, %v1057
      %s1062 = scalar_lea.vmem %s2, 14
      %v1063 = vld [vmem:[%s1062] sm:$0x3]
      %v1065 = vsel %vm483, %v1059, 0
      %v1068 = vsel %vm483, %v1060, 0
      %v1071 = vsel %vm483, %v1061, 0
      %v1074 = vsel %vm493, %v1063, 0
      %1076 = vmatprep.subr.bf16.mxu0 0
      %1077 = vmatpush1.bf16.msra.mxu0 %v1074
      %1078 = vmatprep.subr.bf16.mxu0 0
      %1079 = vmatpush1.bf16.msra.mxu0 0
      %1080 = vmatprep.subr.bf16.mxu0 0
      %1081 = vmatpush1.bf16.msra.mxu0 0
      %1082 = vmatprep.subr.bf16.mxu0 0
      %1083 = vmatpush1.bf16.msra.mxu0 0
      %1084 = vmatprep.subr.bf16.mxu0 0
      %1085 = vmatpush1.bf16.msra.mxu0 0
      %1086 = vmatprep.subr.bf16.mxu0 0
      %1087 = vmatpush1.bf16.msra.mxu0 0
      %1088 = vmatprep.subr.bf16.mxu0 0
      %1089 = vmatpush1.bf16.msra.mxu0 0
      %1090 = vmatprep.subr.bf16.mxu0 0
      %1091 = vmatpush1.bf16.msra.mxu0 0
      %1092 = vmatprep.subr.bf16.mxu0 0
      %1093 = vmatpush1.bf16.msra.mxu0 0
      %1094 = vmatprep.subr.bf16.mxu0 0
      %1095 = vmatpush1.bf16.msra.mxu0 0
      %1096 = vmatprep.subr.bf16.mxu0 0
      %1097 = vmatpush1.bf16.msra.mxu0 0
      %1098 = vmatprep.subr.bf16.mxu0 0
      %1099 = vmatpush1.bf16.msra.mxu0 0
      %1100 = vmatprep.subr.bf16.mxu0 0
      %1101 = vmatpush1.bf16.msra.mxu0 0
      %1102 = vmatprep.subr.bf16.mxu0 0
      %1103 = vmatpush1.bf16.msra.mxu0 0
      %1104 = vmatprep.subr.bf16.mxu0 0
      %1105 = vmatpush1.bf16.msra.mxu0 0
      %1106 = vmatprep.subr.bf16.mxu0 0
      %1107 = vmatpush1.bf16.msra.mxu0 0
      %1108 = vmatprep.mubr.bf16.mxu0 0
      %1109 = vmatmul.mubr.bf16.gmra.mrb[0].mxu0 %v1065
      %v1110 = vpop.f32.mrb[0].mxu0
      %v1111 = vadd.f32 0.0, %v1110
      %v1112 = vpop.f32.mrb[0].mxu0
      %v1113 = vpop.f32.mrb[0].mxu0
      %v1114 = vadd.f32 0.0, %v1113
      %v1115 = vpop.f32.mrb[0].mxu0
      %1116 = vmatprep.mubr.bf16.mxu0 0
      %1117 = vmatmul.mubr.bf16.gmra.mrb[0].mxu0 %v1068
      %v1118 = vpop.f32.mrb[0].mxu0
      %v1119 = vadd.f32 0.0, %v1118
      %v1120 = vpop.f32.mrb[0].mxu0
      %v1121 = vpop.f32.mrb[0].mxu0
      %v1122 = vadd.f32 0.0, %v1121
      %v1123 = vpop.f32.mrb[0].mxu0
      %1124 = vmatprep.mubr.bf16.mxu0 0
      %1125 = vmatmul.mubr.bf16.gmra.mrb[0].mxu0 %v1071
      %v1126 = vpop.f32.mrb[0].mxu0
      %v1127 = vadd.f32 0.0, %v1126
      %v1128 = vpop.f32.mrb[0].mxu0
      %v1129 = vpop.f32.mrb[0].mxu0
      %v1130 = vadd.f32 0.0, %v1129
      %v1131 = vpop.f32.mrb[0].mxu0
      %1132 = vdwg.mxu0
      %v1133 = vadd.f32 %v1047, %v1111
      %v1134 = vadd.f32 %v1048, %v1114
      %v1135 = vadd.f32 %v1049, %v1119
      %v1136 = vadd.f32 %v1050, %v1122
      %v1137 = vadd.f32 %v1051, %v1127
      %v1138 = vadd.f32 %v1052, %v1130
      %v1139 = vld [vmem:[%s450 + $0x12] sm:$0xff]
      %v1140 = vld [vmem:[%s450 + $0x1a] sm:$0xff]
      %v1141 = vld [vmem:[%s450 + $0x22] sm:$0xff]
      %v1142 = vld [vmem:[%s450 + $0x2a] sm:$0xff]
      %v1143 = vld [vmem:[%s450 + $0x32] sm:$0xff]
      %v1144 = vld [vmem:[%s450 + $0x3a] sm:$0xff]
      %v1145 = vpack.c.bf16 %v1140, %v1139
      %v1146 = vpack.c.bf16 %v1142, %v1141
      %v1147 = vpack.c.bf16 %v1144, %v1143
      %s1148 = scalar_lea.vmem %s2, 16
      %v1149 = vld [vmem:[%s1148] sm:$0x3]
      %v1151 = vsel %vm483, %v1145, 0
      %v1154 = vsel %vm483, %v1146, 0
      %v1157 = vsel %vm483, %v1147, 0
      %v1160 = vsel %vm493, %v1149, 0
      %1162 = vmatprep.subr.bf16.mxu0 0
      %1163 = vmatpush1.bf16.msra.mxu0 %v1160
      %1164 = vmatprep.subr.bf16.mxu0 0
      %1165 = vmatpush1.bf16.msra.mxu0 0
      %1166 = vmatprep.subr.bf16.mxu0 0
      %1167 = vmatpush1.bf16.msra.mxu0 0
      %1168 = vmatprep.subr.bf16.mxu0 0
      %1169 = vmatpush1.bf16.msra.mxu0 0
      %1170 = vmatprep.subr.bf16.mxu0 0
      %1171 = vmatpush1.bf16.msra.mxu0 0
      %1172 = vmatprep.subr.bf16.mxu0 0
      %1173 = vmatpush1.bf16.msra.mxu0 0
      %1174 = vmatprep.subr.bf16.mxu0 0
      %1175 = vmatpush1.bf16.msra.mxu0 0
      %1176 = vmatprep.subr.bf16.mxu0 0
      %1177 = vmatpush1.bf16.msra.mxu0 0
      %1178 = vmatprep.subr.bf16.mxu0 0
      %1179 = vmatpush1.bf16.msra.mxu0 0
      %1180 = vmatprep.subr.bf16.mxu0 0
      %1181 = vmatpush1.bf16.msra.mxu0 0
      %1182 = vmatprep.subr.bf16.mxu0 0
      %1183 = vmatpush1.bf16.msra.mxu0 0
      %1184 = vmatprep.subr.bf16.mxu0 0
      %1185 = vmatpush1.bf16.msra.mxu0 0
      %1186 = vmatprep.subr.bf16.mxu0 0
      %1187 = vmatpush1.bf16.msra.mxu0 0
      %1188 = vmatprep.subr.bf16.mxu0 0
      %1189 = vmatpush1.bf16.msra.mxu0 0
      %1190 = vmatprep.subr.bf16.mxu0 0
      %1191 = vmatpush1.bf16.msra.mxu0 0
      %1192 = vmatprep.subr.bf16.mxu0 0
      %1193 = vmatpush1.bf16.msra.mxu0 0
      %1194 = vmatprep.mubr.bf16.mxu0 0
      %1195 = vmatmul.mubr.bf16.gmra.mrb[0].mxu0 %v1151
      %v1196 = vpop.f32.mrb[0].mxu0
      %v1197 = vadd.f32 0.0, %v1196
      %v1198 = vpop.f32.mrb[0].mxu0
      %v1199 = vpop.f32.mrb[0].mxu0
      %v1200 = vadd.f32 0.0, %v1199
      %v1201 = vpop.f32.mrb[0].mxu0
      %1202 = vmatprep.mubr.bf16.mxu0 0
      %1203 = vmatmul.mubr.bf16.gmra.mrb[0].mxu0 %v1154
      %v1204 = vpop.f32.mrb[0].mxu0
      %v1205 = vadd.f32 0.0, %v1204
      %v1206 = vpop.f32.mrb[0].mxu0
      %v1207 = vpop.f32.mrb[0].mxu0
      %v1208 = vadd.f32 0.0, %v1207
      %v1209 = vpop.f32.mrb[0].mxu0
      %1210 = vmatprep.mubr.bf16.mxu0 0
      %1211 = vmatmul.mubr.bf16.gmra.mrb[0].mxu0 %v1157
      %v1212 = vpop.f32.mrb[0].mxu0
      %v1213 = vadd.f32 0.0, %v1212
      %v1214 = vpop.f32.mrb[0].mxu0
      %v1215 = vpop.f32.mrb[0].mxu0
      %v1216 = vadd.f32 0.0, %v1215
      %v1217 = vpop.f32.mrb[0].mxu0
      %1218 = vdwg.mxu0
      %v1219 = vadd.f32 %v1133, %v1197
      %v1220 = vadd.f32 %v1134, %v1200
      %v1221 = vadd.f32 %v1135, %v1205
      %v1222 = vadd.f32 %v1136, %v1208
      %v1223 = vadd.f32 %v1137, %v1213
      %v1224 = vadd.f32 %v1138, %v1216
      %v1225 = vld [vmem:[%s3] sm:$0x1]
      %v1227 = vlaneseq
      %v1228 = vshrl.u32 %v1227, 7
      %v1229 = vsub.s32 0, %v1228
      %v1230 = vrot.slane %v1225, %v1229
      %v1232 = vmul.f32 %v1219, %v1230
      %v1233 = vmul.f32 %v1220, %v1230
      %v1234 = vmul.f32 %v1221, %v1230
      %v1235 = vmul.f32 %v1222, %v1230
      %v1236 = vmul.f32 %v1223, %v1230
      %v1237 = vmul.f32 %v1224, %v1230
      %v1238 = vld [vmem:[%s4] sm:$0x1]
      %v1240 = vlaneseq
      %v1241 = vshrl.u32 %v1240, 7
      %v1242 = vsub.s32 0, %v1241
      %v1243 = vrot.slane %v1238, %v1242
      %v1245 = vadd.f32 %v1232, %v1243
      %v1246 = vadd.f32 %v1233, %v1243
      %v1247 = vadd.f32 %v1234, %v1243
      %v1248 = vadd.f32 %v1235, %v1243
      %v1249 = vadd.f32 %v1236, %v1243
      %v1250 = vadd.f32 %v1237, %v1243
      %v1251 = vmax.f32 %v1245, 0.0
      %v1252 = vmax.f32 %v1246, 0.0
      %v1253 = vmax.f32 %v1247, 0.0
      %v1254 = vmax.f32 %v1248, 0.0
      %v1255 = vmax.f32 %v1249, 0.0
      %v1256 = vmax.f32 %v1250, 0.0
      %vm1257 = vcmask 261120
      %1258 = vst.msk [vmem:[#allocation2] sm:$0xff] %vm1257, %v1251
      %1259 = vst.msk [vmem:[#allocation2 + $0x8] sm:$0xff] %vm1257, %v1252
      %1260 = vst.msk [vmem:[#allocation2 + $0x10] sm:$0xff] %vm1257, %v1253
      %1261 = vst.msk [vmem:[#allocation2 + $0x18] sm:$0xff] %vm1257, %v1254
      %1262 = vst.msk [vmem:[#allocation2 + $0x20] sm:$0xff] %vm1257, %v1255
      %1263 = vst.msk [vmem:[#allocation2 + $0x28] sm:$0xff] %vm1257, %v1256
      %v1264 = vld [vmem:[%s455] sm:$0xff]
      %v1265 = vld [vmem:[%s455 + $0x8] sm:$0xff]
      %v1266 = vld [vmem:[%s455 + $0x10] sm:$0xff]
      %v1267 = vld [vmem:[%s455 + $0x18] sm:$0xff]
      %v1268 = vld [vmem:[%s455 + $0x20] sm:$0xff]
      %v1269 = vld [vmem:[%s455 + $0x28] sm:$0xff]
      %v1270 = vld [vmem:[%s455 + $0x30] sm:$0xff]
      %v1271 = vld [vmem:[%s455 + $0x38] sm:$0xff]
      %v1272 = vld [vmem:[%s455 + $0x40] sm:$0xff]
      %v1273 = vld [vmem:[%s455 + $0x48] sm:$0xff]
      %v1274 = vld [vmem:[%s455 + $0x50] sm:$0xff]
      %v1275 = vld [vmem:[%s455 + $0x58] sm:$0xff]
      %v1276 = vld [vmem:[%s455 + $0x60] sm:$0xff]
      %v1277 = vld [vmem:[%s455 + $0x68] sm:$0xff]
      %v1278 = vld [vmem:[%s455 + $0x70] sm:$0xff]
      %v1279 = vld [vmem:[%s455 + $0x78] sm:$0xff]
      %v1280 = vld [vmem:[%s455 + $0x80] sm:$0xff]
      %v1281 = vld [vmem:[%s455 + $0x88] sm:$0xff]
      %v1282 = vld [vmem:[%s455 + $0x90] sm:$0xff]
      %v1283 = vld [vmem:[%s455 + $0x98] sm:$0xff]
      %v1284 = vld [vmem:[%s455 + $0xa0] sm:$0xff]
      %v1285 = vld [vmem:[%s455 + $0xa8] sm:$0xff]
      %v1286 = vld [vmem:[%s455 + $0xb0] sm:$0xff]
      %v1287 = vld [vmem:[%s455 + $0xb8] sm:$0xff]
      %v1288 = vld [vmem:[%s455 + $0xc0] sm:$0xff]
      %v1289 = vld [vmem:[%s455 + $0xc8] sm:$0xff]
      %v1290 = vld [vmem:[%s455 + $0xd0] sm:$0xff]
      %v1291 = vld [vmem:[%s455 + $0xd8] sm:$0xff]
      %v1292 = vld [vmem:[%s455 + $0xe0] sm:$0xff]
      %v1293 = vld [vmem:[%s455 + $0xe8] sm:$0xff]
      %v1294 = vpack.c.bf16 %v1265, %v1264
      %v1295 = vpack.c.bf16 %v1267, %v1266
      %v1296 = vpack.c.bf16 %v1269, %v1268
      %v1297 = vpack.c.bf16 %v1271, %v1270
      %v1298 = vpack.c.bf16 %v1273, %v1272
      %v1299 = vpack.c.bf16 %v1275, %v1274
      %v1300 = vpack.c.bf16 %v1277, %v1276
      %v1301 = vpack.c.bf16 %v1279, %v1278
      %v1302 = vpack.c.bf16 %v1281, %v1280
      %v1303 = vpack.c.bf16 %v1283, %v1282
      %v1304 = vpack.c.bf16 %v1285, %v1284
      %v1305 = vpack.c.bf16 %v1287, %v1286
      %v1306 = vpack.c.bf16 %v1289, %v1288
      %v1307 = vpack.c.bf16 %v1291, %v1290
      %v1308 = vpack.c.bf16 %v1293, %v1292
      %v1309 = vld [vmem:[%s5] sm:$0x3]
      %v1310 = vld [vmem:[%s455 + $0x1] sm:$0xff]
      %v1311 = vld [vmem:[%s455 + $0x9] sm:$0xff]
      %v1312 = vld [vmem:[%s455 + $0x11] sm:$0xff]
      %v1313 = vld [vmem:[%s455 + $0x19] sm:$0xff]
      %v1314 = vld [vmem:[%s455 + $0x21] sm:$0xff]
      %v1315 = vld [vmem:[%s455 + $0x29] sm:$0xff]
      %v1316 = vld [vmem:[%s455 + $0x31] sm:$0xff]
      %v1317 = vld [vmem:[%s455 + $0x39] sm:$0xff]
      %v1318 = vld [vmem:[%s455 + $0x41] sm:$0xff]
      %v1319 = vld [vmem:[%s455 + $0x49] sm:$0xff]
      %v1320 = vld [vmem:[%s455 + $0x51] sm:$0xff]
      %v1321 = vld [vmem:[%s455 + $0x59] sm:$0xff]
      %v1322 = vld [vmem:[%s455 + $0x61] sm:$0xff]
      %v1323 = vld [vmem:[%s455 + $0x69] sm:$0xff]
      %v1324 = vld [vmem:[%s455 + $0x71] sm:$0xff]
      %v1325 = vld [vmem:[%s455 + $0x79] sm:$0xff]
      %v1326 = vld [vmem:[%s455 + $0x81] sm:$0xff]
      %v1327 = vld [vmem:[%s455 + $0x89] sm:$0xff]
      %v1328 = vld [vmem:[%s455 + $0x91] sm:$0xff]
      %v1329 = vld [vmem:[%s455 + $0x99] sm:$0xff]
      %v1330 = vld [vmem:[%s455 + $0xa1] sm:$0xff]
      %v1331 = vld [vmem:[%s455 + $0xa9] sm:$0xff]
      %v1332 = vld [vmem:[%s455 + $0xb1] sm:$0xff]
      %v1333 = vld [vmem:[%s455 + $0xb9] sm:$0xff]
      %v1334 = vld [vmem:[%s455 + $0xc1] sm:$0xff]
      %v1335 = vld [vmem:[%s455 + $0xc9] sm:$0xff]
      %v1336 = vld [vmem:[%s455 + $0xd1] sm:$0xff]
      %v1337 = vld [vmem:[%s455 + $0xd9] sm:$0xff]
      %v1338 = vld [vmem:[%s455 + $0xe1] sm:$0xff]
      %v1339 = vld [vmem:[%s455 + $0xe9] sm:$0xff]
      %v1340 = vpack.c.bf16 %v1311, %v1310
      %v1341 = vpack.c.bf16 %v1313, %v1312
      %v1342 = vpack.c.bf16 %v1315, %v1314
      %v1343 = vpack.c.bf16 %v1317, %v1316
      %v1344 = vpack.c.bf16 %v1319, %v1318
      %v1345 = vpack.c.bf16 %v1321, %v1320
      %v1346 = vpack.c.bf16 %v1323, %v1322
      %v1347 = vpack.c.bf16 %v1325, %v1324
      %v1348 = vpack.c.bf16 %v1327, %v1326
      %v1349 = vpack.c.bf16 %v1329, %v1328
      %v1350 = vpack.c.bf16 %v1331, %v1330
      %v1351 = vpack.c.bf16 %v1333, %v1332
      %v1352 = vpack.c.bf16 %v1335, %v1334
      %v1353 = vpack.c.bf16 %v1337, %v1336
      %v1354 = vpack.c.bf16 %v1339, %v1338
      %s1355 = scalar_lea.vmem %s5, 2
      %v1356 = vld [vmem:[%s1355] sm:$0x3]
      %v1358 = vsel %vm483, %v1340, 0
      %v1361 = vsel %vm483, %v1341, 0
      %v1364 = vsel %vm483, %v1342, 0
      %v1367 = vsel %vm483, %v1343, 0
      %v1370 = vsel %vm483, %v1344, 0
      %v1373 = vsel %vm483, %v1345, 0
      %v1376 = vsel %vm483, %v1346, 0
      %v1379 = vsel %vm483, %v1347, 0
      %v1382 = vsel %vm483, %v1348, 0
      %v1385 = vsel %vm483, %v1349, 0
      %v1388 = vsel %vm483, %v1350, 0
      %v1391 = vsel %vm483, %v1351, 0
      %v1394 = vsel %vm483, %v1352, 0
      %v1397 = vsel %vm483, %v1353, 0
      %v1400 = vsel %vm483, %v1354, 0
      %v1403 = vsel %vm493, %v1356, 0
      %1405 = vmatprep.subr.bf16.mxu0 0
      %1406 = vmatpush1.bf16.msra.mxu0 %v1403
      %1407 = vmatprep.subr.bf16.mxu0 0
      %1408 = vmatpush1.bf16.msra.mxu0 0
      %1409 = vmatprep.subr.bf16.mxu0 0
      %1410 = vmatpush1.bf16.msra.mxu0 0
      %1411 = vmatprep.subr.bf16.mxu0 0
      %1412 = vmatpush1.bf16.msra.mxu0 0
      %1413 = vmatprep.subr.bf16.mxu0 0
      %1414 = vmatpush1.bf16.msra.mxu0 0
      %1415 = vmatprep.subr.bf16.mxu0 0
      %1416 = vmatpush1.bf16.msra.mxu0 0
      %1417 = vmatprep.subr.bf16.mxu0 0
      %1418 = vmatpush1.bf16.msra.mxu0 0
      %1419 = vmatprep.subr.bf16.mxu0 0
      %1420 = vmatpush1.bf16.msra.mxu0 0
      %1421 = vmatprep.subr.bf16.mxu0 0
      %1422 = vmatpush1.bf16.msra.mxu0 0
      %1423 = vmatprep.subr.bf16.mxu0 0
      %1424 = vmatpush1.bf16.msra.mxu0 0
      %1425 = vmatprep.subr.bf16.mxu0 0
      %1426 = vmatpush1.bf16.msra.mxu0 0
      %1427 = vmatprep.subr.bf16.mxu0 0
      %1428 = vmatpush1.bf16.msra.mxu0 0
      %1429 = vmatprep.subr.bf16.mxu0 0
      %1430 = vmatpush1.bf16.msra.mxu0 0
      %1431 = vmatprep.subr.bf16.mxu0 0
      %1432 = vmatpush1.bf16.msra.mxu0 0
      %1433 = vmatprep.subr.bf16.mxu0 0
      %1434 = vmatpush1.bf16.msra.mxu0 0
      %1435 = vmatprep.subr.bf16.mxu0 0
      %1436 = vmatpush1.bf16.msra.mxu0 0
      %1437 = vmatprep.mubr.bf16.mxu0 0
      %1438 = vmatmul.mubr.bf16.gmra.mrb[0].mxu0 %v1358
      %v1439 = vpop.f32.mrb[0].mxu0
      %v1440 = vadd.f32 0.0, %v1439
      %v1441 = vpop.f32.mrb[0].mxu0
      %v1442 = vpop.f32.mrb[0].mxu0
      %v1443 = vadd.f32 0.0, %v1442
      %v1444 = vpop.f32.mrb[0].mxu0
      %1445 = vmatprep.mubr.bf16.mxu0 0
      %1446 = vmatmul.mubr.bf16.gmra.mrb[0].mxu0 %v1361
      %v1447 = vpop.f32.mrb[0].mxu0
      %v1448 = vadd.f32 0.0, %v1447
      %v1449 = vpop.f32.mrb[0].mxu0
      %v1450 = vpop.f32.mrb[0].mxu0
      %v1451 = vadd.f32 0.0, %v1450
      %v1452 = vpop.f32.mrb[0].mxu0
      %1453 = vmatprep.mubr.bf16.mxu0 0
      %1454 = vmatmul.mubr.bf16.gmra.mrb[0].mxu0 %v1364
      %v1455 = vpop.f32.mrb[0].mxu0
      %v1456 = vadd.f32 0.0, %v1455
      %v1457 = vpop.f32.mrb[0].mxu0
      %v1458 = vpop.f32.mrb[0].mxu0
      %v1459 = vadd.f32 0.0, %v1458
      %v1460 = vpop.f32.mrb[0].mxu0
      %1461 = vmatprep.mubr.bf16.mxu0 0
      %1462 = vmatmul.mubr.bf16.gmra.mrb[0].mxu0 %v1367
      %v1463 = vpop.f32.mrb[0].mxu0
      %v1464 = vadd.f32 0.0, %v1463
      %v1465 = vpop.f32.mrb[0].mxu0
      %v1466 = vpop.f32.mrb[0].mxu0
      %v1467 = vadd.f32 0.0, %v1466
      %v1468 = vpop.f32.mrb[0].mxu0
      %1469 = vmatprep.mubr.bf16.mxu0 0
      %1470 = vmatmul.mubr.bf16.gmra.mrb[0].mxu0 %v1370
      %v1471 = vpop.f32.mrb[0].mxu0
      %v1472 = vadd.f32 0.0, %v1471
      %v1473 = vpop.f32.mrb[0].mxu0
      %v1474 = vpop.f32.mrb[0].mxu0
      %v1475 = vadd.f32 0.0, %v1474
      %v1476 = vpop.f32.mrb[0].mxu0
      %1477 = vmatprep.mubr.bf16.mxu0 0
      %1478 = vmatmul.mubr.bf16.gmra.mrb[0].mxu0 %v1373
      %v1479 = vpop.f32.mrb[0].mxu0
      %v1480 = vadd.f32 0.0, %v1479
      %v1481 = vpop.f32.mrb[0].mxu0
      %v1482 = vpop.f32.mrb[0].mxu0
      %v1483 = vadd.f32 0.0, %v1482
      %v1484 = vpop.f32.mrb[0].mxu0
      %1485 = vmatprep.mubr.bf16.mxu0 0
      %1486 = vmatmul.mubr.bf16.gmra.mrb[0].mxu0 %v1376
      %v1487 = vpop.f32.mrb[0].mxu0
      %v1488 = vadd.f32 0.0, %v1487
      %v1489 = vpop.f32.mrb[0].mxu0
      %v1490 = vpop.f32.mrb[0].mxu0
      %v1491 = vadd.f32 0.0, %v1490
      %v1492 = vpop.f32.mrb[0].mxu0
      %1493 = vmatprep.mubr.bf16.mxu0 0
      %1494 = vmatmul.mubr.bf16.gmra.mrb[0].mxu0 %v1379
      %v1495 = vpop.f32.mrb[0].mxu0
      %v1496 = vadd.f32 0.0, %v1495
      %v1497 = vpop.f32.mrb[0].mxu0
      %v1498 = vpop.f32.mrb[0].mxu0
      %v1499 = vadd.f32 0.0, %v1498
      %v1500 = vpop.f32.mrb[0].mxu0
      %1501 = vmatprep.mubr.bf16.mxu0 0
      %1502 = vmatmul.mubr.bf16.gmra.mrb[0].mxu0 %v1382
      %v1503 = vpop.f32.mrb[0].mxu0
      %v1504 = vadd.f32 0.0, %v1503
      %v1505 = vpop.f32.mrb[0].mxu0
      %v1506 = vpop.f32.mrb[0].mxu0
      %v1507 = vadd.f32 0.0, %v1506
      %v1508 = vpop.f32.mrb[0].mxu0
      %1509 = vmatprep.mubr.bf16.mxu0 0
      %1510 = vmatmul.mubr.bf16.gmra.mrb[0].mxu0 %v1385
      %v1511 = vpop.f32.mrb[0].mxu0
      %v1512 = vadd.f32 0.0, %v1511
      %v1513 = vpop.f32.mrb[0].mxu0
      %v1514 = vpop.f32.mrb[0].mxu0
      %v1515 = vadd.f32 0.0, %v1514
      %v1516 = vpop.f32.mrb[0].mxu0
      %1517 = vmatprep.mubr.bf16.mxu0 0
      %1518 = vmatmul.mubr.bf16.gmra.mrb[0].mxu0 %v1388
      %v1519 = vpop.f32.mrb[0].mxu0
      %v1520 = vadd.f32 0.0, %v1519
      %v1521 = vpop.f32.mrb[0].mxu0
      %v1522 = vpop.f32.mrb[0].mxu0
      %v1523 = vadd.f32 0.0, %v1522
      %v1524 = vpop.f32.mrb[0].mxu0
      %1525 = vmatprep.mubr.bf16.mxu0 0
      %1526 = vmatmul.mubr.bf16.gmra.mrb[0].mxu0 %v1391
      %v1527 = vpop.f32.mrb[0].mxu0
      %v1528 = vadd.f32 0.0, %v1527
      %v1529 = vpop.f32.mrb[0].mxu0
      %v1530 = vpop.f32.mrb[0].mxu0
      %v1531 = vadd.f32 0.0, %v1530
      %v1532 = vpop.f32.mrb[0].mxu0
      %1533 = vmatprep.mubr.bf16.mxu0 0
      %1534 = vmatmul.mubr.bf16.gmra.mrb[0].mxu0 %v1394
      %v1535 = vpop.f32.mrb[0].mxu0
      %v1536 = vadd.f32 0.0, %v1535
      %v1537 = vpop.f32.mrb[0].mxu0
      %v1538 = vpop.f32.mrb[0].mxu0
      %v1539 = vadd.f32 0.0, %v1538
      %v1540 = vpop.f32.mrb[0].mxu0
      %1541 = vmatprep.mubr.bf16.mxu0 0
      %1542 = vmatmul.mubr.bf16.gmra.mrb[0].mxu0 %v1397
      %v1543 = vpop.f32.mrb[0].mxu0
      %v1544 = vadd.f32 0.0, %v1543
      %v1545 = vpop.f32.mrb[0].mxu0
      %v1546 = vpop.f32.mrb[0].mxu0
      %v1547 = vadd.f32 0.0, %v1546
      %v1548 = vpop.f32.mrb[0].mxu0
      %1549 = vmatprep.mubr.bf16.mxu0 0
      %1550 = vmatmul.mubr.bf16.gmra.mrb[0].mxu0 %v1400
      %v1551 = vpop.f32.mrb[0].mxu0
      %v1552 = vadd.f32 0.0, %v1551
      %v1553 = vpop.f32.mrb[0].mxu0
      %v1554 = vpop.f32.mrb[0].mxu0
      %v1555 = vadd.f32 0.0, %v1554
      %v1556 = vpop.f32.mrb[0].mxu0
      %1557 = vdwg.mxu0
      %v1559 = vsel %vm483, %v1294, 0
      %v1562 = vsel %vm483, %v1295, 0
      %v1565 = vsel %vm483, %v1296, 0
      %v1568 = vsel %vm483, %v1297, 0
      %v1571 = vsel %vm483, %v1298, 0
      %v1574 = vsel %vm483, %v1299, 0
      %v1577 = vsel %vm483, %v1300, 0
      %v1580 = vsel %vm483, %v1301, 0
      %v1583 = vsel %vm483, %v1302, 0
      %v1586 = vsel %vm483, %v1303, 0
      %v1589 = vsel %vm483, %v1304, 0
      %v1592 = vsel %vm483, %v1305, 0
      %v1595 = vsel %vm483, %v1306, 0
      %v1598 = vsel %vm483, %v1307, 0
      %v1601 = vsel %vm483, %v1308, 0
      %v1604 = vsel %vm493, %v1309, 0
      %1606 = vmatprep.subr.bf16.mxu0 0
      %1607 = vmatpush1.bf16.msra.mxu0 %v1604
      %1608 = vmatprep.subr.bf16.mxu0 0
      %1609 = vmatpush1.bf16.msra.mxu0 0
      %1610 = vmatprep.subr.bf16.mxu0 0
      %1611 = vmatpush1.bf16.msra.mxu0 0
      %1612 = vmatprep.subr.bf16.mxu0 0
      %1613 = vmatpush1.bf16.msra.mxu0 0
      %1614 = vmatprep.subr.bf16.mxu0 0
      %1615 = vmatpush1.bf16.msra.mxu0 0
      %1616 = vmatprep.subr.bf16.mxu0 0
      %1617 = vmatpush1.bf16.msra.mxu0 0
      %1618 = vmatprep.subr.bf16.mxu0 0
      %1619 = vmatpush1.bf16.msra.mxu0 0
      %1620 = vmatprep.subr.bf16.mxu0 0
      %1621 = vmatpush1.bf16.msra.mxu0 0
      %1622 = vmatprep.subr.bf16.mxu0 0
      %1623 = vmatpush1.bf16.msra.mxu0 0
      %1624 = vmatprep.subr.bf16.mxu0 0
      %1625 = vmatpush1.bf16.msra.mxu0 0
      %1626 = vmatprep.subr.bf16.mxu0 0
      %1627 = vmatpush1.bf16.msra.mxu0 0
      %1628 = vmatprep.subr.bf16.mxu0 0
      %1629 = vmatpush1.bf16.msra.mxu0 0
      %1630 = vmatprep.subr.bf16.mxu0 0
      %1631 = vmatpush1.bf16.msra.mxu0 0
      %1632 = vmatprep.subr.bf16.mxu0 0
      %1633 = vmatpush1.bf16.msra.mxu0 0
      %1634 = vmatprep.subr.bf16.mxu0 0
      %1635 = vmatpush1.bf16.msra.mxu0 0
      %1636 = vmatprep.subr.bf16.mxu0 0
      %1637 = vmatpush1.bf16.msra.mxu0 0
      %1638 = vmatprep.mubr.bf16.mxu0 0
      %1639 = vmatmul.mubr.bf16.gmra.mrb[0].mxu0 %v1559
      %v1640 = vpop.f32.mrb[0].mxu0
      %v1641 = vadd.f32 %v1440, %v1640
      %v1642 = vpop.f32.mrb[0].mxu0
      %v1643 = vpop.f32.mrb[0].mxu0
      %v1644 = vadd.f32 %v1443, %v1643
      %v1645 = vpop.f32.mrb[0].mxu0
      %1646 = vmatprep.mubr.bf16.mxu0 0
      %1647 = vmatmul.mubr.bf16.gmra.mrb[0].mxu0 %v1562
      %v1648 = vpop.f32.mrb[0].mxu0
      %v1649 = vadd.f32 %v1448, %v1648
      %v1650 = vpop.f32.mrb[0].mxu0
      %v1651 = vpop.f32.mrb[0].mxu0
      %v1652 = vadd.f32 %v1451, %v1651
      %v1653 = vpop.f32.mrb[0].mxu0
      %1654 = vmatprep.mubr.bf16.mxu0 0
      %1655 = vmatmul.mubr.bf16.gmra.mrb[0].mxu0 %v1565
      %v1656 = vpop.f32.mrb[0].mxu0
      %v1657 = vadd.f32 %v1456, %v1656
      %v1658 = vpop.f32.mrb[0].mxu0
      %v1659 = vpop.f32.mrb[0].mxu0
      %v1660 = vadd.f32 %v1459, %v1659
      %v1661 = vpop.f32.mrb[0].mxu0
      %1662 = vmatprep.mubr.bf16.mxu0 0
      %1663 = vmatmul.mubr.bf16.gmra.mrb[0].mxu0 %v1568
      %v1664 = vpop.f32.mrb[0].mxu0
      %v1665 = vadd.f32 %v1464, %v1664
      %v1666 = vpop.f32.mrb[0].mxu0
      %v1667 = vpop.f32.mrb[0].mxu0
      %v1668 = vadd.f32 %v1467, %v1667
      %v1669 = vpop.f32.mrb[0].mxu0
      %1670 = vmatprep.mubr.bf16.mxu0 0
      %1671 = vmatmul.mubr.bf16.gmra.mrb[0].mxu0 %v1571
      %v1672 = vpop.f32.mrb[0].mxu0
      %v1673 = vadd.f32 %v1472, %v1672
      %v1674 = vpop.f32.mrb[0].mxu0
      %v1675 = vpop.f32.mrb[0].mxu0
      %v1676 = vadd.f32 %v1475, %v1675
      %v1677 = vpop.f32.mrb[0].mxu0
      %1678 = vmatprep.mubr.bf16.mxu0 0
      %1679 = vmatmul.mubr.bf16.gmra.mrb[0].mxu0 %v1574
      %v1680 = vpop.f32.mrb[0].mxu0
      %v1681 = vadd.f32 %v1480, %v1680
      %v1682 = vpop.f32.mrb[0].mxu0
      %v1683 = vpop.f32.mrb[0].mxu0
      %v1684 = vadd.f32 %v1483, %v1683
      %v1685 = vpop.f32.mrb[0].mxu0
      %1686 = vmatprep.mubr.bf16.mxu0 0
      %1687 = vmatmul.mubr.bf16.gmra.mrb[0].mxu0 %v1577
      %v1688 = vpop.f32.mrb[0].mxu0
      %v1689 = vadd.f32 %v1488, %v1688
      %v1690 = vpop.f32.mrb[0].mxu0
      %v1691 = vpop.f32.mrb[0].mxu0
      %v1692 = vadd.f32 %v1491, %v1691
      %v1693 = vpop.f32.mrb[0].mxu0
      %1694 = vmatprep.mubr.bf16.mxu0 0
      %1695 = vmatmul.mubr.bf16.gmra.mrb[0].mxu0 %v1580
      %v1696 = vpop.f32.mrb[0].mxu0
      %v1697 = vadd.f32 %v1496, %v1696
      %v1698 = vpop.f32.mrb[0].mxu0
      %v1699 = vpop.f32.mrb[0].mxu0
      %v1700 = vadd.f32 %v1499, %v1699
      %v1701 = vpop.f32.mrb[0].mxu0
      %1702 = vmatprep.mubr.bf16.mxu0 0
      %1703 = vmatmul.mubr.bf16.gmra.mrb[0].mxu0 %v1583
      %v1704 = vpop.f32.mrb[0].mxu0
      %v1705 = vadd.f32 %v1504, %v1704
      %v1706 = vpop.f32.mrb[0].mxu0
      %v1707 = vpop.f32.mrb[0].mxu0
      %v1708 = vadd.f32 %v1507, %v1707
      %v1709 = vpop.f32.mrb[0].mxu0
      %1710 = vmatprep.mubr.bf16.mxu0 0
      %1711 = vmatmul.mubr.bf16.gmra.mrb[0].mxu0 %v1586
      %v1712 = vpop.f32.mrb[0].mxu0
      %v1713 = vadd.f32 %v1512, %v1712
      %v1714 = vpop.f32.mrb[0].mxu0
      %v1715 = vpop.f32.mrb[0].mxu0
      %v1716 = vadd.f32 %v1515, %v1715
      %v1717 = vpop.f32.mrb[0].mxu0
      %1718 = vmatprep.mubr.bf16.mxu0 0
      %1719 = vmatmul.mubr.bf16.gmra.mrb[0].mxu0 %v1589
      %v1720 = vpop.f32.mrb[0].mxu0
      %v1721 = vadd.f32 %v1520, %v1720
      %v1722 = vpop.f32.mrb[0].mxu0
      %v1723 = vpop.f32.mrb[0].mxu0
      %v1724 = vadd.f32 %v1523, %v1723
      %v1725 = vpop.f32.mrb[0].mxu0
      %1726 = vmatprep.mubr.bf16.mxu0 0
      %1727 = vmatmul.mubr.bf16.gmra.mrb[0].mxu0 %v1592
      %v1728 = vpop.f32.mrb[0].mxu0
      %v1729 = vadd.f32 %v1528, %v1728
      %v1730 = vpop.f32.mrb[0].mxu0
      %v1731 = vpop.f32.mrb[0].mxu0
      %v1732 = vadd.f32 %v1531, %v1731
      %v1733 = vpop.f32.mrb[0].mxu0
      %1734 = vmatprep.mubr.bf16.mxu0 0
      %1735 = vmatmul.mubr.bf16.gmra.mrb[0].mxu0 %v1595
      %v1736 = vpop.f32.mrb[0].mxu0
      %v1737 = vadd.f32 %v1536, %v1736
      %v1738 = vpop.f32.mrb[0].mxu0
      %v1739 = vpop.f32.mrb[0].mxu0
      %v1740 = vadd.f32 %v1539, %v1739
      %v1741 = vpop.f32.mrb[0].mxu0
      %1742 = vmatprep.mubr.bf16.mxu0 0
      %1743 = vmatmul.mubr.bf16.gmra.mrb[0].mxu0 %v1598
      %v1744 = vpop.f32.mrb[0].mxu0
      %v1745 = vadd.f32 %v1544, %v1744
      %v1746 = vpop.f32.mrb[0].mxu0
      %v1747 = vpop.f32.mrb[0].mxu0
      %v1748 = vadd.f32 %v1547, %v1747
      %v1749 = vpop.f32.mrb[0].mxu0
      %1750 = vmatprep.mubr.bf16.mxu0 0
      %1751 = vmatmul.mubr.bf16.gmra.mrb[0].mxu0 %v1601
      %v1752 = vpop.f32.mrb[0].mxu0
      %v1753 = vadd.f32 %v1552, %v1752
      %v1754 = vpop.f32.mrb[0].mxu0
      %v1755 = vpop.f32.mrb[0].mxu0
      %v1756 = vadd.f32 %v1555, %v1755
      %v1757 = vpop.f32.mrb[0].mxu0
      %1758 = vdwg.mxu0
      %v1759 = vld [vmem:[%s455 + $0x2] sm:$0xff]
      %v1760 = vld [vmem:[%s455 + $0xa] sm:$0xff]
      %v1761 = vld [vmem:[%s455 + $0x12] sm:$0xff]
      %v1762 = vld [vmem:[%s455 + $0x1a] sm:$0xff]
      %v1763 = vld [vmem:[%s455 + $0x22] sm:$0xff]
      %v1764 = vld [vmem:[%s455 + $0x2a] sm:$0xff]
      %v1765 = vld [vmem:[%s455 + $0x32] sm:$0xff]
      %v1766 = vld [vmem:[%s455 + $0x3a] sm:$0xff]
      %v1767 = vld [vmem:[%s455 + $0x42] sm:$0xff]
      %v1768 = vld [vmem:[%s455 + $0x4a] sm:$0xff]
      %v1769 = vld [vmem:[%s455 + $0x52] sm:$0xff]
      %v1770 = vld [vmem:[%s455 + $0x5a] sm:$0xff]
      %v1771 = vld [vmem:[%s455 + $0x62] sm:$0xff]
      %v1772 = vld [vmem:[%s455 + $0x6a] sm:$0xff]
      %v1773 = vld [vmem:[%s455 + $0x72] sm:$0xff]
      %v1774 = vld [vmem:[%s455 + $0x7a] sm:$0xff]
      %v1775 = vld [vmem:[%s455 + $0x82] sm:$0xff]
      %v1776 = vld [vmem:[%s455 + $0x8a] sm:$0xff]
      %v1777 = vld [vmem:[%s455 + $0x92] sm:$0xff]
      %v1778 = vld [vmem:[%s455 + $0x9a] sm:$0xff]
      %v1779 = vld [vmem:[%s455 + $0xa2] sm:$0xff]
      %v1780 = vld [vmem:[%s455 + $0xaa] sm:$0xff]
      %v1781 = vld [vmem:[%s455 + $0xb2] sm:$0xff]
      %v1782 = vld [vmem:[%s455 + $0xba] sm:$0xff]
      %v1783 = vld [vmem:[%s455 + $0xc2] sm:$0xff]
      %v1784 = vld [vmem:[%s455 + $0xca] sm:$0xff]
      %v1785 = vld [vmem:[%s455 + $0xd2] sm:$0xff]
      %v1786 = vld [vmem:[%s455 + $0xda] sm:$0xff]
      %v1787 = vld [vmem:[%s455 + $0xe2] sm:$0xff]
      %v1788 = vld [vmem:[%s455 + $0xea] sm:$0xff]
      %v1789 = vpack.c.bf16 %v1760, %v1759
      %v1790 = vpack.c.bf16 %v1762, %v1761
      %v1791 = vpack.c.bf16 %v1764, %v1763
      %v1792 = vpack.c.bf16 %v1766, %v1765
      %v1793 = vpack.c.bf16 %v1768, %v1767
      %v1794 = vpack.c.bf16 %v1770, %v1769
      %v1795 = vpack.c.bf16 %v1772, %v1771
      %v1796 = vpack.c.bf16 %v1774, %v1773
      %v1797 = vpack.c.bf16 %v1776, %v1775
      %v1798 = vpack.c.bf16 %v1778, %v1777
      %v1799 = vpack.c.bf16 %v1780, %v1779
      %v1800 = vpack.c.bf16 %v1782, %v1781
      %v1801 = vpack.c.bf16 %v1784, %v1783
      %v1802 = vpack.c.bf16 %v1786, %v1785
      %v1803 = vpack.c.bf16 %v1788, %v1787
      %s1804 = scalar_lea.vmem %s5, 4
      %v1805 = vld [vmem:[%s1804] sm:$0x3]
      %v1807 = vsel %vm483, %v1789, 0
      %v1810 = vsel %vm483, %v1790, 0
      %v1813 = vsel %vm483, %v1791, 0
      %v1816 = vsel %vm483, %v1792, 0
      %v1819 = vsel %vm483, %v1793, 0
      %v1822 = vsel %vm483, %v1794, 0
      %v1825 = vsel %vm483, %v1795, 0
      %v1828 = vsel %vm483, %v1796, 0
      %v1831 = vsel %vm483, %v1797, 0
      %v1834 = vsel %vm483, %v1798, 0
      %v1837 = vsel %vm483, %v1799, 0
      %v1840 = vsel %vm483, %v1800, 0
      %v1843 = vsel %vm483, %v1801, 0
      %v1846 = vsel %vm483, %v1802, 0
      %v1849 = vsel %vm483, %v1803, 0
      %v1852 = vsel %vm493, %v1805, 0
      %1854 = vmatprep.subr.bf16.mxu0 0
      %1855 = vmatpush1.bf16.msra.mxu0 %v1852
      %1856 = vmatprep.subr.bf16.mxu0 0
      %1857 = vmatpush1.bf16.msra.mxu0 0
      %1858 = vmatprep.subr.bf16.mxu0 0
      %1859 = vmatpush1.bf16.msra.mxu0 0
      %1860 = vmatprep.subr.bf16.mxu0 0
      %1861 = vmatpush1.bf16.msra.mxu0 0
      %1862 = vmatprep.subr.bf16.mxu0 0
      %1863 = vmatpush1.bf16.msra.mxu0 0
      %1864 = vmatprep.subr.bf16.mxu0 0
      %1865 = vmatpush1.bf16.msra.mxu0 0
      %1866 = vmatprep.subr.bf16.mxu0 0
      %1867 = vmatpush1.bf16.msra.mxu0 0
      %1868 = vmatprep.subr.bf16.mxu0 0
      %1869 = vmatpush1.bf16.msra.mxu0 0
      %1870 = vmatprep.subr.bf16.mxu0 0
      %1871 = vmatpush1.bf16.msra.mxu0 0
      %1872 = vmatprep.subr.bf16.mxu0 0
      %1873 = vmatpush1.bf16.msra.mxu0 0
      %1874 = vmatprep.subr.bf16.mxu0 0
      %1875 = vmatpush1.bf16.msra.mxu0 0
      %1876 = vmatprep.subr.bf16.mxu0 0
      %1877 = vmatpush1.bf16.msra.mxu0 0
      %1878 = vmatprep.subr.bf16.mxu0 0
      %1879 = vmatpush1.bf16.msra.mxu0 0
      %1880 = vmatprep.subr.bf16.mxu0 0
      %1881 = vmatpush1.bf16.msra.mxu0 0
      %1882 = vmatprep.subr.bf16.mxu0 0
      %1883 = vmatpush1.bf16.msra.mxu0 0
      %1884 = vmatprep.subr.bf16.mxu0 0
      %1885 = vmatpush1.bf16.msra.mxu0 0
      %1886 = vmatprep.mubr.bf16.mxu0 0
      %1887 = vmatmul.mubr.bf16.gmra.mrb[0].mxu0 %v1807
      %v1888 = vpop.f32.mrb[0].mxu0
      %v1889 = vadd.f32 0.0, %v1888
      %v1890 = vpop.f32.mrb[0].mxu0
      %v1891 = vpop.f32.mrb[0].mxu0
      %v1892 = vadd.f32 0.0, %v1891
      %v1893 = vpop.f32.mrb[0].mxu0
      %1894 = vmatprep.mubr.bf16.mxu0 0
      %1895 = vmatmul.mubr.bf16.gmra.mrb[0].mxu0 %v1810
      %v1896 = vpop.f32.mrb[0].mxu0
      %v1897 = vadd.f32 0.0, %v1896
      %v1898 = vpop.f32.mrb[0].mxu0
      %v1899 = vpop.f32.mrb[0].mxu0
      %v1900 = vadd.f32 0.0, %v1899
      %v1901 = vpop.f32.mrb[0].mxu0
      %1902 = vmatprep.mubr.bf16.mxu0 0
      %1903 = vmatmul.mubr.bf16.gmra.mrb[0].mxu0 %v1813
      %v1904 = vpop.f32.mrb[0].mxu0
      %v1905 = vadd.f32 0.0, %v1904
      %v1906 = vpop.f32.mrb[0].mxu0
      %v1907 = vpop.f32.mrb[0].mxu0
      %v1908 = vadd.f32 0.0, %v1907
      %v1909 = vpop.f32.mrb[0].mxu0
      %1910 = vmatprep.mubr.bf16.mxu0 0
      %1911 = vmatmul.mubr.bf16.gmra.mrb[0].mxu0 %v1816
      %v1912 = vpop.f32.mrb[0].mxu0
      %v1913 = vadd.f32 0.0, %v1912
      %v1914 = vpop.f32.mrb[0].mxu0
      %v1915 = vpop.f32.mrb[0].mxu0
      %v1916 = vadd.f32 0.0, %v1915
      %v1917 = vpop.f32.mrb[0].mxu0
      %1918 = vmatprep.mubr.bf16.mxu0 0
      %1919 = vmatmul.mubr.bf16.gmra.mrb[0].mxu0 %v1819
      %v1920 = vpop.f32.mrb[0].mxu0
      %v1921 = vadd.f32 0.0, %v1920
      %v1922 = vpop.f32.mrb[0].mxu0
      %v1923 = vpop.f32.mrb[0].mxu0
      %v1924 = vadd.f32 0.0, %v1923
      %v1925 = vpop.f32.mrb[0].mxu0
      %1926 = vmatprep.mubr.bf16.mxu0 0
      %1927 = vmatmul.mubr.bf16.gmra.mrb[0].mxu0 %v1822
      %v1928 = vpop.f32.mrb[0].mxu0
      %v1929 = vadd.f32 0.0, %v1928
      %v1930 = vpop.f32.mrb[0].mxu0
      %v1931 = vpop.f32.mrb[0].mxu0
      %v1932 = vadd.f32 0.0, %v1931
      %v1933 = vpop.f32.mrb[0].mxu0
      %1934 = vmatprep.mubr.bf16.mxu0 0
      %1935 = vmatmul.mubr.bf16.gmra.mrb[0].mxu0 %v1825
      %v1936 = vpop.f32.mrb[0].mxu0
      %v1937 = vadd.f32 0.0, %v1936
      %v1938 = vpop.f32.mrb[0].mxu0
      %v1939 = vpop.f32.mrb[0].mxu0
      %v1940 = vadd.f32 0.0, %v1939
      %v1941 = vpop.f32.mrb[0].mxu0
      %1942 = vmatprep.mubr.bf16.mxu0 0
      %1943 = vmatmul.mubr.bf16.gmra.mrb[0].mxu0 %v1828
      %v1944 = vpop.f32.mrb[0].mxu0
      %v1945 = vadd.f32 0.0, %v1944
      %v1946 = vpop.f32.mrb[0].mxu0
      %v1947 = vpop.f32.mrb[0].mxu0
      %v1948 = vadd.f32 0.0, %v1947
      %v1949 = vpop.f32.mrb[0].mxu0
      %1950 = vmatprep.mubr.bf16.mxu0 0
      %1951 = vmatmul.mubr.bf16.gmra.mrb[0].mxu0 %v1831
      %v1952 = vpop.f32.mrb[0].mxu0
      %v1953 = vadd.f32 0.0, %v1952
      %v1954 = vpop.f32.mrb[0].mxu0
      %v1955 = vpop.f32.mrb[0].mxu0
      %v1956 = vadd.f32 0.0, %v1955
      %v1957 = vpop.f32.mrb[0].mxu0
      %1958 = vmatprep.mubr.bf16.mxu0 0
      %1959 = vmatmul.mubr.bf16.gmra.mrb[0].mxu0 %v1834
      %v1960 = vpop.f32.mrb[0].mxu0
      %v1961 = vadd.f32 0.0, %v1960
      %v1962 = vpop.f32.mrb[0].mxu0
      %v1963 = vpop.f32.mrb[0].mxu0
      %v1964 = vadd.f32 0.0, %v1963
      %v1965 = vpop.f32.mrb[0].mxu0
      %1966 = vmatprep.mubr.bf16.mxu0 0
      %1967 = vmatmul.mubr.bf16.gmra.mrb[0].mxu0 %v1837
      %v1968 = vpop.f32.mrb[0].mxu0
      %v1969 = vadd.f32 0.0, %v1968
      %v1970 = vpop.f32.mrb[0].mxu0
      %v1971 = vpop.f32.mrb[0].mxu0
      %v1972 = vadd.f32 0.0, %v1971
      %v1973 = vpop.f32.mrb[0].mxu0
      %1974 = vmatprep.mubr.bf16.mxu0 0
      %1975 = vmatmul.mubr.bf16.gmra.mrb[0].mxu0 %v1840
      %v1976 = vpop.f32.mrb[0].mxu0
      %v1977 = vadd.f32 0.0, %v1976
      %v1978 = vpop.f32.mrb[0].mxu0
      %v1979 = vpop.f32.mrb[0].mxu0
      %v1980 = vadd.f32 0.0, %v1979
      %v1981 = vpop.f32.mrb[0].mxu0
      %1982 = vmatprep.mubr.bf16.mxu0 0
      %1983 = vmatmul.mubr.bf16.gmra.mrb[0].mxu0 %v1843
      %v1984 = vpop.f32.mrb[0].mxu0
      %v1985 = vadd.f32 0.0, %v1984
      %v1986 = vpop.f32.mrb[0].mxu0
      %v1987 = vpop.f32.mrb[0].mxu0
      %v1988 = vadd.f32 0.0, %v1987
      %v1989 = vpop.f32.mrb[0].mxu0
      %1990 = vmatprep.mubr.bf16.mxu0 0
      %1991 = vmatmul.mubr.bf16.gmra.mrb[0].mxu0 %v1846
      %v1992 = vpop.f32.mrb[0].mxu0
      %v1993 = vadd.f32 0.0, %v1992
      %v1994 = vpop.f32.mrb[0].mxu0
      %v1995 = vpop.f32.mrb[0].mxu0
      %v1996 = vadd.f32 0.0, %v1995
      %v1997 = vpop.f32.mrb[0].mxu0
      %1998 = vmatprep.mubr.bf16.mxu0 0
      %1999 = vmatmul.mubr.bf16.gmra.mrb[0].mxu0 %v1849
      %v2000 = vpop.f32.mrb[0].mxu0
      %v2001 = vadd.f32 0.0, %v2000
      %v2002 = vpop.f32.mrb[0].mxu0
      %v2003 = vpop.f32.mrb[0].mxu0
      %v2004 = vadd.f32 0.0, %v2003
      %v2005 = vpop.f32.mrb[0].mxu0
      %2006 = vdwg.mxu0
      %v2007 = vadd.f32 %v1641, %v1889
      %v2008 = vadd.f32 %v1644, %v1892
      %v2009 = vadd.f32 %v1649, %v1897
      %v2010 = vadd.f32 %v1652, %v1900
      %v2011 = vadd.f32 %v1657, %v1905
      %v2012 = vadd.f32 %v1660, %v1908
      %v2013 = vadd.f32 %v1665, %v1913
      %v2014 = vadd.f32 %v1668, %v1916
      %v2015 = vadd.f32 %v1673, %v1921
      %v2016 = vadd.f32 %v1676, %v1924
      %v2017 = vadd.f32 %v1681, %v1929
      %v2018 = vadd.f32 %v1684, %v1932
      %v2019 = vadd.f32 %v1689, %v1937
      %v2020 = vadd.f32 %v1692, %v1940
      %v2021 = vadd.f32 %v1697, %v1945
      %v2022 = vadd.f32 %v1700, %v1948
      %v2023 = vadd.f32 %v1705, %v1953
      %v2024 = vadd.f32 %v1708, %v1956
      %v2025 = vadd.f32 %v1713, %v1961
      %v2026 = vadd.f32 %v1716, %v1964
      %v2027 = vadd.f32 %v1721, %v1969
      %v2028 = vadd.f32 %v1724, %v1972
      %v2029 = vadd.f32 %v1729, %v1977
      %v2030 = vadd.f32 %v1732, %v1980
      %v2031 = vadd.f32 %v1737, %v1985
      %v2032 = vadd.f32 %v1740, %v1988
      %v2033 = vadd.f32 %v1745, %v1993
      %v2034 = vadd.f32 %v1748, %v1996
      %v2035 = vadd.f32 %v1753, %v2001
      %v2036 = vadd.f32 %v1756, %v2004
      %v2037 = vld [vmem:[%s455 + $0x10] sm:$0xff]
      %v2038 = vld [vmem:[%s455 + $0x18] sm:$0xff]
      %v2039 = vld [vmem:[%s455 + $0x20] sm:$0xff]
      %v2040 = vld [vmem:[%s455 + $0x28] sm:$0xff]
      %v2041 = vld [vmem:[%s455 + $0x30] sm:$0xff]
      %v2042 = vld [vmem:[%s455 + $0x38] sm:$0xff]
      %v2043 = vld [vmem:[%s455 + $0x40] sm:$0xff]
      %v2044 = vld [vmem:[%s455 + $0x48] sm:$0xff]
      %v2045 = vld [vmem:[%s455 + $0x50] sm:$0xff]
      %v2046 = vld [vmem:[%s455 + $0x58] sm:$0xff]
      %v2047 = vld [vmem:[%s455 + $0x60] sm:$0xff]
      %v2048 = vld [vmem:[%s455 + $0x68] sm:$0xff]
      %v2049 = vld [vmem:[%s455 + $0x70] sm:$0xff]
      %v2050 = vld [vmem:[%s455 + $0x78] sm:$0xff]
      %v2051 = vld [vmem:[%s455 + $0x80] sm:$0xff]
      %v2052 = vld [vmem:[%s455 + $0x88] sm:$0xff]
      %v2053 = vld [vmem:[%s455 + $0x90] sm:$0xff]
      %v2054 = vld [vmem:[%s455 + $0x98] sm:$0xff]
      %v2055 = vld [vmem:[%s455 + $0xa0] sm:$0xff]
      %v2056 = vld [vmem:[%s455 + $0xa8] sm:$0xff]
      %v2057 = vld [vmem:[%s455 + $0xb0] sm:$0xff]
      %v2058 = vld [vmem:[%s455 + $0xb8] sm:$0xff]
      %v2059 = vld [vmem:[%s455 + $0xc0] sm:$0xff]
      %v2060 = vld [vmem:[%s455 + $0xc8] sm:$0xff]
      %v2061 = vld [vmem:[%s455 + $0xd0] sm:$0xff]
      %v2062 = vld [vmem:[%s455 + $0xd8] sm:$0xff]
      %v2063 = vld [vmem:[%s455 + $0xe0] sm:$0xff]
      %v2064 = vld [vmem:[%s455 + $0xe8] sm:$0xff]
      %v2065 = vld [vmem:[%s455 + $0xf0] sm:$0xff]
      %v2066 = vld [vmem:[%s455 + $0xf8] sm:$0xff]
      %v2067 = vpack.c.bf16 %v2038, %v2037
      %v2068 = vpack.c.bf16 %v2040, %v2039
      %v2069 = vpack.c.bf16 %v2042, %v2041
      %v2070 = vpack.c.bf16 %v2044, %v2043
      %v2071 = vpack.c.bf16 %v2046, %v2045
      %v2072 = vpack.c.bf16 %v2048, %v2047
      %v2073 = vpack.c.bf16 %v2050, %v2049
      %v2074 = vpack.c.bf16 %v2052, %v2051
      %v2075 = vpack.c.bf16 %v2054, %v2053
      %v2076 = vpack.c.bf16 %v2056, %v2055
      %v2077 = vpack.c.bf16 %v2058, %v2057
      %v2078 = vpack.c.bf16 %v2060, %v2059
      %v2079 = vpack.c.bf16 %v2062, %v2061
      %v2080 = vpack.c.bf16 %v2064, %v2063
      %v2081 = vpack.c.bf16 %v2066, %v2065
      %s2082 = scalar_lea.vmem %s5, 6
      %v2083 = vld [vmem:[%s2082] sm:$0x3]
      %v2085 = vsel %vm483, %v2067, 0
      %v2088 = vsel %vm483, %v2068, 0
      %v2091 = vsel %vm483, %v2069, 0
      %v2094 = vsel %vm483, %v2070, 0
      %v2097 = vsel %vm483, %v2071, 0
      %v2100 = vsel %vm483, %v2072, 0
      %v2103 = vsel %vm483, %v2073, 0
      %v2106 = vsel %vm483, %v2074, 0
      %v2109 = vsel %vm483, %v2075, 0
      %v2112 = vsel %vm483, %v2076, 0
      %v2115 = vsel %vm483, %v2077, 0
      %v2118 = vsel %vm483, %v2078, 0
      %v2121 = vsel %vm483, %v2079, 0
      %v2124 = vsel %vm483, %v2080, 0
      %v2127 = vsel %vm483, %v2081, 0
      %v2130 = vsel %vm493, %v2083, 0
      %2132 = vmatprep.subr.bf16.mxu0 0
      %2133 = vmatpush1.bf16.msra.mxu0 %v2130
      %2134 = vmatprep.subr.bf16.mxu0 0
      %2135 = vmatpush1.bf16.msra.mxu0 0
      %2136 = vmatprep.subr.bf16.mxu0 0
      %2137 = vmatpush1.bf16.msra.mxu0 0
      %2138 = vmatprep.subr.bf16.mxu0 0
      %2139 = vmatpush1.bf16.msra.mxu0 0
      %2140 = vmatprep.subr.bf16.mxu0 0
      %2141 = vmatpush1.bf16.msra.mxu0 0
      %2142 = vmatprep.subr.bf16.mxu0 0
      %2143 = vmatpush1.bf16.msra.mxu0 0
      %2144 = vmatprep.subr.bf16.mxu0 0
      %2145 = vmatpush1.bf16.msra.mxu0 0
      %2146 = vmatprep.subr.bf16.mxu0 0
      %2147 = vmatpush1.bf16.msra.mxu0 0
      %2148 = vmatprep.subr.bf16.mxu0 0
      %2149 = vmatpush1.bf16.msra.mxu0 0
      %2150 = vmatprep.subr.bf16.mxu0 0
      %2151 = vmatpush1.bf16.msra.mxu0 0
      %2152 = vmatprep.subr.bf16.mxu0 0
      %2153 = vmatpush1.bf16.msra.mxu0 0
      %2154 = vmatprep.subr.bf16.mxu0 0
      %2155 = vmatpush1.bf16.msra.mxu0 0
      %2156 = vmatprep.subr.bf16.mxu0 0
      %2157 = vmatpush1.bf16.msra.mxu0 0
      %2158 = vmatprep.subr.bf16.mxu0 0
      %2159 = vmatpush1.bf16.msra.mxu0 0
      %2160 = vmatprep.subr.bf16.mxu0 0
      %2161 = vmatpush1.bf16.msra.mxu0 0
      %2162 = vmatprep.subr.bf16.mxu0 0
      %2163 = vmatpush1.bf16.msra.mxu0 0
      %2164 = vmatprep.mubr.bf16.mxu0 0
      %2165 = vmatmul.mubr.bf16.gmra.mrb[0].mxu0 %v2085
      %v2166 = vpop.f32.mrb[0].mxu0
      %v2167 = vadd.f32 0.0, %v2166
      %v2168 = vpop.f32.mrb[0].mxu0
      %v2169 = vpop.f32.mrb[0].mxu0
      %v2170 = vadd.f32 0.0, %v2169
      %v2171 = vpop.f32.mrb[0].mxu0
      %2172 = vmatprep.mubr.bf16.mxu0 0
      %2173 = vmatmul.mubr.bf16.gmra.mrb[0].mxu0 %v2088
      %v2174 = vpop.f32.mrb[0].mxu0
      %v2175 = vadd.f32 0.0, %v2174
      %v2176 = vpop.f32.mrb[0].mxu0
      %v2177 = vpop.f32.mrb[0].mxu0
      %v2178 = vadd.f32 0.0, %v2177
      %v2179 = vpop.f32.mrb[0].mxu0
      %2180 = vmatprep.mubr.bf16.mxu0 0
      %2181 = vmatmul.mubr.bf16.gmra.mrb[0].mxu0 %v2091
      %v2182 = vpop.f32.mrb[0].mxu0
      %v2183 = vadd.f32 0.0, %v2182
      %v2184 = vpop.f32.mrb[0].mxu0
      %v2185 = vpop.f32.mrb[0].mxu0
      %v2186 = vadd.f32 0.0, %v2185
      %v2187 = vpop.f32.mrb[0].mxu0
      %2188 = vmatprep.mubr.bf16.mxu0 0
      %2189 = vmatmul.mubr.bf16.gmra.mrb[0].mxu0 %v2094
      %v2190 = vpop.f32.mrb[0].mxu0
      %v2191 = vadd.f32 0.0, %v2190
      %v2192 = vpop.f32.mrb[0].mxu0
      %v2193 = vpop.f32.mrb[0].mxu0
      %v2194 = vadd.f32 0.0, %v2193
      %v2195 = vpop.f32.mrb[0].mxu0
      %2196 = vmatprep.mubr.bf16.mxu0 0
      %2197 = vmatmul.mubr.bf16.gmra.mrb[0].mxu0 %v2097
      %v2198 = vpop.f32.mrb[0].mxu0
      %v2199 = vadd.f32 0.0, %v2198
      %v2200 = vpop.f32.mrb[0].mxu0
      %v2201 = vpop.f32.mrb[0].mxu0
      %v2202 = vadd.f32 0.0, %v2201
      %v2203 = vpop.f32.mrb[0].mxu0
      %2204 = vmatprep.mubr.bf16.mxu0 0
      %2205 = vmatmul.mubr.bf16.gmra.mrb[0].mxu0 %v2100
      %v2206 = vpop.f32.mrb[0].mxu0
      %v2207 = vadd.f32 0.0, %v2206
      %v2208 = vpop.f32.mrb[0].mxu0
      %v2209 = vpop.f32.mrb[0].mxu0
      %v2210 = vadd.f32 0.0, %v2209
      %v2211 = vpop.f32.mrb[0].mxu0
      %2212 = vmatprep.mubr.bf16.mxu0 0
      %2213 = vmatmul.mubr.bf16.gmra.mrb[0].mxu0 %v2103
      %v2214 = vpop.f32.mrb[0].mxu0
      %v2215 = vadd.f32 0.0, %v2214
      %v2216 = vpop.f32.mrb[0].mxu0
      %v2217 = vpop.f32.mrb[0].mxu0
      %v2218 = vadd.f32 0.0, %v2217
      %v2219 = vpop.f32.mrb[0].mxu0
      %2220 = vmatprep.mubr.bf16.mxu0 0
      %2221 = vmatmul.mubr.bf16.gmra.mrb[0].mxu0 %v2106
      %v2222 = vpop.f32.mrb[0].mxu0
      %v2223 = vadd.f32 0.0, %v2222
      %v2224 = vpop.f32.mrb[0].mxu0
      %v2225 = vpop.f32.mrb[0].mxu0
      %v2226 = vadd.f32 0.0, %v2225
      %v2227 = vpop.f32.mrb[0].mxu0
      %2228 = vmatprep.mubr.bf16.mxu0 0
      %2229 = vmatmul.mubr.bf16.gmra.mrb[0].mxu0 %v2109
      %v2230 = vpop.f32.mrb[0].mxu0
      %v2231 = vadd.f32 0.0, %v2230
      %v2232 = vpop.f32.mrb[0].mxu0
      %v2233 = vpop.f32.mrb[0].mxu0
      %v2234 = vadd.f32 0.0, %v2233
      %v2235 = vpop.f32.mrb[0].mxu0
      %2236 = vmatprep.mubr.bf16.mxu0 0
      %2237 = vmatmul.mubr.bf16.gmra.mrb[0].mxu0 %v2112
      %v2238 = vpop.f32.mrb[0].mxu0
      %v2239 = vadd.f32 0.0, %v2238
      %v2240 = vpop.f32.mrb[0].mxu0
      %v2241 = vpop.f32.mrb[0].mxu0
      %v2242 = vadd.f32 0.0, %v2241
      %v2243 = vpop.f32.mrb[0].mxu0
      %2244 = vmatprep.mubr.bf16.mxu0 0
      %2245 = vmatmul.mubr.bf16.gmra.mrb[0].mxu0 %v2115
      %v2246 = vpop.f32.mrb[0].mxu0
      %v2247 = vadd.f32 0.0, %v2246
      %v2248 = vpop.f32.mrb[0].mxu0
      %v2249 = vpop.f32.mrb[0].mxu0
      %v2250 = vadd.f32 0.0, %v2249
      %v2251 = vpop.f32.mrb[0].mxu0
      %2252 = vmatprep.mubr.bf16.mxu0 0
      %2253 = vmatmul.mubr.bf16.gmra.mrb[0].mxu0 %v2118
      %v2254 = vpop.f32.mrb[0].mxu0
      %v2255 = vadd.f32 0.0, %v2254
      %v2256 = vpop.f32.mrb[0].mxu0
      %v2257 = vpop.f32.mrb[0].mxu0
      %v2258 = vadd.f32 0.0, %v2257
      %v2259 = vpop.f32.mrb[0].mxu0
      %2260 = vmatprep.mubr.bf16.mxu0 0
      %2261 = vmatmul.mubr.bf16.gmra.mrb[0].mxu0 %v2121
      %v2262 = vpop.f32.mrb[0].mxu0
      %v2263 = vadd.f32 0.0, %v2262
      %v2264 = vpop.f32.mrb[0].mxu0
      %v2265 = vpop.f32.mrb[0].mxu0
      %v2266 = vadd.f32 0.0, %v2265
      %v2267 = vpop.f32.mrb[0].mxu0
      %2268 = vmatprep.mubr.bf16.mxu0 0
      %2269 = vmatmul.mubr.bf16.gmra.mrb[0].mxu0 %v2124
      %v2270 = vpop.f32.mrb[0].mxu0
      %v2271 = vadd.f32 0.0, %v2270
      %v2272 = vpop.f32.mrb[0].mxu0
      %v2273 = vpop.f32.mrb[0].mxu0
      %v2274 = vadd.f32 0.0, %v2273
      %v2275 = vpop.f32.mrb[0].mxu0
      %2276 = vmatprep.mubr.bf16.mxu0 0
      %2277 = vmatmul.mubr.bf16.gmra.mrb[0].mxu0 %v2127
      %v2278 = vpop.f32.mrb[0].mxu0
      %v2279 = vadd.f32 0.0, %v2278
      %v2280 = vpop.f32.mrb[0].mxu0
      %v2281 = vpop.f32.mrb[0].mxu0
      %v2282 = vadd.f32 0.0, %v2281
      %v2283 = vpop.f32.mrb[0].mxu0
      %2284 = vdwg.mxu0
      %v2285 = vadd.f32 %v2007, %v2167
      %v2286 = vadd.f32 %v2008, %v2170
      %v2287 = vadd.f32 %v2009, %v2175
      %v2288 = vadd.f32 %v2010, %v2178
      %v2289 = vadd.f32 %v2011, %v2183
      %v2290 = vadd.f32 %v2012, %v2186
      %v2291 = vadd.f32 %v2013, %v2191
      %v2292 = vadd.f32 %v2014, %v2194
      %v2293 = vadd.f32 %v2015, %v2199
      %v2294 = vadd.f32 %v2016, %v2202
      %v2295 = vadd.f32 %v2017, %v2207
      %v2296 = vadd.f32 %v2018, %v2210
      %v2297 = vadd.f32 %v2019, %v2215
      %v2298 = vadd.f32 %v2020, %v2218
      %v2299 = vadd.f32 %v2021, %v2223
      %v2300 = vadd.f32 %v2022, %v2226
      %v2301 = vadd.f32 %v2023, %v2231
      %v2302 = vadd.f32 %v2024, %v2234
      %v2303 = vadd.f32 %v2025, %v2239
      %v2304 = vadd.f32 %v2026, %v2242
      %v2305 = vadd.f32 %v2027, %v2247
      %v2306 = vadd.f32 %v2028, %v2250
      %v2307 = vadd.f32 %v2029, %v2255
      %v2308 = vadd.f32 %v2030, %v2258
      %v2309 = vadd.f32 %v2031, %v2263
      %v2310 = vadd.f32 %v2032, %v2266
      %v2311 = vadd.f32 %v2033, %v2271
      %v2312 = vadd.f32 %v2034, %v2274
      %v2313 = vadd.f32 %v2035, %v2279
      %v2314 = vadd.f32 %v2036, %v2282
      %v2315 = vld [vmem:[%s455 + $0x11] sm:$0xff]
      %v2316 = vld [vmem:[%s455 + $0x19] sm:$0xff]
      %v2317 = vld [vmem:[%s455 + $0x21] sm:$0xff]
      %v2318 = vld [vmem:[%s455 + $0x29] sm:$0xff]
      %v2319 = vld [vmem:[%s455 + $0x31] sm:$0xff]
      %v2320 = vld [vmem:[%s455 + $0x39] sm:$0xff]
      %v2321 = vld [vmem:[%s455 + $0x41] sm:$0xff]
      %v2322 = vld [vmem:[%s455 + $0x49] sm:$0xff]
      %v2323 = vld [vmem:[%s455 + $0x51] sm:$0xff]
      %v2324 = vld [vmem:[%s455 + $0x59] sm:$0xff]
      %v2325 = vld [vmem:[%s455 + $0x61] sm:$0xff]
      %v2326 = vld [vmem:[%s455 + $0x69] sm:$0xff]
      %v2327 = vld [vmem:[%s455 + $0x71] sm:$0xff]
      %v2328 = vld [vmem:[%s455 + $0x79] sm:$0xff]
      %v2329 = vld [vmem:[%s455 + $0x81] sm:$0xff]
      %v2330 = vld [vmem:[%s455 + $0x89] sm:$0xff]
      %v2331 = vld [vmem:[%s455 + $0x91] sm:$0xff]
      %v2332 = vld [vmem:[%s455 + $0x99] sm:$0xff]
      %v2333 = vld [vmem:[%s455 + $0xa1] sm:$0xff]
      %v2334 = vld [vmem:[%s455 + $0xa9] sm:$0xff]
      %v2335 = vld [vmem:[%s455 + $0xb1] sm:$0xff]
      %v2336 = vld [vmem:[%s455 + $0xb9] sm:$0xff]
      %v2337 = vld [vmem:[%s455 + $0xc1] sm:$0xff]
      %v2338 = vld [vmem:[%s455 + $0xc9] sm:$0xff]
      %v2339 = vld [vmem:[%s455 + $0xd1] sm:$0xff]
      %v2340 = vld [vmem:[%s455 + $0xd9] sm:$0xff]
      %v2341 = vld [vmem:[%s455 + $0xe1] sm:$0xff]
      %v2342 = vld [vmem:[%s455 + $0xe9] sm:$0xff]
      %v2343 = vld [vmem:[%s455 + $0xf1] sm:$0xff]
      %v2344 = vld [vmem:[%s455 + $0xf9] sm:$0xff]
      %v2345 = vpack.c.bf16 %v2316, %v2315
      %v2346 = vpack.c.bf16 %v2318, %v2317
      %v2347 = vpack.c.bf16 %v2320, %v2319
      %v2348 = vpack.c.bf16 %v2322, %v2321
      %v2349 = vpack.c.bf16 %v2324, %v2323
      %v2350 = vpack.c.bf16 %v2326, %v2325
      %v2351 = vpack.c.bf16 %v2328, %v2327
      %v2352 = vpack.c.bf16 %v2330, %v2329
      %v2353 = vpack.c.bf16 %v2332, %v2331
      %v2354 = vpack.c.bf16 %v2334, %v2333
      %v2355 = vpack.c.bf16 %v2336, %v2335
      %v2356 = vpack.c.bf16 %v2338, %v2337
      %v2357 = vpack.c.bf16 %v2340, %v2339
      %v2358 = vpack.c.bf16 %v2342, %v2341
      %v2359 = vpack.c.bf16 %v2344, %v2343
      %s2360 = scalar_lea.vmem %s5, 8
      %v2361 = vld [vmem:[%s2360] sm:$0x3]
      %v2363 = vsel %vm483, %v2345, 0
      %v2366 = vsel %vm483, %v2346, 0
      %v2369 = vsel %vm483, %v2347, 0
      %v2372 = vsel %vm483, %v2348, 0
      %v2375 = vsel %vm483, %v2349, 0
      %v2378 = vsel %vm483, %v2350, 0
      %v2381 = vsel %vm483, %v2351, 0
      %v2384 = vsel %vm483, %v2352, 0
      %v2387 = vsel %vm483, %v2353, 0
      %v2390 = vsel %vm483, %v2354, 0
      %v2393 = vsel %vm483, %v2355, 0
      %v2396 = vsel %vm483, %v2356, 0
      %v2399 = vsel %vm483, %v2357, 0
      %v2402 = vsel %vm483, %v2358, 0
      %v2405 = vsel %vm483, %v2359, 0
      %v2408 = vsel %vm493, %v2361, 0
      %2410 = vmatprep.subr.bf16.mxu0 0
      %2411 = vmatpush1.bf16.msra.mxu0 %v2408
      %2412 = vmatprep.subr.bf16.mxu0 0
      %2413 = vmatpush1.bf16.msra.mxu0 0
      %2414 = vmatprep.subr.bf16.mxu0 0
      %2415 = vmatpush1.bf16.msra.mxu0 0
      %2416 = vmatprep.subr.bf16.mxu0 0
      %2417 = vmatpush1.bf16.msra.mxu0 0
      %2418 = vmatprep.subr.bf16.mxu0 0
      %2419 = vmatpush1.bf16.msra.mxu0 0
      %2420 = vmatprep.subr.bf16.mxu0 0
      %2421 = vmatpush1.bf16.msra.mxu0 0
      %2422 = vmatprep.subr.bf16.mxu0 0
      %2423 = vmatpush1.bf16.msra.mxu0 0
      %2424 = vmatprep.subr.bf16.mxu0 0
      %2425 = vmatpush1.bf16.msra.mxu0 0
      %2426 = vmatprep.subr.bf16.mxu0 0
      %2427 = vmatpush1.bf16.msra.mxu0 0
      %2428 = vmatprep.subr.bf16.mxu0 0
      %2429 = vmatpush1.bf16.msra.mxu0 0
      %2430 = vmatprep.subr.bf16.mxu0 0
      %2431 = vmatpush1.bf16.msra.mxu0 0
      %2432 = vmatprep.subr.bf16.mxu0 0
      %2433 = vmatpush1.bf16.msra.mxu0 0
      %2434 = vmatprep.subr.bf16.mxu0 0
      %2435 = vmatpush1.bf16.msra.mxu0 0
      %2436 = vmatprep.subr.bf16.mxu0 0
      %2437 = vmatpush1.bf16.msra.mxu0 0
      %2438 = vmatprep.subr.bf16.mxu0 0
      %2439 = vmatpush1.bf16.msra.mxu0 0
      %2440 = vmatprep.subr.bf16.mxu0 0
      %2441 = vmatpush1.bf16.msra.mxu0 0
      %2442 = vmatprep.mubr.bf16.mxu0 0
      %2443 = vmatmul.mubr.bf16.gmra.mrb[0].mxu0 %v2363
      %v2444 = vpop.f32.mrb[0].mxu0
      %v2445 = vadd.f32 0.0, %v2444
      %v2446 = vpop.f32.mrb[0].mxu0
      %v2447 = vpop.f32.mrb[0].mxu0
      %v2448 = vadd.f32 0.0, %v2447
      %v2449 = vpop.f32.mrb[0].mxu0
      %2450 = vmatprep.mubr.bf16.mxu0 0
      %2451 = vmatmul.mubr.bf16.gmra.mrb[0].mxu0 %v2366
      %v2452 = vpop.f32.mrb[0].mxu0
      %v2453 = vadd.f32 0.0, %v2452
      %v2454 = vpop.f32.mrb[0].mxu0
      %v2455 = vpop.f32.mrb[0].mxu0
      %v2456 = vadd.f32 0.0, %v2455
      %v2457 = vpop.f32.mrb[0].mxu0
      %2458 = vmatprep.mubr.bf16.mxu0 0
      %2459 = vmatmul.mubr.bf16.gmra.mrb[0].mxu0 %v2369
      %v2460 = vpop.f32.mrb[0].mxu0
      %v2461 = vadd.f32 0.0, %v2460
      %v2462 = vpop.f32.mrb[0].mxu0
      %v2463 = vpop.f32.mrb[0].mxu0
      %v2464 = vadd.f32 0.0, %v2463
      %v2465 = vpop.f32.mrb[0].mxu0
      %2466 = vmatprep.mubr.bf16.mxu0 0
      %2467 = vmatmul.mubr.bf16.gmra.mrb[0].mxu0 %v2372
      %v2468 = vpop.f32.mrb[0].mxu0
      %v2469 = vadd.f32 0.0, %v2468
      %v2470 = vpop.f32.mrb[0].mxu0
      %v2471 = vpop.f32.mrb[0].mxu0
      %v2472 = vadd.f32 0.0, %v2471
      %v2473 = vpop.f32.mrb[0].mxu0
      %2474 = vmatprep.mubr.bf16.mxu0 0
      %2475 = vmatmul.mubr.bf16.gmra.mrb[0].mxu0 %v2375
      %v2476 = vpop.f32.mrb[0].mxu0
      %v2477 = vadd.f32 0.0, %v2476
      %v2478 = vpop.f32.mrb[0].mxu0
      %v2479 = vpop.f32.mrb[0].mxu0
      %v2480 = vadd.f32 0.0, %v2479
      %v2481 = vpop.f32.mrb[0].mxu0
      %2482 = vmatprep.mubr.bf16.mxu0 0
      %2483 = vmatmul.mubr.bf16.gmra.mrb[0].mxu0 %v2378
      %v2484 = vpop.f32.mrb[0].mxu0
      %v2485 = vadd.f32 0.0, %v2484
      %v2486 = vpop.f32.mrb[0].mxu0
      %v2487 = vpop.f32.mrb[0].mxu0
      %v2488 = vadd.f32 0.0, %v2487
      %v2489 = vpop.f32.mrb[0].mxu0
      %2490 = vmatprep.mubr.bf16.mxu0 0
      %2491 = vmatmul.mubr.bf16.gmra.mrb[0].mxu0 %v2381
      %v2492 = vpop.f32.mrb[0].mxu0
      %v2493 = vadd.f32 0.0, %v2492
      %v2494 = vpop.f32.mrb[0].mxu0
      %v2495 = vpop.f32.mrb[0].mxu0
      %v2496 = vadd.f32 0.0, %v2495
      %v2497 = vpop.f32.mrb[0].mxu0
      %2498 = vmatprep.mubr.bf16.mxu0 0
      %2499 = vmatmul.mubr.bf16.gmra.mrb[0].mxu0 %v2384
      %v2500 = vpop.f32.mrb[0].mxu0
      %v2501 = vadd.f32 0.0, %v2500
      %v2502 = vpop.f32.mrb[0].mxu0
      %v2503 = vpop.f32.mrb[0].mxu0
      %v2504 = vadd.f32 0.0, %v2503
      %v2505 = vpop.f32.mrb[0].mxu0
      %2506 = vmatprep.mubr.bf16.mxu0 0
      %2507 = vmatmul.mubr.bf16.gmra.mrb[0].mxu0 %v2387
      %v2508 = vpop.f32.mrb[0].mxu0
      %v2509 = vadd.f32 0.0, %v2508
      %v2510 = vpop.f32.mrb[0].mxu0
      %v2511 = vpop.f32.mrb[0].mxu0
      %v2512 = vadd.f32 0.0, %v2511
      %v2513 = vpop.f32.mrb[0].mxu0
      %2514 = vmatprep.mubr.bf16.mxu0 0
      %2515 = vmatmul.mubr.bf16.gmra.mrb[0].mxu0 %v2390
      %v2516 = vpop.f32.mrb[0].mxu0
      %v2517 = vadd.f32 0.0, %v2516
      %v2518 = vpop.f32.mrb[0].mxu0
      %v2519 = vpop.f32.mrb[0].mxu0
      %v2520 = vadd.f32 0.0, %v2519
      %v2521 = vpop.f32.mrb[0].mxu0
      %2522 = vmatprep.mubr.bf16.mxu0 0
      %2523 = vmatmul.mubr.bf16.gmra.mrb[0].mxu0 %v2393
      %v2524 = vpop.f32.mrb[0].mxu0
      %v2525 = vadd.f32 0.0, %v2524
      %v2526 = vpop.f32.mrb[0].mxu0
      %v2527 = vpop.f32.mrb[0].mxu0
      %v2528 = vadd.f32 0.0, %v2527
      %v2529 = vpop.f32.mrb[0].mxu0
      %2530 = vmatprep.mubr.bf16.mxu0 0
      %2531 = vmatmul.mubr.bf16.gmra.mrb[0].mxu0 %v2396
      %v2532 = vpop.f32.mrb[0].mxu0
      %v2533 = vadd.f32 0.0, %v2532
      %v2534 = vpop.f32.mrb[0].mxu0
      %v2535 = vpop.f32.mrb[0].mxu0
      %v2536 = vadd.f32 0.0, %v2535
      %v2537 = vpop.f32.mrb[0].mxu0
      %2538 = vmatprep.mubr.bf16.mxu0 0
      %2539 = vmatmul.mubr.bf16.gmra.mrb[0].mxu0 %v2399
      %v2540 = vpop.f32.mrb[0].mxu0
      %v2541 = vadd.f32 0.0, %v2540
      %v2542 = vpop.f32.mrb[0].mxu0
      %v2543 = vpop.f32.mrb[0].mxu0
      %v2544 = vadd.f32 0.0, %v2543
      %v2545 = vpop.f32.mrb[0].mxu0
      %2546 = vmatprep.mubr.bf16.mxu0 0
      %2547 = vmatmul.mubr.bf16.gmra.mrb[0].mxu0 %v2402
      %v2548 = vpop.f32.mrb[0].mxu0
      %v2549 = vadd.f32 0.0, %v2548
      %v2550 = vpop.f32.mrb[0].mxu0
      %v2551 = vpop.f32.mrb[0].mxu0
      %v2552 = vadd.f32 0.0, %v2551
      %v2553 = vpop.f32.mrb[0].mxu0
      %2554 = vmatprep.mubr.bf16.mxu0 0
      %2555 = vmatmul.mubr.bf16.gmra.mrb[0].mxu0 %v2405
      %v2556 = vpop.f32.mrb[0].mxu0
      %v2557 = vadd.f32 0.0, %v2556
      %v2558 = vpop.f32.mrb[0].mxu0
      %v2559 = vpop.f32.mrb[0].mxu0
      %v2560 = vadd.f32 0.0, %v2559
      %v2561 = vpop.f32.mrb[0].mxu0
      %2562 = vdwg.mxu0
      %v2563 = vadd.f32 %v2285, %v2445
      %v2564 = vadd.f32 %v2286, %v2448
      %v2565 = vadd.f32 %v2287, %v2453
      %v2566 = vadd.f32 %v2288, %v2456
      %v2567 = vadd.f32 %v2289, %v2461
      %v2568 = vadd.f32 %v2290, %v2464
      %v2569 = vadd.f32 %v2291, %v2469
      %v2570 = vadd.f32 %v2292, %v2472
      %v2571 = vadd.f32 %v2293, %v2477
      %v2572 = vadd.f32 %v2294, %v2480
      %v2573 = vadd.f32 %v2295, %v2485
      %v2574 = vadd.f32 %v2296, %v2488
      %v2575 = vadd.f32 %v2297, %v2493
      %v2576 = vadd.f32 %v2298, %v2496
      %v2577 = vadd.f32 %v2299, %v2501
      %v2578 = vadd.f32 %v2300, %v2504
      %v2579 = vadd.f32 %v2301, %v2509
      %v2580 = vadd.f32 %v2302, %v2512
      %v2581 = vadd.f32 %v2303, %v2517
      %v2582 = vadd.f32 %v2304, %v2520
      %v2583 = vadd.f32 %v2305, %v2525
      %v2584 = vadd.f32 %v2306, %v2528
      %v2585 = vadd.f32 %v2307, %v2533
      %v2586 = vadd.f32 %v2308, %v2536
      %v2587 = vadd.f32 %v2309, %v2541
      %v2588 = vadd.f32 %v2310, %v2544
      %v2589 = vadd.f32 %v2311, %v2549
      %v2590 = vadd.f32 %v2312, %v2552
      %v2591 = vadd.f32 %v2313, %v2557
      %v2592 = vadd.f32 %v2314, %v2560
      %v2593 = vld [vmem:[%s455 + $0x12] sm:$0xff]
      %v2594 = vld [vmem:[%s455 + $0x1a] sm:$0xff]
      %v2595 = vld [vmem:[%s455 + $0x22] sm:$0xff]
      %v2596 = vld [vmem:[%s455 + $0x2a] sm:$0xff]
      %v2597 = vld [vmem:[%s455 + $0x32] sm:$0xff]
      %v2598 = vld [vmem:[%s455 + $0x3a] sm:$0xff]
      %v2599 = vld [vmem:[%s455 + $0x42] sm:$0xff]
      %v2600 = vld [vmem:[%s455 + $0x4a] sm:$0xff]
      %v2601 = vld [vmem:[%s455 + $0x52] sm:$0xff]
      %v2602 = vld [vmem:[%s455 + $0x5a] sm:$0xff]
      %v2603 = vld [vmem:[%s455 + $0x62] sm:$0xff]
      %v2604 = vld [vmem:[%s455 + $0x6a] sm:$0xff]
      %v2605 = vld [vmem:[%s455 + $0x72] sm:$0xff]
      %v2606 = vld [vmem:[%s455 + $0x7a] sm:$0xff]
      %v2607 = vld [vmem:[%s455 + $0x82] sm:$0xff]
      %v2608 = vld [vmem:[%s455 + $0x8a] sm:$0xff]
      %v2609 = vld [vmem:[%s455 + $0x92] sm:$0xff]
      %v2610 = vld [vmem:[%s455 + $0x9a] sm:$0xff]
      %v2611 = vld [vmem:[%s455 + $0xa2] sm:$0xff]
      %v2612 = vld [vmem:[%s455 + $0xaa] sm:$0xff]
      %v2613 = vld [vmem:[%s455 + $0xb2] sm:$0xff]
      %v2614 = vld [vmem:[%s455 + $0xba] sm:$0xff]
      %v2615 = vld [vmem:[%s455 + $0xc2] sm:$0xff]
      %v2616 = vld [vmem:[%s455 + $0xca] sm:$0xff]
      %v2617 = vld [vmem:[%s455 + $0xd2] sm:$0xff]
      %v2618 = vld [vmem:[%s455 + $0xda] sm:$0xff]
      %v2619 = vld [vmem:[%s455 + $0xe2] sm:$0xff]
      %v2620 = vld [vmem:[%s455 + $0xea] sm:$0xff]
      %v2621 = vld [vmem:[%s455 + $0xf2] sm:$0xff]
      %v2622 = vld [vmem:[%s455 + $0xfa] sm:$0xff]
      %v2623 = vpack.c.bf16 %v2594, %v2593
      %v2624 = vpack.c.bf16 %v2596, %v2595
      %v2625 = vpack.c.bf16 %v2598, %v2597
      %v2626 = vpack.c.bf16 %v2600, %v2599
      %v2627 = vpack.c.bf16 %v2602, %v2601
      %v2628 = vpack.c.bf16 %v2604, %v2603
      %v2629 = vpack.c.bf16 %v2606, %v2605
      %v2630 = vpack.c.bf16 %v2608, %v2607
      %v2631 = vpack.c.bf16 %v2610, %v2609
      %v2632 = vpack.c.bf16 %v2612, %v2611
      %v2633 = vpack.c.bf16 %v2614, %v2613
      %v2634 = vpack.c.bf16 %v2616, %v2615
      %v2635 = vpack.c.bf16 %v2618, %v2617
      %v2636 = vpack.c.bf16 %v2620, %v2619
      %v2637 = vpack.c.bf16 %v2622, %v2621
      %s2638 = scalar_lea.vmem %s5, 10
      %v2639 = vld [vmem:[%s2638] sm:$0x3]
      %v2641 = vsel %vm483, %v2623, 0
      %v2644 = vsel %vm483, %v2624, 0
      %v2647 = vsel %vm483, %v2625, 0
      %v2650 = vsel %vm483, %v2626, 0
      %v2653 = vsel %vm483, %v2627, 0
      %v2656 = vsel %vm483, %v2628, 0
      %v2659 = vsel %vm483, %v2629, 0
      %v2662 = vsel %vm483, %v2630, 0
      %v2665 = vsel %vm483, %v2631, 0
      %v2668 = vsel %vm483, %v2632, 0
      %v2671 = vsel %vm483, %v2633, 0
      %v2674 = vsel %vm483, %v2634, 0
      %v2677 = vsel %vm483, %v2635, 0
      %v2680 = vsel %vm483, %v2636, 0
      %v2683 = vsel %vm483, %v2637, 0
      %v2686 = vsel %vm493, %v2639, 0
      %2688 = vmatprep.subr.bf16.mxu0 0
      %2689 = vmatpush1.bf16.msra.mxu0 %v2686
      %2690 = vmatprep.subr.bf16.mxu0 0
      %2691 = vmatpush1.bf16.msra.mxu0 0
      %2692 = vmatprep.subr.bf16.mxu0 0
      %2693 = vmatpush1.bf16.msra.mxu0 0
      %2694 = vmatprep.subr.bf16.mxu0 0
      %2695 = vmatpush1.bf16.msra.mxu0 0
      %2696 = vmatprep.subr.bf16.mxu0 0
      %2697 = vmatpush1.bf16.msra.mxu0 0
      %2698 = vmatprep.subr.bf16.mxu0 0
      %2699 = vmatpush1.bf16.msra.mxu0 0
      %2700 = vmatprep.subr.bf16.mxu0 0
      %2701 = vmatpush1.bf16.msra.mxu0 0
      %2702 = vmatprep.subr.bf16.mxu0 0
      %2703 = vmatpush1.bf16.msra.mxu0 0
      %2704 = vmatprep.subr.bf16.mxu0 0
      %2705 = vmatpush1.bf16.msra.mxu0 0
      %2706 = vmatprep.subr.bf16.mxu0 0
      %2707 = vmatpush1.bf16.msra.mxu0 0
      %2708 = vmatprep.subr.bf16.mxu0 0
      %2709 = vmatpush1.bf16.msra.mxu0 0
      %2710 = vmatprep.subr.bf16.mxu0 0
      %2711 = vmatpush1.bf16.msra.mxu0 0
      %2712 = vmatprep.subr.bf16.mxu0 0
      %2713 = vmatpush1.bf16.msra.mxu0 0
      %2714 = vmatprep.subr.bf16.mxu0 0
      %2715 = vmatpush1.bf16.msra.mxu0 0
      %2716 = vmatprep.subr.bf16.mxu0 0
      %2717 = vmatpush1.bf16.msra.mxu0 0
      %2718 = vmatprep.subr.bf16.mxu0 0
      %2719 = vmatpush1.bf16.msra.mxu0 0
      %2720 = vmatprep.mubr.bf16.mxu0 0
      %2721 = vmatmul.mubr.bf16.gmra.mrb[0].mxu0 %v2641
      %v2722 = vpop.f32.mrb[0].mxu0
      %v2723 = vadd.f32 0.0, %v2722
      %v2724 = vpop.f32.mrb[0].mxu0
      %v2725 = vpop.f32.mrb[0].mxu0
      %v2726 = vadd.f32 0.0, %v2725
      %v2727 = vpop.f32.mrb[0].mxu0
      %2728 = vmatprep.mubr.bf16.mxu0 0
      %2729 = vmatmul.mubr.bf16.gmra.mrb[0].mxu0 %v2644
      %v2730 = vpop.f32.mrb[0].mxu0
      %v2731 = vadd.f32 0.0, %v2730
      %v2732 = vpop.f32.mrb[0].mxu0
      %v2733 = vpop.f32.mrb[0].mxu0
      %v2734 = vadd.f32 0.0, %v2733
      %v2735 = vpop.f32.mrb[0].mxu0
      %2736 = vmatprep.mubr.bf16.mxu0 0
      %2737 = vmatmul.mubr.bf16.gmra.mrb[0].mxu0 %v2647
      %v2738 = vpop.f32.mrb[0].mxu0
      %v2739 = vadd.f32 0.0, %v2738
      %v2740 = vpop.f32.mrb[0].mxu0
      %v2741 = vpop.f32.mrb[0].mxu0
      %v2742 = vadd.f32 0.0, %v2741
      %v2743 = vpop.f32.mrb[0].mxu0
      %2744 = vmatprep.mubr.bf16.mxu0 0
      %2745 = vmatmul.mubr.bf16.gmra.mrb[0].mxu0 %v2650
      %v2746 = vpop.f32.mrb[0].mxu0
      %v2747 = vadd.f32 0.0, %v2746
      %v2748 = vpop.f32.mrb[0].mxu0
      %v2749 = vpop.f32.mrb[0].mxu0
      %v2750 = vadd.f32 0.0, %v2749
      %v2751 = vpop.f32.mrb[0].mxu0
      %2752 = vmatprep.mubr.bf16.mxu0 0
      %2753 = vmatmul.mubr.bf16.gmra.mrb[0].mxu0 %v2653
      %v2754 = vpop.f32.mrb[0].mxu0
      %v2755 = vadd.f32 0.0, %v2754
      %v2756 = vpop.f32.mrb[0].mxu0
      %v2757 = vpop.f32.mrb[0].mxu0
      %v2758 = vadd.f32 0.0, %v2757
      %v2759 = vpop.f32.mrb[0].mxu0
      %2760 = vmatprep.mubr.bf16.mxu0 0
      %2761 = vmatmul.mubr.bf16.gmra.mrb[0].mxu0 %v2656
      %v2762 = vpop.f32.mrb[0].mxu0
      %v2763 = vadd.f32 0.0, %v2762
      %v2764 = vpop.f32.mrb[0].mxu0
      %v2765 = vpop.f32.mrb[0].mxu0
      %v2766 = vadd.f32 0.0, %v2765
      %v2767 = vpop.f32.mrb[0].mxu0
      %2768 = vmatprep.mubr.bf16.mxu0 0
      %2769 = vmatmul.mubr.bf16.gmra.mrb[0].mxu0 %v2659
      %v2770 = vpop.f32.mrb[0].mxu0
      %v2771 = vadd.f32 0.0, %v2770
      %v2772 = vpop.f32.mrb[0].mxu0
      %v2773 = vpop.f32.mrb[0].mxu0
      %v2774 = vadd.f32 0.0, %v2773
      %v2775 = vpop.f32.mrb[0].mxu0
      %2776 = vmatprep.mubr.bf16.mxu0 0
      %2777 = vmatmul.mubr.bf16.gmra.mrb[0].mxu0 %v2662
      %v2778 = vpop.f32.mrb[0].mxu0
      %v2779 = vadd.f32 0.0, %v2778
      %v2780 = vpop.f32.mrb[0].mxu0
      %v2781 = vpop.f32.mrb[0].mxu0
      %v2782 = vadd.f32 0.0, %v2781
      %v2783 = vpop.f32.mrb[0].mxu0
      %2784 = vmatprep.mubr.bf16.mxu0 0
      %2785 = vmatmul.mubr.bf16.gmra.mrb[0].mxu0 %v2665
      %v2786 = vpop.f32.mrb[0].mxu0
      %v2787 = vadd.f32 0.0, %v2786
      %v2788 = vpop.f32.mrb[0].mxu0
      %v2789 = vpop.f32.mrb[0].mxu0
      %v2790 = vadd.f32 0.0, %v2789
      %v2791 = vpop.f32.mrb[0].mxu0
      %2792 = vmatprep.mubr.bf16.mxu0 0
      %2793 = vmatmul.mubr.bf16.gmra.mrb[0].mxu0 %v2668
      %v2794 = vpop.f32.mrb[0].mxu0
      %v2795 = vadd.f32 0.0, %v2794
      %v2796 = vpop.f32.mrb[0].mxu0
      %v2797 = vpop.f32.mrb[0].mxu0
      %v2798 = vadd.f32 0.0, %v2797
      %v2799 = vpop.f32.mrb[0].mxu0
      %2800 = vmatprep.mubr.bf16.mxu0 0
      %2801 = vmatmul.mubr.bf16.gmra.mrb[0].mxu0 %v2671
      %v2802 = vpop.f32.mrb[0].mxu0
      %v2803 = vadd.f32 0.0, %v2802
      %v2804 = vpop.f32.mrb[0].mxu0
      %v2805 = vpop.f32.mrb[0].mxu0
      %v2806 = vadd.f32 0.0, %v2805
      %v2807 = vpop.f32.mrb[0].mxu0
      %2808 = vmatprep.mubr.bf16.mxu0 0
      %2809 = vmatmul.mubr.bf16.gmra.mrb[0].mxu0 %v2674
      %v2810 = vpop.f32.mrb[0].mxu0
      %v2811 = vadd.f32 0.0, %v2810
      %v2812 = vpop.f32.mrb[0].mxu0
      %v2813 = vpop.f32.mrb[0].mxu0
      %v2814 = vadd.f32 0.0, %v2813
      %v2815 = vpop.f32.mrb[0].mxu0
      %2816 = vmatprep.mubr.bf16.mxu0 0
      %2817 = vmatmul.mubr.bf16.gmra.mrb[0].mxu0 %v2677
      %v2818 = vpop.f32.mrb[0].mxu0
      %v2819 = vadd.f32 0.0, %v2818
      %v2820 = vpop.f32.mrb[0].mxu0
      %v2821 = vpop.f32.mrb[0].mxu0
      %v2822 = vadd.f32 0.0, %v2821
      %v2823 = vpop.f32.mrb[0].mxu0
      %2824 = vmatprep.mubr.bf16.mxu0 0
      %2825 = vmatmul.mubr.bf16.gmra.mrb[0].mxu0 %v2680
      %v2826 = vpop.f32.mrb[0].mxu0
      %v2827 = vadd.f32 0.0, %v2826
      %v2828 = vpop.f32.mrb[0].mxu0
      %v2829 = vpop.f32.mrb[0].mxu0
      %v2830 = vadd.f32 0.0, %v2829
      %v2831 = vpop.f32.mrb[0].mxu0
      %2832 = vmatprep.mubr.bf16.mxu0 0
      %2833 = vmatmul.mubr.bf16.gmra.mrb[0].mxu0 %v2683
      %v2834 = vpop.f32.mrb[0].mxu0
      %v2835 = vadd.f32 0.0, %v2834
      %v2836 = vpop.f32.mrb[0].mxu0
      %v2837 = vpop.f32.mrb[0].mxu0
      %v2838 = vadd.f32 0.0, %v2837
      %v2839 = vpop.f32.mrb[0].mxu0
      %2840 = vdwg.mxu0
      %v2841 = vadd.f32 %v2563, %v2723
      %v2842 = vadd.f32 %v2564, %v2726
      %v2843 = vadd.f32 %v2565, %v2731
      %v2844 = vadd.f32 %v2566, %v2734
      %v2845 = vadd.f32 %v2567, %v2739
      %v2846 = vadd.f32 %v2568, %v2742
      %v2847 = vadd.f32 %v2569, %v2747
      %v2848 = vadd.f32 %v2570, %v2750
      %v2849 = vadd.f32 %v2571, %v2755
      %v2850 = vadd.f32 %v2572, %v2758
      %v2851 = vadd.f32 %v2573, %v2763
      %v2852 = vadd.f32 %v2574, %v2766
      %v2853 = vadd.f32 %v2575, %v2771
      %v2854 = vadd.f32 %v2576, %v2774
      %v2855 = vadd.f32 %v2577, %v2779
      %v2856 = vadd.f32 %v2578, %v2782
      %v2857 = vadd.f32 %v2579, %v2787
      %v2858 = vadd.f32 %v2580, %v2790
      %v2859 = vadd.f32 %v2581, %v2795
      %v2860 = vadd.f32 %v2582, %v2798
      %v2861 = vadd.f32 %v2583, %v2803
      %v2862 = vadd.f32 %v2584, %v2806
      %v2863 = vadd.f32 %v2585, %v2811
      %v2864 = vadd.f32 %v2586, %v2814
      %v2865 = vadd.f32 %v2587, %v2819
      %v2866 = vadd.f32 %v2588, %v2822
      %v2867 = vadd.f32 %v2589, %v2827
      %v2868 = vadd.f32 %v2590, %v2830
      %v2869 = vadd.f32 %v2591, %v2835
      %v2870 = vadd.f32 %v2592, %v2838
      %v2871 = vld [vmem:[%s455 + $0x20] sm:$0xff]
      %v2872 = vld [vmem:[%s455 + $0x28] sm:$0xff]
      %v2873 = vld [vmem:[%s455 + $0x30] sm:$0xff]
      %v2874 = vld [vmem:[%s455 + $0x38] sm:$0xff]
      %v2875 = vld [vmem:[%s455 + $0x40] sm:$0xff]
      %v2876 = vld [vmem:[%s455 + $0x48] sm:$0xff]
      %v2877 = vld [vmem:[%s455 + $0x50] sm:$0xff]
      %v2878 = vld [vmem:[%s455 + $0x58] sm:$0xff]
      %v2879 = vld [vmem:[%s455 + $0x60] sm:$0xff]
      %v2880 = vld [vmem:[%s455 + $0x68] sm:$0xff]
      %v2881 = vld [vmem:[%s455 + $0x70] sm:$0xff]
      %v2882 = vld [vmem:[%s455 + $0x78] sm:$0xff]
      %v2883 = vld [vmem:[%s455 + $0x80] sm:$0xff]
      %v2884 = vld [vmem:[%s455 + $0x88] sm:$0xff]
      %v2885 = vld [vmem:[%s455 + $0x90] sm:$0xff]
      %v2886 = vld [vmem:[%s455 + $0x98] sm:$0xff]
      %v2887 = vld [vmem:[%s455 + $0xa0] sm:$0xff]
      %v2888 = vld [vmem:[%s455 + $0xa8] sm:$0xff]
      %v2889 = vld [vmem:[%s455 + $0xb0] sm:$0xff]
      %v2890 = vld [vmem:[%s455 + $0xb8] sm:$0xff]
      %v2891 = vld [vmem:[%s455 + $0xc0] sm:$0xff]
      %v2892 = vld [vmem:[%s455 + $0xc8] sm:$0xff]
      %v2893 = vld [vmem:[%s455 + $0xd0] sm:$0xff]
      %v2894 = vld [vmem:[%s455 + $0xd8] sm:$0xff]
      %v2895 = vld [vmem:[%s455 + $0xe0] sm:$0xff]
      %v2896 = vld [vmem:[%s455 + $0xe8] sm:$0xff]
      %v2897 = vld [vmem:[%s455 + $0xf0] sm:$0xff]
      %v2898 = vld [vmem:[%s455 + $0xf8] sm:$0xff]
      %v2899 = vld [vmem:[%s455 + $0x100] sm:$0xff]
      %v2900 = vld [vmem:[%s455 + $0x108] sm:$0xff]
      %v2901 = vpack.c.bf16 %v2872, %v2871
      %v2902 = vpack.c.bf16 %v2874, %v2873
      %v2903 = vpack.c.bf16 %v2876, %v2875
      %v2904 = vpack.c.bf16 %v2878, %v2877
      %v2905 = vpack.c.bf16 %v2880, %v2879
      %v2906 = vpack.c.bf16 %v2882, %v2881
      %v2907 = vpack.c.bf16 %v2884, %v2883
      %v2908 = vpack.c.bf16 %v2886, %v2885
      %v2909 = vpack.c.bf16 %v2888, %v2887
      %v2910 = vpack.c.bf16 %v2890, %v2889
      %v2911 = vpack.c.bf16 %v2892, %v2891
      %v2912 = vpack.c.bf16 %v2894, %v2893
      %v2913 = vpack.c.bf16 %v2896, %v2895
      %v2914 = vpack.c.bf16 %v2898, %v2897
      %v2915 = vpack.c.bf16 %v2900, %v2899
      %s2916 = scalar_lea.vmem %s5, 12
      %v2917 = vld [vmem:[%s2916] sm:$0x3]
      %v2919 = vsel %vm483, %v2901, 0
      %v2922 = vsel %vm483, %v2902, 0
      %v2925 = vsel %vm483, %v2903, 0
      %v2928 = vsel %vm483, %v2904, 0
      %v2931 = vsel %vm483, %v2905, 0
      %v2934 = vsel %vm483, %v2906, 0
      %v2937 = vsel %vm483, %v2907, 0
      %v2940 = vsel %vm483, %v2908, 0
      %v2943 = vsel %vm483, %v2909, 0
      %v2946 = vsel %vm483, %v2910, 0
      %v2949 = vsel %vm483, %v2911, 0
      %v2952 = vsel %vm483, %v2912, 0
      %v2955 = vsel %vm483, %v2913, 0
      %v2958 = vsel %vm483, %v2914, 0
      %v2961 = vsel %vm483, %v2915, 0
      %v2964 = vsel %vm493, %v2917, 0
      %2966 = vmatprep.subr.bf16.mxu0 0
      %2967 = vmatpush1.bf16.msra.mxu0 %v2964
      %2968 = vmatprep.subr.bf16.mxu0 0
      %2969 = vmatpush1.bf16.msra.mxu0 0
      %2970 = vmatprep.subr.bf16.mxu0 0
      %2971 = vmatpush1.bf16.msra.mxu0 0
      %2972 = vmatprep.subr.bf16.mxu0 0
      %2973 = vmatpush1.bf16.msra.mxu0 0
      %2974 = vmatprep.subr.bf16.mxu0 0
      %2975 = vmatpush1.bf16.msra.mxu0 0
      %2976 = vmatprep.subr.bf16.mxu0 0
      %2977 = vmatpush1.bf16.msra.mxu0 0
      %2978 = vmatprep.subr.bf16.mxu0 0
      %2979 = vmatpush1.bf16.msra.mxu0 0
      %2980 = vmatprep.subr.bf16.mxu0 0
      %2981 = vmatpush1.bf16.msra.mxu0 0
      %2982 = vmatprep.subr.bf16.mxu0 0
      %2983 = vmatpush1.bf16.msra.mxu0 0
      %2984 = vmatprep.subr.bf16.mxu0 0
      %2985 = vmatpush1.bf16.msra.mxu0 0
      %2986 = vmatprep.subr.bf16.mxu0 0
      %2987 = vmatpush1.bf16.msra.mxu0 0
      %2988 = vmatprep.subr.bf16.mxu0 0
      %2989 = vmatpush1.bf16.msra.mxu0 0
      %2990 = vmatprep.subr.bf16.mxu0 0
      %2991 = vmatpush1.bf16.msra.mxu0 0
      %2992 = vmatprep.subr.bf16.mxu0 0
      %2993 = vmatpush1.bf16.msra.mxu0 0
      %2994 = vmatprep.subr.bf16.mxu0 0
      %2995 = vmatpush1.bf16.msra.mxu0 0
      %2996 = vmatprep.subr.bf16.mxu0 0
      %2997 = vmatpush1.bf16.msra.mxu0 0
      %2998 = vmatprep.mubr.bf16.mxu0 0
      %2999 = vmatmul.mubr.bf16.gmra.mrb[0].mxu0 %v2919
      %v3000 = vpop.f32.mrb[0].mxu0
      %v3001 = vadd.f32 0.0, %v3000
      %v3002 = vpop.f32.mrb[0].mxu0
      %v3003 = vpop.f32.mrb[0].mxu0
      %v3004 = vadd.f32 0.0, %v3003
      %v3005 = vpop.f32.mrb[0].mxu0
      %3006 = vmatprep.mubr.bf16.mxu0 0
      %3007 = vmatmul.mubr.bf16.gmra.mrb[0].mxu0 %v2922
      %v3008 = vpop.f32.mrb[0].mxu0
      %v3009 = vadd.f32 0.0, %v3008
      %v3010 = vpop.f32.mrb[0].mxu0
      %v3011 = vpop.f32.mrb[0].mxu0
      %v3012 = vadd.f32 0.0, %v3011
      %v3013 = vpop.f32.mrb[0].mxu0
      %3014 = vmatprep.mubr.bf16.mxu0 0
      %3015 = vmatmul.mubr.bf16.gmra.mrb[0].mxu0 %v2925
      %v3016 = vpop.f32.mrb[0].mxu0
      %v3017 = vadd.f32 0.0, %v3016
      %v3018 = vpop.f32.mrb[0].mxu0
      %v3019 = vpop.f32.mrb[0].mxu0
      %v3020 = vadd.f32 0.0, %v3019
      %v3021 = vpop.f32.mrb[0].mxu0
      %3022 = vmatprep.mubr.bf16.mxu0 0
      %3023 = vmatmul.mubr.bf16.gmra.mrb[0].mxu0 %v2928
      %v3024 = vpop.f32.mrb[0].mxu0
      %v3025 = vadd.f32 0.0, %v3024
      %v3026 = vpop.f32.mrb[0].mxu0
      %v3027 = vpop.f32.mrb[0].mxu0
      %v3028 = vadd.f32 0.0, %v3027
      %v3029 = vpop.f32.mrb[0].mxu0
      %3030 = vmatprep.mubr.bf16.mxu0 0
      %3031 = vmatmul.mubr.bf16.gmra.mrb[0].mxu0 %v2931
      %v3032 = vpop.f32.mrb[0].mxu0
      %v3033 = vadd.f32 0.0, %v3032
      %v3034 = vpop.f32.mrb[0].mxu0
      %v3035 = vpop.f32.mrb[0].mxu0
      %v3036 = vadd.f32 0.0, %v3035
      %v3037 = vpop.f32.mrb[0].mxu0
      %3038 = vmatprep.mubr.bf16.mxu0 0
      %3039 = vmatmul.mubr.bf16.gmra.mrb[0].mxu0 %v2934
      %v3040 = vpop.f32.mrb[0].mxu0
      %v3041 = vadd.f32 0.0, %v3040
      %v3042 = vpop.f32.mrb[0].mxu0
      %v3043 = vpop.f32.mrb[0].mxu0
      %v3044 = vadd.f32 0.0, %v3043
      %v3045 = vpop.f32.mrb[0].mxu0
      %3046 = vmatprep.mubr.bf16.mxu0 0
      %3047 = vmatmul.mubr.bf16.gmra.mrb[0].mxu0 %v2937
      %v3048 = vpop.f32.mrb[0].mxu0
      %v3049 = vadd.f32 0.0, %v3048
      %v3050 = vpop.f32.mrb[0].mxu0
      %v3051 = vpop.f32.mrb[0].mxu0
      %v3052 = vadd.f32 0.0, %v3051
      %v3053 = vpop.f32.mrb[0].mxu0
      %3054 = vmatprep.mubr.bf16.mxu0 0
      %3055 = vmatmul.mubr.bf16.gmra.mrb[0].mxu0 %v2940
      %v3056 = vpop.f32.mrb[0].mxu0
      %v3057 = vadd.f32 0.0, %v3056
      %v3058 = vpop.f32.mrb[0].mxu0
      %v3059 = vpop.f32.mrb[0].mxu0
      %v3060 = vadd.f32 0.0, %v3059
      %v3061 = vpop.f32.mrb[0].mxu0
      %3062 = vmatprep.mubr.bf16.mxu0 0
      %3063 = vmatmul.mubr.bf16.gmra.mrb[0].mxu0 %v2943
      %v3064 = vpop.f32.mrb[0].mxu0
      %v3065 = vadd.f32 0.0, %v3064
      %v3066 = vpop.f32.mrb[0].mxu0
      %v3067 = vpop.f32.mrb[0].mxu0
      %v3068 = vadd.f32 0.0, %v3067
      %v3069 = vpop.f32.mrb[0].mxu0
      %3070 = vmatprep.mubr.bf16.mxu0 0
      %3071 = vmatmul.mubr.bf16.gmra.mrb[0].mxu0 %v2946
      %v3072 = vpop.f32.mrb[0].mxu0
      %v3073 = vadd.f32 0.0, %v3072
      %v3074 = vpop.f32.mrb[0].mxu0
      %v3075 = vpop.f32.mrb[0].mxu0
      %v3076 = vadd.f32 0.0, %v3075
      %v3077 = vpop.f32.mrb[0].mxu0
      %3078 = vmatprep.mubr.bf16.mxu0 0
      %3079 = vmatmul.mubr.bf16.gmra.mrb[0].mxu0 %v2949
      %v3080 = vpop.f32.mrb[0].mxu0
      %v3081 = vadd.f32 0.0, %v3080
      %v3082 = vpop.f32.mrb[0].mxu0
      %v3083 = vpop.f32.mrb[0].mxu0
      %v3084 = vadd.f32 0.0, %v3083
      %v3085 = vpop.f32.mrb[0].mxu0
      %3086 = vmatprep.mubr.bf16.mxu0 0
      %3087 = vmatmul.mubr.bf16.gmra.mrb[0].mxu0 %v2952
      %v3088 = vpop.f32.mrb[0].mxu0
      %v3089 = vadd.f32 0.0, %v3088
      %v3090 = vpop.f32.mrb[0].mxu0
      %v3091 = vpop.f32.mrb[0].mxu0
      %v3092 = vadd.f32 0.0, %v3091
      %v3093 = vpop.f32.mrb[0].mxu0
      %3094 = vmatprep.mubr.bf16.mxu0 0
      %3095 = vmatmul.mubr.bf16.gmra.mrb[0].mxu0 %v2955
      %v3096 = vpop.f32.mrb[0].mxu0
      %v3097 = vadd.f32 0.0, %v3096
      %v3098 = vpop.f32.mrb[0].mxu0
      %v3099 = vpop.f32.mrb[0].mxu0
      %v3100 = vadd.f32 0.0, %v3099
      %v3101 = vpop.f32.mrb[0].mxu0
      %3102 = vmatprep.mubr.bf16.mxu0 0
      %3103 = vmatmul.mubr.bf16.gmra.mrb[0].mxu0 %v2958
      %v3104 = vpop.f32.mrb[0].mxu0
      %v3105 = vadd.f32 0.0, %v3104
      %v3106 = vpop.f32.mrb[0].mxu0
      %v3107 = vpop.f32.mrb[0].mxu0
      %v3108 = vadd.f32 0.0, %v3107
      %v3109 = vpop.f32.mrb[0].mxu0
      %3110 = vmatprep.mubr.bf16.mxu0 0
      %3111 = vmatmul.mubr.bf16.gmra.mrb[0].mxu0 %v2961
      %v3112 = vpop.f32.mrb[0].mxu0
      %v3113 = vadd.f32 0.0, %v3112
      %v3114 = vpop.f32.mrb[0].mxu0
      %v3115 = vpop.f32.mrb[0].mxu0
      %v3116 = vadd.f32 0.0, %v3115
      %v3117 = vpop.f32.mrb[0].mxu0
      %3118 = vdwg.mxu0
      %v3119 = vadd.f32 %v2841, %v3001
      %v3120 = vadd.f32 %v2842, %v3004
      %v3121 = vadd.f32 %v2843, %v3009
      %v3122 = vadd.f32 %v2844, %v3012
      %v3123 = vadd.f32 %v2845, %v3017
      %v3124 = vadd.f32 %v2846, %v3020
      %v3125 = vadd.f32 %v2847, %v3025
      %v3126 = vadd.f32 %v2848, %v3028
      %v3127 = vadd.f32 %v2849, %v3033
      %v3128 = vadd.f32 %v2850, %v3036
      %v3129 = vadd.f32 %v2851, %v3041
      %v3130 = vadd.f32 %v2852, %v3044
      %v3131 = vadd.f32 %v2853, %v3049
      %v3132 = vadd.f32 %v2854, %v3052
      %v3133 = vadd.f32 %v2855, %v3057
      %v3134 = vadd.f32 %v2856, %v3060
      %v3135 = vadd.f32 %v2857, %v3065
      %v3136 = vadd.f32 %v2858, %v3068
      %v3137 = vadd.f32 %v2859, %v3073
      %v3138 = vadd.f32 %v2860, %v3076
      %v3139 = vadd.f32 %v2861, %v3081
      %v3140 = vadd.f32 %v2862, %v3084
      %v3141 = vadd.f32 %v2863, %v3089
      %v3142 = vadd.f32 %v2864, %v3092
      %v3143 = vadd.f32 %v2865, %v3097
      %v3144 = vadd.f32 %v2866, %v3100
      %v3145 = vadd.f32 %v2867, %v3105
      %v3146 = vadd.f32 %v2868, %v3108
      %v3147 = vadd.f32 %v2869, %v3113
      %v3148 = vadd.f32 %v2870, %v3116
      %v3149 = vld [vmem:[%s455 + $0x21] sm:$0xff]
      %v3150 = vld [vmem:[%s455 + $0x29] sm:$0xff]
      %v3151 = vld [vmem:[%s455 + $0x31] sm:$0xff]
      %v3152 = vld [vmem:[%s455 + $0x39] sm:$0xff]
      %v3153 = vld [vmem:[%s455 + $0x41] sm:$0xff]
      %v3154 = vld [vmem:[%s455 + $0x49] sm:$0xff]
      %v3155 = vld [vmem:[%s455 + $0x51] sm:$0xff]
      %v3156 = vld [vmem:[%s455 + $0x59] sm:$0xff]
      %v3157 = vld [vmem:[%s455 + $0x61] sm:$0xff]
      %v3158 = vld [vmem:[%s455 + $0x69] sm:$0xff]
      %v3159 = vld [vmem:[%s455 + $0x71] sm:$0xff]
      %v3160 = vld [vmem:[%s455 + $0x79] sm:$0xff]
      %v3161 = vld [vmem:[%s455 + $0x81] sm:$0xff]
      %v3162 = vld [vmem:[%s455 + $0x89] sm:$0xff]
      %v3163 = vld [vmem:[%s455 + $0x91] sm:$0xff]
      %v3164 = vld [vmem:[%s455 + $0x99] sm:$0xff]
      %v3165 = vld [vmem:[%s455 + $0xa1] sm:$0xff]
      %v3166 = vld [vmem:[%s455 + $0xa9] sm:$0xff]
      %v3167 = vld [vmem:[%s455 + $0xb1] sm:$0xff]
      %v3168 = vld [vmem:[%s455 + $0xb9] sm:$0xff]
      %v3169 = vld [vmem:[%s455 + $0xc1] sm:$0xff]
      %v3170 = vld [vmem:[%s455 + $0xc9] sm:$0xff]
      %v3171 = vld [vmem:[%s455 + $0xd1] sm:$0xff]
      %v3172 = vld [vmem:[%s455 + $0xd9] sm:$0xff]
      %v3173 = vld [vmem:[%s455 + $0xe1] sm:$0xff]
      %v3174 = vld [vmem:[%s455 + $0xe9] sm:$0xff]
      %v3175 = vld [vmem:[%s455 + $0xf1] sm:$0xff]
      %v3176 = vld [vmem:[%s455 + $0xf9] sm:$0xff]
      %v3177 = vld [vmem:[%s455 + $0x101] sm:$0xff]
      %v3178 = vld [vmem:[%s455 + $0x109] sm:$0xff]
      %v3179 = vpack.c.bf16 %v3150, %v3149
      %v3180 = vpack.c.bf16 %v3152, %v3151
      %v3181 = vpack.c.bf16 %v3154, %v3153
      %v3182 = vpack.c.bf16 %v3156, %v3155
      %v3183 = vpack.c.bf16 %v3158, %v3157
      %v3184 = vpack.c.bf16 %v3160, %v3159
      %v3185 = vpack.c.bf16 %v3162, %v3161
      %v3186 = vpack.c.bf16 %v3164, %v3163
      %v3187 = vpack.c.bf16 %v3166, %v3165
      %v3188 = vpack.c.bf16 %v3168, %v3167
      %v3189 = vpack.c.bf16 %v3170, %v3169
      %v3190 = vpack.c.bf16 %v3172, %v3171
      %v3191 = vpack.c.bf16 %v3174, %v3173
      %v3192 = vpack.c.bf16 %v3176, %v3175
      %v3193 = vpack.c.bf16 %v3178, %v3177
      %s3194 = scalar_lea.vmem %s5, 14
      %v3195 = vld [vmem:[%s3194] sm:$0x3]
      %v3197 = vsel %vm483, %v3179, 0
      %v3200 = vsel %vm483, %v3180, 0
      %v3203 = vsel %vm483, %v3181, 0
      %v3206 = vsel %vm483, %v3182, 0
      %v3209 = vsel %vm483, %v3183, 0
      %v3212 = vsel %vm483, %v3184, 0
      %v3215 = vsel %vm483, %v3185, 0
      %v3218 = vsel %vm483, %v3186, 0
      %v3221 = vsel %vm483, %v3187, 0
      %v3224 = vsel %vm483, %v3188, 0
      %v3227 = vsel %vm483, %v3189, 0
      %v3230 = vsel %vm483, %v3190, 0
      %v3233 = vsel %vm483, %v3191, 0
      %v3236 = vsel %vm483, %v3192, 0
      %v3239 = vsel %vm483, %v3193, 0
      %v3242 = vsel %vm493, %v3195, 0
      %3244 = vmatprep.subr.bf16.mxu0 0
      %3245 = vmatpush1.bf16.msra.mxu0 %v3242
      %3246 = vmatprep.subr.bf16.mxu0 0
      %3247 = vmatpush1.bf16.msra.mxu0 0
      %3248 = vmatprep.subr.bf16.mxu0 0
      %3249 = vmatpush1.bf16.msra.mxu0 0
      %3250 = vmatprep.subr.bf16.mxu0 0
      %3251 = vmatpush1.bf16.msra.mxu0 0
      %3252 = vmatprep.subr.bf16.mxu0 0
      %3253 = vmatpush1.bf16.msra.mxu0 0
      %3254 = vmatprep.subr.bf16.mxu0 0
      %3255 = vmatpush1.bf16.msra.mxu0 0
      %3256 = vmatprep.subr.bf16.mxu0 0
      %3257 = vmatpush1.bf16.msra.mxu0 0
      %3258 = vmatprep.subr.bf16.mxu0 0
      %3259 = vmatpush1.bf16.msra.mxu0 0
      %3260 = vmatprep.subr.bf16.mxu0 0
      %3261 = vmatpush1.bf16.msra.mxu0 0
      %3262 = vmatprep.subr.bf16.mxu0 0
      %3263 = vmatpush1.bf16.msra.mxu0 0
      %3264 = vmatprep.subr.bf16.mxu0 0
      %3265 = vmatpush1.bf16.msra.mxu0 0
      %3266 = vmatprep.subr.bf16.mxu0 0
      %3267 = vmatpush1.bf16.msra.mxu0 0
      %3268 = vmatprep.subr.bf16.mxu0 0
      %3269 = vmatpush1.bf16.msra.mxu0 0
      %3270 = vmatprep.subr.bf16.mxu0 0
      %3271 = vmatpush1.bf16.msra.mxu0 0
      %3272 = vmatprep.subr.bf16.mxu0 0
      %3273 = vmatpush1.bf16.msra.mxu0 0
      %3274 = vmatprep.subr.bf16.mxu0 0
      %3275 = vmatpush1.bf16.msra.mxu0 0
      %3276 = vmatprep.mubr.bf16.mxu0 0
      %3277 = vmatmul.mubr.bf16.gmra.mrb[0].mxu0 %v3197
      %v3278 = vpop.f32.mrb[0].mxu0
      %v3279 = vadd.f32 0.0, %v3278
      %v3280 = vpop.f32.mrb[0].mxu0
      %v3281 = vpop.f32.mrb[0].mxu0
      %v3282 = vadd.f32 0.0, %v3281
      %v3283 = vpop.f32.mrb[0].mxu0
      %3284 = vmatprep.mubr.bf16.mxu0 0
      %3285 = vmatmul.mubr.bf16.gmra.mrb[0].mxu0 %v3200
      %v3286 = vpop.f32.mrb[0].mxu0
      %v3287 = vadd.f32 0.0, %v3286
      %v3288 = vpop.f32.mrb[0].mxu0
      %v3289 = vpop.f32.mrb[0].mxu0
      %v3290 = vadd.f32 0.0, %v3289
      %v3291 = vpop.f32.mrb[0].mxu0
      %3292 = vmatprep.mubr.bf16.mxu0 0
      %3293 = vmatmul.mubr.bf16.gmra.mrb[0].mxu0 %v3203
      %v3294 = vpop.f32.mrb[0].mxu0
      %v3295 = vadd.f32 0.0, %v3294
      %v3296 = vpop.f32.mrb[0].mxu0
      %v3297 = vpop.f32.mrb[0].mxu0
      %v3298 = vadd.f32 0.0, %v3297
      %v3299 = vpop.f32.mrb[0].mxu0
      %3300 = vmatprep.mubr.bf16.mxu0 0
      %3301 = vmatmul.mubr.bf16.gmra.mrb[0].mxu0 %v3206
      %v3302 = vpop.f32.mrb[0].mxu0
      %v3303 = vadd.f32 0.0, %v3302
      %v3304 = vpop.f32.mrb[0].mxu0
      %v3305 = vpop.f32.mrb[0].mxu0
      %v3306 = vadd.f32 0.0, %v3305
      %v3307 = vpop.f32.mrb[0].mxu0
      %3308 = vmatprep.mubr.bf16.mxu0 0
      %3309 = vmatmul.mubr.bf16.gmra.mrb[0].mxu0 %v3209
      %v3310 = vpop.f32.mrb[0].mxu0
      %v3311 = vadd.f32 0.0, %v3310
      %v3312 = vpop.f32.mrb[0].mxu0
      %v3313 = vpop.f32.mrb[0].mxu0
      %v3314 = vadd.f32 0.0, %v3313
      %v3315 = vpop.f32.mrb[0].mxu0
      %3316 = vmatprep.mubr.bf16.mxu0 0
      %3317 = vmatmul.mubr.bf16.gmra.mrb[0].mxu0 %v3212
      %v3318 = vpop.f32.mrb[0].mxu0
      %v3319 = vadd.f32 0.0, %v3318
      %v3320 = vpop.f32.mrb[0].mxu0
      %v3321 = vpop.f32.mrb[0].mxu0
      %v3322 = vadd.f32 0.0, %v3321
      %v3323 = vpop.f32.mrb[0].mxu0
      %3324 = vmatprep.mubr.bf16.mxu0 0
      %3325 = vmatmul.mubr.bf16.gmra.mrb[0].mxu0 %v3215
      %v3326 = vpop.f32.mrb[0].mxu0
      %v3327 = vadd.f32 0.0, %v3326
      %v3328 = vpop.f32.mrb[0].mxu0
      %v3329 = vpop.f32.mrb[0].mxu0
      %v3330 = vadd.f32 0.0, %v3329
      %v3331 = vpop.f32.mrb[0].mxu0
      %3332 = vmatprep.mubr.bf16.mxu0 0
      %3333 = vmatmul.mubr.bf16.gmra.mrb[0].mxu0 %v3218
      %v3334 = vpop.f32.mrb[0].mxu0
      %v3335 = vadd.f32 0.0, %v3334
      %v3336 = vpop.f32.mrb[0].mxu0
      %v3337 = vpop.f32.mrb[0].mxu0
      %v3338 = vadd.f32 0.0, %v3337
      %v3339 = vpop.f32.mrb[0].mxu0
      %3340 = vmatprep.mubr.bf16.mxu0 0
      %3341 = vmatmul.mubr.bf16.gmra.mrb[0].mxu0 %v3221
      %v3342 = vpop.f32.mrb[0].mxu0
      %v3343 = vadd.f32 0.0, %v3342
      %v3344 = vpop.f32.mrb[0].mxu0
      %v3345 = vpop.f32.mrb[0].mxu0
      %v3346 = vadd.f32 0.0, %v3345
      %v3347 = vpop.f32.mrb[0].mxu0
      %3348 = vmatprep.mubr.bf16.mxu0 0
      %3349 = vmatmul.mubr.bf16.gmra.mrb[0].mxu0 %v3224
      %v3350 = vpop.f32.mrb[0].mxu0
      %v3351 = vadd.f32 0.0, %v3350
      %v3352 = vpop.f32.mrb[0].mxu0
      %v3353 = vpop.f32.mrb[0].mxu0
      %v3354 = vadd.f32 0.0, %v3353
      %v3355 = vpop.f32.mrb[0].mxu0
      %3356 = vmatprep.mubr.bf16.mxu0 0
      %3357 = vmatmul.mubr.bf16.gmra.mrb[0].mxu0 %v3227
      %v3358 = vpop.f32.mrb[0].mxu0
      %v3359 = vadd.f32 0.0, %v3358
      %v3360 = vpop.f32.mrb[0].mxu0
      %v3361 = vpop.f32.mrb[0].mxu0
      %v3362 = vadd.f32 0.0, %v3361
      %v3363 = vpop.f32.mrb[0].mxu0
      %3364 = vmatprep.mubr.bf16.mxu0 0
      %3365 = vmatmul.mubr.bf16.gmra.mrb[0].mxu0 %v3230
      %v3366 = vpop.f32.mrb[0].mxu0
      %v3367 = vadd.f32 0.0, %v3366
      %v3368 = vpop.f32.mrb[0].mxu0
      %v3369 = vpop.f32.mrb[0].mxu0
      %v3370 = vadd.f32 0.0, %v3369
      %v3371 = vpop.f32.mrb[0].mxu0
      %3372 = vmatprep.mubr.bf16.mxu0 0
      %3373 = vmatmul.mubr.bf16.gmra.mrb[0].mxu0 %v3233
      %v3374 = vpop.f32.mrb[0].mxu0
      %v3375 = vadd.f32 0.0, %v3374
      %v3376 = vpop.f32.mrb[0].mxu0
      %v3377 = vpop.f32.mrb[0].mxu0
      %v3378 = vadd.f32 0.0, %v3377
      %v3379 = vpop.f32.mrb[0].mxu0
      %3380 = vmatprep.mubr.bf16.mxu0 0
      %3381 = vmatmul.mubr.bf16.gmra.mrb[0].mxu0 %v3236
      %v3382 = vpop.f32.mrb[0].mxu0
      %v3383 = vadd.f32 0.0, %v3382
      %v3384 = vpop.f32.mrb[0].mxu0
      %v3385 = vpop.f32.mrb[0].mxu0
      %v3386 = vadd.f32 0.0, %v3385
      %v3387 = vpop.f32.mrb[0].mxu0
      %3388 = vmatprep.mubr.bf16.mxu0 0
      %3389 = vmatmul.mubr.bf16.gmra.mrb[0].mxu0 %v3239
      %v3390 = vpop.f32.mrb[0].mxu0
      %v3391 = vadd.f32 0.0, %v3390
      %v3392 = vpop.f32.mrb[0].mxu0
      %v3393 = vpop.f32.mrb[0].mxu0
      %v3394 = vadd.f32 0.0, %v3393
      %v3395 = vpop.f32.mrb[0].mxu0
      %3396 = vdwg.mxu0
      %v3397 = vadd.f32 %v3119, %v3279
      %v3398 = vadd.f32 %v3120, %v3282
      %v3399 = vadd.f32 %v3121, %v3287
      %v3400 = vadd.f32 %v3122, %v3290
      %v3401 = vadd.f32 %v3123, %v3295
      %v3402 = vadd.f32 %v3124, %v3298
      %v3403 = vadd.f32 %v3125, %v3303
      %v3404 = vadd.f32 %v3126, %v3306
      %v3405 = vadd.f32 %v3127, %v3311
      %v3406 = vadd.f32 %v3128, %v3314
      %v3407 = vadd.f32 %v3129, %v3319
      %v3408 = vadd.f32 %v3130, %v3322
      %v3409 = vadd.f32 %v3131, %v3327
      %v3410 = vadd.f32 %v3132, %v3330
      %v3411 = vadd.f32 %v3133, %v3335
      %v3412 = vadd.f32 %v3134, %v3338
      %v3413 = vadd.f32 %v3135, %v3343
      %v3414 = vadd.f32 %v3136, %v3346
      %v3415 = vadd.f32 %v3137, %v3351
      %v3416 = vadd.f32 %v3138, %v3354
      %v3417 = vadd.f32 %v3139, %v3359
      %v3418 = vadd.f32 %v3140, %v3362
      %v3419 = vadd.f32 %v3141, %v3367
      %v3420 = vadd.f32 %v3142, %v3370
      %v3421 = vadd.f32 %v3143, %v3375
      %v3422 = vadd.f32 %v3144, %v3378
      %v3423 = vadd.f32 %v3145, %v3383
      %v3424 = vadd.f32 %v3146, %v3386
      %v3425 = vadd.f32 %v3147, %v3391
      %v3426 = vadd.f32 %v3148, %v3394
      %v3427 = vld [vmem:[%s455 + $0x22] sm:$0xff]
      %v3428 = vld [vmem:[%s455 + $0x2a] sm:$0xff]
      %v3429 = vld [vmem:[%s455 + $0x32] sm:$0xff]
      %v3430 = vld [vmem:[%s455 + $0x3a] sm:$0xff]
      %v3431 = vld [vmem:[%s455 + $0x42] sm:$0xff]
      %v3432 = vld [vmem:[%s455 + $0x4a] sm:$0xff]
      %v3433 = vld [vmem:[%s455 + $0x52] sm:$0xff]
      %v3434 = vld [vmem:[%s455 + $0x5a] sm:$0xff]
      %v3435 = vld [vmem:[%s455 + $0x62] sm:$0xff]
      %v3436 = vld [vmem:[%s455 + $0x6a] sm:$0xff]
      %v3437 = vld [vmem:[%s455 + $0x72] sm:$0xff]
      %v3438 = vld [vmem:[%s455 + $0x7a] sm:$0xff]
      %v3439 = vld [vmem:[%s455 + $0x82] sm:$0xff]
      %v3440 = vld [vmem:[%s455 + $0x8a] sm:$0xff]
      %v3441 = vld [vmem:[%s455 + $0x92] sm:$0xff]
      %v3442 = vld [vmem:[%s455 + $0x9a] sm:$0xff]
      %v3443 = vld [vmem:[%s455 + $0xa2] sm:$0xff]
      %v3444 = vld [vmem:[%s455 + $0xaa] sm:$0xff]
      %v3445 = vld [vmem:[%s455 + $0xb2] sm:$0xff]
      %v3446 = vld [vmem:[%s455 + $0xba] sm:$0xff]
      %v3447 = vld [vmem:[%s455 + $0xc2] sm:$0xff]
      %v3448 = vld [vmem:[%s455 + $0xca] sm:$0xff]
      %v3449 = vld [vmem:[%s455 + $0xd2] sm:$0xff]
      %v3450 = vld [vmem:[%s455 + $0xda] sm:$0xff]
      %v3451 = vld [vmem:[%s455 + $0xe2] sm:$0xff]
      %v3452 = vld [vmem:[%s455 + $0xea] sm:$0xff]
      %v3453 = vld [vmem:[%s455 + $0xf2] sm:$0xff]
      %v3454 = vld [vmem:[%s455 + $0xfa] sm:$0xff]
      %v3455 = vld [vmem:[%s455 + $0x102] sm:$0xff]
      %v3456 = vld [vmem:[%s455 + $0x10a] sm:$0xff]
      %v3457 = vpack.c.bf16 %v3428, %v3427
      %v3458 = vpack.c.bf16 %v3430, %v3429
      %v3459 = vpack.c.bf16 %v3432, %v3431
      %v3460 = vpack.c.bf16 %v3434, %v3433
      %v3461 = vpack.c.bf16 %v3436, %v3435
      %v3462 = vpack.c.bf16 %v3438, %v3437
      %v3463 = vpack.c.bf16 %v3440, %v3439
      %v3464 = vpack.c.bf16 %v3442, %v3441
      %v3465 = vpack.c.bf16 %v3444, %v3443
      %v3466 = vpack.c.bf16 %v3446, %v3445
      %v3467 = vpack.c.bf16 %v3448, %v3447
      %v3468 = vpack.c.bf16 %v3450, %v3449
      %v3469 = vpack.c.bf16 %v3452, %v3451
      %v3470 = vpack.c.bf16 %v3454, %v3453
      %v3471 = vpack.c.bf16 %v3456, %v3455
      %s3472 = scalar_lea.vmem %s5, 16
      %v3473 = vld [vmem:[%s3472] sm:$0x3]
      %v3475 = vsel %vm483, %v3457, 0
      %v3478 = vsel %vm483, %v3458, 0
      %v3481 = vsel %vm483, %v3459, 0
      %v3484 = vsel %vm483, %v3460, 0
      %v3487 = vsel %vm483, %v3461, 0
      %v3490 = vsel %vm483, %v3462, 0
      %v3493 = vsel %vm483, %v3463, 0
      %v3496 = vsel %vm483, %v3464, 0
      %v3499 = vsel %vm483, %v3465, 0
      %v3502 = vsel %vm483, %v3466, 0
      %v3505 = vsel %vm483, %v3467, 0
      %v3508 = vsel %vm483, %v3468, 0
      %v3511 = vsel %vm483, %v3469, 0
      %v3514 = vsel %vm483, %v3470, 0
      %v3517 = vsel %vm483, %v3471, 0
      %v3520 = vsel %vm493, %v3473, 0
      %3522 = vmatprep.subr.bf16.mxu0 0
      %3523 = vmatpush1.bf16.msra.mxu0 %v3520
      %3524 = vmatprep.subr.bf16.mxu0 0
      %3525 = vmatpush1.bf16.msra.mxu0 0
      %3526 = vmatprep.subr.bf16.mxu0 0
      %3527 = vmatpush1.bf16.msra.mxu0 0
      %3528 = vmatprep.subr.bf16.mxu0 0
      %3529 = vmatpush1.bf16.msra.mxu0 0
      %3530 = vmatprep.subr.bf16.mxu0 0
      %3531 = vmatpush1.bf16.msra.mxu0 0
      %3532 = vmatprep.subr.bf16.mxu0 0
      %3533 = vmatpush1.bf16.msra.mxu0 0
      %3534 = vmatprep.subr.bf16.mxu0 0
      %3535 = vmatpush1.bf16.msra.mxu0 0
      %3536 = vmatprep.subr.bf16.mxu0 0
      %3537 = vmatpush1.bf16.msra.mxu0 0
      %3538 = vmatprep.subr.bf16.mxu0 0
      %3539 = vmatpush1.bf16.msra.mxu0 0
      %3540 = vmatprep.subr.bf16.mxu0 0
      %3541 = vmatpush1.bf16.msra.mxu0 0
      %3542 = vmatprep.subr.bf16.mxu0 0
      %3543 = vmatpush1.bf16.msra.mxu0 0
      %3544 = vmatprep.subr.bf16.mxu0 0
      %3545 = vmatpush1.bf16.msra.mxu0 0
      %3546 = vmatprep.subr.bf16.mxu0 0
      %3547 = vmatpush1.bf16.msra.mxu0 0
      %3548 = vmatprep.subr.bf16.mxu0 0
      %3549 = vmatpush1.bf16.msra.mxu0 0
      %3550 = vmatprep.subr.bf16.mxu0 0
      %3551 = vmatpush1.bf16.msra.mxu0 0
      %3552 = vmatprep.subr.bf16.mxu0 0
      %3553 = vmatpush1.bf16.msra.mxu0 0
      %3554 = vmatprep.mubr.bf16.mxu0 0
      %3555 = vmatmul.mubr.bf16.gmra.mrb[0].mxu0 %v3475
      %v3556 = vpop.f32.mrb[0].mxu0
      %v3557 = vadd.f32 0.0, %v3556
      %v3558 = vpop.f32.mrb[0].mxu0
      %v3559 = vpop.f32.mrb[0].mxu0
      %v3560 = vadd.f32 0.0, %v3559
      %v3561 = vpop.f32.mrb[0].mxu0
      %3562 = vmatprep.mubr.bf16.mxu0 0
      %3563 = vmatmul.mubr.bf16.gmra.mrb[0].mxu0 %v3478
      %v3564 = vpop.f32.mrb[0].mxu0
      %v3565 = vadd.f32 0.0, %v3564
      %v3566 = vpop.f32.mrb[0].mxu0
      %v3567 = vpop.f32.mrb[0].mxu0
      %v3568 = vadd.f32 0.0, %v3567
      %v3569 = vpop.f32.mrb[0].mxu0
      %3570 = vmatprep.mubr.bf16.mxu0 0
      %3571 = vmatmul.mubr.bf16.gmra.mrb[0].mxu0 %v3481
      %v3572 = vpop.f32.mrb[0].mxu0
      %v3573 = vadd.f32 0.0, %v3572
      %v3574 = vpop.f32.mrb[0].mxu0
      %v3575 = vpop.f32.mrb[0].mxu0
      %v3576 = vadd.f32 0.0, %v3575
      %v3577 = vpop.f32.mrb[0].mxu0
      %3578 = vmatprep.mubr.bf16.mxu0 0
      %3579 = vmatmul.mubr.bf16.gmra.mrb[0].mxu0 %v3484
      %v3580 = vpop.f32.mrb[0].mxu0
      %v3581 = vadd.f32 0.0, %v3580
      %v3582 = vpop.f32.mrb[0].mxu0
      %v3583 = vpop.f32.mrb[0].mxu0
      %v3584 = vadd.f32 0.0, %v3583
      %v3585 = vpop.f32.mrb[0].mxu0
      %3586 = vmatprep.mubr.bf16.mxu0 0
      %3587 = vmatmul.mubr.bf16.gmra.mrb[0].mxu0 %v3487
      %v3588 = vpop.f32.mrb[0].mxu0
      %v3589 = vadd.f32 0.0, %v3588
      %v3590 = vpop.f32.mrb[0].mxu0
      %v3591 = vpop.f32.mrb[0].mxu0
      %v3592 = vadd.f32 0.0, %v3591
      %v3593 = vpop.f32.mrb[0].mxu0
      %3594 = vmatprep.mubr.bf16.mxu0 0
      %3595 = vmatmul.mubr.bf16.gmra.mrb[0].mxu0 %v3490
      %v3596 = vpop.f32.mrb[0].mxu0
      %v3597 = vadd.f32 0.0, %v3596
      %v3598 = vpop.f32.mrb[0].mxu0
      %v3599 = vpop.f32.mrb[0].mxu0
      %v3600 = vadd.f32 0.0, %v3599
      %v3601 = vpop.f32.mrb[0].mxu0
      %3602 = vmatprep.mubr.bf16.mxu0 0
      %3603 = vmatmul.mubr.bf16.gmra.mrb[0].mxu0 %v3493
      %v3604 = vpop.f32.mrb[0].mxu0
      %v3605 = vadd.f32 0.0, %v3604
      %v3606 = vpop.f32.mrb[0].mxu0
      %v3607 = vpop.f32.mrb[0].mxu0
      %v3608 = vadd.f32 0.0, %v3607
      %v3609 = vpop.f32.mrb[0].mxu0
      %3610 = vmatprep.mubr.bf16.mxu0 0
      %3611 = vmatmul.mubr.bf16.gmra.mrb[0].mxu0 %v3496
      %v3612 = vpop.f32.mrb[0].mxu0
      %v3613 = vadd.f32 0.0, %v3612
      %v3614 = vpop.f32.mrb[0].mxu0
      %v3615 = vpop.f32.mrb[0].mxu0
      %v3616 = vadd.f32 0.0, %v3615
      %v3617 = vpop.f32.mrb[0].mxu0
      %3618 = vmatprep.mubr.bf16.mxu0 0
      %3619 = vmatmul.mubr.bf16.gmra.mrb[0].mxu0 %v3499
      %v3620 = vpop.f32.mrb[0].mxu0
      %v3621 = vadd.f32 0.0, %v3620
      %v3622 = vpop.f32.mrb[0].mxu0
      %v3623 = vpop.f32.mrb[0].mxu0
      %v3624 = vadd.f32 0.0, %v3623
      %v3625 = vpop.f32.mrb[0].mxu0
      %3626 = vmatprep.mubr.bf16.mxu0 0
      %3627 = vmatmul.mubr.bf16.gmra.mrb[0].mxu0 %v3502
      %v3628 = vpop.f32.mrb[0].mxu0
      %v3629 = vadd.f32 0.0, %v3628
      %v3630 = vpop.f32.mrb[0].mxu0
      %v3631 = vpop.f32.mrb[0].mxu0
      %v3632 = vadd.f32 0.0, %v3631
      %v3633 = vpop.f32.mrb[0].mxu0
      %3634 = vmatprep.mubr.bf16.mxu0 0
      %3635 = vmatmul.mubr.bf16.gmra.mrb[0].mxu0 %v3505
      %v3636 = vpop.f32.mrb[0].mxu0
      %v3637 = vadd.f32 0.0, %v3636
      %v3638 = vpop.f32.mrb[0].mxu0
      %v3639 = vpop.f32.mrb[0].mxu0
      %v3640 = vadd.f32 0.0, %v3639
      %v3641 = vpop.f32.mrb[0].mxu0
      %3642 = vmatprep.mubr.bf16.mxu0 0
      %3643 = vmatmul.mubr.bf16.gmra.mrb[0].mxu0 %v3508
      %v3644 = vpop.f32.mrb[0].mxu0
      %v3645 = vadd.f32 0.0, %v3644
      %v3646 = vpop.f32.mrb[0].mxu0
      %v3647 = vpop.f32.mrb[0].mxu0
      %v3648 = vadd.f32 0.0, %v3647
      %v3649 = vpop.f32.mrb[0].mxu0
      %3650 = vmatprep.mubr.bf16.mxu0 0
      %3651 = vmatmul.mubr.bf16.gmra.mrb[0].mxu0 %v3511
      %v3652 = vpop.f32.mrb[0].mxu0
      %v3653 = vadd.f32 0.0, %v3652
      %v3654 = vpop.f32.mrb[0].mxu0
      %v3655 = vpop.f32.mrb[0].mxu0
      %v3656 = vadd.f32 0.0, %v3655
      %v3657 = vpop.f32.mrb[0].mxu0
      %3658 = vmatprep.mubr.bf16.mxu0 0
      %3659 = vmatmul.mubr.bf16.gmra.mrb[0].mxu0 %v3514
      %v3660 = vpop.f32.mrb[0].mxu0
      %v3661 = vadd.f32 0.0, %v3660
      %v3662 = vpop.f32.mrb[0].mxu0
      %v3663 = vpop.f32.mrb[0].mxu0
      %v3664 = vadd.f32 0.0, %v3663
      %v3665 = vpop.f32.mrb[0].mxu0
      %3666 = vmatprep.mubr.bf16.mxu0 0
      %3667 = vmatmul.mubr.bf16.gmra.mrb[0].mxu0 %v3517
      %v3668 = vpop.f32.mrb[0].mxu0
      %v3669 = vadd.f32 0.0, %v3668
      %v3670 = vpop.f32.mrb[0].mxu0
      %v3671 = vpop.f32.mrb[0].mxu0
      %v3672 = vadd.f32 0.0, %v3671
      %v3673 = vpop.f32.mrb[0].mxu0
      %3674 = vdwg.mxu0
      %v3675 = vadd.f32 %v3397, %v3557
      %v3676 = vadd.f32 %v3398, %v3560
      %v3677 = vadd.f32 %v3399, %v3565
      %v3678 = vadd.f32 %v3400, %v3568
      %v3679 = vadd.f32 %v3401, %v3573
      %v3680 = vadd.f32 %v3402, %v3576
      %v3681 = vadd.f32 %v3403, %v3581
      %v3682 = vadd.f32 %v3404, %v3584
      %v3683 = vadd.f32 %v3405, %v3589
      %v3684 = vadd.f32 %v3406, %v3592
      %v3685 = vadd.f32 %v3407, %v3597
      %v3686 = vadd.f32 %v3408, %v3600
      %v3687 = vadd.f32 %v3409, %v3605
      %v3688 = vadd.f32 %v3410, %v3608
      %v3689 = vadd.f32 %v3411, %v3613
      %v3690 = vadd.f32 %v3412, %v3616
      %v3691 = vadd.f32 %v3413, %v3621
      %v3692 = vadd.f32 %v3414, %v3624
      %v3693 = vadd.f32 %v3415, %v3629
      %v3694 = vadd.f32 %v3416, %v3632
      %v3695 = vadd.f32 %v3417, %v3637
      %v3696 = vadd.f32 %v3418, %v3640
      %v3697 = vadd.f32 %v3419, %v3645
      %v3698 = vadd.f32 %v3420, %v3648
      %v3699 = vadd.f32 %v3421, %v3653
      %v3700 = vadd.f32 %v3422, %v3656
      %v3701 = vadd.f32 %v3423, %v3661
      %v3702 = vadd.f32 %v3424, %v3664
      %v3703 = vadd.f32 %v3425, %v3669
      %v3704 = vadd.f32 %v3426, %v3672
      %v3705 = vld [vmem:[%s6] sm:$0x1]
      %v3707 = vlaneseq
      %v3708 = vshrl.u32 %v3707, 7
      %v3709 = vsub.s32 0, %v3708
      %v3710 = vrot.slane %v3705, %v3709
      %v3712 = vmul.f32 %v3675, %v3710
      %v3713 = vmul.f32 %v3676, %v3710
      %v3714 = vmul.f32 %v3677, %v3710
      %v3715 = vmul.f32 %v3678, %v3710
      %v3716 = vmul.f32 %v3679, %v3710
      %v3717 = vmul.f32 %v3680, %v3710
      %v3718 = vmul.f32 %v3681, %v3710
      %v3719 = vmul.f32 %v3682, %v3710
      %v3720 = vmul.f32 %v3683, %v3710
      %v3721 = vmul.f32 %v3684, %v3710
      %v3722 = vmul.f32 %v3685, %v3710
      %v3723 = vmul.f32 %v3686, %v3710
      %v3724 = vmul.f32 %v3687, %v3710
      %v3725 = vmul.f32 %v3688, %v3710
      %v3726 = vmul.f32 %v3689, %v3710
      %v3727 = vmul.f32 %v3690, %v3710
      %v3728 = vmul.f32 %v3691, %v3710
      %v3729 = vmul.f32 %v3692, %v3710
      %v3730 = vmul.f32 %v3693, %v3710
      %v3731 = vmul.f32 %v3694, %v3710
      %v3732 = vmul.f32 %v3695, %v3710
      %v3733 = vmul.f32 %v3696, %v3710
      %v3734 = vmul.f32 %v3697, %v3710
      %v3735 = vmul.f32 %v3698, %v3710
      %v3736 = vmul.f32 %v3699, %v3710
      %v3737 = vmul.f32 %v3700, %v3710
      %v3738 = vmul.f32 %v3701, %v3710
      %v3739 = vmul.f32 %v3702, %v3710
      %v3740 = vmul.f32 %v3703, %v3710
      %v3741 = vmul.f32 %v3704, %v3710
      %v3742 = vld [vmem:[%s7] sm:$0x1]
      %v3744 = vlaneseq
      %v3745 = vshrl.u32 %v3744, 7
      %v3746 = vsub.s32 0, %v3745
      %v3747 = vrot.slane %v3742, %v3746
      %v3749 = vadd.f32 %v3712, %v3747
      %v3750 = vadd.f32 %v3713, %v3747
      %v3751 = vadd.f32 %v3714, %v3747
      %v3752 = vadd.f32 %v3715, %v3747
      %v3753 = vadd.f32 %v3716, %v3747
      %v3754 = vadd.f32 %v3717, %v3747
      %v3755 = vadd.f32 %v3718, %v3747
      %v3756 = vadd.f32 %v3719, %v3747
      %v3757 = vadd.f32 %v3720, %v3747
      %v3758 = vadd.f32 %v3721, %v3747
      %v3759 = vadd.f32 %v3722, %v3747
      %v3760 = vadd.f32 %v3723, %v3747
      %v3761 = vadd.f32 %v3724, %v3747
      %v3762 = vadd.f32 %v3725, %v3747
      %v3763 = vadd.f32 %v3726, %v3747
      %v3764 = vadd.f32 %v3727, %v3747
      %v3765 = vadd.f32 %v3728, %v3747
      %v3766 = vadd.f32 %v3729, %v3747
      %v3767 = vadd.f32 %v3730, %v3747
      %v3768 = vadd.f32 %v3731, %v3747
      %v3769 = vadd.f32 %v3732, %v3747
      %v3770 = vadd.f32 %v3733, %v3747
      %v3771 = vadd.f32 %v3734, %v3747
      %v3772 = vadd.f32 %v3735, %v3747
      %v3773 = vadd.f32 %v3736, %v3747
      %v3774 = vadd.f32 %v3737, %v3747
      %v3775 = vadd.f32 %v3738, %v3747
      %v3776 = vadd.f32 %v3739, %v3747
      %v3777 = vadd.f32 %v3740, %v3747
      %v3778 = vadd.f32 %v3741, %v3747
      %v3779 = vmax.f32 %v3749, 0.0
      %v3780 = vmax.f32 %v3750, 0.0
      %v3781 = vmax.f32 %v3751, 0.0
      %v3782 = vmax.f32 %v3752, 0.0
      %v3783 = vmax.f32 %v3753, 0.0
      %v3784 = vmax.f32 %v3754, 0.0
      %v3785 = vmax.f32 %v3755, 0.0
      %v3786 = vmax.f32 %v3756, 0.0
      %v3787 = vmax.f32 %v3757, 0.0
      %v3788 = vmax.f32 %v3758, 0.0
      %v3789 = vmax.f32 %v3759, 0.0
      %v3790 = vmax.f32 %v3760, 0.0
      %v3791 = vmax.f32 %v3761, 0.0
      %v3792 = vmax.f32 %v3762, 0.0
      %v3793 = vmax.f32 %v3763, 0.0
      %v3794 = vmax.f32 %v3764, 0.0
      %v3795 = vmax.f32 %v3765, 0.0
      %v3796 = vmax.f32 %v3766, 0.0
      %v3797 = vmax.f32 %v3767, 0.0
      %v3798 = vmax.f32 %v3768, 0.0
      %v3799 = vmax.f32 %v3769, 0.0
      %v3800 = vmax.f32 %v3770, 0.0
      %v3801 = vmax.f32 %v3771, 0.0
      %v3802 = vmax.f32 %v3772, 0.0
      %v3803 = vmax.f32 %v3773, 0.0
      %v3804 = vmax.f32 %v3774, 0.0
      %v3805 = vmax.f32 %v3775, 0.0
      %v3806 = vmax.f32 %v3776, 0.0
      %v3807 = vmax.f32 %v3777, 0.0
      %v3808 = vmax.f32 %v3778, 0.0
      %3809 = vst.msk [vmem:[#allocation3] sm:$0xff] %vm1257, %v3779
      %3810 = vst.msk [vmem:[#allocation3 + $0x8] sm:$0xff] %vm1257, %v3780
      %3811 = vst.msk [vmem:[#allocation3 + $0x10] sm:$0xff] %vm1257, %v3781
      %3812 = vst.msk [vmem:[#allocation3 + $0x18] sm:$0xff] %vm1257, %v3782
      %3813 = vst.msk [vmem:[#allocation3 + $0x20] sm:$0xff] %vm1257, %v3783
      %3814 = vst.msk [vmem:[#allocation3 + $0x28] sm:$0xff] %vm1257, %v3784
      %3815 = vst.msk [vmem:[#allocation3 + $0x30] sm:$0xff] %vm1257, %v3785
      %3816 = vst.msk [vmem:[#allocation3 + $0x38] sm:$0xff] %vm1257, %v3786
      %3817 = vst.msk [vmem:[#allocation3 + $0x40] sm:$0xff] %vm1257, %v3787
      %3818 = vst.msk [vmem:[#allocation3 + $0x48] sm:$0xff] %vm1257, %v3788
      %3819 = vst.msk [vmem:[#allocation3 + $0x50] sm:$0xff] %vm1257, %v3789
      %3820 = vst.msk [vmem:[#allocation3 + $0x58] sm:$0xff] %vm1257, %v3790
      %3821 = vst.msk [vmem:[#allocation3 + $0x60] sm:$0xff] %vm1257, %v3791
      %3822 = vst.msk [vmem:[#allocation3 + $0x68] sm:$0xff] %vm1257, %v3792
      %3823 = vst.msk [vmem:[#allocation3 + $0x70] sm:$0xff] %vm1257, %v3793
      %3824 = vst.msk [vmem:[#allocation3 + $0x78] sm:$0xff] %vm1257, %v3794
      %3825 = vst.msk [vmem:[#allocation3 + $0x80] sm:$0xff] %vm1257, %v3795
      %3826 = vst.msk [vmem:[#allocation3 + $0x88] sm:$0xff] %vm1257, %v3796
      %3827 = vst.msk [vmem:[#allocation3 + $0x90] sm:$0xff] %vm1257, %v3797
      %3828 = vst.msk [vmem:[#allocation3 + $0x98] sm:$0xff] %vm1257, %v3798
      %3829 = vst.msk [vmem:[#allocation3 + $0xa0] sm:$0xff] %vm1257, %v3799
      %3830 = vst.msk [vmem:[#allocation3 + $0xa8] sm:$0xff] %vm1257, %v3800
      %3831 = vst.msk [vmem:[#allocation3 + $0xb0] sm:$0xff] %vm1257, %v3801
      %3832 = vst.msk [vmem:[#allocation3 + $0xb8] sm:$0xff] %vm1257, %v3802
      %3833 = vst.msk [vmem:[#allocation3 + $0xc0] sm:$0xff] %vm1257, %v3803
      %3834 = vst.msk [vmem:[#allocation3 + $0xc8] sm:$0xff] %vm1257, %v3804
      %3835 = vst.msk [vmem:[#allocation3 + $0xd0] sm:$0xff] %vm1257, %v3805
      %3836 = vst.msk [vmem:[#allocation3 + $0xd8] sm:$0xff] %vm1257, %v3806
      %3837 = vst.msk [vmem:[#allocation3 + $0xe0] sm:$0xff] %vm1257, %v3807
      %3838 = vst.msk [vmem:[#allocation3 + $0xe8] sm:$0xff] %vm1257, %v3808
      %v3839 = vld [vmem:[#allocation3] sm:$0xff]
      %v3840 = vld [vmem:[#allocation3 + $0x8] sm:$0xff]
      %v3841 = vld [vmem:[#allocation3 + $0x10] sm:$0xff]
      %v3842 = vld [vmem:[#allocation3 + $0x18] sm:$0xff]
      %v3843 = vld [vmem:[#allocation3 + $0x20] sm:$0xff]
      %v3844 = vld [vmem:[#allocation3 + $0x28] sm:$0xff]
      %v3845 = vld [vmem:[#allocation3 + $0x30] sm:$0xff]
      %v3846 = vld [vmem:[#allocation3 + $0x38] sm:$0xff]
      %v3847 = vld [vmem:[#allocation3 + $0x40] sm:$0xff]
      %v3848 = vld [vmem:[#allocation3 + $0x48] sm:$0xff]
      %v3849 = vld [vmem:[#allocation3 + $0x50] sm:$0xff]
      %v3850 = vld [vmem:[#allocation3 + $0x58] sm:$0xff]
      %v3851 = vld [vmem:[#allocation3 + $0x60] sm:$0xff]
      %v3852 = vld [vmem:[#allocation3 + $0x68] sm:$0xff]
      %v3853 = vld [vmem:[#allocation3 + $0x70] sm:$0xff]
      %v3854 = vld [vmem:[#allocation3 + $0x78] sm:$0xff]
      %v3855 = vld [vmem:[#allocation3 + $0x80] sm:$0xff]
      %v3856 = vld [vmem:[#allocation3 + $0x88] sm:$0xff]
      %v3857 = vld [vmem:[#allocation2] sm:$0x1]
      %v3858 = vlaneseq
      %v3859 = vshrl.u32 %v3858, 7
      %v3860 = vsub.s32 0, %v3859
      %v3861 = vrot.slane %v3857, %v3860
      %v3862 = vmul.f32 %v3839, %v3861
      %v3863 = vmul.f32 %v3840, %v3861
      %v3864 = vmul.f32 %v3841, %v3861
      %v3865 = vmul.f32 %v3842, %v3861
      %v3866 = vmul.f32 %v3843, %v3861
      %v3867 = vmul.f32 %v3844, %v3861
      %v3868 = vmul.f32 %v3845, %v3861
      %v3869 = vmul.f32 %v3846, %v3861
      %v3870 = vmul.f32 %v3847, %v3861
      %v3871 = vmul.f32 %v3848, %v3861
      %v3872 = vmul.f32 %v3849, %v3861
      %v3873 = vmul.f32 %v3850, %v3861
      %v3874 = vmul.f32 %v3851, %v3861
      %v3875 = vmul.f32 %v3852, %v3861
      %v3876 = vmul.f32 %v3853, %v3861
      %v3877 = vmul.f32 %v3854, %v3861
      %v3878 = vmul.f32 %v3855, %v3861
      %v3879 = vmul.f32 %v3856, %v3861
      %v3880 = vadd.f32 %v3862, 0.0
      %v3881 = vadd.f32 %v3863, 0.0
      %v3882 = vadd.f32 %v3864, 0.0
      %v3883 = vadd.f32 %v3865, 0.0
      %v3884 = vadd.f32 %v3866, 0.0
      %v3885 = vadd.f32 %v3867, 0.0
      %v3886 = vadd.f32 %v3868, 0.0
      %v3887 = vadd.f32 %v3869, 0.0
      %v3888 = vadd.f32 %v3870, 0.0
      %v3889 = vadd.f32 %v3871, 0.0
      %v3890 = vadd.f32 %v3872, 0.0
      %v3891 = vadd.f32 %v3873, 0.0
      %v3892 = vadd.f32 %v3874, 0.0
      %v3893 = vadd.f32 %v3875, 0.0
      %v3894 = vadd.f32 %v3876, 0.0
      %v3895 = vadd.f32 %v3877, 0.0
      %v3896 = vadd.f32 %v3878, 0.0
      %v3897 = vadd.f32 %v3879, 0.0
      %v3898 = vld [vmem:[#allocation3 + $0x1] sm:$0xff]
      %v3899 = vld [vmem:[#allocation3 + $0x9] sm:$0xff]
      %v3900 = vld [vmem:[#allocation3 + $0x11] sm:$0xff]
      %v3901 = vld [vmem:[#allocation3 + $0x19] sm:$0xff]
      %v3902 = vld [vmem:[#allocation3 + $0x21] sm:$0xff]
      %v3903 = vld [vmem:[#allocation3 + $0x29] sm:$0xff]
      %v3904 = vld [vmem:[#allocation3 + $0x31] sm:$0xff]
      %v3905 = vld [vmem:[#allocation3 + $0x39] sm:$0xff]
      %v3906 = vld [vmem:[#allocation3 + $0x41] sm:$0xff]
      %v3907 = vld [vmem:[#allocation3 + $0x49] sm:$0xff]
      %v3908 = vld [vmem:[#allocation3 + $0x51] sm:$0xff]
      %v3909 = vld [vmem:[#allocation3 + $0x59] sm:$0xff]
      %v3910 = vld [vmem:[#allocation3 + $0x61] sm:$0xff]
      %v3911 = vld [vmem:[#allocation3 + $0x69] sm:$0xff]
      %v3912 = vld [vmem:[#allocation3 + $0x71] sm:$0xff]
      %v3913 = vld [vmem:[#allocation3 + $0x79] sm:$0xff]
      %v3914 = vld [vmem:[#allocation3 + $0x81] sm:$0xff]
      %v3915 = vld [vmem:[#allocation3 + $0x89] sm:$0xff]
      %v3916 = vld [vmem:[#allocation2 + $0x1] sm:$0x1]
      %v3917 = vlaneseq
      %v3918 = vshrl.u32 %v3917, 7
      %v3919 = vsub.s32 0, %v3918
      %v3920 = vrot.slane %v3916, %v3919
      %v3921 = vmul.f32 %v3898, %v3920
      %v3922 = vmul.f32 %v3899, %v3920
      %v3923 = vmul.f32 %v3900, %v3920
      %v3924 = vmul.f32 %v3901, %v3920
      %v3925 = vmul.f32 %v3902, %v3920
      %v3926 = vmul.f32 %v3903, %v3920
      %v3927 = vmul.f32 %v3904, %v3920
      %v3928 = vmul.f32 %v3905, %v3920
      %v3929 = vmul.f32 %v3906, %v3920
      %v3930 = vmul.f32 %v3907, %v3920
      %v3931 = vmul.f32 %v3908, %v3920
      %v3932 = vmul.f32 %v3909, %v3920
      %v3933 = vmul.f32 %v3910, %v3920
      %v3934 = vmul.f32 %v3911, %v3920
      %v3935 = vmul.f32 %v3912, %v3920
      %v3936 = vmul.f32 %v3913, %v3920
      %v3937 = vmul.f32 %v3914, %v3920
      %v3938 = vmul.f32 %v3915, %v3920
      %v3939 = vadd.f32 %v3880, %v3921
      %v3940 = vadd.f32 %v3881, %v3922
      %v3941 = vadd.f32 %v3882, %v3923
      %v3942 = vadd.f32 %v3883, %v3924
      %v3943 = vadd.f32 %v3884, %v3925
      %v3944 = vadd.f32 %v3885, %v3926
      %v3945 = vadd.f32 %v3886, %v3927
      %v3946 = vadd.f32 %v3887, %v3928
      %v3947 = vadd.f32 %v3888, %v3929
      %v3948 = vadd.f32 %v3889, %v3930
      %v3949 = vadd.f32 %v3890, %v3931
      %v3950 = vadd.f32 %v3891, %v3932
      %v3951 = vadd.f32 %v3892, %v3933
      %v3952 = vadd.f32 %v3893, %v3934
      %v3953 = vadd.f32 %v3894, %v3935
      %v3954 = vadd.f32 %v3895, %v3936
      %v3955 = vadd.f32 %v3896, %v3937
      %v3956 = vadd.f32 %v3897, %v3938
      %v3957 = vld [vmem:[#allocation3 + $0x2] sm:$0xff]
      %v3958 = vld [vmem:[#allocation3 + $0xa] sm:$0xff]
      %v3959 = vld [vmem:[#allocation3 + $0x12] sm:$0xff]
      %v3960 = vld [vmem:[#allocation3 + $0x1a] sm:$0xff]
      %v3961 = vld [vmem:[#allocation3 + $0x22] sm:$0xff]
      %v3962 = vld [vmem:[#allocation3 + $0x2a] sm:$0xff]
      %v3963 = vld [vmem:[#allocation3 + $0x32] sm:$0xff]
      %v3964 = vld [vmem:[#allocation3 + $0x3a] sm:$0xff]
      %v3965 = vld [vmem:[#allocation3 + $0x42] sm:$0xff]
      %v3966 = vld [vmem:[#allocation3 + $0x4a] sm:$0xff]
      %v3967 = vld [vmem:[#allocation3 + $0x52] sm:$0xff]
      %v3968 = vld [vmem:[#allocation3 + $0x5a] sm:$0xff]
      %v3969 = vld [vmem:[#allocation3 + $0x62] sm:$0xff]
      %v3970 = vld [vmem:[#allocation3 + $0x6a] sm:$0xff]
      %v3971 = vld [vmem:[#allocation3 + $0x72] sm:$0xff]
      %v3972 = vld [vmem:[#allocation3 + $0x7a] sm:$0xff]
      %v3973 = vld [vmem:[#allocation3 + $0x82] sm:$0xff]
      %v3974 = vld [vmem:[#allocation3 + $0x8a] sm:$0xff]
      %v3975 = vld [vmem:[#allocation2 + $0x2] sm:$0x1]
      %v3976 = vlaneseq
      %v3977 = vshrl.u32 %v3976, 7
      %v3978 = vsub.s32 0, %v3977
      %v3979 = vrot.slane %v3975, %v3978
      %v3980 = vmul.f32 %v3957, %v3979
      %v3981 = vmul.f32 %v3958, %v3979
      %v3982 = vmul.f32 %v3959, %v3979
      %v3983 = vmul.f32 %v3960, %v3979
      %v3984 = vmul.f32 %v3961, %v3979
      %v3985 = vmul.f32 %v3962, %v3979
      %v3986 = vmul.f32 %v3963, %v3979
      %v3987 = vmul.f32 %v3964, %v3979
      %v3988 = vmul.f32 %v3965, %v3979
      %v3989 = vmul.f32 %v3966, %v3979
      %v3990 = vmul.f32 %v3967, %v3979
      %v3991 = vmul.f32 %v3968, %v3979
      %v3992 = vmul.f32 %v3969, %v3979
      %v3993 = vmul.f32 %v3970, %v3979
      %v3994 = vmul.f32 %v3971, %v3979
      %v3995 = vmul.f32 %v3972, %v3979
      %v3996 = vmul.f32 %v3973, %v3979
      %v3997 = vmul.f32 %v3974, %v3979
      %v3998 = vadd.f32 %v3939, %v3980
      %v3999 = vadd.f32 %v3940, %v3981
      %v4000 = vadd.f32 %v3941, %v3982
      %v4001 = vadd.f32 %v3942, %v3983
      %v4002 = vadd.f32 %v3943, %v3984
      %v4003 = vadd.f32 %v3944, %v3985
      %v4004 = vadd.f32 %v3945, %v3986
      %v4005 = vadd.f32 %v3946, %v3987
      %v4006 = vadd.f32 %v3947, %v3988
      %v4007 = vadd.f32 %v3948, %v3989
      %v4008 = vadd.f32 %v3949, %v3990
      %v4009 = vadd.f32 %v3950, %v3991
      %v4010 = vadd.f32 %v3951, %v3992
      %v4011 = vadd.f32 %v3952, %v3993
      %v4012 = vadd.f32 %v3953, %v3994
      %v4013 = vadd.f32 %v3954, %v3995
      %v4014 = vadd.f32 %v3955, %v3996
      %v4015 = vadd.f32 %v3956, %v3997
      %v4016 = vld [vmem:[#allocation3 + $0x3] sm:$0xff]
      %v4017 = vld [vmem:[#allocation3 + $0xb] sm:$0xff]
      %v4018 = vld [vmem:[#allocation3 + $0x13] sm:$0xff]
      %v4019 = vld [vmem:[#allocation3 + $0x1b] sm:$0xff]
      %v4020 = vld [vmem:[#allocation3 + $0x23] sm:$0xff]
      %v4021 = vld [vmem:[#allocation3 + $0x2b] sm:$0xff]
      %v4022 = vld [vmem:[#allocation3 + $0x33] sm:$0xff]
      %v4023 = vld [vmem:[#allocation3 + $0x3b] sm:$0xff]
      %v4024 = vld [vmem:[#allocation3 + $0x43] sm:$0xff]
      %v4025 = vld [vmem:[#allocation3 + $0x4b] sm:$0xff]
      %v4026 = vld [vmem:[#allocation3 + $0x53] sm:$0xff]
      %v4027 = vld [vmem:[#allocation3 + $0x5b] sm:$0xff]
      %v4028 = vld [vmem:[#allocation3 + $0x63] sm:$0xff]
      %v4029 = vld [vmem:[#allocation3 + $0x6b] sm:$0xff]
      %v4030 = vld [vmem:[#allocation3 + $0x73] sm:$0xff]
      %v4031 = vld [vmem:[#allocation3 + $0x7b] sm:$0xff]
      %v4032 = vld [vmem:[#allocation3 + $0x83] sm:$0xff]
      %v4033 = vld [vmem:[#allocation3 + $0x8b] sm:$0xff]
      %v4034 = vld [vmem:[#allocation2 + $0x3] sm:$0x1]
      %v4035 = vlaneseq
      %v4036 = vshrl.u32 %v4035, 7
      %v4037 = vsub.s32 0, %v4036
      %v4038 = vrot.slane %v4034, %v4037
      %v4039 = vmul.f32 %v4016, %v4038
      %v4040 = vmul.f32 %v4017, %v4038
      %v4041 = vmul.f32 %v4018, %v4038
      %v4042 = vmul.f32 %v4019, %v4038
      %v4043 = vmul.f32 %v4020, %v4038
      %v4044 = vmul.f32 %v4021, %v4038
      %v4045 = vmul.f32 %v4022, %v4038
      %v4046 = vmul.f32 %v4023, %v4038
      %v4047 = vmul.f32 %v4024, %v4038
      %v4048 = vmul.f32 %v4025, %v4038
      %v4049 = vmul.f32 %v4026, %v4038
      %v4050 = vmul.f32 %v4027, %v4038
      %v4051 = vmul.f32 %v4028, %v4038
      %v4052 = vmul.f32 %v4029, %v4038
      %v4053 = vmul.f32 %v4030, %v4038
      %v4054 = vmul.f32 %v4031, %v4038
      %v4055 = vmul.f32 %v4032, %v4038
      %v4056 = vmul.f32 %v4033, %v4038
      %v4057 = vadd.f32 %v3998, %v4039
      %v4058 = vadd.f32 %v3999, %v4040
      %v4059 = vadd.f32 %v4000, %v4041
      %v4060 = vadd.f32 %v4001, %v4042
      %v4061 = vadd.f32 %v4002, %v4043
      %v4062 = vadd.f32 %v4003, %v4044
      %v4063 = vadd.f32 %v4004, %v4045
      %v4064 = vadd.f32 %v4005, %v4046
      %v4065 = vadd.f32 %v4006, %v4047
      %v4066 = vadd.f32 %v4007, %v4048
      %v4067 = vadd.f32 %v4008, %v4049
      %v4068 = vadd.f32 %v4009, %v4050
      %v4069 = vadd.f32 %v4010, %v4051
      %v4070 = vadd.f32 %v4011, %v4052
      %v4071 = vadd.f32 %v4012, %v4053
      %v4072 = vadd.f32 %v4013, %v4054
      %v4073 = vadd.f32 %v4014, %v4055
      %v4074 = vadd.f32 %v4015, %v4056
      %v4075 = vld [vmem:[#allocation3 + $0x4] sm:$0xff]
      %v4076 = vld [vmem:[#allocation3 + $0xc] sm:$0xff]
      %v4077 = vld [vmem:[#allocation3 + $0x14] sm:$0xff]
      %v4078 = vld [vmem:[#allocation3 + $0x1c] sm:$0xff]
      %v4079 = vld [vmem:[#allocation3 + $0x24] sm:$0xff]
      %v4080 = vld [vmem:[#allocation3 + $0x2c] sm:$0xff]
      %v4081 = vld [vmem:[#allocation3 + $0x34] sm:$0xff]
      %v4082 = vld [vmem:[#allocation3 + $0x3c] sm:$0xff]
      %v4083 = vld [vmem:[#allocation3 + $0x44] sm:$0xff]
      %v4084 = vld [vmem:[#allocation3 + $0x4c] sm:$0xff]
      %v4085 = vld [vmem:[#allocation3 + $0x54] sm:$0xff]
      %v4086 = vld [vmem:[#allocation3 + $0x5c] sm:$0xff]
      %v4087 = vld [vmem:[#allocation3 + $0x64] sm:$0xff]
      %v4088 = vld [vmem:[#allocation3 + $0x6c] sm:$0xff]
      %v4089 = vld [vmem:[#allocation3 + $0x74] sm:$0xff]
      %v4090 = vld [vmem:[#allocation3 + $0x7c] sm:$0xff]
      %v4091 = vld [vmem:[#allocation3 + $0x84] sm:$0xff]
      %v4092 = vld [vmem:[#allocation3 + $0x8c] sm:$0xff]
      %v4093 = vld [vmem:[#allocation2 + $0x4] sm:$0x1]
      %v4094 = vlaneseq
      %v4095 = vshrl.u32 %v4094, 7
      %v4096 = vsub.s32 0, %v4095
      %v4097 = vrot.slane %v4093, %v4096
      %v4098 = vmul.f32 %v4075, %v4097
      %v4099 = vmul.f32 %v4076, %v4097
      %v4100 = vmul.f32 %v4077, %v4097
      %v4101 = vmul.f32 %v4078, %v4097
      %v4102 = vmul.f32 %v4079, %v4097
      %v4103 = vmul.f32 %v4080, %v4097
      %v4104 = vmul.f32 %v4081, %v4097
      %v4105 = vmul.f32 %v4082, %v4097
      %v4106 = vmul.f32 %v4083, %v4097
      %v4107 = vmul.f32 %v4084, %v4097
      %v4108 = vmul.f32 %v4085, %v4097
      %v4109 = vmul.f32 %v4086, %v4097
      %v4110 = vmul.f32 %v4087, %v4097
      %v4111 = vmul.f32 %v4088, %v4097
      %v4112 = vmul.f32 %v4089, %v4097
      %v4113 = vmul.f32 %v4090, %v4097
      %v4114 = vmul.f32 %v4091, %v4097
      %v4115 = vmul.f32 %v4092, %v4097
      %v4116 = vadd.f32 %v4057, %v4098
      %v4117 = vadd.f32 %v4058, %v4099
      %v4118 = vadd.f32 %v4059, %v4100
      %v4119 = vadd.f32 %v4060, %v4101
      %v4120 = vadd.f32 %v4061, %v4102
      %v4121 = vadd.f32 %v4062, %v4103
      %v4122 = vadd.f32 %v4063, %v4104
      %v4123 = vadd.f32 %v4064, %v4105
      %v4124 = vadd.f32 %v4065, %v4106
      %v4125 = vadd.f32 %v4066, %v4107
      %v4126 = vadd.f32 %v4067, %v4108
      %v4127 = vadd.f32 %v4068, %v4109
      %v4128 = vadd.f32 %v4069, %v4110
      %v4129 = vadd.f32 %v4070, %v4111
      %v4130 = vadd.f32 %v4071, %v4112
      %v4131 = vadd.f32 %v4072, %v4113
      %v4132 = vadd.f32 %v4073, %v4114
      %v4133 = vadd.f32 %v4074, %v4115
      %v4134 = vld [vmem:[#allocation3 + $0x5] sm:$0xff]
      %v4135 = vld [vmem:[#allocation3 + $0xd] sm:$0xff]
      %v4136 = vld [vmem:[#allocation3 + $0x15] sm:$0xff]
      %v4137 = vld [vmem:[#allocation3 + $0x1d] sm:$0xff]
      %v4138 = vld [vmem:[#allocation3 + $0x25] sm:$0xff]
      %v4139 = vld [vmem:[#allocation3 + $0x2d] sm:$0xff]
      %v4140 = vld [vmem:[#allocation3 + $0x35] sm:$0xff]
      %v4141 = vld [vmem:[#allocation3 + $0x3d] sm:$0xff]
      %v4142 = vld [vmem:[#allocation3 + $0x45] sm:$0xff]
      %v4143 = vld [vmem:[#allocation3 + $0x4d] sm:$0xff]
      %v4144 = vld [vmem:[#allocation3 + $0x55] sm:$0xff]
      %v4145 = vld [vmem:[#allocation3 + $0x5d] sm:$0xff]
      %v4146 = vld [vmem:[#allocation3 + $0x65] sm:$0xff]
      %v4147 = vld [vmem:[#allocation3 + $0x6d] sm:$0xff]
      %v4148 = vld [vmem:[#allocation3 + $0x75] sm:$0xff]
      %v4149 = vld [vmem:[#allocation3 + $0x7d] sm:$0xff]
      %v4150 = vld [vmem:[#allocation3 + $0x85] sm:$0xff]
      %v4151 = vld [vmem:[#allocation3 + $0x8d] sm:$0xff]
      %v4152 = vld [vmem:[#allocation2 + $0x5] sm:$0x1]
      %v4153 = vlaneseq
      %v4154 = vshrl.u32 %v4153, 7
      %v4155 = vsub.s32 0, %v4154
      %v4156 = vrot.slane %v4152, %v4155
      %v4157 = vmul.f32 %v4134, %v4156
      %v4158 = vmul.f32 %v4135, %v4156
      %v4159 = vmul.f32 %v4136, %v4156
      %v4160 = vmul.f32 %v4137, %v4156
      %v4161 = vmul.f32 %v4138, %v4156
      %v4162 = vmul.f32 %v4139, %v4156
      %v4163 = vmul.f32 %v4140, %v4156
      %v4164 = vmul.f32 %v4141, %v4156
      %v4165 = vmul.f32 %v4142, %v4156
      %v4166 = vmul.f32 %v4143, %v4156
      %v4167 = vmul.f32 %v4144, %v4156
      %v4168 = vmul.f32 %v4145, %v4156
      %v4169 = vmul.f32 %v4146, %v4156
      %v4170 = vmul.f32 %v4147, %v4156
      %v4171 = vmul.f32 %v4148, %v4156
      %v4172 = vmul.f32 %v4149, %v4156
      %v4173 = vmul.f32 %v4150, %v4156
      %v4174 = vmul.f32 %v4151, %v4156
      %v4175 = vadd.f32 %v4116, %v4157
      %v4176 = vadd.f32 %v4117, %v4158
      %v4177 = vadd.f32 %v4118, %v4159
      %v4178 = vadd.f32 %v4119, %v4160
      %v4179 = vadd.f32 %v4120, %v4161
      %v4180 = vadd.f32 %v4121, %v4162
      %v4181 = vadd.f32 %v4122, %v4163
      %v4182 = vadd.f32 %v4123, %v4164
      %v4183 = vadd.f32 %v4124, %v4165
      %v4184 = vadd.f32 %v4125, %v4166
      %v4185 = vadd.f32 %v4126, %v4167
      %v4186 = vadd.f32 %v4127, %v4168
      %v4187 = vadd.f32 %v4128, %v4169
      %v4188 = vadd.f32 %v4129, %v4170
      %v4189 = vadd.f32 %v4130, %v4171
      %v4190 = vadd.f32 %v4131, %v4172
      %v4191 = vadd.f32 %v4132, %v4173
      %v4192 = vadd.f32 %v4133, %v4174
      %v4193 = vld [vmem:[#allocation3 + $0x90] sm:$0xff]
      %v4194 = vld [vmem:[#allocation3 + $0x98] sm:$0xff]
      %v4195 = vld [vmem:[#allocation2 + $0x8] sm:$0x1]
      %v4196 = vlaneseq
      %v4197 = vshrl.u32 %v4196, 7
      %v4198 = vsub.s32 0, %v4197
      %v4199 = vrot.slane %v4195, %v4198
      %v4200 = vmul.f32 %v3841, %v4199
      %v4201 = vmul.f32 %v3842, %v4199
      %v4202 = vmul.f32 %v3843, %v4199
      %v4203 = vmul.f32 %v3844, %v4199
      %v4204 = vmul.f32 %v3845, %v4199
      %v4205 = vmul.f32 %v3846, %v4199
      %v4206 = vmul.f32 %v3847, %v4199
      %v4207 = vmul.f32 %v3848, %v4199
      %v4208 = vmul.f32 %v3849, %v4199
      %v4209 = vmul.f32 %v3850, %v4199
      %v4210 = vmul.f32 %v3851, %v4199
      %v4211 = vmul.f32 %v3852, %v4199
      %v4212 = vmul.f32 %v3853, %v4199
      %v4213 = vmul.f32 %v3854, %v4199
      %v4214 = vmul.f32 %v3855, %v4199
      %v4215 = vmul.f32 %v3856, %v4199
      %v4216 = vmul.f32 %v4193, %v4199
      %v4217 = vmul.f32 %v4194, %v4199
      %v4218 = vadd.f32 %v4175, %v4200
      %v4219 = vadd.f32 %v4176, %v4201
      %v4220 = vadd.f32 %v4177, %v4202
      %v4221 = vadd.f32 %v4178, %v4203
      %v4222 = vadd.f32 %v4179, %v4204
      %v4223 = vadd.f32 %v4180, %v4205
      %v4224 = vadd.f32 %v4181, %v4206
      %v4225 = vadd.f32 %v4182, %v4207
      %v4226 = vadd.f32 %v4183, %v4208
      %v4227 = vadd.f32 %v4184, %v4209
      %v4228 = vadd.f32 %v4185, %v4210
      %v4229 = vadd.f32 %v4186, %v4211
      %v4230 = vadd.f32 %v4187, %v4212
      %v4231 = vadd.f32 %v4188, %v4213
      %v4232 = vadd.f32 %v4189, %v4214
      %v4233 = vadd.f32 %v4190, %v4215
      %v4234 = vadd.f32 %v4191, %v4216
      %v4235 = vadd.f32 %v4192, %v4217
      %v4236 = vld [vmem:[#allocation3 + $0x91] sm:$0xff]
      %v4237 = vld [vmem:[#allocation3 + $0x99] sm:$0xff]
      %v4238 = vld [vmem:[#allocation2 + $0x9] sm:$0x1]
      %v4239 = vlaneseq
      %v4240 = vshrl.u32 %v4239, 7
      %v4241 = vsub.s32 0, %v4240
      %v4242 = vrot.slane %v4238, %v4241
      %v4243 = vmul.f32 %v3900, %v4242
      %v4244 = vmul.f32 %v3901, %v4242
      %v4245 = vmul.f32 %v3902, %v4242
      %v4246 = vmul.f32 %v3903, %v4242
      %v4247 = vmul.f32 %v3904, %v4242
      %v4248 = vmul.f32 %v3905, %v4242
      %v4249 = vmul.f32 %v3906, %v4242
      %v4250 = vmul.f32 %v3907, %v4242
      %v4251 = vmul.f32 %v3908, %v4242
      %v4252 = vmul.f32 %v3909, %v4242
      %v4253 = vmul.f32 %v3910, %v4242
      %v4254 = vmul.f32 %v3911, %v4242
      %v4255 = vmul.f32 %v3912, %v4242
      %v4256 = vmul.f32 %v3913, %v4242
      %v4257 = vmul.f32 %v3914, %v4242
      %v4258 = vmul.f32 %v3915, %v4242
      %v4259 = vmul.f32 %v4236, %v4242
      %v4260 = vmul.f32 %v4237, %v4242
      %v4261 = vadd.f32 %v4218, %v4243
      %v4262 = vadd.f32 %v4219, %v4244
      %v4263 = vadd.f32 %v4220, %v4245
      %v4264 = vadd.f32 %v4221, %v4246
      %v4265 = vadd.f32 %v4222, %v4247
      %v4266 = vadd.f32 %v4223, %v4248
      %v4267 = vadd.f32 %v4224, %v4249
      %v4268 = vadd.f32 %v4225, %v4250
      %v4269 = vadd.f32 %v4226, %v4251
      %v4270 = vadd.f32 %v4227, %v4252
      %v4271 = vadd.f32 %v4228, %v4253
      %v4272 = vadd.f32 %v4229, %v4254
      %v4273 = vadd.f32 %v4230, %v4255
      %v4274 = vadd.f32 %v4231, %v4256
      %v4275 = vadd.f32 %v4232, %v4257
      %v4276 = vadd.f32 %v4233, %v4258
      %v4277 = vadd.f32 %v4234, %v4259
      %v4278 = vadd.f32 %v4235, %v4260
      %v4279 = vld [vmem:[#allocation3 + $0x92] sm:$0xff]
      %v4280 = vld [vmem:[#allocation3 + $0x9a] sm:$0xff]
      %v4281 = vld [vmem:[#allocation2 + $0xa] sm:$0x1]
      %v4282 = vlaneseq
      %v4283 = vshrl.u32 %v4282, 7
      %v4284 = vsub.s32 0, %v4283
      %v4285 = vrot.slane %v4281, %v4284
      %v4286 = vmul.f32 %v3959, %v4285
      %v4287 = vmul.f32 %v3960, %v4285
      %v4288 = vmul.f32 %v3961, %v4285
      %v4289 = vmul.f32 %v3962, %v4285
      %v4290 = vmul.f32 %v3963, %v4285
      %v4291 = vmul.f32 %v3964, %v4285
      %v4292 = vmul.f32 %v3965, %v4285
      %v4293 = vmul.f32 %v3966, %v4285
      %v4294 = vmul.f32 %v3967, %v4285
      %v4295 = vmul.f32 %v3968, %v4285
      %v4296 = vmul.f32 %v3969, %v4285
      %v4297 = vmul.f32 %v3970, %v4285
      %v4298 = vmul.f32 %v3971, %v4285
      %v4299 = vmul.f32 %v3972, %v4285
      %v4300 = vmul.f32 %v3973, %v4285
      %v4301 = vmul.f32 %v3974, %v4285
      %v4302 = vmul.f32 %v4279, %v4285
      %v4303 = vmul.f32 %v4280, %v4285
      %v4304 = vadd.f32 %v4261, %v4286
      %v4305 = vadd.f32 %v4262, %v4287
      %v4306 = vadd.f32 %v4263, %v4288
      %v4307 = vadd.f32 %v4264, %v4289
      %v4308 = vadd.f32 %v4265, %v4290
      %v4309 = vadd.f32 %v4266, %v4291
      %v4310 = vadd.f32 %v4267, %v4292
      %v4311 = vadd.f32 %v4268, %v4293
      %v4312 = vadd.f32 %v4269, %v4294
      %v4313 = vadd.f32 %v4270, %v4295
      %v4314 = vadd.f32 %v4271, %v4296
      %v4315 = vadd.f32 %v4272, %v4297
      %v4316 = vadd.f32 %v4273, %v4298
      %v4317 = vadd.f32 %v4274, %v4299
      %v4318 = vadd.f32 %v4275, %v4300
      %v4319 = vadd.f32 %v4276, %v4301
      %v4320 = vadd.f32 %v4277, %v4302
      %v4321 = vadd.f32 %v4278, %v4303
      %v4322 = vld [vmem:[#allocation3 + $0x93] sm:$0xff]
      %v4323 = vld [vmem:[#allocation3 + $0x9b] sm:$0xff]
      %v4324 = vld [vmem:[#allocation2 + $0xb] sm:$0x1]
      %v4325 = vlaneseq
      %v4326 = vshrl.u32 %v4325, 7
      %v4327 = vsub.s32 0, %v4326
      %v4328 = vrot.slane %v4324, %v4327
      %v4329 = vmul.f32 %v4018, %v4328
      %v4330 = vmul.f32 %v4019, %v4328
      %v4331 = vmul.f32 %v4020, %v4328
      %v4332 = vmul.f32 %v4021, %v4328
      %v4333 = vmul.f32 %v4022, %v4328
      %v4334 = vmul.f32 %v4023, %v4328
      %v4335 = vmul.f32 %v4024, %v4328
      %v4336 = vmul.f32 %v4025, %v4328
      %v4337 = vmul.f32 %v4026, %v4328
      %v4338 = vmul.f32 %v4027, %v4328
      %v4339 = vmul.f32 %v4028, %v4328
      %v4340 = vmul.f32 %v4029, %v4328
      %v4341 = vmul.f32 %v4030, %v4328
      %v4342 = vmul.f32 %v4031, %v4328
      %v4343 = vmul.f32 %v4032, %v4328
      %v4344 = vmul.f32 %v4033, %v4328
      %v4345 = vmul.f32 %v4322, %v4328
      %v4346 = vmul.f32 %v4323, %v4328
      %v4347 = vadd.f32 %v4304, %v4329
      %v4348 = vadd.f32 %v4305, %v4330
      %v4349 = vadd.f32 %v4306, %v4331
      %v4350 = vadd.f32 %v4307, %v4332
      %v4351 = vadd.f32 %v4308, %v4333
      %v4352 = vadd.f32 %v4309, %v4334
      %v4353 = vadd.f32 %v4310, %v4335
      %v4354 = vadd.f32 %v4311, %v4336
      %v4355 = vadd.f32 %v4312, %v4337
      %v4356 = vadd.f32 %v4313, %v4338
      %v4357 = vadd.f32 %v4314, %v4339
      %v4358 = vadd.f32 %v4315, %v4340
      %v4359 = vadd.f32 %v4316, %v4341
      %v4360 = vadd.f32 %v4317, %v4342
      %v4361 = vadd.f32 %v4318, %v4343
      %v4362 = vadd.f32 %v4319, %v4344
      %v4363 = vadd.f32 %v4320, %v4345
      %v4364 = vadd.f32 %v4321, %v4346
      %v4365 = vld [vmem:[#allocation3 + $0x94] sm:$0xff]
      %v4366 = vld [vmem:[#allocation3 + $0x9c] sm:$0xff]
      %v4367 = vld [vmem:[#allocation2 + $0xc] sm:$0x1]
      %v4368 = vlaneseq
      %v4369 = vshrl.u32 %v4368, 7
      %v4370 = vsub.s32 0, %v4369
      %v4371 = vrot.slane %v4367, %v4370
      %v4372 = vmul.f32 %v4077, %v4371
      %v4373 = vmul.f32 %v4078, %v4371
      %v4374 = vmul.f32 %v4079, %v4371
      %v4375 = vmul.f32 %v4080, %v4371
      %v4376 = vmul.f32 %v4081, %v4371
      %v4377 = vmul.f32 %v4082, %v4371
      %v4378 = vmul.f32 %v4083, %v4371
      %v4379 = vmul.f32 %v4084, %v4371
      %v4380 = vmul.f32 %v4085, %v4371
      %v4381 = vmul.f32 %v4086, %v4371
      %v4382 = vmul.f32 %v4087, %v4371
      %v4383 = vmul.f32 %v4088, %v4371
      %v4384 = vmul.f32 %v4089, %v4371
      %v4385 = vmul.f32 %v4090, %v4371
      %v4386 = vmul.f32 %v4091, %v4371
      %v4387 = vmul.f32 %v4092, %v4371
      %v4388 = vmul.f32 %v4365, %v4371
      %v4389 = vmul.f32 %v4366, %v4371
      %v4390 = vadd.f32 %v4347, %v4372
      %v4391 = vadd.f32 %v4348, %v4373
      %v4392 = vadd.f32 %v4349, %v4374
      %v4393 = vadd.f32 %v4350, %v4375
      %v4394 = vadd.f32 %v4351, %v4376
      %v4395 = vadd.f32 %v4352, %v4377
      %v4396 = vadd.f32 %v4353, %v4378
      %v4397 = vadd.f32 %v4354, %v4379
      %v4398 = vadd.f32 %v4355, %v4380
      %v4399 = vadd.f32 %v4356, %v4381
      %v4400 = vadd.f32 %v4357, %v4382
      %v4401 = vadd.f32 %v4358, %v4383
      %v4402 = vadd.f32 %v4359, %v4384
      %v4403 = vadd.f32 %v4360, %v4385
      %v4404 = vadd.f32 %v4361, %v4386
      %v4405 = vadd.f32 %v4362, %v4387
      %v4406 = vadd.f32 %v4363, %v4388
      %v4407 = vadd.f32 %v4364, %v4389
      %v4408 = vld [vmem:[#allocation3 + $0x95] sm:$0xff]
      %v4409 = vld [vmem:[#allocation3 + $0x9d] sm:$0xff]
      %v4410 = vld [vmem:[#allocation2 + $0xd] sm:$0x1]
      %v4411 = vlaneseq
      %v4412 = vshrl.u32 %v4411, 7
      %v4413 = vsub.s32 0, %v4412
      %v4414 = vrot.slane %v4410, %v4413
      %v4415 = vmul.f32 %v4136, %v4414
      %v4416 = vmul.f32 %v4137, %v4414
      %v4417 = vmul.f32 %v4138, %v4414
      %v4418 = vmul.f32 %v4139, %v4414
      %v4419 = vmul.f32 %v4140, %v4414
      %v4420 = vmul.f32 %v4141, %v4414
      %v4421 = vmul.f32 %v4142, %v4414
      %v4422 = vmul.f32 %v4143, %v4414
      %v4423 = vmul.f32 %v4144, %v4414
      %v4424 = vmul.f32 %v4145, %v4414
      %v4425 = vmul.f32 %v4146, %v4414
      %v4426 = vmul.f32 %v4147, %v4414
      %v4427 = vmul.f32 %v4148, %v4414
      %v4428 = vmul.f32 %v4149, %v4414
      %v4429 = vmul.f32 %v4150, %v4414
      %v4430 = vmul.f32 %v4151, %v4414
      %v4431 = vmul.f32 %v4408, %v4414
      %v4432 = vmul.f32 %v4409, %v4414
      %v4433 = vadd.f32 %v4390, %v4415
      %v4434 = vadd.f32 %v4391, %v4416
      %v4435 = vadd.f32 %v4392, %v4417
      %v4436 = vadd.f32 %v4393, %v4418
      %v4437 = vadd.f32 %v4394, %v4419
      %v4438 = vadd.f32 %v4395, %v4420
      %v4439 = vadd.f32 %v4396, %v4421
      %v4440 = vadd.f32 %v4397, %v4422
      %v4441 = vadd.f32 %v4398, %v4423
      %v4442 = vadd.f32 %v4399, %v4424
      %v4443 = vadd.f32 %v4400, %v4425
      %v4444 = vadd.f32 %v4401, %v4426
      %v4445 = vadd.f32 %v4402, %v4427
      %v4446 = vadd.f32 %v4403, %v4428
      %v4447 = vadd.f32 %v4404, %v4429
      %v4448 = vadd.f32 %v4405, %v4430
      %v4449 = vadd.f32 %v4406, %v4431
      %v4450 = vadd.f32 %v4407, %v4432
      %v4451 = vld [vmem:[#allocation3 + $0xa0] sm:$0xff]
      %v4452 = vld [vmem:[#allocation3 + $0xa8] sm:$0xff]
      %v4453 = vld [vmem:[#allocation2 + $0x10] sm:$0x1]
      %v4454 = vlaneseq
      %v4455 = vshrl.u32 %v4454, 7
      %v4456 = vsub.s32 0, %v4455
      %v4457 = vrot.slane %v4453, %v4456
      %v4458 = vmul.f32 %v3843, %v4457
      %v4459 = vmul.f32 %v3844, %v4457
      %v4460 = vmul.f32 %v3845, %v4457
      %v4461 = vmul.f32 %v3846, %v4457
      %v4462 = vmul.f32 %v3847, %v4457
      %v4463 = vmul.f32 %v3848, %v4457
      %v4464 = vmul.f32 %v3849, %v4457
      %v4465 = vmul.f32 %v3850, %v4457
      %v4466 = vmul.f32 %v3851, %v4457
      %v4467 = vmul.f32 %v3852, %v4457
      %v4468 = vmul.f32 %v3853, %v4457
      %v4469 = vmul.f32 %v3854, %v4457
      %v4470 = vmul.f32 %v3855, %v4457
      %v4471 = vmul.f32 %v3856, %v4457
      %v4472 = vmul.f32 %v4193, %v4457
      %v4473 = vmul.f32 %v4194, %v4457
      %v4474 = vmul.f32 %v4451, %v4457
      %v4475 = vmul.f32 %v4452, %v4457
      %v4476 = vadd.f32 %v4433, %v4458
      %v4477 = vadd.f32 %v4434, %v4459
      %v4478 = vadd.f32 %v4435, %v4460
      %v4479 = vadd.f32 %v4436, %v4461
      %v4480 = vadd.f32 %v4437, %v4462
      %v4481 = vadd.f32 %v4438, %v4463
      %v4482 = vadd.f32 %v4439, %v4464
      %v4483 = vadd.f32 %v4440, %v4465
      %v4484 = vadd.f32 %v4441, %v4466
      %v4485 = vadd.f32 %v4442, %v4467
      %v4486 = vadd.f32 %v4443, %v4468
      %v4487 = vadd.f32 %v4444, %v4469
      %v4488 = vadd.f32 %v4445, %v4470
      %v4489 = vadd.f32 %v4446, %v4471
      %v4490 = vadd.f32 %v4447, %v4472
      %v4491 = vadd.f32 %v4448, %v4473
      %v4492 = vadd.f32 %v4449, %v4474
      %v4493 = vadd.f32 %v4450, %v4475
      %v4494 = vld [vmem:[#allocation3 + $0xa1] sm:$0xff]
      %v4495 = vld [vmem:[#allocation3 + $0xa9] sm:$0xff]
      %v4496 = vld [vmem:[#allocation2 + $0x11] sm:$0x1]
      %v4497 = vlaneseq
      %v4498 = vshrl.u32 %v4497, 7
      %v4499 = vsub.s32 0, %v4498
      %v4500 = vrot.slane %v4496, %v4499
      %v4501 = vmul.f32 %v3902, %v4500
      %v4502 = vmul.f32 %v3903, %v4500
      %v4503 = vmul.f32 %v3904, %v4500
      %v4504 = vmul.f32 %v3905, %v4500
      %v4505 = vmul.f32 %v3906, %v4500
      %v4506 = vmul.f32 %v3907, %v4500
      %v4507 = vmul.f32 %v3908, %v4500
      %v4508 = vmul.f32 %v3909, %v4500
      %v4509 = vmul.f32 %v3910, %v4500
      %v4510 = vmul.f32 %v3911, %v4500
      %v4511 = vmul.f32 %v3912, %v4500
      %v4512 = vmul.f32 %v3913, %v4500
      %v4513 = vmul.f32 %v3914, %v4500
      %v4514 = vmul.f32 %v3915, %v4500
      %v4515 = vmul.f32 %v4236, %v4500
      %v4516 = vmul.f32 %v4237, %v4500
      %v4517 = vmul.f32 %v4494, %v4500
      %v4518 = vmul.f32 %v4495, %v4500
      %v4519 = vadd.f32 %v4476, %v4501
      %v4520 = vadd.f32 %v4477, %v4502
      %v4521 = vadd.f32 %v4478, %v4503
      %v4522 = vadd.f32 %v4479, %v4504
      %v4523 = vadd.f32 %v4480, %v4505
      %v4524 = vadd.f32 %v4481, %v4506
      %v4525 = vadd.f32 %v4482, %v4507
      %v4526 = vadd.f32 %v4483, %v4508
      %v4527 = vadd.f32 %v4484, %v4509
      %v4528 = vadd.f32 %v4485, %v4510
      %v4529 = vadd.f32 %v4486, %v4511
      %v4530 = vadd.f32 %v4487, %v4512
      %v4531 = vadd.f32 %v4488, %v4513
      %v4532 = vadd.f32 %v4489, %v4514
      %v4533 = vadd.f32 %v4490, %v4515
      %v4534 = vadd.f32 %v4491, %v4516
      %v4535 = vadd.f32 %v4492, %v4517
      %v4536 = vadd.f32 %v4493, %v4518
      %v4537 = vld [vmem:[#allocation3 + $0xa2] sm:$0xff]
      %v4538 = vld [vmem:[#allocation3 + $0xaa] sm:$0xff]
      %v4539 = vld [vmem:[#allocation2 + $0x12] sm:$0x1]
      %v4540 = vlaneseq
      %v4541 = vshrl.u32 %v4540, 7
      %v4542 = vsub.s32 0, %v4541
      %v4543 = vrot.slane %v4539, %v4542
      %v4544 = vmul.f32 %v3961, %v4543
      %v4545 = vmul.f32 %v3962, %v4543
      %v4546 = vmul.f32 %v3963, %v4543
      %v4547 = vmul.f32 %v3964, %v4543
      %v4548 = vmul.f32 %v3965, %v4543
      %v4549 = vmul.f32 %v3966, %v4543
      %v4550 = vmul.f32 %v3967, %v4543
      %v4551 = vmul.f32 %v3968, %v4543
      %v4552 = vmul.f32 %v3969, %v4543
      %v4553 = vmul.f32 %v3970, %v4543
      %v4554 = vmul.f32 %v3971, %v4543
      %v4555 = vmul.f32 %v3972, %v4543
      %v4556 = vmul.f32 %v3973, %v4543
      %v4557 = vmul.f32 %v3974, %v4543
      %v4558 = vmul.f32 %v4279, %v4543
      %v4559 = vmul.f32 %v4280, %v4543
      %v4560 = vmul.f32 %v4537, %v4543
      %v4561 = vmul.f32 %v4538, %v4543
      %v4562 = vadd.f32 %v4519, %v4544
      %v4563 = vadd.f32 %v4520, %v4545
      %v4564 = vadd.f32 %v4521, %v4546
      %v4565 = vadd.f32 %v4522, %v4547
      %v4566 = vadd.f32 %v4523, %v4548
      %v4567 = vadd.f32 %v4524, %v4549
      %v4568 = vadd.f32 %v4525, %v4550
      %v4569 = vadd.f32 %v4526, %v4551
      %v4570 = vadd.f32 %v4527, %v4552
      %v4571 = vadd.f32 %v4528, %v4553
      %v4572 = vadd.f32 %v4529, %v4554
      %v4573 = vadd.f32 %v4530, %v4555
      %v4574 = vadd.f32 %v4531, %v4556
      %v4575 = vadd.f32 %v4532, %v4557
      %v4576 = vadd.f32 %v4533, %v4558
      %v4577 = vadd.f32 %v4534, %v4559
      %v4578 = vadd.f32 %v4535, %v4560
      %v4579 = vadd.f32 %v4536, %v4561
      %v4580 = vld [vmem:[#allocation3 + $0xa3] sm:$0xff]
      %v4581 = vld [vmem:[#allocation3 + $0xab] sm:$0xff]
      %v4582 = vld [vmem:[#allocation2 + $0x13] sm:$0x1]
      %v4583 = vlaneseq
      %v4584 = vshrl.u32 %v4583, 7
      %v4585 = vsub.s32 0, %v4584
      %v4586 = vrot.slane %v4582, %v4585
      %v4587 = vmul.f32 %v4020, %v4586
      %v4588 = vmul.f32 %v4021, %v4586
      %v4589 = vmul.f32 %v4022, %v4586
      %v4590 = vmul.f32 %v4023, %v4586
      %v4591 = vmul.f32 %v4024, %v4586
      %v4592 = vmul.f32 %v4025, %v4586
      %v4593 = vmul.f32 %v4026, %v4586
      %v4594 = vmul.f32 %v4027, %v4586
      %v4595 = vmul.f32 %v4028, %v4586
      %v4596 = vmul.f32 %v4029, %v4586
      %v4597 = vmul.f32 %v4030, %v4586
      %v4598 = vmul.f32 %v4031, %v4586
      %v4599 = vmul.f32 %v4032, %v4586
      %v4600 = vmul.f32 %v4033, %v4586
      %v4601 = vmul.f32 %v4322, %v4586
      %v4602 = vmul.f32 %v4323, %v4586
      %v4603 = vmul.f32 %v4580, %v4586
      %v4604 = vmul.f32 %v4581, %v4586
      %v4605 = vadd.f32 %v4562, %v4587
      %v4606 = vadd.f32 %v4563, %v4588
      %v4607 = vadd.f32 %v4564, %v4589
      %v4608 = vadd.f32 %v4565, %v4590
      %v4609 = vadd.f32 %v4566, %v4591
      %v4610 = vadd.f32 %v4567, %v4592
      %v4611 = vadd.f32 %v4568, %v4593
      %v4612 = vadd.f32 %v4569, %v4594
      %v4613 = vadd.f32 %v4570, %v4595
      %v4614 = vadd.f32 %v4571, %v4596
      %v4615 = vadd.f32 %v4572, %v4597
      %v4616 = vadd.f32 %v4573, %v4598
      %v4617 = vadd.f32 %v4574, %v4599
      %v4618 = vadd.f32 %v4575, %v4600
      %v4619 = vadd.f32 %v4576, %v4601
      %v4620 = vadd.f32 %v4577, %v4602
      %v4621 = vadd.f32 %v4578, %v4603
      %v4622 = vadd.f32 %v4579, %v4604
      %v4623 = vld [vmem:[#allocation3 + $0xa4] sm:$0xff]
      %v4624 = vld [vmem:[#allocation3 + $0xac] sm:$0xff]
      %v4625 = vld [vmem:[#allocation2 + $0x14] sm:$0x1]
      %v4626 = vlaneseq
      %v4627 = vshrl.u32 %v4626, 7
      %v4628 = vsub.s32 0, %v4627
      %v4629 = vrot.slane %v4625, %v4628
      %v4630 = vmul.f32 %v4079, %v4629
      %v4631 = vmul.f32 %v4080, %v4629
      %v4632 = vmul.f32 %v4081, %v4629
      %v4633 = vmul.f32 %v4082, %v4629
      %v4634 = vmul.f32 %v4083, %v4629
      %v4635 = vmul.f32 %v4084, %v4629
      %v4636 = vmul.f32 %v4085, %v4629
      %v4637 = vmul.f32 %v4086, %v4629
      %v4638 = vmul.f32 %v4087, %v4629
      %v4639 = vmul.f32 %v4088, %v4629
      %v4640 = vmul.f32 %v4089, %v4629
      %v4641 = vmul.f32 %v4090, %v4629
      %v4642 = vmul.f32 %v4091, %v4629
      %v4643 = vmul.f32 %v4092, %v4629
      %v4644 = vmul.f32 %v4365, %v4629
      %v4645 = vmul.f32 %v4366, %v4629
      %v4646 = vmul.f32 %v4623, %v4629
      %v4647 = vmul.f32 %v4624, %v4629
      %v4648 = vadd.f32 %v4605, %v4630
      %v4649 = vadd.f32 %v4606, %v4631
      %v4650 = vadd.f32 %v4607, %v4632
      %v4651 = vadd.f32 %v4608, %v4633
      %v4652 = vadd.f32 %v4609, %v4634
      %v4653 = vadd.f32 %v4610, %v4635
      %v4654 = vadd.f32 %v4611, %v4636
      %v4655 = vadd.f32 %v4612, %v4637
      %v4656 = vadd.f32 %v4613, %v4638
      %v4657 = vadd.f32 %v4614, %v4639
      %v4658 = vadd.f32 %v4615, %v4640
      %v4659 = vadd.f32 %v4616, %v4641
      %v4660 = vadd.f32 %v4617, %v4642
      %v4661 = vadd.f32 %v4618, %v4643
      %v4662 = vadd.f32 %v4619, %v4644
      %v4663 = vadd.f32 %v4620, %v4645
      %v4664 = vadd.f32 %v4621, %v4646
      %v4665 = vadd.f32 %v4622, %v4647
      %v4666 = vld [vmem:[#allocation3 + $0xa5] sm:$0xff]
      %v4667 = vld [vmem:[#allocation3 + $0xad] sm:$0xff]
      %v4668 = vld [vmem:[#allocation2 + $0x15] sm:$0x1]
      %v4669 = vlaneseq
      %v4670 = vshrl.u32 %v4669, 7
      %v4671 = vsub.s32 0, %v4670
      %v4672 = vrot.slane %v4668, %v4671
      %v4673 = vmul.f32 %v4138, %v4672
      %v4674 = vmul.f32 %v4139, %v4672
      %v4675 = vmul.f32 %v4140, %v4672
      %v4676 = vmul.f32 %v4141, %v4672
      %v4677 = vmul.f32 %v4142, %v4672
      %v4678 = vmul.f32 %v4143, %v4672
      %v4679 = vmul.f32 %v4144, %v4672
      %v4680 = vmul.f32 %v4145, %v4672
      %v4681 = vmul.f32 %v4146, %v4672
      %v4682 = vmul.f32 %v4147, %v4672
      %v4683 = vmul.f32 %v4148, %v4672
      %v4684 = vmul.f32 %v4149, %v4672
      %v4685 = vmul.f32 %v4150, %v4672
      %v4686 = vmul.f32 %v4151, %v4672
      %v4687 = vmul.f32 %v4408, %v4672
      %v4688 = vmul.f32 %v4409, %v4672
      %v4689 = vmul.f32 %v4666, %v4672
      %v4690 = vmul.f32 %v4667, %v4672
      %v4691 = vadd.f32 %v4648, %v4673
      %v4692 = vadd.f32 %v4649, %v4674
      %v4693 = vadd.f32 %v4650, %v4675
      %v4694 = vadd.f32 %v4651, %v4676
      %v4695 = vadd.f32 %v4652, %v4677
      %v4696 = vadd.f32 %v4653, %v4678
      %v4697 = vadd.f32 %v4654, %v4679
      %v4698 = vadd.f32 %v4655, %v4680
      %v4699 = vadd.f32 %v4656, %v4681
      %v4700 = vadd.f32 %v4657, %v4682
      %v4701 = vadd.f32 %v4658, %v4683
      %v4702 = vadd.f32 %v4659, %v4684
      %v4703 = vadd.f32 %v4660, %v4685
      %v4704 = vadd.f32 %v4661, %v4686
      %v4705 = vadd.f32 %v4662, %v4687
      %v4706 = vadd.f32 %v4663, %v4688
      %v4707 = vadd.f32 %v4664, %v4689
      %v4708 = vadd.f32 %v4665, %v4690
      %v4709 = vld [vmem:[#allocation3 + $0xb0] sm:$0xff]
      %v4710 = vld [vmem:[#allocation3 + $0xb8] sm:$0xff]
      %v4711 = vld [vmem:[#allocation2 + $0x18] sm:$0x1]
      %v4712 = vlaneseq
      %v4713 = vshrl.u32 %v4712, 7
      %v4714 = vsub.s32 0, %v4713
      %v4715 = vrot.slane %v4711, %v4714
      %v4716 = vmul.f32 %v3845, %v4715
      %v4717 = vmul.f32 %v3846, %v4715
      %v4718 = vmul.f32 %v3847, %v4715
      %v4719 = vmul.f32 %v3848, %v4715
      %v4720 = vmul.f32 %v3849, %v4715
      %v4721 = vmul.f32 %v3850, %v4715
      %v4722 = vmul.f32 %v3851, %v4715
      %v4723 = vmul.f32 %v3852, %v4715
      %v4724 = vmul.f32 %v3853, %v4715
      %v4725 = vmul.f32 %v3854, %v4715
      %v4726 = vmul.f32 %v3855, %v4715
      %v4727 = vmul.f32 %v3856, %v4715
      %v4728 = vmul.f32 %v4193, %v4715
      %v4729 = vmul.f32 %v4194, %v4715
      %v4730 = vmul.f32 %v4451, %v4715
      %v4731 = vmul.f32 %v4452, %v4715
      %v4732 = vmul.f32 %v4709, %v4715
      %v4733 = vmul.f32 %v4710, %v4715
      %v4734 = vadd.f32 %v4691, %v4716
      %v4735 = vadd.f32 %v4692, %v4717
      %v4736 = vadd.f32 %v4693, %v4718
      %v4737 = vadd.f32 %v4694, %v4719
      %v4738 = vadd.f32 %v4695, %v4720
      %v4739 = vadd.f32 %v4696, %v4721
      %v4740 = vadd.f32 %v4697, %v4722
      %v4741 = vadd.f32 %v4698, %v4723
      %v4742 = vadd.f32 %v4699, %v4724
      %v4743 = vadd.f32 %v4700, %v4725
      %v4744 = vadd.f32 %v4701, %v4726
      %v4745 = vadd.f32 %v4702, %v4727
      %v4746 = vadd.f32 %v4703, %v4728
      %v4747 = vadd.f32 %v4704, %v4729
      %v4748 = vadd.f32 %v4705, %v4730
      %v4749 = vadd.f32 %v4706, %v4731
      %v4750 = vadd.f32 %v4707, %v4732
      %v4751 = vadd.f32 %v4708, %v4733
      %v4752 = vld [vmem:[#allocation3 + $0xb1] sm:$0xff]
      %v4753 = vld [vmem:[#allocation3 + $0xb9] sm:$0xff]
      %v4754 = vld [vmem:[#allocation2 + $0x19] sm:$0x1]
      %v4755 = vlaneseq
      %v4756 = vshrl.u32 %v4755, 7
      %v4757 = vsub.s32 0, %v4756
      %v4758 = vrot.slane %v4754, %v4757
      %v4759 = vmul.f32 %v3904, %v4758
      %v4760 = vmul.f32 %v3905, %v4758
      %v4761 = vmul.f32 %v3906, %v4758
      %v4762 = vmul.f32 %v3907, %v4758
      %v4763 = vmul.f32 %v3908, %v4758
      %v4764 = vmul.f32 %v3909, %v4758
      %v4765 = vmul.f32 %v3910, %v4758
      %v4766 = vmul.f32 %v3911, %v4758
      %v4767 = vmul.f32 %v3912, %v4758
      %v4768 = vmul.f32 %v3913, %v4758
      %v4769 = vmul.f32 %v3914, %v4758
      %v4770 = vmul.f32 %v3915, %v4758
      %v4771 = vmul.f32 %v4236, %v4758
      %v4772 = vmul.f32 %v4237, %v4758
      %v4773 = vmul.f32 %v4494, %v4758
      %v4774 = vmul.f32 %v4495, %v4758
      %v4775 = vmul.f32 %v4752, %v4758
      %v4776 = vmul.f32 %v4753, %v4758
      %v4777 = vadd.f32 %v4734, %v4759
      %v4778 = vadd.f32 %v4735, %v4760
      %v4779 = vadd.f32 %v4736, %v4761
      %v4780 = vadd.f32 %v4737, %v4762
      %v4781 = vadd.f32 %v4738, %v4763
      %v4782 = vadd.f32 %v4739, %v4764
      %v4783 = vadd.f32 %v4740, %v4765
      %v4784 = vadd.f32 %v4741, %v4766
      %v4785 = vadd.f32 %v4742, %v4767
      %v4786 = vadd.f32 %v4743, %v4768
      %v4787 = vadd.f32 %v4744, %v4769
      %v4788 = vadd.f32 %v4745, %v4770
      %v4789 = vadd.f32 %v4746, %v4771
      %v4790 = vadd.f32 %v4747, %v4772
      %v4791 = vadd.f32 %v4748, %v4773
      %v4792 = vadd.f32 %v4749, %v4774
      %v4793 = vadd.f32 %v4750, %v4775
      %v4794 = vadd.f32 %v4751, %v4776
      %v4795 = vld [vmem:[#allocation3 + $0xb2] sm:$0xff]
      %v4796 = vld [vmem:[#allocation3 + $0xba] sm:$0xff]
      %v4797 = vld [vmem:[#allocation2 + $0x1a] sm:$0x1]
      %v4798 = vlaneseq
      %v4799 = vshrl.u32 %v4798, 7
      %v4800 = vsub.s32 0, %v4799
      %v4801 = vrot.slane %v4797, %v4800
      %v4802 = vmul.f32 %v3963, %v4801
      %v4803 = vmul.f32 %v3964, %v4801
      %v4804 = vmul.f32 %v3965, %v4801
      %v4805 = vmul.f32 %v3966, %v4801
      %v4806 = vmul.f32 %v3967, %v4801
      %v4807 = vmul.f32 %v3968, %v4801
      %v4808 = vmul.f32 %v3969, %v4801
      %v4809 = vmul.f32 %v3970, %v4801
      %v4810 = vmul.f32 %v3971, %v4801
      %v4811 = vmul.f32 %v3972, %v4801
      %v4812 = vmul.f32 %v3973, %v4801
      %v4813 = vmul.f32 %v3974, %v4801
      %v4814 = vmul.f32 %v4279, %v4801
      %v4815 = vmul.f32 %v4280, %v4801
      %v4816 = vmul.f32 %v4537, %v4801
      %v4817 = vmul.f32 %v4538, %v4801
      %v4818 = vmul.f32 %v4795, %v4801
      %v4819 = vmul.f32 %v4796, %v4801
      %v4820 = vadd.f32 %v4777, %v4802
      %v4821 = vadd.f32 %v4778, %v4803
      %v4822 = vadd.f32 %v4779, %v4804
      %v4823 = vadd.f32 %v4780, %v4805
      %v4824 = vadd.f32 %v4781, %v4806
      %v4825 = vadd.f32 %v4782, %v4807
      %v4826 = vadd.f32 %v4783, %v4808
      %v4827 = vadd.f32 %v4784, %v4809
      %v4828 = vadd.f32 %v4785, %v4810
      %v4829 = vadd.f32 %v4786, %v4811
      %v4830 = vadd.f32 %v4787, %v4812
      %v4831 = vadd.f32 %v4788, %v4813
      %v4832 = vadd.f32 %v4789, %v4814
      %v4833 = vadd.f32 %v4790, %v4815
      %v4834 = vadd.f32 %v4791, %v4816
      %v4835 = vadd.f32 %v4792, %v4817
      %v4836 = vadd.f32 %v4793, %v4818
      %v4837 = vadd.f32 %v4794, %v4819
      %v4838 = vld [vmem:[#allocation3 + $0xb3] sm:$0xff]
      %v4839 = vld [vmem:[#allocation3 + $0xbb] sm:$0xff]
      %v4840 = vld [vmem:[#allocation2 + $0x1b] sm:$0x1]
      %v4841 = vlaneseq
      %v4842 = vshrl.u32 %v4841, 7
      %v4843 = vsub.s32 0, %v4842
      %v4844 = vrot.slane %v4840, %v4843
      %v4845 = vmul.f32 %v4022, %v4844
      %v4846 = vmul.f32 %v4023, %v4844
      %v4847 = vmul.f32 %v4024, %v4844
      %v4848 = vmul.f32 %v4025, %v4844
      %v4849 = vmul.f32 %v4026, %v4844
      %v4850 = vmul.f32 %v4027, %v4844
      %v4851 = vmul.f32 %v4028, %v4844
      %v4852 = vmul.f32 %v4029, %v4844
      %v4853 = vmul.f32 %v4030, %v4844
      %v4854 = vmul.f32 %v4031, %v4844
      %v4855 = vmul.f32 %v4032, %v4844
      %v4856 = vmul.f32 %v4033, %v4844
      %v4857 = vmul.f32 %v4322, %v4844
      %v4858 = vmul.f32 %v4323, %v4844
      %v4859 = vmul.f32 %v4580, %v4844
      %v4860 = vmul.f32 %v4581, %v4844
      %v4861 = vmul.f32 %v4838, %v4844
      %v4862 = vmul.f32 %v4839, %v4844
      %v4863 = vadd.f32 %v4820, %v4845
      %v4864 = vadd.f32 %v4821, %v4846
      %v4865 = vadd.f32 %v4822, %v4847
      %v4866 = vadd.f32 %v4823, %v4848
      %v4867 = vadd.f32 %v4824, %v4849
      %v4868 = vadd.f32 %v4825, %v4850
      %v4869 = vadd.f32 %v4826, %v4851
      %v4870 = vadd.f32 %v4827, %v4852
      %v4871 = vadd.f32 %v4828, %v4853
      %v4872 = vadd.f32 %v4829, %v4854
      %v4873 = vadd.f32 %v4830, %v4855
      %v4874 = vadd.f32 %v4831, %v4856
      %v4875 = vadd.f32 %v4832, %v4857
      %v4876 = vadd.f32 %v4833, %v4858
      %v4877 = vadd.f32 %v4834, %v4859
      %v4878 = vadd.f32 %v4835, %v4860
      %v4879 = vadd.f32 %v4836, %v4861
      %v4880 = vadd.f32 %v4837, %v4862
      %v4881 = vld [vmem:[#allocation3 + $0xb4] sm:$0xff]
      %v4882 = vld [vmem:[#allocation3 + $0xbc] sm:$0xff]
      %v4883 = vld [vmem:[#allocation2 + $0x1c] sm:$0x1]
      %v4884 = vlaneseq
      %v4885 = vshrl.u32 %v4884, 7
      %v4886 = vsub.s32 0, %v4885
      %v4887 = vrot.slane %v4883, %v4886
      %v4888 = vmul.f32 %v4081, %v4887
      %v4889 = vmul.f32 %v4082, %v4887
      %v4890 = vmul.f32 %v4083, %v4887
      %v4891 = vmul.f32 %v4084, %v4887
      %v4892 = vmul.f32 %v4085, %v4887
      %v4893 = vmul.f32 %v4086, %v4887
      %v4894 = vmul.f32 %v4087, %v4887
      %v4895 = vmul.f32 %v4088, %v4887
      %v4896 = vmul.f32 %v4089, %v4887
      %v4897 = vmul.f32 %v4090, %v4887
      %v4898 = vmul.f32 %v4091, %v4887
      %v4899 = vmul.f32 %v4092, %v4887
      %v4900 = vmul.f32 %v4365, %v4887
      %v4901 = vmul.f32 %v4366, %v4887
      %v4902 = vmul.f32 %v4623, %v4887
      %v4903 = vmul.f32 %v4624, %v4887
      %v4904 = vmul.f32 %v4881, %v4887
      %v4905 = vmul.f32 %v4882, %v4887
      %v4906 = vadd.f32 %v4863, %v4888
      %v4907 = vadd.f32 %v4864, %v4889
      %v4908 = vadd.f32 %v4865, %v4890
      %v4909 = vadd.f32 %v4866, %v4891
      %v4910 = vadd.f32 %v4867, %v4892
      %v4911 = vadd.f32 %v4868, %v4893
      %v4912 = vadd.f32 %v4869, %v4894
      %v4913 = vadd.f32 %v4870, %v4895
      %v4914 = vadd.f32 %v4871, %v4896
      %v4915 = vadd.f32 %v4872, %v4897
      %v4916 = vadd.f32 %v4873, %v4898
      %v4917 = vadd.f32 %v4874, %v4899
      %v4918 = vadd.f32 %v4875, %v4900
      %v4919 = vadd.f32 %v4876, %v4901
      %v4920 = vadd.f32 %v4877, %v4902
      %v4921 = vadd.f32 %v4878, %v4903
      %v4922 = vadd.f32 %v4879, %v4904
      %v4923 = vadd.f32 %v4880, %v4905
      %v4924 = vld [vmem:[#allocation3 + $0xb5] sm:$0xff]
      %v4925 = vld [vmem:[#allocation3 + $0xbd] sm:$0xff]
      %v4926 = vld [vmem:[#allocation2 + $0x1d] sm:$0x1]
      %v4927 = vlaneseq
      %v4928 = vshrl.u32 %v4927, 7
      %v4929 = vsub.s32 0, %v4928
      %v4930 = vrot.slane %v4926, %v4929
      %v4931 = vmul.f32 %v4140, %v4930
      %v4932 = vmul.f32 %v4141, %v4930
      %v4933 = vmul.f32 %v4142, %v4930
      %v4934 = vmul.f32 %v4143, %v4930
      %v4935 = vmul.f32 %v4144, %v4930
      %v4936 = vmul.f32 %v4145, %v4930
      %v4937 = vmul.f32 %v4146, %v4930
      %v4938 = vmul.f32 %v4147, %v4930
      %v4939 = vmul.f32 %v4148, %v4930
      %v4940 = vmul.f32 %v4149, %v4930
      %v4941 = vmul.f32 %v4150, %v4930
      %v4942 = vmul.f32 %v4151, %v4930
      %v4943 = vmul.f32 %v4408, %v4930
      %v4944 = vmul.f32 %v4409, %v4930
      %v4945 = vmul.f32 %v4666, %v4930
      %v4946 = vmul.f32 %v4667, %v4930
      %v4947 = vmul.f32 %v4924, %v4930
      %v4948 = vmul.f32 %v4925, %v4930
      %v4949 = vadd.f32 %v4906, %v4931
      %v4950 = vadd.f32 %v4907, %v4932
      %v4951 = vadd.f32 %v4908, %v4933
      %v4952 = vadd.f32 %v4909, %v4934
      %v4953 = vadd.f32 %v4910, %v4935
      %v4954 = vadd.f32 %v4911, %v4936
      %v4955 = vadd.f32 %v4912, %v4937
      %v4956 = vadd.f32 %v4913, %v4938
      %v4957 = vadd.f32 %v4914, %v4939
      %v4958 = vadd.f32 %v4915, %v4940
      %v4959 = vadd.f32 %v4916, %v4941
      %v4960 = vadd.f32 %v4917, %v4942
      %v4961 = vadd.f32 %v4918, %v4943
      %v4962 = vadd.f32 %v4919, %v4944
      %v4963 = vadd.f32 %v4920, %v4945
      %v4964 = vadd.f32 %v4921, %v4946
      %v4965 = vadd.f32 %v4922, %v4947
      %v4966 = vadd.f32 %v4923, %v4948
      %v4967 = vld [vmem:[#allocation3 + $0xc0] sm:$0xff]
      %v4968 = vld [vmem:[#allocation3 + $0xc8] sm:$0xff]
      %v4969 = vld [vmem:[#allocation2 + $0x20] sm:$0x1]
      %v4970 = vlaneseq
      %v4971 = vshrl.u32 %v4970, 7
      %v4972 = vsub.s32 0, %v4971
      %v4973 = vrot.slane %v4969, %v4972
      %v4974 = vmul.f32 %v3847, %v4973
      %v4975 = vmul.f32 %v3848, %v4973
      %v4976 = vmul.f32 %v3849, %v4973
      %v4977 = vmul.f32 %v3850, %v4973
      %v4978 = vmul.f32 %v3851, %v4973
      %v4979 = vmul.f32 %v3852, %v4973
      %v4980 = vmul.f32 %v3853, %v4973
      %v4981 = vmul.f32 %v3854, %v4973
      %v4982 = vmul.f32 %v3855, %v4973
      %v4983 = vmul.f32 %v3856, %v4973
      %v4984 = vmul.f32 %v4193, %v4973
      %v4985 = vmul.f32 %v4194, %v4973
      %v4986 = vmul.f32 %v4451, %v4973
      %v4987 = vmul.f32 %v4452, %v4973
      %v4988 = vmul.f32 %v4709, %v4973
      %v4989 = vmul.f32 %v4710, %v4973
      %v4990 = vmul.f32 %v4967, %v4973
      %v4991 = vmul.f32 %v4968, %v4973
      %v4992 = vadd.f32 %v4949, %v4974
      %v4993 = vadd.f32 %v4950, %v4975
      %v4994 = vadd.f32 %v4951, %v4976
      %v4995 = vadd.f32 %v4952, %v4977
      %v4996 = vadd.f32 %v4953, %v4978
      %v4997 = vadd.f32 %v4954, %v4979
      %v4998 = vadd.f32 %v4955, %v4980
      %v4999 = vadd.f32 %v4956, %v4981
      %v5000 = vadd.f32 %v4957, %v4982
      %v5001 = vadd.f32 %v4958, %v4983
      %v5002 = vadd.f32 %v4959, %v4984
      %v5003 = vadd.f32 %v4960, %v4985
      %v5004 = vadd.f32 %v4961, %v4986
      %v5005 = vadd.f32 %v4962, %v4987
      %v5006 = vadd.f32 %v4963, %v4988
      %v5007 = vadd.f32 %v4964, %v4989
      %v5008 = vadd.f32 %v4965, %v4990
      %v5009 = vadd.f32 %v4966, %v4991
      %v5010 = vld [vmem:[#allocation3 + $0xc1] sm:$0xff]
      %v5011 = vld [vmem:[#allocation3 + $0xc9] sm:$0xff]
      %v5012 = vld [vmem:[#allocation2 + $0x21] sm:$0x1]
      %v5013 = vlaneseq
      %v5014 = vshrl.u32 %v5013, 7
      %v5015 = vsub.s32 0, %v5014
      %v5016 = vrot.slane %v5012, %v5015
      %v5017 = vmul.f32 %v3906, %v5016
      %v5018 = vmul.f32 %v3907, %v5016
      %v5019 = vmul.f32 %v3908, %v5016
      %v5020 = vmul.f32 %v3909, %v5016
      %v5021 = vmul.f32 %v3910, %v5016
      %v5022 = vmul.f32 %v3911, %v5016
      %v5023 = vmul.f32 %v3912, %v5016
      %v5024 = vmul.f32 %v3913, %v5016
      %v5025 = vmul.f32 %v3914, %v5016
      %v5026 = vmul.f32 %v3915, %v5016
      %v5027 = vmul.f32 %v4236, %v5016
      %v5028 = vmul.f32 %v4237, %v5016
      %v5029 = vmul.f32 %v4494, %v5016
      %v5030 = vmul.f32 %v4495, %v5016
      %v5031 = vmul.f32 %v4752, %v5016
      %v5032 = vmul.f32 %v4753, %v5016
      %v5033 = vmul.f32 %v5010, %v5016
      %v5034 = vmul.f32 %v5011, %v5016
      %v5035 = vadd.f32 %v4992, %v5017
      %v5036 = vadd.f32 %v4993, %v5018
      %v5037 = vadd.f32 %v4994, %v5019
      %v5038 = vadd.f32 %v4995, %v5020
      %v5039 = vadd.f32 %v4996, %v5021
      %v5040 = vadd.f32 %v4997, %v5022
      %v5041 = vadd.f32 %v4998, %v5023
      %v5042 = vadd.f32 %v4999, %v5024
      %v5043 = vadd.f32 %v5000, %v5025
      %v5044 = vadd.f32 %v5001, %v5026
      %v5045 = vadd.f32 %v5002, %v5027
      %v5046 = vadd.f32 %v5003, %v5028
      %v5047 = vadd.f32 %v5004, %v5029
      %v5048 = vadd.f32 %v5005, %v5030
      %v5049 = vadd.f32 %v5006, %v5031
      %v5050 = vadd.f32 %v5007, %v5032
      %v5051 = vadd.f32 %v5008, %v5033
      %v5052 = vadd.f32 %v5009, %v5034
      %v5053 = vld [vmem:[#allocation3 + $0xc2] sm:$0xff]
      %v5054 = vld [vmem:[#allocation3 + $0xca] sm:$0xff]
      %v5055 = vld [vmem:[#allocation2 + $0x22] sm:$0x1]
      %v5056 = vlaneseq
      %v5057 = vshrl.u32 %v5056, 7
      %v5058 = vsub.s32 0, %v5057
      %v5059 = vrot.slane %v5055, %v5058
      %v5060 = vmul.f32 %v3965, %v5059
      %v5061 = vmul.f32 %v3966, %v5059
      %v5062 = vmul.f32 %v3967, %v5059
      %v5063 = vmul.f32 %v3968, %v5059
      %v5064 = vmul.f32 %v3969, %v5059
      %v5065 = vmul.f32 %v3970, %v5059
      %v5066 = vmul.f32 %v3971, %v5059
      %v5067 = vmul.f32 %v3972, %v5059
      %v5068 = vmul.f32 %v3973, %v5059
      %v5069 = vmul.f32 %v3974, %v5059
      %v5070 = vmul.f32 %v4279, %v5059
      %v5071 = vmul.f32 %v4280, %v5059
      %v5072 = vmul.f32 %v4537, %v5059
      %v5073 = vmul.f32 %v4538, %v5059
      %v5074 = vmul.f32 %v4795, %v5059
      %v5075 = vmul.f32 %v4796, %v5059
      %v5076 = vmul.f32 %v5053, %v5059
      %v5077 = vmul.f32 %v5054, %v5059
      %v5078 = vadd.f32 %v5035, %v5060
      %v5079 = vadd.f32 %v5036, %v5061
      %v5080 = vadd.f32 %v5037, %v5062
      %v5081 = vadd.f32 %v5038, %v5063
      %v5082 = vadd.f32 %v5039, %v5064
      %v5083 = vadd.f32 %v5040, %v5065
      %v5084 = vadd.f32 %v5041, %v5066
      %v5085 = vadd.f32 %v5042, %v5067
      %v5086 = vadd.f32 %v5043, %v5068
      %v5087 = vadd.f32 %v5044, %v5069
      %v5088 = vadd.f32 %v5045, %v5070
      %v5089 = vadd.f32 %v5046, %v5071
      %v5090 = vadd.f32 %v5047, %v5072
      %v5091 = vadd.f32 %v5048, %v5073
      %v5092 = vadd.f32 %v5049, %v5074
      %v5093 = vadd.f32 %v5050, %v5075
      %v5094 = vadd.f32 %v5051, %v5076
      %v5095 = vadd.f32 %v5052, %v5077
      %v5096 = vld [vmem:[#allocation3 + $0xc3] sm:$0xff]
      %v5097 = vld [vmem:[#allocation3 + $0xcb] sm:$0xff]
      %v5098 = vld [vmem:[#allocation2 + $0x23] sm:$0x1]
      %v5099 = vlaneseq
      %v5100 = vshrl.u32 %v5099, 7
      %v5101 = vsub.s32 0, %v5100
      %v5102 = vrot.slane %v5098, %v5101
      %v5103 = vmul.f32 %v4024, %v5102
      %v5104 = vmul.f32 %v4025, %v5102
      %v5105 = vmul.f32 %v4026, %v5102
      %v5106 = vmul.f32 %v4027, %v5102
      %v5107 = vmul.f32 %v4028, %v5102
      %v5108 = vmul.f32 %v4029, %v5102
      %v5109 = vmul.f32 %v4030, %v5102
      %v5110 = vmul.f32 %v4031, %v5102
      %v5111 = vmul.f32 %v4032, %v5102
      %v5112 = vmul.f32 %v4033, %v5102
      %v5113 = vmul.f32 %v4322, %v5102
      %v5114 = vmul.f32 %v4323, %v5102
      %v5115 = vmul.f32 %v4580, %v5102
      %v5116 = vmul.f32 %v4581, %v5102
      %v5117 = vmul.f32 %v4838, %v5102
      %v5118 = vmul.f32 %v4839, %v5102
      %v5119 = vmul.f32 %v5096, %v5102
      %v5120 = vmul.f32 %v5097, %v5102
      %v5121 = vadd.f32 %v5078, %v5103
      %v5122 = vadd.f32 %v5079, %v5104
      %v5123 = vadd.f32 %v5080, %v5105
      %v5124 = vadd.f32 %v5081, %v5106
      %v5125 = vadd.f32 %v5082, %v5107
      %v5126 = vadd.f32 %v5083, %v5108
      %v5127 = vadd.f32 %v5084, %v5109
      %v5128 = vadd.f32 %v5085, %v5110
      %v5129 = vadd.f32 %v5086, %v5111
      %v5130 = vadd.f32 %v5087, %v5112
      %v5131 = vadd.f32 %v5088, %v5113
      %v5132 = vadd.f32 %v5089, %v5114
      %v5133 = vadd.f32 %v5090, %v5115
      %v5134 = vadd.f32 %v5091, %v5116
      %v5135 = vadd.f32 %v5092, %v5117
      %v5136 = vadd.f32 %v5093, %v5118
      %v5137 = vadd.f32 %v5094, %v5119
      %v5138 = vadd.f32 %v5095, %v5120
      %v5139 = vld [vmem:[#allocation3 + $0xc4] sm:$0xff]
      %v5140 = vld [vmem:[#allocation3 + $0xcc] sm:$0xff]
      %v5141 = vld [vmem:[#allocation2 + $0x24] sm:$0x1]
      %v5142 = vlaneseq
      %v5143 = vshrl.u32 %v5142, 7
      %v5144 = vsub.s32 0, %v5143
      %v5145 = vrot.slane %v5141, %v5144
      %v5146 = vmul.f32 %v4083, %v5145
      %v5147 = vmul.f32 %v4084, %v5145
      %v5148 = vmul.f32 %v4085, %v5145
      %v5149 = vmul.f32 %v4086, %v5145
      %v5150 = vmul.f32 %v4087, %v5145
      %v5151 = vmul.f32 %v4088, %v5145
      %v5152 = vmul.f32 %v4089, %v5145
      %v5153 = vmul.f32 %v4090, %v5145
      %v5154 = vmul.f32 %v4091, %v5145
      %v5155 = vmul.f32 %v4092, %v5145
      %v5156 = vmul.f32 %v4365, %v5145
      %v5157 = vmul.f32 %v4366, %v5145
      %v5158 = vmul.f32 %v4623, %v5145
      %v5159 = vmul.f32 %v4624, %v5145
      %v5160 = vmul.f32 %v4881, %v5145
      %v5161 = vmul.f32 %v4882, %v5145
      %v5162 = vmul.f32 %v5139, %v5145
      %v5163 = vmul.f32 %v5140, %v5145
      %v5164 = vadd.f32 %v5121, %v5146
      %v5165 = vadd.f32 %v5122, %v5147
      %v5166 = vadd.f32 %v5123, %v5148
      %v5167 = vadd.f32 %v5124, %v5149
      %v5168 = vadd.f32 %v5125, %v5150
      %v5169 = vadd.f32 %v5126, %v5151
      %v5170 = vadd.f32 %v5127, %v5152
      %v5171 = vadd.f32 %v5128, %v5153
      %v5172 = vadd.f32 %v5129, %v5154
      %v5173 = vadd.f32 %v5130, %v5155
      %v5174 = vadd.f32 %v5131, %v5156
      %v5175 = vadd.f32 %v5132, %v5157
      %v5176 = vadd.f32 %v5133, %v5158
      %v5177 = vadd.f32 %v5134, %v5159
      %v5178 = vadd.f32 %v5135, %v5160
      %v5179 = vadd.f32 %v5136, %v5161
      %v5180 = vadd.f32 %v5137, %v5162
      %v5181 = vadd.f32 %v5138, %v5163
      %v5182 = vld [vmem:[#allocation3 + $0xc5] sm:$0xff]
      %v5183 = vld [vmem:[#allocation3 + $0xcd] sm:$0xff]
      %v5184 = vld [vmem:[#allocation2 + $0x25] sm:$0x1]
      %v5185 = vlaneseq
      %v5186 = vshrl.u32 %v5185, 7
      %v5187 = vsub.s32 0, %v5186
      %v5188 = vrot.slane %v5184, %v5187
      %v5189 = vmul.f32 %v4142, %v5188
      %v5190 = vmul.f32 %v4143, %v5188
      %v5191 = vmul.f32 %v4144, %v5188
      %v5192 = vmul.f32 %v4145, %v5188
      %v5193 = vmul.f32 %v4146, %v5188
      %v5194 = vmul.f32 %v4147, %v5188
      %v5195 = vmul.f32 %v4148, %v5188
      %v5196 = vmul.f32 %v4149, %v5188
      %v5197 = vmul.f32 %v4150, %v5188
      %v5198 = vmul.f32 %v4151, %v5188
      %v5199 = vmul.f32 %v4408, %v5188
      %v5200 = vmul.f32 %v4409, %v5188
      %v5201 = vmul.f32 %v4666, %v5188
      %v5202 = vmul.f32 %v4667, %v5188
      %v5203 = vmul.f32 %v4924, %v5188
      %v5204 = vmul.f32 %v4925, %v5188
      %v5205 = vmul.f32 %v5182, %v5188
      %v5206 = vmul.f32 %v5183, %v5188
      %v5207 = vadd.f32 %v5164, %v5189
      %v5208 = vadd.f32 %v5165, %v5190
      %v5209 = vadd.f32 %v5166, %v5191
      %v5210 = vadd.f32 %v5167, %v5192
      %v5211 = vadd.f32 %v5168, %v5193
      %v5212 = vadd.f32 %v5169, %v5194
      %v5213 = vadd.f32 %v5170, %v5195
      %v5214 = vadd.f32 %v5171, %v5196
      %v5215 = vadd.f32 %v5172, %v5197
      %v5216 = vadd.f32 %v5173, %v5198
      %v5217 = vadd.f32 %v5174, %v5199
      %v5218 = vadd.f32 %v5175, %v5200
      %v5219 = vadd.f32 %v5176, %v5201
      %v5220 = vadd.f32 %v5177, %v5202
      %v5221 = vadd.f32 %v5178, %v5203
      %v5222 = vadd.f32 %v5179, %v5204
      %v5223 = vadd.f32 %v5180, %v5205
      %v5224 = vadd.f32 %v5181, %v5206
      %v5225 = vld [vmem:[#allocation3 + $0xd0] sm:$0xff]
      %v5226 = vld [vmem:[#allocation3 + $0xd8] sm:$0xff]
      %v5227 = vld [vmem:[#allocation2 + $0x28] sm:$0x1]
      %v5228 = vlaneseq
      %v5229 = vshrl.u32 %v5228, 7
      %v5230 = vsub.s32 0, %v5229
      %v5231 = vrot.slane %v5227, %v5230
      %v5232 = vmul.f32 %v3849, %v5231
      %v5233 = vmul.f32 %v3850, %v5231
      %v5234 = vmul.f32 %v3851, %v5231
      %v5235 = vmul.f32 %v3852, %v5231
      %v5236 = vmul.f32 %v3853, %v5231
      %v5237 = vmul.f32 %v3854, %v5231
      %v5238 = vmul.f32 %v3855, %v5231
      %v5239 = vmul.f32 %v3856, %v5231
      %v5240 = vmul.f32 %v4193, %v5231
      %v5241 = vmul.f32 %v4194, %v5231
      %v5242 = vmul.f32 %v4451, %v5231
      %v5243 = vmul.f32 %v4452, %v5231
      %v5244 = vmul.f32 %v4709, %v5231
      %v5245 = vmul.f32 %v4710, %v5231
      %v5246 = vmul.f32 %v4967, %v5231
      %v5247 = vmul.f32 %v4968, %v5231
      %v5248 = vmul.f32 %v5225, %v5231
      %v5249 = vmul.f32 %v5226, %v5231
      %v5250 = vadd.f32 %v5207, %v5232
      %v5251 = vadd.f32 %v5208, %v5233
      %v5252 = vadd.f32 %v5209, %v5234
      %v5253 = vadd.f32 %v5210, %v5235
      %v5254 = vadd.f32 %v5211, %v5236
      %v5255 = vadd.f32 %v5212, %v5237
      %v5256 = vadd.f32 %v5213, %v5238
      %v5257 = vadd.f32 %v5214, %v5239
      %v5258 = vadd.f32 %v5215, %v5240
      %v5259 = vadd.f32 %v5216, %v5241
      %v5260 = vadd.f32 %v5217, %v5242
      %v5261 = vadd.f32 %v5218, %v5243
      %v5262 = vadd.f32 %v5219, %v5244
      %v5263 = vadd.f32 %v5220, %v5245
      %v5264 = vadd.f32 %v5221, %v5246
      %v5265 = vadd.f32 %v5222, %v5247
      %v5266 = vadd.f32 %v5223, %v5248
      %v5267 = vadd.f32 %v5224, %v5249
      %v5268 = vld [vmem:[#allocation3 + $0xd1] sm:$0xff]
      %v5269 = vld [vmem:[#allocation3 + $0xd9] sm:$0xff]
      %v5270 = vld [vmem:[#allocation2 + $0x29] sm:$0x1]
      %v5271 = vlaneseq
      %v5272 = vshrl.u32 %v5271, 7
      %v5273 = vsub.s32 0, %v5272
      %v5274 = vrot.slane %v5270, %v5273
      %v5275 = vmul.f32 %v3908, %v5274
      %v5276 = vmul.f32 %v3909, %v5274
      %v5277 = vmul.f32 %v3910, %v5274
      %v5278 = vmul.f32 %v3911, %v5274
      %v5279 = vmul.f32 %v3912, %v5274
      %v5280 = vmul.f32 %v3913, %v5274
      %v5281 = vmul.f32 %v3914, %v5274
      %v5282 = vmul.f32 %v3915, %v5274
      %v5283 = vmul.f32 %v4236, %v5274
      %v5284 = vmul.f32 %v4237, %v5274
      %v5285 = vmul.f32 %v4494, %v5274
      %v5286 = vmul.f32 %v4495, %v5274
      %v5287 = vmul.f32 %v4752, %v5274
      %v5288 = vmul.f32 %v4753, %v5274
      %v5289 = vmul.f32 %v5010, %v5274
      %v5290 = vmul.f32 %v5011, %v5274
      %v5291 = vmul.f32 %v5268, %v5274
      %v5292 = vmul.f32 %v5269, %v5274
      %v5293 = vadd.f32 %v5250, %v5275
      %v5294 = vadd.f32 %v5251, %v5276
      %v5295 = vadd.f32 %v5252, %v5277
      %v5296 = vadd.f32 %v5253, %v5278
      %v5297 = vadd.f32 %v5254, %v5279
      %v5298 = vadd.f32 %v5255, %v5280
      %v5299 = vadd.f32 %v5256, %v5281
      %v5300 = vadd.f32 %v5257, %v5282
      %v5301 = vadd.f32 %v5258, %v5283
      %v5302 = vadd.f32 %v5259, %v5284
      %v5303 = vadd.f32 %v5260, %v5285
      %v5304 = vadd.f32 %v5261, %v5286
      %v5305 = vadd.f32 %v5262, %v5287
      %v5306 = vadd.f32 %v5263, %v5288
      %v5307 = vadd.f32 %v5264, %v5289
      %v5308 = vadd.f32 %v5265, %v5290
      %v5309 = vadd.f32 %v5266, %v5291
      %v5310 = vadd.f32 %v5267, %v5292
      %v5311 = vld [vmem:[#allocation3 + $0xd2] sm:$0xff]
      %v5312 = vld [vmem:[#allocation3 + $0xda] sm:$0xff]
      %v5313 = vld [vmem:[#allocation2 + $0x2a] sm:$0x1]
      %v5314 = vlaneseq
      %v5315 = vshrl.u32 %v5314, 7
      %v5316 = vsub.s32 0, %v5315
      %v5317 = vrot.slane %v5313, %v5316
      %v5318 = vmul.f32 %v3967, %v5317
      %v5319 = vmul.f32 %v3968, %v5317
      %v5320 = vmul.f32 %v3969, %v5317
      %v5321 = vmul.f32 %v3970, %v5317
      %v5322 = vmul.f32 %v3971, %v5317
      %v5323 = vmul.f32 %v3972, %v5317
      %v5324 = vmul.f32 %v3973, %v5317
      %v5325 = vmul.f32 %v3974, %v5317
      %v5326 = vmul.f32 %v4279, %v5317
      %v5327 = vmul.f32 %v4280, %v5317
      %v5328 = vmul.f32 %v4537, %v5317
      %v5329 = vmul.f32 %v4538, %v5317
      %v5330 = vmul.f32 %v4795, %v5317
      %v5331 = vmul.f32 %v4796, %v5317
      %v5332 = vmul.f32 %v5053, %v5317
      %v5333 = vmul.f32 %v5054, %v5317
      %v5334 = vmul.f32 %v5311, %v5317
      %v5335 = vmul.f32 %v5312, %v5317
      %v5336 = vadd.f32 %v5293, %v5318
      %v5337 = vadd.f32 %v5294, %v5319
      %v5338 = vadd.f32 %v5295, %v5320
      %v5339 = vadd.f32 %v5296, %v5321
      %v5340 = vadd.f32 %v5297, %v5322
      %v5341 = vadd.f32 %v5298, %v5323
      %v5342 = vadd.f32 %v5299, %v5324
      %v5343 = vadd.f32 %v5300, %v5325
      %v5344 = vadd.f32 %v5301, %v5326
      %v5345 = vadd.f32 %v5302, %v5327
      %v5346 = vadd.f32 %v5303, %v5328
      %v5347 = vadd.f32 %v5304, %v5329
      %v5348 = vadd.f32 %v5305, %v5330
      %v5349 = vadd.f32 %v5306, %v5331
      %v5350 = vadd.f32 %v5307, %v5332
      %v5351 = vadd.f32 %v5308, %v5333
      %v5352 = vadd.f32 %v5309, %v5334
      %v5353 = vadd.f32 %v5310, %v5335
      %v5354 = vld [vmem:[#allocation3 + $0xd3] sm:$0xff]
      %v5355 = vld [vmem:[#allocation3 + $0xdb] sm:$0xff]
      %v5356 = vld [vmem:[#allocation2 + $0x2b] sm:$0x1]
      %v5357 = vlaneseq
      %v5358 = vshrl.u32 %v5357, 7
      %v5359 = vsub.s32 0, %v5358
      %v5360 = vrot.slane %v5356, %v5359
      %v5361 = vmul.f32 %v4026, %v5360
      %v5362 = vmul.f32 %v4027, %v5360
      %v5363 = vmul.f32 %v4028, %v5360
      %v5364 = vmul.f32 %v4029, %v5360
      %v5365 = vmul.f32 %v4030, %v5360
      %v5366 = vmul.f32 %v4031, %v5360
      %v5367 = vmul.f32 %v4032, %v5360
      %v5368 = vmul.f32 %v4033, %v5360
      %v5369 = vmul.f32 %v4322, %v5360
      %v5370 = vmul.f32 %v4323, %v5360
      %v5371 = vmul.f32 %v4580, %v5360
      %v5372 = vmul.f32 %v4581, %v5360
      %v5373 = vmul.f32 %v4838, %v5360
      %v5374 = vmul.f32 %v4839, %v5360
      %v5375 = vmul.f32 %v5096, %v5360
      %v5376 = vmul.f32 %v5097, %v5360
      %v5377 = vmul.f32 %v5354, %v5360
      %v5378 = vmul.f32 %v5355, %v5360
      %v5379 = vadd.f32 %v5336, %v5361
      %v5380 = vadd.f32 %v5337, %v5362
      %v5381 = vadd.f32 %v5338, %v5363
      %v5382 = vadd.f32 %v5339, %v5364
      %v5383 = vadd.f32 %v5340, %v5365
      %v5384 = vadd.f32 %v5341, %v5366
      %v5385 = vadd.f32 %v5342, %v5367
      %v5386 = vadd.f32 %v5343, %v5368
      %v5387 = vadd.f32 %v5344, %v5369
      %v5388 = vadd.f32 %v5345, %v5370
      %v5389 = vadd.f32 %v5346, %v5371
      %v5390 = vadd.f32 %v5347, %v5372
      %v5391 = vadd.f32 %v5348, %v5373
      %v5392 = vadd.f32 %v5349, %v5374
      %v5393 = vadd.f32 %v5350, %v5375
      %v5394 = vadd.f32 %v5351, %v5376
      %v5395 = vadd.f32 %v5352, %v5377
      %v5396 = vadd.f32 %v5353, %v5378
      %v5397 = vld [vmem:[#allocation3 + $0xd4] sm:$0xff]
      %v5398 = vld [vmem:[#allocation3 + $0xdc] sm:$0xff]
      %v5399 = vld [vmem:[#allocation2 + $0x2c] sm:$0x1]
      %v5400 = vlaneseq
      %v5401 = vshrl.u32 %v5400, 7
      %v5402 = vsub.s32 0, %v5401
      %v5403 = vrot.slane %v5399, %v5402
      %v5404 = vmul.f32 %v4085, %v5403
      %v5405 = vmul.f32 %v4086, %v5403
      %v5406 = vmul.f32 %v4087, %v5403
      %v5407 = vmul.f32 %v4088, %v5403
      %v5408 = vmul.f32 %v4089, %v5403
      %v5409 = vmul.f32 %v4090, %v5403
      %v5410 = vmul.f32 %v4091, %v5403
      %v5411 = vmul.f32 %v4092, %v5403
      %v5412 = vmul.f32 %v4365, %v5403
      %v5413 = vmul.f32 %v4366, %v5403
      %v5414 = vmul.f32 %v4623, %v5403
      %v5415 = vmul.f32 %v4624, %v5403
      %v5416 = vmul.f32 %v4881, %v5403
      %v5417 = vmul.f32 %v4882, %v5403
      %v5418 = vmul.f32 %v5139, %v5403
      %v5419 = vmul.f32 %v5140, %v5403
      %v5420 = vmul.f32 %v5397, %v5403
      %v5421 = vmul.f32 %v5398, %v5403
      %v5422 = vadd.f32 %v5379, %v5404
      %v5423 = vadd.f32 %v5380, %v5405
      %v5424 = vadd.f32 %v5381, %v5406
      %v5425 = vadd.f32 %v5382, %v5407
      %v5426 = vadd.f32 %v5383, %v5408
      %v5427 = vadd.f32 %v5384, %v5409
      %v5428 = vadd.f32 %v5385, %v5410
      %v5429 = vadd.f32 %v5386, %v5411
      %v5430 = vadd.f32 %v5387, %v5412
      %v5431 = vadd.f32 %v5388, %v5413
      %v5432 = vadd.f32 %v5389, %v5414
      %v5433 = vadd.f32 %v5390, %v5415
      %v5434 = vadd.f32 %v5391, %v5416
      %v5435 = vadd.f32 %v5392, %v5417
      %v5436 = vadd.f32 %v5393, %v5418
      %v5437 = vadd.f32 %v5394, %v5419
      %v5438 = vadd.f32 %v5395, %v5420
      %v5439 = vadd.f32 %v5396, %v5421
      %v5440 = vld [vmem:[#allocation3 + $0xd5] sm:$0xff]
      %v5441 = vld [vmem:[#allocation3 + $0xdd] sm:$0xff]
      %v5442 = vld [vmem:[#allocation2 + $0x2d] sm:$0x1]
      %v5443 = vlaneseq
      %v5444 = vshrl.u32 %v5443, 7
      %v5445 = vsub.s32 0, %v5444
      %v5446 = vrot.slane %v5442, %v5445
      %v5447 = vmul.f32 %v4144, %v5446
      %v5448 = vmul.f32 %v4145, %v5446
      %v5449 = vmul.f32 %v4146, %v5446
      %v5450 = vmul.f32 %v4147, %v5446
      %v5451 = vmul.f32 %v4148, %v5446
      %v5452 = vmul.f32 %v4149, %v5446
      %v5453 = vmul.f32 %v4150, %v5446
      %v5454 = vmul.f32 %v4151, %v5446
      %v5455 = vmul.f32 %v4408, %v5446
      %v5456 = vmul.f32 %v4409, %v5446
      %v5457 = vmul.f32 %v4666, %v5446
      %v5458 = vmul.f32 %v4667, %v5446
      %v5459 = vmul.f32 %v4924, %v5446
      %v5460 = vmul.f32 %v4925, %v5446
      %v5461 = vmul.f32 %v5182, %v5446
      %v5462 = vmul.f32 %v5183, %v5446
      %v5463 = vmul.f32 %v5440, %v5446
      %v5464 = vmul.f32 %v5441, %v5446
      %v5465 = vadd.f32 %v5422, %v5447
      %v5466 = vadd.f32 %v5423, %v5448
      %v5467 = vadd.f32 %v5424, %v5449
      %v5468 = vadd.f32 %v5425, %v5450
      %v5469 = vadd.f32 %v5426, %v5451
      %v5470 = vadd.f32 %v5427, %v5452
      %v5471 = vadd.f32 %v5428, %v5453
      %v5472 = vadd.f32 %v5429, %v5454
      %v5473 = vadd.f32 %v5430, %v5455
      %v5474 = vadd.f32 %v5431, %v5456
      %v5475 = vadd.f32 %v5432, %v5457
      %v5476 = vadd.f32 %v5433, %v5458
      %v5477 = vadd.f32 %v5434, %v5459
      %v5478 = vadd.f32 %v5435, %v5460
      %v5479 = vadd.f32 %v5436, %v5461
      %v5480 = vadd.f32 %v5437, %v5462
      %v5481 = vadd.f32 %v5438, %v5463
      %v5482 = vadd.f32 %v5439, %v5464
      %v5483 = vpack.c.bf16 %v5466, %v5465
      %v5484 = vpack.c.bf16 %v5468, %v5467
      %v5485 = vpack.c.bf16 %v5470, %v5469
      %v5486 = vpack.c.bf16 %v5472, %v5471
      %v5487 = vpack.c.bf16 %v5474, %v5473
      %v5488 = vpack.c.bf16 %v5476, %v5475
      %v5489 = vpack.c.bf16 %v5478, %v5477
      %v5490 = vpack.c.bf16 %v5480, %v5479
      %v5491 = vpack.c.bf16 %v5482, %v5481
      %v5492 = vld [vmem:[%s8] sm:$0xf]
      %v5493 = vld [vmem:[%s8 + $0x4] sm:$0xf]
      %v5494 = vld [vmem:[%s8 + $0x8] sm:$0xf]
      %v5495 = vld [vmem:[%s8 + $0xc] sm:$0xf]
      %v5500 = vunpack.c.l.b16 %v5492
      %v5501 = vunpack.c.l.b16 %v5493
      %v5502 = vunpack.c.l.b16 %v5494
      %v5503 = vunpack.c.l.b16 %v5495
      %v5504 = vpack.c.b16 %v5501, %v5500
      %v5505 = vpack.c.b16 %v5503, %v5502
      %v5509 = vsel %vm1257, %v5483, 0
      %v5512 = vsel %vm1257, %v5484, 0
      %v5515 = vsel %vm1257, %v5485, 0
      %v5518 = vsel %vm1257, %v5486, 0
      %v5521 = vsel %vm1257, %v5487, 0
      %v5524 = vsel %vm1257, %v5488, 0
      %v5527 = vsel %vm1257, %v5489, 0
      %v5530 = vsel %vm1257, %v5490, 0
      %v5533 = vsel %vm1257, %v5491, 0
      %5535 = vmatprep.subr.bf16.mxu0 0
      %5536 = vmatpush1.bf16.msra.mxu0 %v5504
      %5537 = vmatprep.subr.bf16.mxu0 0
      %5538 = vmatpush1.bf16.msra.mxu0 %v5505
      %5539 = vmatprep.subr.bf16.mxu0 0
      %5540 = vmatpush1.bf16.msra.mxu0 0
      %5541 = vmatprep.subr.bf16.mxu0 0
      %5542 = vmatpush1.bf16.msra.mxu0 0
      %5543 = vmatprep.subr.bf16.mxu0 0
      %5544 = vmatpush1.bf16.msra.mxu0 0
      %5545 = vmatprep.subr.bf16.mxu0 0
      %5546 = vmatpush1.bf16.msra.mxu0 0
      %5547 = vmatprep.subr.bf16.mxu0 0
      %5548 = vmatpush1.bf16.msra.mxu0 0
      %5549 = vmatprep.subr.bf16.mxu0 0
      %5550 = vmatpush1.bf16.msra.mxu0 0
      %5551 = vmatprep.subr.bf16.mxu0 0
      %5552 = vmatpush1.bf16.msra.mxu0 0
      %5553 = vmatprep.subr.bf16.mxu0 0
      %5554 = vmatpush1.bf16.msra.mxu0 0
      %5555 = vmatprep.subr.bf16.mxu0 0
      %5556 = vmatpush1.bf16.msra.mxu0 0
      %5557 = vmatprep.subr.bf16.mxu0 0
      %5558 = vmatpush1.bf16.msra.mxu0 0
      %5559 = vmatprep.subr.bf16.mxu0 0
      %5560 = vmatpush1.bf16.msra.mxu0 0
      %5561 = vmatprep.subr.bf16.mxu0 0
      %5562 = vmatpush1.bf16.msra.mxu0 0
      %5563 = vmatprep.subr.bf16.mxu0 0
      %5564 = vmatpush1.bf16.msra.mxu0 0
      %5565 = vmatprep.subr.bf16.mxu0 0
      %5566 = vmatpush1.bf16.msra.mxu0 0
      %5567 = vmatprep.mubr.bf16.mxu0 0
      %5568 = vmatmul.mubr.bf16.gmra.mrb[0].mxu0 %v5509
      %v5569 = vpop.f32.mrb[0].mxu0
      %v5570 = vadd.f32 0.0, %v5569
      %v5571 = vpop.f32.mrb[0].mxu0
      %v5572 = vpop.f32.mrb[0].mxu0
      %v5573 = vadd.f32 0.0, %v5572
      %v5574 = vpop.f32.mrb[0].mxu0
      %5575 = vmatprep.mubr.bf16.mxu0 0
      %5576 = vmatmul.mubr.bf16.gmra.mrb[0].mxu0 %v5512
      %v5577 = vpop.f32.mrb[0].mxu0
      %v5578 = vadd.f32 0.0, %v5577
      %v5579 = vpop.f32.mrb[0].mxu0
      %v5580 = vpop.f32.mrb[0].mxu0
      %v5581 = vadd.f32 0.0, %v5580
      %v5582 = vpop.f32.mrb[0].mxu0
      %5583 = vmatprep.mubr.bf16.mxu0 0
      %5584 = vmatmul.mubr.bf16.gmra.mrb[0].mxu0 %v5515
      %v5585 = vpop.f32.mrb[0].mxu0
      %v5586 = vadd.f32 0.0, %v5585
      %v5587 = vpop.f32.mrb[0].mxu0
      %v5588 = vpop.f32.mrb[0].mxu0
      %v5589 = vadd.f32 0.0, %v5588
      %v5590 = vpop.f32.mrb[0].mxu0
      %5591 = vmatprep.mubr.bf16.mxu0 0
      %5592 = vmatmul.mubr.bf16.gmra.mrb[0].mxu0 %v5518
      %v5593 = vpop.f32.mrb[0].mxu0
      %v5594 = vadd.f32 0.0, %v5593
      %v5595 = vpop.f32.mrb[0].mxu0
      %v5596 = vpop.f32.mrb[0].mxu0
      %v5597 = vadd.f32 0.0, %v5596
      %v5598 = vpop.f32.mrb[0].mxu0
      %5599 = vmatprep.mubr.bf16.mxu0 0
      %5600 = vmatmul.mubr.bf16.gmra.mrb[0].mxu0 %v5521
      %v5601 = vpop.f32.mrb[0].mxu0
      %v5602 = vadd.f32 0.0, %v5601
      %v5603 = vpop.f32.mrb[0].mxu0
      %v5604 = vpop.f32.mrb[0].mxu0
      %v5605 = vadd.f32 0.0, %v5604
      %v5606 = vpop.f32.mrb[0].mxu0
      %5607 = vmatprep.mubr.bf16.mxu0 0
      %5608 = vmatmul.mubr.bf16.gmra.mrb[0].mxu0 %v5524
      %v5609 = vpop.f32.mrb[0].mxu0
      %v5610 = vadd.f32 0.0, %v5609
      %v5611 = vpop.f32.mrb[0].mxu0
      %v5612 = vpop.f32.mrb[0].mxu0
      %v5613 = vadd.f32 0.0, %v5612
      %v5614 = vpop.f32.mrb[0].mxu0
      %5615 = vmatprep.mubr.bf16.mxu0 0
      %5616 = vmatmul.mubr.bf16.gmra.mrb[0].mxu0 %v5527
      %v5617 = vpop.f32.mrb[0].mxu0
      %v5618 = vadd.f32 0.0, %v5617
      %v5619 = vpop.f32.mrb[0].mxu0
      %v5620 = vpop.f32.mrb[0].mxu0
      %v5621 = vadd.f32 0.0, %v5620
      %v5622 = vpop.f32.mrb[0].mxu0
      %5623 = vmatprep.mubr.bf16.mxu0 0
      %5624 = vmatmul.mubr.bf16.gmra.mrb[0].mxu0 %v5530
      %v5625 = vpop.f32.mrb[0].mxu0
      %v5626 = vadd.f32 0.0, %v5625
      %v5627 = vpop.f32.mrb[0].mxu0
      %v5628 = vpop.f32.mrb[0].mxu0
      %v5629 = vadd.f32 0.0, %v5628
      %v5630 = vpop.f32.mrb[0].mxu0
      %5631 = vmatprep.mubr.bf16.mxu0 0
      %5632 = vmatmul.mubr.bf16.gmra.mrb[0].mxu0 %v5533
      %v5633 = vpop.f32.mrb[0].mxu0
      %v5634 = vadd.f32 0.0, %v5633
      %v5635 = vpop.f32.mrb[0].mxu0
      %v5636 = vpop.f32.mrb[0].mxu0
      %v5637 = vadd.f32 0.0, %v5636
      %v5638 = vpop.f32.mrb[0].mxu0
      %5639 = vdwg.mxu0
      %v5640 = vld [vmem:[%s9] sm:$0x1]
      %v5642 = vlaneseq
      %v5643 = vshrl.u32 %v5642, 7
      %v5644 = vsub.s32 0, %v5643
      %v5645 = vrot.slane %v5640, %v5644
      %v5647 = vmul.f32 %v5570, %v5645
      %v5648 = vmul.f32 %v5573, %v5645
      %v5649 = vmul.f32 %v5578, %v5645
      %v5650 = vmul.f32 %v5581, %v5645
      %v5651 = vmul.f32 %v5586, %v5645
      %v5652 = vmul.f32 %v5589, %v5645
      %v5653 = vmul.f32 %v5594, %v5645
      %v5654 = vmul.f32 %v5597, %v5645
      %v5655 = vmul.f32 %v5602, %v5645
      %v5656 = vmul.f32 %v5605, %v5645
      %v5657 = vmul.f32 %v5610, %v5645
      %v5658 = vmul.f32 %v5613, %v5645
      %v5659 = vmul.f32 %v5618, %v5645
      %v5660 = vmul.f32 %v5621, %v5645
      %v5661 = vmul.f32 %v5626, %v5645
      %v5662 = vmul.f32 %v5629, %v5645
      %v5663 = vmul.f32 %v5634, %v5645
      %v5664 = vmul.f32 %v5637, %v5645
      %v5665 = vld [vmem:[%s10] sm:$0x1]
      %v5667 = vlaneseq
      %v5668 = vshrl.u32 %v5667, 7
      %v5669 = vsub.s32 0, %v5668
      %v5670 = vrot.slane %v5665, %v5669
      %v5672 = vadd.f32 %v5647, %v5670
      %v5673 = vadd.f32 %v5648, %v5670
      %v5674 = vadd.f32 %v5649, %v5670
      %v5675 = vadd.f32 %v5650, %v5670
      %v5676 = vadd.f32 %v5651, %v5670
      %v5677 = vadd.f32 %v5652, %v5670
      %v5678 = vadd.f32 %v5653, %v5670
      %v5679 = vadd.f32 %v5654, %v5670
      %v5680 = vadd.f32 %v5655, %v5670
      %v5681 = vadd.f32 %v5656, %v5670
      %v5682 = vadd.f32 %v5657, %v5670
      %v5683 = vadd.f32 %v5658, %v5670
      %v5684 = vadd.f32 %v5659, %v5670
      %v5685 = vadd.f32 %v5660, %v5670
      %v5686 = vadd.f32 %v5661, %v5670
      %v5687 = vadd.f32 %v5662, %v5670
      %v5688 = vadd.f32 %v5663, %v5670
      %v5689 = vadd.f32 %v5664, %v5670
      %v5690 = vmax.f32 %v5672, 0.0
      %v5691 = vmax.f32 %v5673, 0.0
      %v5692 = vmax.f32 %v5674, 0.0
      %v5693 = vmax.f32 %v5675, 0.0
      %v5694 = vmax.f32 %v5676, 0.0
      %v5695 = vmax.f32 %v5677, 0.0
      %v5696 = vmax.f32 %v5678, 0.0
      %v5697 = vmax.f32 %v5679, 0.0
      %v5698 = vmax.f32 %v5680, 0.0
      %v5699 = vmax.f32 %v5681, 0.0
      %v5700 = vmax.f32 %v5682, 0.0
      %v5701 = vmax.f32 %v5683, 0.0
      %v5702 = vmax.f32 %v5684, 0.0
      %v5703 = vmax.f32 %v5685, 0.0
      %v5704 = vmax.f32 %v5686, 0.0
      %v5705 = vmax.f32 %v5687, 0.0
      %v5706 = vmax.f32 %v5688, 0.0
      %v5707 = vmax.f32 %v5689, 0.0
      %v5708 = vpack.c.bf16 %v5691, %v5690
      %v5709 = vpack.c.bf16 %v5693, %v5692
      %v5710 = vpack.c.bf16 %v5695, %v5694
      %v5711 = vpack.c.bf16 %v5697, %v5696
      %v5712 = vpack.c.bf16 %v5699, %v5698
      %v5713 = vpack.c.bf16 %v5701, %v5700
      %v5714 = vpack.c.bf16 %v5703, %v5702
      %v5715 = vpack.c.bf16 %v5705, %v5704
      %v5716 = vpack.c.bf16 %v5707, %v5706
      %v5717 = vld [vmem:[%s11] sm:$0xf]
      %v5718 = vld [vmem:[%s11 + $0x4] sm:$0xf]
      %v5719 = vld [vmem:[%s11 + $0x8] sm:$0xf]
      %v5720 = vld [vmem:[%s11 + $0xc] sm:$0xf]
      %v5721 = vld [vmem:[%s12] sm:$0x1]
      %v5723 = vlaneseq
      %v5724 = vshrl.u32 %v5723, 7
      %v5725 = vsub.s32 0, %v5724
      %v5726 = vrot.slane %v5721, %v5725
      %v5732 = vunpack.c.l.b16 %v5717
      %v5733 = vunpack.c.l.b16 %v5718
      %v5734 = vunpack.c.l.b16 %v5719
      %v5735 = vunpack.c.l.b16 %v5720
      %v5736 = vpack.c.b16 %v5733, %v5732
      %v5737 = vpack.c.b16 %v5735, %v5734
      %v5741 = vsel %vm1257, %v5708, 0
      %v5744 = vsel %vm1257, %v5709, 0
      %v5747 = vsel %vm1257, %v5710, 0
      %v5750 = vsel %vm1257, %v5711, 0
      %v5753 = vsel %vm1257, %v5712, 0
      %v5756 = vsel %vm1257, %v5713, 0
      %v5759 = vsel %vm1257, %v5714, 0
      %v5762 = vsel %vm1257, %v5715, 0
      %v5765 = vsel %vm1257, %v5716, 0
      %5767 = vmatprep.subr.bf16.mxu0 0
      %5768 = vmatpush1.bf16.msra.mxu0 %v5736
      %5769 = vmatprep.subr.bf16.mxu0 0
      %5770 = vmatpush1.bf16.msra.mxu0 %v5737
      %5771 = vmatprep.subr.bf16.mxu0 0
      %5772 = vmatpush1.bf16.msra.mxu0 0
      %5773 = vmatprep.subr.bf16.mxu0 0
      %5774 = vmatpush1.bf16.msra.mxu0 0
      %5775 = vmatprep.subr.bf16.mxu0 0
      %5776 = vmatpush1.bf16.msra.mxu0 0
      %5777 = vmatprep.subr.bf16.mxu0 0
      %5778 = vmatpush1.bf16.msra.mxu0 0
      %5779 = vmatprep.subr.bf16.mxu0 0
      %5780 = vmatpush1.bf16.msra.mxu0 0
      %5781 = vmatprep.subr.bf16.mxu0 0
      %5782 = vmatpush1.bf16.msra.mxu0 0
      %5783 = vmatprep.subr.bf16.mxu0 0
      %5784 = vmatpush1.bf16.msra.mxu0 0
      %5785 = vmatprep.subr.bf16.mxu0 0
      %5786 = vmatpush1.bf16.msra.mxu0 0
      %5787 = vmatprep.subr.bf16.mxu0 0
      %5788 = vmatpush1.bf16.msra.mxu0 0
      %5789 = vmatprep.subr.bf16.mxu0 0
      %5790 = vmatpush1.bf16.msra.mxu0 0
      %5791 = vmatprep.subr.bf16.mxu0 0
      %5792 = vmatpush1.bf16.msra.mxu0 0
      %5793 = vmatprep.subr.bf16.mxu0 0
      %5794 = vmatpush1.bf16.msra.mxu0 0
      %5795 = vmatprep.subr.bf16.mxu0 0
      %5796 = vmatpush1.bf16.msra.mxu0 0
      %5797 = vmatprep.subr.bf16.mxu0 0
      %5798 = vmatpush1.bf16.msra.mxu0 0
      %5799 = vmatprep.mubr.bf16.mxu0 0
      %5800 = vmatmul.mubr.bf16.gmra.mrb[0].mxu0 %v5741
      %v5801 = vpop.f32.mrb[0].mxu0
      %v5802 = vadd.f32 %v5726, %v5801
      %v5803 = vpop.f32.mrb[0].mxu0
      %v5804 = vpop.f32.mrb[0].mxu0
      %v5805 = vadd.f32 %v5726, %v5804
      %v5806 = vpop.f32.mrb[0].mxu0
      %5807 = vmatprep.mubr.bf16.mxu0 0
      %5808 = vmatmul.mubr.bf16.gmra.mrb[0].mxu0 %v5744
      %v5809 = vpop.f32.mrb[0].mxu0
      %v5810 = vadd.f32 %v5726, %v5809
      %v5811 = vpop.f32.mrb[0].mxu0
      %v5812 = vpop.f32.mrb[0].mxu0
      %v5813 = vadd.f32 %v5726, %v5812
      %v5814 = vpop.f32.mrb[0].mxu0
      %5815 = vmatprep.mubr.bf16.mxu0 0
      %5816 = vmatmul.mubr.bf16.gmra.mrb[0].mxu0 %v5747
      %v5817 = vpop.f32.mrb[0].mxu0
      %v5818 = vadd.f32 %v5726, %v5817
      %v5819 = vpop.f32.mrb[0].mxu0
      %v5820 = vpop.f32.mrb[0].mxu0
      %v5821 = vadd.f32 %v5726, %v5820
      %v5822 = vpop.f32.mrb[0].mxu0
      %5823 = vmatprep.mubr.bf16.mxu0 0
      %5824 = vmatmul.mubr.bf16.gmra.mrb[0].mxu0 %v5750
      %v5825 = vpop.f32.mrb[0].mxu0
      %v5826 = vadd.f32 %v5726, %v5825
      %v5827 = vpop.f32.mrb[0].mxu0
      %v5828 = vpop.f32.mrb[0].mxu0
      %v5829 = vadd.f32 %v5726, %v5828
      %v5830 = vpop.f32.mrb[0].mxu0
      %5831 = vmatprep.mubr.bf16.mxu0 0
      %5832 = vmatmul.mubr.bf16.gmra.mrb[0].mxu0 %v5753
      %v5833 = vpop.f32.mrb[0].mxu0
      %v5834 = vadd.f32 %v5726, %v5833
      %v5835 = vpop.f32.mrb[0].mxu0
      %v5836 = vpop.f32.mrb[0].mxu0
      %v5837 = vadd.f32 %v5726, %v5836
      %v5838 = vpop.f32.mrb[0].mxu0
      %5839 = vmatprep.mubr.bf16.mxu0 0
      %5840 = vmatmul.mubr.bf16.gmra.mrb[0].mxu0 %v5756
      %v5841 = vpop.f32.mrb[0].mxu0
      %v5842 = vadd.f32 %v5726, %v5841
      %v5843 = vpop.f32.mrb[0].mxu0
      %v5844 = vpop.f32.mrb[0].mxu0
      %v5845 = vadd.f32 %v5726, %v5844
      %v5846 = vpop.f32.mrb[0].mxu0
      %5847 = vmatprep.mubr.bf16.mxu0 0
      %5848 = vmatmul.mubr.bf16.gmra.mrb[0].mxu0 %v5759
      %v5849 = vpop.f32.mrb[0].mxu0
      %v5850 = vadd.f32 %v5726, %v5849
      %v5851 = vpop.f32.mrb[0].mxu0
      %v5852 = vpop.f32.mrb[0].mxu0
      %v5853 = vadd.f32 %v5726, %v5852
      %v5854 = vpop.f32.mrb[0].mxu0
      %5855 = vmatprep.mubr.bf16.mxu0 0
      %5856 = vmatmul.mubr.bf16.gmra.mrb[0].mxu0 %v5762
      %v5857 = vpop.f32.mrb[0].mxu0
      %v5858 = vadd.f32 %v5726, %v5857
      %v5859 = vpop.f32.mrb[0].mxu0
      %v5860 = vpop.f32.mrb[0].mxu0
      %v5861 = vadd.f32 %v5726, %v5860
      %v5862 = vpop.f32.mrb[0].mxu0
      %5863 = vmatprep.mubr.bf16.mxu0 0
      %5864 = vmatmul.mubr.bf16.gmra.mrb[0].mxu0 %v5765
      %v5865 = vpop.f32.mrb[0].mxu0
      %v5866 = vadd.f32 %v5726, %v5865
      %v5867 = vpop.f32.mrb[0].mxu0
      %v5868 = vpop.f32.mrb[0].mxu0
      %v5869 = vadd.f32 %v5726, %v5868
      %v5870 = vpop.f32.mrb[0].mxu0
      %5871 = vdwg.mxu0
      %5872 = vst [vmem:[%s460] sm:$0xff] %v5802
      %5873 = vst [vmem:[%s460 + $0x8] sm:$0xff] %v5805
      %5874 = vst [vmem:[%s460 + $0x10] sm:$0xff] %v5810
      %5875 = vst [vmem:[%s460 + $0x18] sm:$0xff] %v5813
      %5876 = vst [vmem:[%s460 + $0x20] sm:$0xff] %v5818
      %5877 = vst [vmem:[%s460 + $0x28] sm:$0xff] %v5821
      %5878 = vst [vmem:[%s460 + $0x30] sm:$0xff] %v5826
      %5879 = vst [vmem:[%s460 + $0x38] sm:$0xff] %v5829
      %5880 = vst [vmem:[%s460 + $0x40] sm:$0xff] %v5834
      %5881 = vst [vmem:[%s460 + $0x48] sm:$0xff] %v5837
      %5882 = vst [vmem:[%s460 + $0x50] sm:$0xff] %v5842
      %5883 = vst [vmem:[%s460 + $0x58] sm:$0xff] %v5845
      %5884 = vst [vmem:[%s460 + $0x60] sm:$0xff] %v5850
      %5885 = vst [vmem:[%s460 + $0x68] sm:$0xff] %v5853
      %5886 = vst [vmem:[%s460 + $0x70] sm:$0xff] %v5858
      %5887 = vst [vmem:[%s460 + $0x78] sm:$0xff] %v5861
      %5888 = vst [vmem:[%s460 + $0x80] sm:$0xff] %v5866
      %5889 = vst [vmem:[%s460 + $0x88] sm:$0xff] %v5869
      %p5890 = scmp.lt.s32.totalorder %s24, 1
      %s5891 = scalar_select %p5890, %s24, 1
      %s5892 = smul.addr %s5891, 18
      %s5893 = smul.addr %s5892, 8
      %s5894 = scalar_lea.vmem %s13, %s5893
      // Predicated region
      $region73: #{depthwise_xcorr_forward.1} parent=71 // pred_check
        %p5895 = pneg %p325
      $region74: #{depthwise_xcorr_forward.1} parent=71 // pred_check_branch
        %5897 = sbr.rel (%p5895) target = $region76
      $region75: #{depthwise_xcorr_forward.1} parent=71 // pred_region
        _
      $region76: #{depthwise_xcorr_forward.1} parent=71 // pred_fallthru
        _
    $region72: #{depthwise_xcorr_forward.1} parent=5 // pred_fallthru
      _
    %p5898 = scmp.le.s32.totalorder 2, %s19
    // Predicated region
    $region77: #{depthwise_xcorr_forward.1} parent=5 // pred_check
      %p5899 = pneg %p5898
    $region78: #{depthwise_xcorr_forward.1} parent=5 // pred_check_branch
      %5901 = sbr.rel (%p5899) target = $region80
    $region79: #{depthwise_xcorr_forward.1} parent=5 // pred_region
      %s5902 = ssub.s32 %s19, 2
      // Predicated region
      $region81: #{depthwise_xcorr_forward.1} parent=79 // pred_check
        %p5903 = pneg %p331
      $region82: #{depthwise_xcorr_forward.1} parent=79 // pred_check_branch
        %5905 = sbr.rel (%p5903) target = $region84
      $region83: #{depthwise_xcorr_forward.1} parent=79 // pred_region
        %p5906 = scmp.lt.s32.totalorder %s25, 1
        %s5907 = scalar_select %p5906, %s25, 1
        %s5908 = smul.addr %s5907, 18
        %s5909 = smul.addr %s5908, 8
        %s5910 = scalar_lea.vmem %s13, %s5909
      $region84: #{depthwise_xcorr_forward.1} parent=79 // pred_fallthru
        _
    $region80: #{depthwise_xcorr_forward.1} parent=5 // pred_fallthru
      _
  $region6: #{depthwise_xcorr_forward.1} parent=0 // loop_footer
    %s23 = sadd.s32 1, %s19
  $region7: #{depthwise_xcorr_forward.1} parent=0 // loop_footer_branch
    %18 = sbr.rel target = $region3
  $region8: #{depthwise_xcorr_forward.1} parent=0 // loop_exit
    _

</llo_original>
